<compile_context>
chip_gen: v6e
topology: v6e:2x2x1
jax: 0.10.0
libtpu: 0.0.40
codegen_flags: <defaults>
</compile_context>

<pallas_src>
import jax
import jax.numpy as jnp
from jax.experimental import pallas as pl
from jax.experimental.pallas import tpu as pltpu


# ----------------------------------------------------------------------------
# Fused kernel: conv1/conv2 -> pool+leaky -> conv4 -> pool+leaky -> GRU (x2)
#               -> ntrk MLP -> weighted batch stats -> dense -> dense2
# ----------------------------------------------------------------------------
def _fused_kernel(patches_ref, bw_ref, ntrk_ref,
                  w1s_ref, b1s_ref, w4_ref, b4_ref,
                  wi_ref, wh_ref, bi_ref, bhn_ref,
                  n0w_ref, n0b_ref, n1w_ref, n1b_ref,
                  wmv_ref, whid_ref, db_ref, d2w_ref, d2b_ref,
                  out_ref, act1_ref):
    f32 = jnp.float32
    BP = out_ref.shape[0]                  # padded batch (multiple of 8)
    C = w4_ref.shape[1]                    # conv channels (32)
    K4 = w4_ref.shape[0]                   # conv4 kernel size (16)
    H = bhn_ref.shape[-1]                  # GRU hidden (48)
    G = wi_ref.shape[-1] // 3              # per-gate lane stride (128, aligned)
    rows = act1_ref.shape[0]               # Lp1 * BP
    Lp1 = rows // BP                       # length after conv1 + pool
    T = (Lp1 - K4 + 1) // 2                # GRU timesteps after conv4 + pool
    PB = 2 * T * BP                        # conv4 rows actually consumed

    def leaky(v):
        return jnp.where(v >= 0.0, v, 0.01 * v)

    def dot(a, b):
        return jnp.dot(a, b, preferred_element_type=f32)

    r_final = []
    for br in range(2):                    # two jet branches, statically unrolled
        # ---- conv1/conv2: one dot per pool parity; maxpool(2,2)+leaky fused
        #      (bias commutes with max, leaky is monotone -> exact) -----------
        w1 = w1s_ref[br]                   # (K1*cin, C)
        b1 = b1s_ref[br]                   # (1, C)
        y_even = dot(patches_ref[br, 0], w1)
        y_odd = dot(patches_ref[br, 1], w1)
        act1_ref[...] = leaky(jnp.maximum(y_even, y_odd) + b1)   # rows: l*BP + b

        # ---- conv4 as K4 shifted dots; accumulator stays in vregs -----------
        acc = jnp.zeros((PB, C), f32)
        for k in range(K4):                # static, unrolled
            acc = acc + dot(act1_ref[pl.ds(k * BP, PB), :], w4_ref[k])
        y4 = acc + b4_ref[...]             # rows: p*BP + b, p in [0, 2T)

        # ---- maxpool(2,2) + leaky -> GRU inputs, vreg-resident --------------
        xs = jnp.concatenate(
            [leaky(jnp.maximum(y4[(2 * t) * BP:(2 * t + 1) * BP, :],
                               y4[(2 * t + 1) * BP:(2 * t + 2) * BP, :]))
             for t in range(T)], axis=0)   # (T*BP, C), rows: t*BP + b

        # ---- GRU with fused gates (PyTorch order r, z, n), gates padded to
        #      128 lanes so every slice is vreg-aligned ------------------------
        wi = wi_ref[br]                    # (C, 3G)
        wh = wh_ref[br]                    # (H, 3G)
        bi = bi_ref[br]                    # (1, 3G)  [b_ir+b_hr | b_iz+b_hz | b_in]
        bhn = bhn_ref[br]                  # (1, H)
        gi = dot(xs, wi) + bi              # all timestep input projections at once

        h = jnp.zeros((BP, H), f32)
        for t in range(T):                 # tiny static recurrence
            gh = dot(h, wh)                # ONE (BP,H)x(H,3G) dot per step
            git = gi[t * BP:(t + 1) * BP, :]
            r = jax.nn.sigmoid(git[:, 0:H] + gh[:, 0:H])
            z = jax.nn.sigmoid(git[:, G:G + H] + gh[:, G:G + H])
            n = jnp.tanh(git[:, 2 * G:2 * G + H]
                         + r * (gh[:, 2 * G:2 * G + H] + bhn))
            h = (1.0 - z) * n + z * h
        r_final.append(h)                  # (BP, H)

    # ---- head: ntrk MLP, weighted batch stats, dense, dense2 ----------------
    nt = (ntrk_ref[...] - 50.0) / 100.0
    h0 = jnp.maximum(dot(nt, n0w_ref[...]) + n0b_ref[...], 0.0)
    nt_h = jnp.maximum(dot(h0, n1w_ref[...]) + n1b_ref[...], 0.0)       # (BP, 2)

    hidden = jnp.concatenate([r_final[0], r_final[1], nt_h], axis=1)    # (BP, 98)
    w = bw_ref[...]                                                     # (BP, 1), pad rows 0
    m = jnp.sum(w * hidden, axis=0, keepdims=True)                      # weighted mean rows
    msq = jnp.sum(w * hidden * hidden, axis=0, keepdims=True)
    v = msq - m * m                                                     # reference's "std" (no sqrt)
    mv = jnp.concatenate([m, v], axis=1)                                # (1, 196)

    pre = dot(hidden, whid_ref[...]) + dot(mv, wmv_ref[...]) + db_ref[...]
    out_ref[...] = dot(jnp.maximum(pre, 0.0), d2w_ref[...]) + d2b_ref[...]


# ----------------------------------------------------------------------------
# pallas_call wrapper
# ----------------------------------------------------------------------------
def _run_fused(patches, bw_col, ntrk, pp):
    _, _, rows, kc = patches.shape
    BP = bw_col.shape[0]
    K4, C, _ = pp["w4"].shape
    H = pp["bhn"].shape[-1]
    G = pp["wi"].shape[-1] // 3
    Lp1 = rows // BP
    T = (Lp1 - K4 + 1) // 2
    PB = 2 * T * BP

    args = (patches, bw_col, ntrk,
            pp["w1s"], pp["b1s"], pp["w4"], pp["b4"],
            pp["wi"], pp["wh"], pp["bi"], pp["bhn"],
            pp["n0w"], pp["n0b"], pp["n1w"], pp["n1b"],
            pp["wmv"], pp["whid"], pp["db"], pp["d2w"], pp["d2b"])

    flops_branch = (2 * 2 * rows * kc * C            # conv1/conv2 (two parities)
                    + K4 * 2 * PB * C * C            # conv4 shifted dots
                    + 2 * (T * BP) * C * (3 * G)     # GRU input projections
                    + T * 2 * BP * H * (3 * G))      # GRU recurrence
    flops_head = (2 * BP * (ntrk.shape[1] * 32 + 32 * 2 + (2 * H + 2) * 32 + 32)
                  + 2 * 2 * (2 * H + 2) * 32)
    cost = pl.CostEstimate(
        flops=int(2 * flops_branch + flops_head),
        transcendentals=int(2 * T * BP * 3 * H),
        bytes_accessed=int(4 * (sum(int(a.size) for a in args) + BP)))

    return pl.pallas_call(
        _fused_kernel,
        out_shape=jax.ShapeDtypeStruct((BP, 1), jnp.float32),
        grid=(1,),
        in_specs=[pl.BlockSpec(a.shape, lambda i, nd=a.ndim: (0,) * nd)
                  for a in args],
        out_specs=pl.BlockSpec((BP, 1), lambda i: (0, 0)),
        scratch_shapes=[pltpu.VMEM((rows, C), jnp.float32)],   # pooled conv1 acts
        compiler_params=pltpu.CompilerParams(
            dimension_semantics=("arbitrary",)),
        cost_estimate=cost,
    )(*args)


# ----------------------------------------------------------------------------
# One-time, eager weight re-layout (hoisted out of the jitted forward pass)
# ----------------------------------------------------------------------------
def prep_params(p):
    H, G = 48, 128

    def conv_mat(w):                       # (Cout, Cin, K) -> (K*Cin, Cout)
        return jnp.transpose(w, (2, 1, 0)).reshape(-1, w.shape[0])

    def pad_lanes(m, width):               # right-pad last dim with zeros
        return jnp.pad(m, ((0, 0), (0, width - m.shape[1])))

    def gru_prep(g):
        w_ih, w_hh, b_ih, b_hh = g["w_ih"], g["w_hh"], g["b_ih"], g["b_hh"]
        wi = jnp.concatenate(
            [pad_lanes(w_ih[i * H:(i + 1) * H].T, G) for i in range(3)], axis=1)
        wh = jnp.concatenate(
            [pad_lanes(w_hh[i * H:(i + 1) * H].T, G) for i in range(3)], axis=1)
        b_r = b_ih[0:H] + b_hh[0:H]
        b_z = b_ih[H:2 * H] + b_hh[H:2 * H]
        b_n = b_ih[2 * H:3 * H]
        bi = jnp.concatenate(
            [pad_lanes(b.reshape(1, H), G) for b in (b_r, b_z, b_n)], axis=1)
        bhn = b_hh[2 * H:3 * H].reshape(1, H)
        return wi, wh, bi, bhn

    wi1, wh1, bi1, bhn1 = gru_prep(p["rnn1"])
    wi2, wh2, bi2, bhn2 = gru_prep(p["rnn2"])
    hd = 2 * H + 2                                                   # 98

    return {
        "w1s": jnp.stack([conv_mat(p["conv1_w"]), conv_mat(p["conv2_w"])]),
        "b1s": jnp.stack([p["conv1_b"].reshape(1, -1), p["conv2_b"].reshape(1, -1)]),
        "w4": jnp.transpose(p["conv4_w"], (2, 1, 0)),                # (K4, Cin, Cout)
        "b4": p["conv4_b"].reshape(1, -1),
        "wi": jnp.stack([wi1, wi2]), "wh": jnp.stack([wh1, wh2]),
        "bi": jnp.stack([bi1, bi2]), "bhn": jnp.stack([bhn1, bhn2]),
        "n0w": p["ntrk0_w"], "n0b": p["ntrk0_b"],
        "n1w": p["ntrk1_w"], "n1b": p["ntrk1_b"],
        "wmv": p["dense_w"][0:2 * hd],          # [mean rows | var rows]  (196, 32)
        "whid": p["dense_w"][2 * hd:3 * hd],    # hidden rows             (98, 32)
        "db": p["dense_b"], "d2w": p["dense2_w"], "d2b": p["dense2_b"],
    }


# ----------------------------------------------------------------------------
# Forward pass (mirrors BeefyConv1DModel.forward, n_directions=1, dropout=id)
# ----------------------------------------------------------------------------
def forward(prepped, ntrk_inputs, leading_jets, subleading_jets, batch_weights):
    B, L, cin = leading_jets.shape
    K4 = prepped["w4"].shape[0]
    K1 = prepped["w1s"].shape[1] // cin
    Lp1 = (L - K1 + 1) // 2                 # length after conv1 + pool
    T = (Lp1 - K4 + 1) // 2                 # GRU timesteps after conv4 + pool
    assert Lp1 >= K4 and T >= 1, "sequence too short for the conv chain"
    BP = ((B + 7) // 8) * 8                 # pad batch to 8-sublane row blocks

    # im2col for conv1/conv2, pool parity pre-split; rows ordered
    # (pooled_position, padded_batch) so every in-kernel row slice is an
    # aligned, contiguous 8-deep block.
    def make_patches(x):                    # x: (B, L, cin) channels-last
        idx = (2 * jnp.arange(Lp1)[None, :, None]
               + jnp.arange(2)[:, None, None]
               + jnp.arange(K1)[None, None, :])                 # (2, Lp1, K1)
        g = x[:, idx, :]                                        # (B, 2, Lp1, K1, cin)
        g = jnp.transpose(g, (1, 2, 0, 3, 4))                   # (2, Lp1, B, K1, cin)
        g = g.reshape(2, Lp1, B, K1 * cin)
        g = jnp.pad(g, ((0, 0), (0, 0), (0, BP - B), (0, 0)))   # pad batch rows
        return g.reshape(2, Lp1 * BP, K1 * cin)

    patches = jnp.stack([make_patches(leading_jets), make_patches(subleading_jets)])
    ntrk_p = jnp.pad(ntrk_inputs, ((0, BP - B), (0, 0)))
    bw_col = jnp.pad(batch_weights.reshape(B, 1), ((0, BP - B), (0, 0)))  # pads = 0

    out = _run_fused(patches, bw_col, ntrk_p, prepped)
    return out[:B]


# ----------------------------------------------------------------------------
# Deterministic parameter init (PyTorch-like uniform(-1/sqrt(fan_in), ...))
# ----------------------------------------------------------------------------
def init_params(key, ntrk_input_size, input_size):
    keys = iter(jax.random.split(key, 32))

    def u(shape, fan_in):
        s = 1.0 / float(fan_in) ** 0.5
        return jax.random.uniform(next(keys), shape, jnp.float32, -s, s)

    H = 48
    hidden_dim = 48 * 1 * 2 + 2        # r1 + r2 + ntrk_hidden = 98
    return {
        "conv1_w": u((32, input_size, 20), input_size * 20),
        "conv1_b": u((32,), input_size * 20),
        "conv2_w": u((32, input_size, 20), input_size * 20),
        "conv2_b": u((32,), input_size * 20),
        # conv3 exists in __init__ but is never used in forward(); omitted.
        "conv4_w": u((32, 32, 16), 32 * 16),
        "conv4_b": u((32,), 32 * 16),
        "rnn1": {
            "w_ih": u((3 * H, 32), H), "w_hh": u((3 * H, H), H),
            "b_ih": u((3 * H,), H), "b_hh": u((3 * H,), H),
        },
        "rnn2": {
            "w_ih": u((3 * H, 32), H), "w_hh": u((3 * H, H), H),
            "b_ih": u((3 * H,), H), "b_hh": u((3 * H,), H),
        },
        # Linear weights stored already transposed: (in, out)
        "ntrk0_w": u((ntrk_input_size, 32), ntrk_input_size),
        "ntrk0_b": u((1, 32), ntrk_input_size),
        "ntrk1_w": u((32, 2), 32),
        "ntrk1_b": u((1, 2), 32),
        "dense_w": u((3 * hidden_dim, 32), 3 * hidden_dim),
        "dense_b": u((1, 32), 3 * hidden_dim),
        "dense2_w": u((32, 1), 32),
        "dense2_b": u((1, 1), 32),
    }


if __name__ == "__main__":
    key = jax.random.PRNGKey(0)
    B = 4                 # batch
    seq_len = 64          # jet sequence length (>= 53 needed by the conv chain)
    input_size = 6        # per-step jet features
    ntrk_input_size = 5

    kp, k1, k2, k3, k4 = jax.random.split(key, 5)
    params = init_params(kp, ntrk_input_size, input_size)
    prepped = prep_params(params)   # eager, once: weight re-layout out of jit path

    ntrk_inputs = jax.random.uniform(k1, (B, ntrk_input_size), jnp.float32, 0.0, 100.0)
    leading_jets = jax.random.normal(k2, (B, seq_len, input_size), jnp.float32)
    subleading_jets = jax.random.normal(k3, (B, seq_len, input_size), jnp.float32)
    bw = jax.random.uniform(k4, (1, B), jnp.float32, 0.1, 1.0)
    batch_weights = bw / jnp.sum(bw)

    fwd = jax.jit(forward)
    out = fwd(prepped, ntrk_inputs, leading_jets, subleading_jets, batch_weights)
    out = jax.block_until_ready(out)
    assert out.shape == (B, 1), out.shape
    assert bool(jnp.all(jnp.isfinite(out)))
    print("KERNEL_OK")
</pallas_src>

<mosaic_0001>
module attributes {stable_mosaic.version = 11 : i64} {
  func.func @_fused_kernel(%arg0: i32, %arg1: memref<2x2x176x120xf32, #tpu.memory_space<vmem>>, %arg2: memref<8x1xf32, #tpu.memory_space<vmem>>, %arg3: memref<8x5xf32, #tpu.memory_space<vmem>>, %arg4: memref<2x120x32xf32, #tpu.memory_space<vmem>>, %arg5: memref<2x1x32xf32, #tpu.memory_space<vmem>>, %arg6: memref<16x32x32xf32, #tpu.memory_space<vmem>>, %arg7: memref<1x32xf32, #tpu.memory_space<vmem>>, %arg8: memref<2x32x384xf32, #tpu.memory_space<vmem>>, %arg9: memref<2x48x384xf32, #tpu.memory_space<vmem>>, %arg10: memref<2x1x384xf32, #tpu.memory_space<vmem>>, %arg11: memref<2x1x48xf32, #tpu.memory_space<vmem>>, %arg12: memref<5x32xf32, #tpu.memory_space<vmem>>, %arg13: memref<1x32xf32, #tpu.memory_space<vmem>>, %arg14: memref<32x2xf32, #tpu.memory_space<vmem>>, %arg15: memref<1x2xf32, #tpu.memory_space<vmem>>, %arg16: memref<196x32xf32, #tpu.memory_space<vmem>>, %arg17: memref<98x32xf32, #tpu.memory_space<vmem>>, %arg18: memref<1x32xf32, #tpu.memory_space<vmem>>, %arg19: memref<32x1xf32, #tpu.memory_space<vmem>>, %arg20: memref<1x1xf32, #tpu.memory_space<vmem>>, %arg21: memref<8x1xf32, #tpu.memory_space<vmem>>, %arg22: memref<176x32xf32, #tpu.memory_space<vmem>>) attributes {dimension_semantics = [#tpu.dimension_semantics<arbitrary>], iteration_bounds = array<i64: 1>, scalar_prefetch = 0 : i64, scratch_operands = 1 : i64, tpu.core_type = #tpu.core_type<tc>, window_params = [{pipeline_mode = #tpu.pipeline_mode<synchronous>, transform_indices = @transform_0, window_bounds = array<i64: 2, 2, 176, 120>}, {pipeline_mode = #tpu.pipeline_mode<synchronous>, transform_indices = @transform_1, window_bounds = array<i64: 8, 1>}, {pipeline_mode = #tpu.pipeline_mode<synchronous>, transform_indices = @transform_2, window_bounds = array<i64: 8, 5>}, {pipeline_mode = #tpu.pipeline_mode<synchronous>, transform_indices = @transform_3, window_bounds = array<i64: 2, 120, 32>}, {pipeline_mode = #tpu.pipeline_mode<synchronous>, transform_indices = @transform_4, window_bounds = array<i64: 2, 1, 32>}, {pipeline_mode = #tpu.pipeline_mode<synchronous>, transform_indices = @transform_5, window_bounds = array<i64: 16, 32, 32>}, {pipeline_mode = #tpu.pipeline_mode<synchronous>, transform_indices = @transform_6, window_bounds = array<i64: 1, 32>}, {pipeline_mode = #tpu.pipeline_mode<synchronous>, transform_indices = @transform_7, window_bounds = array<i64: 2, 32, 384>}, {pipeline_mode = #tpu.pipeline_mode<synchronous>, transform_indices = @transform_8, window_bounds = array<i64: 2, 48, 384>}, {pipeline_mode = #tpu.pipeline_mode<synchronous>, transform_indices = @transform_9, window_bounds = array<i64: 2, 1, 384>}, {pipeline_mode = #tpu.pipeline_mode<synchronous>, transform_indices = @transform_10, window_bounds = array<i64: 2, 1, 48>}, {pipeline_mode = #tpu.pipeline_mode<synchronous>, transform_indices = @transform_11, window_bounds = array<i64: 5, 32>}, {pipeline_mode = #tpu.pipeline_mode<synchronous>, transform_indices = @transform_12, window_bounds = array<i64: 1, 32>}, {pipeline_mode = #tpu.pipeline_mode<synchronous>, transform_indices = @transform_13, window_bounds = array<i64: 32, 2>}, {pipeline_mode = #tpu.pipeline_mode<synchronous>, transform_indices = @transform_14, window_bounds = array<i64: 1, 2>}, {pipeline_mode = #tpu.pipeline_mode<synchronous>, transform_indices = @transform_15, window_bounds = array<i64: 196, 32>}, {pipeline_mode = #tpu.pipeline_mode<synchronous>, transform_indices = @transform_16, window_bounds = array<i64: 98, 32>}, {pipeline_mode = #tpu.pipeline_mode<synchronous>, transform_indices = @transform_17, window_bounds = array<i64: 1, 32>}, {pipeline_mode = #tpu.pipeline_mode<synchronous>, transform_indices = @transform_18, window_bounds = array<i64: 32, 1>}, {pipeline_mode = #tpu.pipeline_mode<synchronous>, transform_indices = @transform_19, window_bounds = array<i64: 1, 1>}, {pipeline_mode = #tpu.pipeline_mode<synchronous>, transform_indices = @transform_20, window_bounds = array<i64: 8, 1>}]} {
    %c0 = arith.constant 0 : index
    %c0_0 = arith.constant 0 : index
    %c0_1 = arith.constant 0 : index
    %0 = vector.load %arg4[%c0, %c0_0, %c0_1] : memref<2x120x32xf32, #tpu.memory_space<vmem>>, vector<1x120x32xf32>
    %1 = vector.shape_cast %0 : vector<1x120x32xf32> to vector<120x32xf32>
    %c0_2 = arith.constant 0 : index
    %c0_3 = arith.constant 0 : index
    %c0_4 = arith.constant 0 : index
    %2 = vector.load %arg5[%c0_2, %c0_3, %c0_4] : memref<2x1x32xf32, #tpu.memory_space<vmem>>, vector<1x1x32xf32>
    %3 = vector.shape_cast %2 : vector<1x1x32xf32> to vector<1x32xf32>
    %c0_5 = arith.constant 0 : index
    %c0_6 = arith.constant 0 : index
    %c0_7 = arith.constant 0 : index
    %c0_8 = arith.constant 0 : index
    %4 = vector.load %arg1[%c0_5, %c0_6, %c0_7, %c0_8] : memref<2x2x176x120xf32, #tpu.memory_space<vmem>>, vector<1x1x176x120xf32>
    %5 = vector.shape_cast %4 : vector<1x1x176x120xf32> to vector<176x120xf32>
    %cst = arith.constant dense<0.000000e+00> : vector<176x32xf32>
    %6 = tpu.matmul %5, %1, %cst {dimension_numbers = #tpu.dot_dimension_numbers<[1], [0], [0], [1], [0, 0, 1, 1], [], []>} : vector<176x120xf32>, vector<120x32xf32>, vector<176x32xf32> -> vector<176x32xf32>
    %c0_9 = arith.constant 0 : index
    %c1 = arith.constant 1 : index
    %c0_10 = arith.constant 0 : index
    %c0_11 = arith.constant 0 : index
    %7 = vector.load %arg1[%c0_9, %c1, %c0_10, %c0_11] : memref<2x2x176x120xf32, #tpu.memory_space<vmem>>, vector<1x1x176x120xf32>
    %8 = vector.shape_cast %7 : vector<1x1x176x120xf32> to vector<176x120xf32>
    %cst_12 = arith.constant dense<0.000000e+00> : vector<176x32xf32>
    %9 = tpu.matmul %8, %1, %cst_12 {dimension_numbers = #tpu.dot_dimension_numbers<[1], [0], [0], [1], [0, 0, 1, 1], [], []>} : vector<176x120xf32>, vector<120x32xf32>, vector<176x32xf32> -> vector<176x32xf32>
    %10 = arith.maximumf %6, %9 : vector<176x32xf32>
    %11 = vector.broadcast %3 : vector<1x32xf32> to vector<176x32xf32>
    %12 = arith.addf %10, %11 : vector<176x32xf32>
    %cst_13 = arith.constant 0.000000e+00 : f32
    %13 = vector.broadcast %cst_13 : f32 to vector<176x32xf32>
    %14 = arith.cmpf oge, %12, %13 : vector<176x32xf32>
    %cst_14 = arith.constant 0.00999999977 : f32
    %15 = vector.broadcast %cst_14 : f32 to vector<176x32xf32>
    %16 = arith.mulf %15, %12 : vector<176x32xf32>
    %17 = arith.select %14, %12, %16 : vector<176x32xi1>, vector<176x32xf32>
    %c0_15 = arith.constant 0 : index
    %c0_16 = arith.constant 0 : index
    %18 = vector.load %arg22[%c0_15, %c0_16] : memref<176x32xf32, #tpu.memory_space<vmem>>, vector<176x32xf32>
    tpu.vector_store %arg22[%c0_15, %c0_16], %17 {strides = array<i32>} : memref<176x32xf32, #tpu.memory_space<vmem>>, vector<176x32xf32>,
    %cst_17 = arith.constant 0.000000e+00 : f32
    %19 = vector.broadcast %cst_17 : f32 to vector<48x32xf32>
    %c0_18 = arith.constant 0 : index
    %c0_19 = arith.constant 0 : index
    %20 = vector.load %arg22[%c0_18, %c0_19] : memref<176x32xf32, #tpu.memory_space<vmem>>, vector<48x32xf32>
    %c0_20 = arith.constant 0 : index
    %c0_21 = arith.constant 0 : index
    %c0_22 = arith.constant 0 : index
    %21 = vector.load %arg6[%c0_20, %c0_21, %c0_22] : memref<16x32x32xf32, #tpu.memory_space<vmem>>, vector<1x32x32xf32>
    %22 = vector.shape_cast %21 : vector<1x32x32xf32> to vector<32x32xf32>
    %cst_23 = arith.constant dense<0.000000e+00> : vector<48x32xf32>
    %23 = tpu.matmul %20, %22, %cst_23 {dimension_numbers = #tpu.dot_dimension_numbers<[1], [0], [0], [1], [0, 0, 1, 1], [], []>} : vector<48x32xf32>, vector<32x32xf32>, vector<48x32xf32> -> vector<48x32xf32>
    %24 = arith.addf %19, %23 : vector<48x32xf32>
    %c8 = arith.constant 8 : index
    %c0_24 = arith.constant 0 : index
    %25 = vector.load %arg22[%c8, %c0_24] : memref<176x32xf32, #tpu.memory_space<vmem>>, vector<48x32xf32>
    %c1_25 = arith.constant 1 : index
    %c0_26 = arith.constant 0 : index
    %c0_27 = arith.constant 0 : index
    %26 = vector.load %arg6[%c1_25, %c0_26, %c0_27] : memref<16x32x32xf32, #tpu.memory_space<vmem>>, vector<1x32x32xf32>
    %27 = vector.shape_cast %26 : vector<1x32x32xf32> to vector<32x32xf32>
    %cst_28 = arith.constant dense<0.000000e+00> : vector<48x32xf32>
    %28 = tpu.matmul %25, %27, %cst_28 {dimension_numbers = #tpu.dot_dimension_numbers<[1], [0], [0], [1], [0, 0, 1, 1], [], []>} : vector<48x32xf32>, vector<32x32xf32>, vector<48x32xf32> -> vector<48x32xf32>
    %29 = arith.addf %24, %28 : vector<48x32xf32>
    %c16 = arith.constant 16 : index
    %c0_29 = arith.constant 0 : index
    %30 = vector.load %arg22[%c16, %c0_29] : memref<176x32xf32, #tpu.memory_space<vmem>>, vector<48x32xf32>
    %c2 = arith.constant 2 : index
    %c0_30 = arith.constant 0 : index
    %c0_31 = arith.constant 0 : index
    %31 = vector.load %arg6[%c2, %c0_30, %c0_31] : memref<16x32x32xf32, #tpu.memory_space<vmem>>, vector<1x32x32xf32>
    %32 = vector.shape_cast %31 : vector<1x32x32xf32> to vector<32x32xf32>
    %cst_32 = arith.constant dense<0.000000e+00> : vector<48x32xf32>
    %33 = tpu.matmul %30, %32, %cst_32 {dimension_numbers = #tpu.dot_dimension_numbers<[1], [0], [0], [1], [0, 0, 1, 1], [], []>} : vector<48x32xf32>, vector<32x32xf32>, vector<48x32xf32> -> vector<48x32xf32>
    %34 = arith.addf %29, %33 : vector<48x32xf32>
    %c24 = arith.constant 24 : index
    %c0_33 = arith.constant 0 : index
    %35 = vector.load %arg22[%c24, %c0_33] : memref<176x32xf32, #tpu.memory_space<vmem>>, vector<48x32xf32>
    %c3 = arith.constant 3 : index
    %c0_34 = arith.constant 0 : index
    %c0_35 = arith.constant 0 : index
    %36 = vector.load %arg6[%c3, %c0_34, %c0_35] : memref<16x32x32xf32, #tpu.memory_space<vmem>>, vector<1x32x32xf32>
    %37 = vector.shape_cast %36 : vector<1x32x32xf32> to vector<32x32xf32>
    %cst_36 = arith.constant dense<0.000000e+00> : vector<48x32xf32>
    %38 = tpu.matmul %35, %37, %cst_36 {dimension_numbers = #tpu.dot_dimension_numbers<[1], [0], [0], [1], [0, 0, 1, 1], [], []>} : vector<48x32xf32>, vector<32x32xf32>, vector<48x32xf32> -> vector<48x32xf32>
    %39 = arith.addf %34, %38 : vector<48x32xf32>
    %c32 = arith.constant 32 : index
    %c0_37 = arith.constant 0 : index
    %40 = vector.load %arg22[%c32, %c0_37] : memref<176x32xf32, #tpu.memory_space<vmem>>, vector<48x32xf32>
    %c4 = arith.constant 4 : index
    %c0_38 = arith.constant 0 : index
    %c0_39 = arith.constant 0 : index
    %41 = vector.load %arg6[%c4, %c0_38, %c0_39] : memref<16x32x32xf32, #tpu.memory_space<vmem>>, vector<1x32x32xf32>
    %42 = vector.shape_cast %41 : vector<1x32x32xf32> to vector<32x32xf32>
    %cst_40 = arith.constant dense<0.000000e+00> : vector<48x32xf32>
    %43 = tpu.matmul %40, %42, %cst_40 {dimension_numbers = #tpu.dot_dimension_numbers<[1], [0], [0], [1], [0, 0, 1, 1], [], []>} : vector<48x32xf32>, vector<32x32xf32>, vector<48x32xf32> -> vector<48x32xf32>
    %44 = arith.addf %39, %43 : vector<48x32xf32>
    %c40 = arith.constant 40 : index
    %c0_41 = arith.constant 0 : index
    %45 = vector.load %arg22[%c40, %c0_41] : memref<176x32xf32, #tpu.memory_space<vmem>>, vector<48x32xf32>
    %c5 = arith.constant 5 : index
    %c0_42 = arith.constant 0 : index
    %c0_43 = arith.constant 0 : index
    %46 = vector.load %arg6[%c5, %c0_42, %c0_43] : memref<16x32x32xf32, #tpu.memory_space<vmem>>, vector<1x32x32xf32>
    %47 = vector.shape_cast %46 : vector<1x32x32xf32> to vector<32x32xf32>
    %cst_44 = arith.constant dense<0.000000e+00> : vector<48x32xf32>
    %48 = tpu.matmul %45, %47, %cst_44 {dimension_numbers = #tpu.dot_dimension_numbers<[1], [0], [0], [1], [0, 0, 1, 1], [], []>} : vector<48x32xf32>, vector<32x32xf32>, vector<48x32xf32> -> vector<48x32xf32>
    %49 = arith.addf %44, %48 : vector<48x32xf32>
    %c48 = arith.constant 48 : index
    %c0_45 = arith.constant 0 : index
    %50 = vector.load %arg22[%c48, %c0_45] : memref<176x32xf32, #tpu.memory_space<vmem>>, vector<48x32xf32>
    %c6 = arith.constant 6 : index
    %c0_46 = arith.constant 0 : index
    %c0_47 = arith.constant 0 : index
    %51 = vector.load %arg6[%c6, %c0_46, %c0_47] : memref<16x32x32xf32, #tpu.memory_space<vmem>>, vector<1x32x32xf32>
    %52 = vector.shape_cast %51 : vector<1x32x32xf32> to vector<32x32xf32>
    %cst_48 = arith.constant dense<0.000000e+00> : vector<48x32xf32>
    %53 = tpu.matmul %50, %52, %cst_48 {dimension_numbers = #tpu.dot_dimension_numbers<[1], [0], [0], [1], [0, 0, 1, 1], [], []>} : vector<48x32xf32>, vector<32x32xf32>, vector<48x32xf32> -> vector<48x32xf32>
    %54 = arith.addf %49, %53 : vector<48x32xf32>
    %c56 = arith.constant 56 : index
    %c0_49 = arith.constant 0 : index
    %55 = vector.load %arg22[%c56, %c0_49] : memref<176x32xf32, #tpu.memory_space<vmem>>, vector<48x32xf32>
    %c7 = arith.constant 7 : index
    %c0_50 = arith.constant 0 : index
    %c0_51 = arith.constant 0 : index
    %56 = vector.load %arg6[%c7, %c0_50, %c0_51] : memref<16x32x32xf32, #tpu.memory_space<vmem>>, vector<1x32x32xf32>
    %57 = vector.shape_cast %56 : vector<1x32x32xf32> to vector<32x32xf32>
    %cst_52 = arith.constant dense<0.000000e+00> : vector<48x32xf32>
    %58 = tpu.matmul %55, %57, %cst_52 {dimension_numbers = #tpu.dot_dimension_numbers<[1], [0], [0], [1], [0, 0, 1, 1], [], []>} : vector<48x32xf32>, vector<32x32xf32>, vector<48x32xf32> -> vector<48x32xf32>
    %59 = arith.addf %54, %58 : vector<48x32xf32>
    %c64 = arith.constant 64 : index
    %c0_53 = arith.constant 0 : index
    %60 = vector.load %arg22[%c64, %c0_53] : memref<176x32xf32, #tpu.memory_space<vmem>>, vector<48x32xf32>
    %c8_54 = arith.constant 8 : index
    %c0_55 = arith.constant 0 : index
    %c0_56 = arith.constant 0 : index
    %61 = vector.load %arg6[%c8_54, %c0_55, %c0_56] : memref<16x32x32xf32, #tpu.memory_space<vmem>>, vector<1x32x32xf32>
    %62 = vector.shape_cast %61 : vector<1x32x32xf32> to vector<32x32xf32>
    %cst_57 = arith.constant dense<0.000000e+00> : vector<48x32xf32>
    %63 = tpu.matmul %60, %62, %cst_57 {dimension_numbers = #tpu.dot_dimension_numbers<[1], [0], [0], [1], [0, 0, 1, 1], [], []>} : vector<48x32xf32>, vector<32x32xf32>, vector<48x32xf32> -> vector<48x32xf32>
    %64 = arith.addf %59, %63 : vector<48x32xf32>
    %c72 = arith.constant 72 : index
    %c0_58 = arith.constant 0 : index
    %65 = vector.load %arg22[%c72, %c0_58] : memref<176x32xf32, #tpu.memory_space<vmem>>, vector<48x32xf32>
    %c9 = arith.constant 9 : index
    %c0_59 = arith.constant 0 : index
    %c0_60 = arith.constant 0 : index
    %66 = vector.load %arg6[%c9, %c0_59, %c0_60] : memref<16x32x32xf32, #tpu.memory_space<vmem>>, vector<1x32x32xf32>
    %67 = vector.shape_cast %66 : vector<1x32x32xf32> to vector<32x32xf32>
    %cst_61 = arith.constant dense<0.000000e+00> : vector<48x32xf32>
    %68 = tpu.matmul %65, %67, %cst_61 {dimension_numbers = #tpu.dot_dimension_numbers<[1], [0], [0], [1], [0, 0, 1, 1], [], []>} : vector<48x32xf32>, vector<32x32xf32>, vector<48x32xf32> -> vector<48x32xf32>
    %69 = arith.addf %64, %68 : vector<48x32xf32>
    %c80 = arith.constant 80 : index
    %c0_62 = arith.constant 0 : index
    %70 = vector.load %arg22[%c80, %c0_62] : memref<176x32xf32, #tpu.memory_space<vmem>>, vector<48x32xf32>
    %c10 = arith.constant 10 : index
    %c0_63 = arith.constant 0 : index
    %c0_64 = arith.constant 0 : index
    %71 = vector.load %arg6[%c10, %c0_63, %c0_64] : memref<16x32x32xf32, #tpu.memory_space<vmem>>, vector<1x32x32xf32>
    %72 = vector.shape_cast %71 : vector<1x32x32xf32> to vector<32x32xf32>
    %cst_65 = arith.constant dense<0.000000e+00> : vector<48x32xf32>
    %73 = tpu.matmul %70, %72, %cst_65 {dimension_numbers = #tpu.dot_dimension_numbers<[1], [0], [0], [1], [0, 0, 1, 1], [], []>} : vector<48x32xf32>, vector<32x32xf32>, vector<48x32xf32> -> vector<48x32xf32>
    %74 = arith.addf %69, %73 : vector<48x32xf32>
    %c88 = arith.constant 88 : index
    %c0_66 = arith.constant 0 : index
    %75 = vector.load %arg22[%c88, %c0_66] : memref<176x32xf32, #tpu.memory_space<vmem>>, vector<48x32xf32>
    %c11 = arith.constant 11 : index
    %c0_67 = arith.constant 0 : index
    %c0_68 = arith.constant 0 : index
    %76 = vector.load %arg6[%c11, %c0_67, %c0_68] : memref<16x32x32xf32, #tpu.memory_space<vmem>>, vector<1x32x32xf32>
    %77 = vector.shape_cast %76 : vector<1x32x32xf32> to vector<32x32xf32>
    %cst_69 = arith.constant dense<0.000000e+00> : vector<48x32xf32>
    %78 = tpu.matmul %75, %77, %cst_69 {dimension_numbers = #tpu.dot_dimension_numbers<[1], [0], [0], [1], [0, 0, 1, 1], [], []>} : vector<48x32xf32>, vector<32x32xf32>, vector<48x32xf32> -> vector<48x32xf32>
    %79 = arith.addf %74, %78 : vector<48x32xf32>
    %c96 = arith.constant 96 : index
    %c0_70 = arith.constant 0 : index
    %80 = vector.load %arg22[%c96, %c0_70] : memref<176x32xf32, #tpu.memory_space<vmem>>, vector<48x32xf32>
    %c12 = arith.constant 12 : index
    %c0_71 = arith.constant 0 : index
    %c0_72 = arith.constant 0 : index
    %81 = vector.load %arg6[%c12, %c0_71, %c0_72] : memref<16x32x32xf32, #tpu.memory_space<vmem>>, vector<1x32x32xf32>
    %82 = vector.shape_cast %81 : vector<1x32x32xf32> to vector<32x32xf32>
    %cst_73 = arith.constant dense<0.000000e+00> : vector<48x32xf32>
    %83 = tpu.matmul %80, %82, %cst_73 {dimension_numbers = #tpu.dot_dimension_numbers<[1], [0], [0], [1], [0, 0, 1, 1], [], []>} : vector<48x32xf32>, vector<32x32xf32>, vector<48x32xf32> -> vector<48x32xf32>
    %84 = arith.addf %79, %83 : vector<48x32xf32>
    %c104 = arith.constant 104 : index
    %c0_74 = arith.constant 0 : index
    %85 = vector.load %arg22[%c104, %c0_74] : memref<176x32xf32, #tpu.memory_space<vmem>>, vector<48x32xf32>
    %c13 = arith.constant 13 : index
    %c0_75 = arith.constant 0 : index
    %c0_76 = arith.constant 0 : index
    %86 = vector.load %arg6[%c13, %c0_75, %c0_76] : memref<16x32x32xf32, #tpu.memory_space<vmem>>, vector<1x32x32xf32>
    %87 = vector.shape_cast %86 : vector<1x32x32xf32> to vector<32x32xf32>
    %cst_77 = arith.constant dense<0.000000e+00> : vector<48x32xf32>
    %88 = tpu.matmul %85, %87, %cst_77 {dimension_numbers = #tpu.dot_dimension_numbers<[1], [0], [0], [1], [0, 0, 1, 1], [], []>} : vector<48x32xf32>, vector<32x32xf32>, vector<48x32xf32> -> vector<48x32xf32>
    %89 = arith.addf %84, %88 : vector<48x32xf32>
    %c112 = arith.constant 112 : index
    %c0_78 = arith.constant 0 : index
    %90 = vector.load %arg22[%c112, %c0_78] : memref<176x32xf32, #tpu.memory_space<vmem>>, vector<48x32xf32>
    %c14 = arith.constant 14 : index
    %c0_79 = arith.constant 0 : index
    %c0_80 = arith.constant 0 : index
    %91 = vector.load %arg6[%c14, %c0_79, %c0_80] : memref<16x32x32xf32, #tpu.memory_space<vmem>>, vector<1x32x32xf32>
    %92 = vector.shape_cast %91 : vector<1x32x32xf32> to vector<32x32xf32>
    %cst_81 = arith.constant dense<0.000000e+00> : vector<48x32xf32>
    %93 = tpu.matmul %90, %92, %cst_81 {dimension_numbers = #tpu.dot_dimension_numbers<[1], [0], [0], [1], [0, 0, 1, 1], [], []>} : vector<48x32xf32>, vector<32x32xf32>, vector<48x32xf32> -> vector<48x32xf32>
    %94 = arith.addf %89, %93 : vector<48x32xf32>
    %c120 = arith.constant 120 : index
    %c0_82 = arith.constant 0 : index
    %95 = vector.load %arg22[%c120, %c0_82] : memref<176x32xf32, #tpu.memory_space<vmem>>, vector<48x32xf32>
    %c15 = arith.constant 15 : index
    %c0_83 = arith.constant 0 : index
    %c0_84 = arith.constant 0 : index
    %96 = vector.load %arg6[%c15, %c0_83, %c0_84] : memref<16x32x32xf32, #tpu.memory_space<vmem>>, vector<1x32x32xf32>
    %97 = vector.shape_cast %96 : vector<1x32x32xf32> to vector<32x32xf32>
    %cst_85 = arith.constant dense<0.000000e+00> : vector<48x32xf32>
    %98 = tpu.matmul %95, %97, %cst_85 {dimension_numbers = #tpu.dot_dimension_numbers<[1], [0], [0], [1], [0, 0, 1, 1], [], []>} : vector<48x32xf32>, vector<32x32xf32>, vector<48x32xf32> -> vector<48x32xf32>
    %99 = arith.addf %94, %98 : vector<48x32xf32>
    %c0_86 = arith.constant 0 : index
    %c0_87 = arith.constant 0 : index
    %100 = vector.load %arg7[%c0_86, %c0_87] : memref<1x32xf32, #tpu.memory_space<vmem>>, vector<1x32xf32>
    %101 = vector.broadcast %100 : vector<1x32xf32> to vector<48x32xf32>
    %102 = arith.addf %99, %101 : vector<48x32xf32>
    %103 = vector.extract_strided_slice %102 {offsets = [0, 0], sizes = [8, 32], strides = [1, 1]} : vector<48x32xf32> to vector<8x32xf32>
    %104 = vector.extract_strided_slice %102 {offsets = [8, 0], sizes = [8, 32], strides = [1, 1]} : vector<48x32xf32> to vector<8x32xf32>
    %105 = arith.maximumf %103, %104 : vector<8x32xf32>
    %cst_88 = arith.constant 0.000000e+00 : f32
    %106 = vector.broadcast %cst_88 : f32 to vector<8x32xf32>
    %107 = arith.cmpf oge, %105, %106 : vector<8x32xf32>
    %cst_89 = arith.constant 0.00999999977 : f32
    %108 = vector.broadcast %cst_89 : f32 to vector<8x32xf32>
    %109 = arith.mulf %108, %105 : vector<8x32xf32>
    %110 = arith.select %107, %105, %109 : vector<8x32xi1>, vector<8x32xf32>
    %111 = vector.extract_strided_slice %102 {offsets = [16, 0], sizes = [8, 32], strides = [1, 1]} : vector<48x32xf32> to vector<8x32xf32>
    %112 = vector.extract_strided_slice %102 {offsets = [24, 0], sizes = [8, 32], strides = [1, 1]} : vector<48x32xf32> to vector<8x32xf32>
    %113 = arith.maximumf %111, %112 : vector<8x32xf32>
    %cst_90 = arith.constant 0.000000e+00 : f32
    %114 = vector.broadcast %cst_90 : f32 to vector<8x32xf32>
    %115 = arith.cmpf oge, %113, %114 : vector<8x32xf32>
    %cst_91 = arith.constant 0.00999999977 : f32
    %116 = vector.broadcast %cst_91 : f32 to vector<8x32xf32>
    %117 = arith.mulf %116, %113 : vector<8x32xf32>
    %118 = arith.select %115, %113, %117 : vector<8x32xi1>, vector<8x32xf32>
    %119 = vector.extract_strided_slice %102 {offsets = [32, 0], sizes = [8, 32], strides = [1, 1]} : vector<48x32xf32> to vector<8x32xf32>
    %120 = vector.extract_strided_slice %102 {offsets = [40, 0], sizes = [8, 32], strides = [1, 1]} : vector<48x32xf32> to vector<8x32xf32>
    %121 = arith.maximumf %119, %120 : vector<8x32xf32>
    %cst_92 = arith.constant 0.000000e+00 : f32
    %122 = vector.broadcast %cst_92 : f32 to vector<8x32xf32>
    %123 = arith.cmpf oge, %121, %122 : vector<8x32xf32>
    %cst_93 = arith.constant 0.00999999977 : f32
    %124 = vector.broadcast %cst_93 : f32 to vector<8x32xf32>
    %125 = arith.mulf %124, %121 : vector<8x32xf32>
    %126 = arith.select %123, %121, %125 : vector<8x32xi1>, vector<8x32xf32>
    %127 = tpu.concatenate %110, %118, %126 in 0 : vector<8x32xf32>, vector<8x32xf32>, vector<8x32xf32> -> vector<24x32xf32>
    %c0_94 = arith.constant 0 : index
    %c0_95 = arith.constant 0 : index
    %c0_96 = arith.constant 0 : index
    %128 = vector.load %arg8[%c0_94, %c0_95, %c0_96] : memref<2x32x384xf32, #tpu.memory_space<vmem>>, vector<1x32x384xf32>
    %129 = vector.shape_cast %128 : vector<1x32x384xf32> to vector<32x384xf32>
    %c0_97 = arith.constant 0 : index
    %c0_98 = arith.constant 0 : index
    %c0_99 = arith.constant 0 : index
    %130 = vector.load %arg9[%c0_97, %c0_98, %c0_99] : memref<2x48x384xf32, #tpu.memory_space<vmem>>, vector<1x48x384xf32>
    %131 = vector.shape_cast %130 : vector<1x48x384xf32> to vector<48x384xf32>
    %c0_100 = arith.constant 0 : index
    %c0_101 = arith.constant 0 : index
    %c0_102 = arith.constant 0 : index
    %132 = vector.load %arg10[%c0_100, %c0_101, %c0_102] : memref<2x1x384xf32, #tpu.memory_space<vmem>>, vector<1x1x384xf32>
    %133 = vector.shape_cast %132 : vector<1x1x384xf32> to vector<1x384xf32>
    %c0_103 = arith.constant 0 : index
    %c0_104 = arith.constant 0 : index
    %c0_105 = arith.constant 0 : index
    %134 = vector.load %arg11[%c0_103, %c0_104, %c0_105] : memref<2x1x48xf32, #tpu.memory_space<vmem>>, vector<1x1x48xf32>
    %135 = vector.shape_cast %134 : vector<1x1x48xf32> to vector<1x48xf32>
    %cst_106 = arith.constant dense<0.000000e+00> : vector<24x384xf32>
    %136 = tpu.matmul %127, %129, %cst_106 {dimension_numbers = #tpu.dot_dimension_numbers<[1], [0], [0], [1], [0, 0, 1, 1], [], []>} : vector<24x32xf32>, vector<32x384xf32>, vector<24x384xf32> -> vector<24x384xf32>
    %137 = vector.broadcast %133 : vector<1x384xf32> to vector<24x384xf32>
    %138 = arith.addf %136, %137 : vector<24x384xf32>
    %cst_107 = arith.constant 0.000000e+00 : f32
    %139 = vector.broadcast %cst_107 : f32 to vector<8x48xf32>
    %cst_108 = arith.constant dense<0.000000e+00> : vector<8x384xf32>
    %140 = tpu.matmul %139, %131, %cst_108 {dimension_numbers = #tpu.dot_dimension_numbers<[1], [0], [0], [1], [0, 0, 1, 1], [], []>} : vector<8x48xf32>, vector<48x384xf32>, vector<8x384xf32> -> vector<8x384xf32>
    %141 = vector.extract_strided_slice %138 {offsets = [0, 0], sizes = [8, 384], strides = [1, 1]} : vector<24x384xf32> to vector<8x384xf32>
    %142 = vector.extract_strided_slice %141 {offsets = [0, 0], sizes = [8, 48], strides = [1, 1]} : vector<8x384xf32> to vector<8x48xf32>
    %143 = vector.extract_strided_slice %140 {offsets = [0, 0], sizes = [8, 48], strides = [1, 1]} : vector<8x384xf32> to vector<8x48xf32>
    %144 = arith.addf %142, %143 : vector<8x48xf32>
    %145 = arith.negf %144 : vector<8x48xf32>
    %146 = math.exp %145 : vector<8x48xf32>
    %cst_109 = arith.constant 1.000000e+00 : f32
    %147 = vector.broadcast %cst_109 : f32 to vector<8x48xf32>
    %148 = arith.addf %147, %146 : vector<8x48xf32>
    %149 = arith.divf %147, %148 : vector<8x48xf32>
    %150 = vector.extract_strided_slice %141 {offsets = [0, 128], sizes = [8, 48], strides = [1, 1]} : vector<8x384xf32> to vector<8x48xf32>
    %151 = vector.extract_strided_slice %140 {offsets = [0, 128], sizes = [8, 48], strides = [1, 1]} : vector<8x384xf32> to vector<8x48xf32>
    %152 = arith.addf %150, %151 : vector<8x48xf32>
    %153 = arith.negf %152 : vector<8x48xf32>
    %154 = math.exp %153 : vector<8x48xf32>
    %cst_110 = arith.constant 1.000000e+00 : f32
    %155 = vector.broadcast %cst_110 : f32 to vector<8x48xf32>
    %156 = arith.addf %155, %154 : vector<8x48xf32>
    %157 = arith.divf %155, %156 : vector<8x48xf32>
    %158 = vector.extract_strided_slice %141 {offsets = [0, 256], sizes = [8, 48], strides = [1, 1]} : vector<8x384xf32> to vector<8x48xf32>
    %159 = vector.extract_strided_slice %140 {offsets = [0, 256], sizes = [8, 48], strides = [1, 1]} : vector<8x384xf32> to vector<8x48xf32>
    %160 = vector.broadcast %135 : vector<1x48xf32> to vector<8x48xf32>
    %161 = arith.addf %159, %160 : vector<8x48xf32>
    %162 = arith.mulf %149, %161 : vector<8x48xf32>
    %163 = arith.addf %158, %162 : vector<8x48xf32>
    %164 = math.tanh %163 : vector<8x48xf32>
    %cst_111 = arith.constant 1.000000e+00 : f32
    %165 = vector.broadcast %cst_111 : f32 to vector<8x48xf32>
    %166 = arith.subf %165, %157 : vector<8x48xf32>
    %167 = arith.mulf %166, %164 : vector<8x48xf32>
    %168 = arith.mulf %157, %139 : vector<8x48xf32>
    %169 = arith.addf %167, %168 : vector<8x48xf32>
    %cst_112 = arith.constant dense<0.000000e+00> : vector<8x384xf32>
    %170 = tpu.matmul %169, %131, %cst_112 {dimension_numbers = #tpu.dot_dimension_numbers<[1], [0], [0], [1], [0, 0, 1, 1], [], []>} : vector<8x48xf32>, vector<48x384xf32>, vector<8x384xf32> -> vector<8x384xf32>
    %171 = vector.extract_strided_slice %138 {offsets = [8, 0], sizes = [8, 384], strides = [1, 1]} : vector<24x384xf32> to vector<8x384xf32>
    %172 = vector.extract_strided_slice %171 {offsets = [0, 0], sizes = [8, 48], strides = [1, 1]} : vector<8x384xf32> to vector<8x48xf32>
    %173 = vector.extract_strided_slice %170 {offsets = [0, 0], sizes = [8, 48], strides = [1, 1]} : vector<8x384xf32> to vector<8x48xf32>
    %174 = arith.addf %172, %173 : vector<8x48xf32>
    %175 = arith.negf %174 : vector<8x48xf32>
    %176 = math.exp %175 : vector<8x48xf32>
    %cst_113 = arith.constant 1.000000e+00 : f32
    %177 = vector.broadcast %cst_113 : f32 to vector<8x48xf32>
    %178 = arith.addf %177, %176 : vector<8x48xf32>
    %179 = arith.divf %177, %178 : vector<8x48xf32>
    %180 = vector.extract_strided_slice %171 {offsets = [0, 128], sizes = [8, 48], strides = [1, 1]} : vector<8x384xf32> to vector<8x48xf32>
    %181 = vector.extract_strided_slice %170 {offsets = [0, 128], sizes = [8, 48], strides = [1, 1]} : vector<8x384xf32> to vector<8x48xf32>
    %182 = arith.addf %180, %181 : vector<8x48xf32>
    %183 = arith.negf %182 : vector<8x48xf32>
    %184 = math.exp %183 : vector<8x48xf32>
    %cst_114 = arith.constant 1.000000e+00 : f32
    %185 = vector.broadcast %cst_114 : f32 to vector<8x48xf32>
    %186 = arith.addf %185, %184 : vector<8x48xf32>
    %187 = arith.divf %185, %186 : vector<8x48xf32>
    %188 = vector.extract_strided_slice %171 {offsets = [0, 256], sizes = [8, 48], strides = [1, 1]} : vector<8x384xf32> to vector<8x48xf32>
    %189 = vector.extract_strided_slice %170 {offsets = [0, 256], sizes = [8, 48], strides = [1, 1]} : vector<8x384xf32> to vector<8x48xf32>
    %190 = vector.broadcast %135 : vector<1x48xf32> to vector<8x48xf32>
    %191 = arith.addf %189, %190 : vector<8x48xf32>
    %192 = arith.mulf %179, %191 : vector<8x48xf32>
    %193 = arith.addf %188, %192 : vector<8x48xf32>
    %194 = math.tanh %193 : vector<8x48xf32>
    %cst_115 = arith.constant 1.000000e+00 : f32
    %195 = vector.broadcast %cst_115 : f32 to vector<8x48xf32>
    %196 = arith.subf %195, %187 : vector<8x48xf32>
    %197 = arith.mulf %196, %194 : vector<8x48xf32>
    %198 = arith.mulf %187, %169 : vector<8x48xf32>
    %199 = arith.addf %197, %198 : vector<8x48xf32>
    %cst_116 = arith.constant dense<0.000000e+00> : vector<8x384xf32>
    %200 = tpu.matmul %199, %131, %cst_116 {dimension_numbers = #tpu.dot_dimension_numbers<[1], [0], [0], [1], [0, 0, 1, 1], [], []>} : vector<8x48xf32>, vector<48x384xf32>, vector<8x384xf32> -> vector<8x384xf32>
    %201 = vector.extract_strided_slice %138 {offsets = [16, 0], sizes = [8, 384], strides = [1, 1]} : vector<24x384xf32> to vector<8x384xf32>
    %202 = vector.extract_strided_slice %201 {offsets = [0, 0], sizes = [8, 48], strides = [1, 1]} : vector<8x384xf32> to vector<8x48xf32>
    %203 = vector.extract_strided_slice %200 {offsets = [0, 0], sizes = [8, 48], strides = [1, 1]} : vector<8x384xf32> to vector<8x48xf32>
    %204 = arith.addf %202, %203 : vector<8x48xf32>
    %205 = arith.negf %204 : vector<8x48xf32>
    %206 = math.exp %205 : vector<8x48xf32>
    %cst_117 = arith.constant 1.000000e+00 : f32
    %207 = vector.broadcast %cst_117 : f32 to vector<8x48xf32>
    %208 = arith.addf %207, %206 : vector<8x48xf32>
    %209 = arith.divf %207, %208 : vector<8x48xf32>
    %210 = vector.extract_strided_slice %201 {offsets = [0, 128], sizes = [8, 48], strides = [1, 1]} : vector<8x384xf32> to vector<8x48xf32>
    %211 = vector.extract_strided_slice %200 {offsets = [0, 128], sizes = [8, 48], strides = [1, 1]} : vector<8x384xf32> to vector<8x48xf32>
    %212 = arith.addf %210, %211 : vector<8x48xf32>
    %213 = arith.negf %212 : vector<8x48xf32>
    %214 = math.exp %213 : vector<8x48xf32>
    %cst_118 = arith.constant 1.000000e+00 : f32
    %215 = vector.broadcast %cst_118 : f32 to vector<8x48xf32>
    %216 = arith.addf %215, %214 : vector<8x48xf32>
    %217 = arith.divf %215, %216 : vector<8x48xf32>
    %218 = vector.extract_strided_slice %201 {offsets = [0, 256], sizes = [8, 48], strides = [1, 1]} : vector<8x384xf32> to vector<8x48xf32>
    %219 = vector.extract_strided_slice %200 {offsets = [0, 256], sizes = [8, 48], strides = [1, 1]} : vector<8x384xf32> to vector<8x48xf32>
    %220 = vector.broadcast %135 : vector<1x48xf32> to vector<8x48xf32>
    %221 = arith.addf %219, %220 : vector<8x48xf32>
    %222 = arith.mulf %209, %221 : vector<8x48xf32>
    %223 = arith.addf %218, %222 : vector<8x48xf32>
    %224 = math.tanh %223 : vector<8x48xf32>
    %cst_119 = arith.constant 1.000000e+00 : f32
    %225 = vector.broadcast %cst_119 : f32 to vector<8x48xf32>
    %226 = arith.subf %225, %217 : vector<8x48xf32>
    %227 = arith.mulf %226, %224 : vector<8x48xf32>
    %228 = arith.mulf %217, %199 : vector<8x48xf32>
    %229 = arith.addf %227, %228 : vector<8x48xf32>
    %c1_120 = arith.constant 1 : index
    %c0_121 = arith.constant 0 : index
    %c0_122 = arith.constant 0 : index
    %230 = vector.load %arg4[%c1_120, %c0_121, %c0_122] : memref<2x120x32xf32, #tpu.memory_space<vmem>>, vector<1x120x32xf32>
    %231 = vector.shape_cast %230 : vector<1x120x32xf32> to vector<120x32xf32>
    %c1_123 = arith.constant 1 : index
    %c0_124 = arith.constant 0 : index
    %c0_125 = arith.constant 0 : index
    %232 = vector.load %arg5[%c1_123, %c0_124, %c0_125] : memref<2x1x32xf32, #tpu.memory_space<vmem>>, vector<1x1x32xf32>
    %233 = vector.shape_cast %232 : vector<1x1x32xf32> to vector<1x32xf32>
    %c1_126 = arith.constant 1 : index
    %c0_127 = arith.constant 0 : index
    %c0_128 = arith.constant 0 : index
    %c0_129 = arith.constant 0 : index
    %234 = vector.load %arg1[%c1_126, %c0_127, %c0_128, %c0_129] : memref<2x2x176x120xf32, #tpu.memory_space<vmem>>, vector<1x1x176x120xf32>
    %235 = vector.shape_cast %234 : vector<1x1x176x120xf32> to vector<176x120xf32>
    %cst_130 = arith.constant dense<0.000000e+00> : vector<176x32xf32>
    %236 = tpu.matmul %235, %231, %cst_130 {dimension_numbers = #tpu.dot_dimension_numbers<[1], [0], [0], [1], [0, 0, 1, 1], [], []>} : vector<176x120xf32>, vector<120x32xf32>, vector<176x32xf32> -> vector<176x32xf32>
    %c1_131 = arith.constant 1 : index
    %c1_132 = arith.constant 1 : index
    %c0_133 = arith.constant 0 : index
    %c0_134 = arith.constant 0 : index
    %237 = vector.load %arg1[%c1_131, %c1_132, %c0_133, %c0_134] : memref<2x2x176x120xf32, #tpu.memory_space<vmem>>, vector<1x1x176x120xf32>
    %238 = vector.shape_cast %237 : vector<1x1x176x120xf32> to vector<176x120xf32>
    %cst_135 = arith.constant dense<0.000000e+00> : vector<176x32xf32>
    %239 = tpu.matmul %238, %231, %cst_135 {dimension_numbers = #tpu.dot_dimension_numbers<[1], [0], [0], [1], [0, 0, 1, 1], [], []>} : vector<176x120xf32>, vector<120x32xf32>, vector<176x32xf32> -> vector<176x32xf32>
    %240 = arith.maximumf %236, %239 : vector<176x32xf32>
    %241 = vector.broadcast %233 : vector<1x32xf32> to vector<176x32xf32>
    %242 = arith.addf %240, %241 : vector<176x32xf32>
    %cst_136 = arith.constant 0.000000e+00 : f32
    %243 = vector.broadcast %cst_136 : f32 to vector<176x32xf32>
    %244 = arith.cmpf oge, %242, %243 : vector<176x32xf32>
    %cst_137 = arith.constant 0.00999999977 : f32
    %245 = vector.broadcast %cst_137 : f32 to vector<176x32xf32>
    %246 = arith.mulf %245, %242 : vector<176x32xf32>
    %247 = arith.select %244, %242, %246 : vector<176x32xi1>, vector<176x32xf32>
    %c0_138 = arith.constant 0 : index
    %c0_139 = arith.constant 0 : index
    %248 = vector.load %arg22[%c0_138, %c0_139] : memref<176x32xf32, #tpu.memory_space<vmem>>, vector<176x32xf32>
    tpu.vector_store %arg22[%c0_138, %c0_139], %247 {strides = array<i32>} : memref<176x32xf32, #tpu.memory_space<vmem>>, vector<176x32xf32>,
    %cst_140 = arith.constant 0.000000e+00 : f32
    %249 = vector.broadcast %cst_140 : f32 to vector<48x32xf32>
    %c0_141 = arith.constant 0 : index
    %c0_142 = arith.constant 0 : index
    %250 = vector.load %arg22[%c0_141, %c0_142] : memref<176x32xf32, #tpu.memory_space<vmem>>, vector<48x32xf32>
    %c0_143 = arith.constant 0 : index
    %c0_144 = arith.constant 0 : index
    %c0_145 = arith.constant 0 : index
    %251 = vector.load %arg6[%c0_143, %c0_144, %c0_145] : memref<16x32x32xf32, #tpu.memory_space<vmem>>, vector<1x32x32xf32>
    %252 = vector.shape_cast %251 : vector<1x32x32xf32> to vector<32x32xf32>
    %cst_146 = arith.constant dense<0.000000e+00> : vector<48x32xf32>
    %253 = tpu.matmul %250, %252, %cst_146 {dimension_numbers = #tpu.dot_dimension_numbers<[1], [0], [0], [1], [0, 0, 1, 1], [], []>} : vector<48x32xf32>, vector<32x32xf32>, vector<48x32xf32> -> vector<48x32xf32>
    %254 = arith.addf %249, %253 : vector<48x32xf32>
    %c8_147 = arith.constant 8 : index
    %c0_148 = arith.constant 0 : index
    %255 = vector.load %arg22[%c8_147, %c0_148] : memref<176x32xf32, #tpu.memory_space<vmem>>, vector<48x32xf32>
    %c1_149 = arith.constant 1 : index
    %c0_150 = arith.constant 0 : index
    %c0_151 = arith.constant 0 : index
    %256 = vector.load %arg6[%c1_149, %c0_150, %c0_151] : memref<16x32x32xf32, #tpu.memory_space<vmem>>, vector<1x32x32xf32>
    %257 = vector.shape_cast %256 : vector<1x32x32xf32> to vector<32x32xf32>
    %cst_152 = arith.constant dense<0.000000e+00> : vector<48x32xf32>
    %258 = tpu.matmul %255, %257, %cst_152 {dimension_numbers = #tpu.dot_dimension_numbers<[1], [0], [0], [1], [0, 0, 1, 1], [], []>} : vector<48x32xf32>, vector<32x32xf32>, vector<48x32xf32> -> vector<48x32xf32>
    %259 = arith.addf %254, %258 : vector<48x32xf32>
    %c16_153 = arith.constant 16 : index
    %c0_154 = arith.constant 0 : index
    %260 = vector.load %arg22[%c16_153, %c0_154] : memref<176x32xf32, #tpu.memory_space<vmem>>, vector<48x32xf32>
    %c2_155 = arith.constant 2 : index
    %c0_156 = arith.constant 0 : index
    %c0_157 = arith.constant 0 : index
    %261 = vector.load %arg6[%c2_155, %c0_156, %c0_157] : memref<16x32x32xf32, #tpu.memory_space<vmem>>, vector<1x32x32xf32>
    %262 = vector.shape_cast %261 : vector<1x32x32xf32> to vector<32x32xf32>
    %cst_158 = arith.constant dense<0.000000e+00> : vector<48x32xf32>
    %263 = tpu.matmul %260, %262, %cst_158 {dimension_numbers = #tpu.dot_dimension_numbers<[1], [0], [0], [1], [0, 0, 1, 1], [], []>} : vector<48x32xf32>, vector<32x32xf32>, vector<48x32xf32> -> vector<48x32xf32>
    %264 = arith.addf %259, %263 : vector<48x32xf32>
    %c24_159 = arith.constant 24 : index
    %c0_160 = arith.constant 0 : index
    %265 = vector.load %arg22[%c24_159, %c0_160] : memref<176x32xf32, #tpu.memory_space<vmem>>, vector<48x32xf32>
    %c3_161 = arith.constant 3 : index
    %c0_162 = arith.constant 0 : index
    %c0_163 = arith.constant 0 : index
    %266 = vector.load %arg6[%c3_161, %c0_162, %c0_163] : memref<16x32x32xf32, #tpu.memory_space<vmem>>, vector<1x32x32xf32>
    %267 = vector.shape_cast %266 : vector<1x32x32xf32> to vector<32x32xf32>
    %cst_164 = arith.constant dense<0.000000e+00> : vector<48x32xf32>
    %268 = tpu.matmul %265, %267, %cst_164 {dimension_numbers = #tpu.dot_dimension_numbers<[1], [0], [0], [1], [0, 0, 1, 1], [], []>} : vector<48x32xf32>, vector<32x32xf32>, vector<48x32xf32> -> vector<48x32xf32>
    %269 = arith.addf %264, %268 : vector<48x32xf32>
    %c32_165 = arith.constant 32 : index
    %c0_166 = arith.constant 0 : index
    %270 = vector.load %arg22[%c32_165, %c0_166] : memref<176x32xf32, #tpu.memory_space<vmem>>, vector<48x32xf32>
    %c4_167 = arith.constant 4 : index
    %c0_168 = arith.constant 0 : index
    %c0_169 = arith.constant 0 : index
    %271 = vector.load %arg6[%c4_167, %c0_168, %c0_169] : memref<16x32x32xf32, #tpu.memory_space<vmem>>, vector<1x32x32xf32>
    %272 = vector.shape_cast %271 : vector<1x32x32xf32> to vector<32x32xf32>
    %cst_170 = arith.constant dense<0.000000e+00> : vector<48x32xf32>
    %273 = tpu.matmul %270, %272, %cst_170 {dimension_numbers = #tpu.dot_dimension_numbers<[1], [0], [0], [1], [0, 0, 1, 1], [], []>} : vector<48x32xf32>, vector<32x32xf32>, vector<48x32xf32> -> vector<48x32xf32>
    %274 = arith.addf %269, %273 : vector<48x32xf32>
    %c40_171 = arith.constant 40 : index
    %c0_172 = arith.constant 0 : index
    %275 = vector.load %arg22[%c40_171, %c0_172] : memref<176x32xf32, #tpu.memory_space<vmem>>, vector<48x32xf32>
    %c5_173 = arith.constant 5 : index
    %c0_174 = arith.constant 0 : index
    %c0_175 = arith.constant 0 : index
    %276 = vector.load %arg6[%c5_173, %c0_174, %c0_175] : memref<16x32x32xf32, #tpu.memory_space<vmem>>, vector<1x32x32xf32>
    %277 = vector.shape_cast %276 : vector<1x32x32xf32> to vector<32x32xf32>
    %cst_176 = arith.constant dense<0.000000e+00> : vector<48x32xf32>
    %278 = tpu.matmul %275, %277, %cst_176 {dimension_numbers = #tpu.dot_dimension_numbers<[1], [0], [0], [1], [0, 0, 1, 1], [], []>} : vector<48x32xf32>, vector<32x32xf32>, vector<48x32xf32> -> vector<48x32xf32>
    %279 = arith.addf %274, %278 : vector<48x32xf32>
    %c48_177 = arith.constant 48 : index
    %c0_178 = arith.constant 0 : index
    %280 = vector.load %arg22[%c48_177, %c0_178] : memref<176x32xf32, #tpu.memory_space<vmem>>, vector<48x32xf32>
    %c6_179 = arith.constant 6 : index
    %c0_180 = arith.constant 0 : index
    %c0_181 = arith.constant 0 : index
    %281 = vector.load %arg6[%c6_179, %c0_180, %c0_181] : memref<16x32x32xf32, #tpu.memory_space<vmem>>, vector<1x32x32xf32>
    %282 = vector.shape_cast %281 : vector<1x32x32xf32> to vector<32x32xf32>
    %cst_182 = arith.constant dense<0.000000e+00> : vector<48x32xf32>
    %283 = tpu.matmul %280, %282, %cst_182 {dimension_numbers = #tpu.dot_dimension_numbers<[1], [0], [0], [1], [0, 0, 1, 1], [], []>} : vector<48x32xf32>, vector<32x32xf32>, vector<48x32xf32> -> vector<48x32xf32>
    %284 = arith.addf %279, %283 : vector<48x32xf32>
    %c56_183 = arith.constant 56 : index
    %c0_184 = arith.constant 0 : index
    %285 = vector.load %arg22[%c56_183, %c0_184] : memref<176x32xf32, #tpu.memory_space<vmem>>, vector<48x32xf32>
    %c7_185 = arith.constant 7 : index
    %c0_186 = arith.constant 0 : index
    %c0_187 = arith.constant 0 : index
    %286 = vector.load %arg6[%c7_185, %c0_186, %c0_187] : memref<16x32x32xf32, #tpu.memory_space<vmem>>, vector<1x32x32xf32>
    %287 = vector.shape_cast %286 : vector<1x32x32xf32> to vector<32x32xf32>
    %cst_188 = arith.constant dense<0.000000e+00> : vector<48x32xf32>
    %288 = tpu.matmul %285, %287, %cst_188 {dimension_numbers = #tpu.dot_dimension_numbers<[1], [0], [0], [1], [0, 0, 1, 1], [], []>} : vector<48x32xf32>, vector<32x32xf32>, vector<48x32xf32> -> vector<48x32xf32>
    %289 = arith.addf %284, %288 : vector<48x32xf32>
    %c64_189 = arith.constant 64 : index
    %c0_190 = arith.constant 0 : index
    %290 = vector.load %arg22[%c64_189, %c0_190] : memref<176x32xf32, #tpu.memory_space<vmem>>, vector<48x32xf32>
    %c8_191 = arith.constant 8 : index
    %c0_192 = arith.constant 0 : index
    %c0_193 = arith.constant 0 : index
    %291 = vector.load %arg6[%c8_191, %c0_192, %c0_193] : memref<16x32x32xf32, #tpu.memory_space<vmem>>, vector<1x32x32xf32>
    %292 = vector.shape_cast %291 : vector<1x32x32xf32> to vector<32x32xf32>
    %cst_194 = arith.constant dense<0.000000e+00> : vector<48x32xf32>
    %293 = tpu.matmul %290, %292, %cst_194 {dimension_numbers = #tpu.dot_dimension_numbers<[1], [0], [0], [1], [0, 0, 1, 1], [], []>} : vector<48x32xf32>, vector<32x32xf32>, vector<48x32xf32> -> vector<48x32xf32>
    %294 = arith.addf %289, %293 : vector<48x32xf32>
    %c72_195 = arith.constant 72 : index
    %c0_196 = arith.constant 0 : index
    %295 = vector.load %arg22[%c72_195, %c0_196] : memref<176x32xf32, #tpu.memory_space<vmem>>, vector<48x32xf32>
    %c9_197 = arith.constant 9 : index
    %c0_198 = arith.constant 0 : index
    %c0_199 = arith.constant 0 : index
    %296 = vector.load %arg6[%c9_197, %c0_198, %c0_199] : memref<16x32x32xf32, #tpu.memory_space<vmem>>, vector<1x32x32xf32>
    %297 = vector.shape_cast %296 : vector<1x32x32xf32> to vector<32x32xf32>
    %cst_200 = arith.constant dense<0.000000e+00> : vector<48x32xf32>
    %298 = tpu.matmul %295, %297, %cst_200 {dimension_numbers = #tpu.dot_dimension_numbers<[1], [0], [0], [1], [0, 0, 1, 1], [], []>} : vector<48x32xf32>, vector<32x32xf32>, vector<48x32xf32> -> vector<48x32xf32>
    %299 = arith.addf %294, %298 : vector<48x32xf32>
    %c80_201 = arith.constant 80 : index
    %c0_202 = arith.constant 0 : index
    %300 = vector.load %arg22[%c80_201, %c0_202] : memref<176x32xf32, #tpu.memory_space<vmem>>, vector<48x32xf32>
    %c10_203 = arith.constant 10 : index
    %c0_204 = arith.constant 0 : index
    %c0_205 = arith.constant 0 : index
    %301 = vector.load %arg6[%c10_203, %c0_204, %c0_205] : memref<16x32x32xf32, #tpu.memory_space<vmem>>, vector<1x32x32xf32>
    %302 = vector.shape_cast %301 : vector<1x32x32xf32> to vector<32x32xf32>
    %cst_206 = arith.constant dense<0.000000e+00> : vector<48x32xf32>
    %303 = tpu.matmul %300, %302, %cst_206 {dimension_numbers = #tpu.dot_dimension_numbers<[1], [0], [0], [1], [0, 0, 1, 1], [], []>} : vector<48x32xf32>, vector<32x32xf32>, vector<48x32xf32> -> vector<48x32xf32>
    %304 = arith.addf %299, %303 : vector<48x32xf32>
    %c88_207 = arith.constant 88 : index
    %c0_208 = arith.constant 0 : index
    %305 = vector.load %arg22[%c88_207, %c0_208] : memref<176x32xf32, #tpu.memory_space<vmem>>, vector<48x32xf32>
    %c11_209 = arith.constant 11 : index
    %c0_210 = arith.constant 0 : index
    %c0_211 = arith.constant 0 : index
    %306 = vector.load %arg6[%c11_209, %c0_210, %c0_211] : memref<16x32x32xf32, #tpu.memory_space<vmem>>, vector<1x32x32xf32>
    %307 = vector.shape_cast %306 : vector<1x32x32xf32> to vector<32x32xf32>
    %cst_212 = arith.constant dense<0.000000e+00> : vector<48x32xf32>
    %308 = tpu.matmul %305, %307, %cst_212 {dimension_numbers = #tpu.dot_dimension_numbers<[1], [0], [0], [1], [0, 0, 1, 1], [], []>} : vector<48x32xf32>, vector<32x32xf32>, vector<48x32xf32> -> vector<48x32xf32>
    %309 = arith.addf %304, %308 : vector<48x32xf32>
    %c96_213 = arith.constant 96 : index
    %c0_214 = arith.constant 0 : index
    %310 = vector.load %arg22[%c96_213, %c0_214] : memref<176x32xf32, #tpu.memory_space<vmem>>, vector<48x32xf32>
    %c12_215 = arith.constant 12 : index
    %c0_216 = arith.constant 0 : index
    %c0_217 = arith.constant 0 : index
    %311 = vector.load %arg6[%c12_215, %c0_216, %c0_217] : memref<16x32x32xf32, #tpu.memory_space<vmem>>, vector<1x32x32xf32>
    %312 = vector.shape_cast %311 : vector<1x32x32xf32> to vector<32x32xf32>
    %cst_218 = arith.constant dense<0.000000e+00> : vector<48x32xf32>
    %313 = tpu.matmul %310, %312, %cst_218 {dimension_numbers = #tpu.dot_dimension_numbers<[1], [0], [0], [1], [0, 0, 1, 1], [], []>} : vector<48x32xf32>, vector<32x32xf32>, vector<48x32xf32> -> vector<48x32xf32>
    %314 = arith.addf %309, %313 : vector<48x32xf32>
    %c104_219 = arith.constant 104 : index
    %c0_220 = arith.constant 0 : index
    %315 = vector.load %arg22[%c104_219, %c0_220] : memref<176x32xf32, #tpu.memory_space<vmem>>, vector<48x32xf32>
    %c13_221 = arith.constant 13 : index
    %c0_222 = arith.constant 0 : index
    %c0_223 = arith.constant 0 : index
    %316 = vector.load %arg6[%c13_221, %c0_222, %c0_223] : memref<16x32x32xf32, #tpu.memory_space<vmem>>, vector<1x32x32xf32>
    %317 = vector.shape_cast %316 : vector<1x32x32xf32> to vector<32x32xf32>
    %cst_224 = arith.constant dense<0.000000e+00> : vector<48x32xf32>
    %318 = tpu.matmul %315, %317, %cst_224 {dimension_numbers = #tpu.dot_dimension_numbers<[1], [0], [0], [1], [0, 0, 1, 1], [], []>} : vector<48x32xf32>, vector<32x32xf32>, vector<48x32xf32> -> vector<48x32xf32>
    %319 = arith.addf %314, %318 : vector<48x32xf32>
    %c112_225 = arith.constant 112 : index
    %c0_226 = arith.constant 0 : index
    %320 = vector.load %arg22[%c112_225, %c0_226] : memref<176x32xf32, #tpu.memory_space<vmem>>, vector<48x32xf32>
    %c14_227 = arith.constant 14 : index
    %c0_228 = arith.constant 0 : index
    %c0_229 = arith.constant 0 : index
    %321 = vector.load %arg6[%c14_227, %c0_228, %c0_229] : memref<16x32x32xf32, #tpu.memory_space<vmem>>, vector<1x32x32xf32>
    %322 = vector.shape_cast %321 : vector<1x32x32xf32> to vector<32x32xf32>
    %cst_230 = arith.constant dense<0.000000e+00> : vector<48x32xf32>
    %323 = tpu.matmul %320, %322, %cst_230 {dimension_numbers = #tpu.dot_dimension_numbers<[1], [0], [0], [1], [0, 0, 1, 1], [], []>} : vector<48x32xf32>, vector<32x32xf32>, vector<48x32xf32> -> vector<48x32xf32>
    %324 = arith.addf %319, %323 : vector<48x32xf32>
    %c120_231 = arith.constant 120 : index
    %c0_232 = arith.constant 0 : index
    %325 = vector.load %arg22[%c120_231, %c0_232] : memref<176x32xf32, #tpu.memory_space<vmem>>, vector<48x32xf32>
    %c15_233 = arith.constant 15 : index
    %c0_234 = arith.constant 0 : index
    %c0_235 = arith.constant 0 : index
    %326 = vector.load %arg6[%c15_233, %c0_234, %c0_235] : memref<16x32x32xf32, #tpu.memory_space<vmem>>, vector<1x32x32xf32>
    %327 = vector.shape_cast %326 : vector<1x32x32xf32> to vector<32x32xf32>
    %cst_236 = arith.constant dense<0.000000e+00> : vector<48x32xf32>
    %328 = tpu.matmul %325, %327, %cst_236 {dimension_numbers = #tpu.dot_dimension_numbers<[1], [0], [0], [1], [0, 0, 1, 1], [], []>} : vector<48x32xf32>, vector<32x32xf32>, vector<48x32xf32> -> vector<48x32xf32>
    %329 = arith.addf %324, %328 : vector<48x32xf32>
    %c0_237 = arith.constant 0 : index
    %c0_238 = arith.constant 0 : index
    %330 = vector.load %arg7[%c0_237, %c0_238] : memref<1x32xf32, #tpu.memory_space<vmem>>, vector<1x32xf32>
    %331 = vector.broadcast %330 : vector<1x32xf32> to vector<48x32xf32>
    %332 = arith.addf %329, %331 : vector<48x32xf32>
    %333 = vector.extract_strided_slice %332 {offsets = [0, 0], sizes = [8, 32], strides = [1, 1]} : vector<48x32xf32> to vector<8x32xf32>
    %334 = vector.extract_strided_slice %332 {offsets = [8, 0], sizes = [8, 32], strides = [1, 1]} : vector<48x32xf32> to vector<8x32xf32>
    %335 = arith.maximumf %333, %334 : vector<8x32xf32>
    %cst_239 = arith.constant 0.000000e+00 : f32
    %336 = vector.broadcast %cst_239 : f32 to vector<8x32xf32>
    %337 = arith.cmpf oge, %335, %336 : vector<8x32xf32>
    %cst_240 = arith.constant 0.00999999977 : f32
    %338 = vector.broadcast %cst_240 : f32 to vector<8x32xf32>
    %339 = arith.mulf %338, %335 : vector<8x32xf32>
    %340 = arith.select %337, %335, %339 : vector<8x32xi1>, vector<8x32xf32>
    %341 = vector.extract_strided_slice %332 {offsets = [16, 0], sizes = [8, 32], strides = [1, 1]} : vector<48x32xf32> to vector<8x32xf32>
    %342 = vector.extract_strided_slice %332 {offsets = [24, 0], sizes = [8, 32], strides = [1, 1]} : vector<48x32xf32> to vector<8x32xf32>
    %343 = arith.maximumf %341, %342 : vector<8x32xf32>
    %cst_241 = arith.constant 0.000000e+00 : f32
    %344 = vector.broadcast %cst_241 : f32 to vector<8x32xf32>
    %345 = arith.cmpf oge, %343, %344 : vector<8x32xf32>
    %cst_242 = arith.constant 0.00999999977 : f32
    %346 = vector.broadcast %cst_242 : f32 to vector<8x32xf32>
    %347 = arith.mulf %346, %343 : vector<8x32xf32>
    %348 = arith.select %345, %343, %347 : vector<8x32xi1>, vector<8x32xf32>
    %349 = vector.extract_strided_slice %332 {offsets = [32, 0], sizes = [8, 32], strides = [1, 1]} : vector<48x32xf32> to vector<8x32xf32>
    %350 = vector.extract_strided_slice %332 {offsets = [40, 0], sizes = [8, 32], strides = [1, 1]} : vector<48x32xf32> to vector<8x32xf32>
    %351 = arith.maximumf %349, %350 : vector<8x32xf32>
    %cst_243 = arith.constant 0.000000e+00 : f32
    %352 = vector.broadcast %cst_243 : f32 to vector<8x32xf32>
    %353 = arith.cmpf oge, %351, %352 : vector<8x32xf32>
    %cst_244 = arith.constant 0.00999999977 : f32
    %354 = vector.broadcast %cst_244 : f32 to vector<8x32xf32>
    %355 = arith.mulf %354, %351 : vector<8x32xf32>
    %356 = arith.select %353, %351, %355 : vector<8x32xi1>, vector<8x32xf32>
    %357 = tpu.concatenate %340, %348, %356 in 0 : vector<8x32xf32>, vector<8x32xf32>, vector<8x32xf32> -> vector<24x32xf32>
    %c1_245 = arith.constant 1 : index
    %c0_246 = arith.constant 0 : index
    %c0_247 = arith.constant 0 : index
    %358 = vector.load %arg8[%c1_245, %c0_246, %c0_247] : memref<2x32x384xf32, #tpu.memory_space<vmem>>, vector<1x32x384xf32>
    %359 = vector.shape_cast %358 : vector<1x32x384xf32> to vector<32x384xf32>
    %c1_248 = arith.constant 1 : index
    %c0_249 = arith.constant 0 : index
    %c0_250 = arith.constant 0 : index
    %360 = vector.load %arg9[%c1_248, %c0_249, %c0_250] : memref<2x48x384xf32, #tpu.memory_space<vmem>>, vector<1x48x384xf32>
    %361 = vector.shape_cast %360 : vector<1x48x384xf32> to vector<48x384xf32>
    %c1_251 = arith.constant 1 : index
    %c0_252 = arith.constant 0 : index
    %c0_253 = arith.constant 0 : index
    %362 = vector.load %arg10[%c1_251, %c0_252, %c0_253] : memref<2x1x384xf32, #tpu.memory_space<vmem>>, vector<1x1x384xf32>
    %363 = vector.shape_cast %362 : vector<1x1x384xf32> to vector<1x384xf32>
    %c1_254 = arith.constant 1 : index
    %c0_255 = arith.constant 0 : index
    %c0_256 = arith.constant 0 : index
    %364 = vector.load %arg11[%c1_254, %c0_255, %c0_256] : memref<2x1x48xf32, #tpu.memory_space<vmem>>, vector<1x1x48xf32>
    %365 = vector.shape_cast %364 : vector<1x1x48xf32> to vector<1x48xf32>
    %cst_257 = arith.constant dense<0.000000e+00> : vector<24x384xf32>
    %366 = tpu.matmul %357, %359, %cst_257 {dimension_numbers = #tpu.dot_dimension_numbers<[1], [0], [0], [1], [0, 0, 1, 1], [], []>} : vector<24x32xf32>, vector<32x384xf32>, vector<24x384xf32> -> vector<24x384xf32>
    %367 = vector.broadcast %363 : vector<1x384xf32> to vector<24x384xf32>
    %368 = arith.addf %366, %367 : vector<24x384xf32>
    %cst_258 = arith.constant 0.000000e+00 : f32
    %369 = vector.broadcast %cst_258 : f32 to vector<8x48xf32>
    %cst_259 = arith.constant dense<0.000000e+00> : vector<8x384xf32>
    %370 = tpu.matmul %369, %361, %cst_259 {dimension_numbers = #tpu.dot_dimension_numbers<[1], [0], [0], [1], [0, 0, 1, 1], [], []>} : vector<8x48xf32>, vector<48x384xf32>, vector<8x384xf32> -> vector<8x384xf32>
    %371 = vector.extract_strided_slice %368 {offsets = [0, 0], sizes = [8, 384], strides = [1, 1]} : vector<24x384xf32> to vector<8x384xf32>
    %372 = vector.extract_strided_slice %371 {offsets = [0, 0], sizes = [8, 48], strides = [1, 1]} : vector<8x384xf32> to vector<8x48xf32>
    %373 = vector.extract_strided_slice %370 {offsets = [0, 0], sizes = [8, 48], strides = [1, 1]} : vector<8x384xf32> to vector<8x48xf32>
    %374 = arith.addf %372, %373 : vector<8x48xf32>
    %375 = arith.negf %374 : vector<8x48xf32>
    %376 = math.exp %375 : vector<8x48xf32>
    %cst_260 = arith.constant 1.000000e+00 : f32
    %377 = vector.broadcast %cst_260 : f32 to vector<8x48xf32>
    %378 = arith.addf %377, %376 : vector<8x48xf32>
    %379 = arith.divf %377, %378 : vector<8x48xf32>
    %380 = vector.extract_strided_slice %371 {offsets = [0, 128], sizes = [8, 48], strides = [1, 1]} : vector<8x384xf32> to vector<8x48xf32>
    %381 = vector.extract_strided_slice %370 {offsets = [0, 128], sizes = [8, 48], strides = [1, 1]} : vector<8x384xf32> to vector<8x48xf32>
    %382 = arith.addf %380, %381 : vector<8x48xf32>
    %383 = arith.negf %382 : vector<8x48xf32>
    %384 = math.exp %383 : vector<8x48xf32>
    %cst_261 = arith.constant 1.000000e+00 : f32
    %385 = vector.broadcast %cst_261 : f32 to vector<8x48xf32>
    %386 = arith.addf %385, %384 : vector<8x48xf32>
    %387 = arith.divf %385, %386 : vector<8x48xf32>
    %388 = vector.extract_strided_slice %371 {offsets = [0, 256], sizes = [8, 48], strides = [1, 1]} : vector<8x384xf32> to vector<8x48xf32>
    %389 = vector.extract_strided_slice %370 {offsets = [0, 256], sizes = [8, 48], strides = [1, 1]} : vector<8x384xf32> to vector<8x48xf32>
    %390 = vector.broadcast %365 : vector<1x48xf32> to vector<8x48xf32>
    %391 = arith.addf %389, %390 : vector<8x48xf32>
    %392 = arith.mulf %379, %391 : vector<8x48xf32>
    %393 = arith.addf %388, %392 : vector<8x48xf32>
    %394 = math.tanh %393 : vector<8x48xf32>
    %cst_262 = arith.constant 1.000000e+00 : f32
    %395 = vector.broadcast %cst_262 : f32 to vector<8x48xf32>
    %396 = arith.subf %395, %387 : vector<8x48xf32>
    %397 = arith.mulf %396, %394 : vector<8x48xf32>
    %398 = arith.mulf %387, %369 : vector<8x48xf32>
    %399 = arith.addf %397, %398 : vector<8x48xf32>
    %cst_263 = arith.constant dense<0.000000e+00> : vector<8x384xf32>
    %400 = tpu.matmul %399, %361, %cst_263 {dimension_numbers = #tpu.dot_dimension_numbers<[1], [0], [0], [1], [0, 0, 1, 1], [], []>} : vector<8x48xf32>, vector<48x384xf32>, vector<8x384xf32> -> vector<8x384xf32>
    %401 = vector.extract_strided_slice %368 {offsets = [8, 0], sizes = [8, 384], strides = [1, 1]} : vector<24x384xf32> to vector<8x384xf32>
    %402 = vector.extract_strided_slice %401 {offsets = [0, 0], sizes = [8, 48], strides = [1, 1]} : vector<8x384xf32> to vector<8x48xf32>
    %403 = vector.extract_strided_slice %400 {offsets = [0, 0], sizes = [8, 48], strides = [1, 1]} : vector<8x384xf32> to vector<8x48xf32>
    %404 = arith.addf %402, %403 : vector<8x48xf32>
    %405 = arith.negf %404 : vector<8x48xf32>
    %406 = math.exp %405 : vector<8x48xf32>
    %cst_264 = arith.constant 1.000000e+00 : f32
    %407 = vector.broadcast %cst_264 : f32 to vector<8x48xf32>
    %408 = arith.addf %407, %406 : vector<8x48xf32>
    %409 = arith.divf %407, %408 : vector<8x48xf32>
    %410 = vector.extract_strided_slice %401 {offsets = [0, 128], sizes = [8, 48], strides = [1, 1]} : vector<8x384xf32> to vector<8x48xf32>
    %411 = vector.extract_strided_slice %400 {offsets = [0, 128], sizes = [8, 48], strides = [1, 1]} : vector<8x384xf32> to vector<8x48xf32>
    %412 = arith.addf %410, %411 : vector<8x48xf32>
    %413 = arith.negf %412 : vector<8x48xf32>
    %414 = math.exp %413 : vector<8x48xf32>
    %cst_265 = arith.constant 1.000000e+00 : f32
    %415 = vector.broadcast %cst_265 : f32 to vector<8x48xf32>
    %416 = arith.addf %415, %414 : vector<8x48xf32>
    %417 = arith.divf %415, %416 : vector<8x48xf32>
    %418 = vector.extract_strided_slice %401 {offsets = [0, 256], sizes = [8, 48], strides = [1, 1]} : vector<8x384xf32> to vector<8x48xf32>
    %419 = vector.extract_strided_slice %400 {offsets = [0, 256], sizes = [8, 48], strides = [1, 1]} : vector<8x384xf32> to vector<8x48xf32>
    %420 = vector.broadcast %365 : vector<1x48xf32> to vector<8x48xf32>
    %421 = arith.addf %419, %420 : vector<8x48xf32>
    %422 = arith.mulf %409, %421 : vector<8x48xf32>
    %423 = arith.addf %418, %422 : vector<8x48xf32>
    %424 = math.tanh %423 : vector<8x48xf32>
    %cst_266 = arith.constant 1.000000e+00 : f32
    %425 = vector.broadcast %cst_266 : f32 to vector<8x48xf32>
    %426 = arith.subf %425, %417 : vector<8x48xf32>
    %427 = arith.mulf %426, %424 : vector<8x48xf32>
    %428 = arith.mulf %417, %399 : vector<8x48xf32>
    %429 = arith.addf %427, %428 : vector<8x48xf32>
    %cst_267 = arith.constant dense<0.000000e+00> : vector<8x384xf32>
    %430 = tpu.matmul %429, %361, %cst_267 {dimension_numbers = #tpu.dot_dimension_numbers<[1], [0], [0], [1], [0, 0, 1, 1], [], []>} : vector<8x48xf32>, vector<48x384xf32>, vector<8x384xf32> -> vector<8x384xf32>
    %431 = vector.extract_strided_slice %368 {offsets = [16, 0], sizes = [8, 384], strides = [1, 1]} : vector<24x384xf32> to vector<8x384xf32>
    %432 = vector.extract_strided_slice %431 {offsets = [0, 0], sizes = [8, 48], strides = [1, 1]} : vector<8x384xf32> to vector<8x48xf32>
    %433 = vector.extract_strided_slice %430 {offsets = [0, 0], sizes = [8, 48], strides = [1, 1]} : vector<8x384xf32> to vector<8x48xf32>
    %434 = arith.addf %432, %433 : vector<8x48xf32>
    %435 = arith.negf %434 : vector<8x48xf32>
    %436 = math.exp %435 : vector<8x48xf32>
    %cst_268 = arith.constant 1.000000e+00 : f32
    %437 = vector.broadcast %cst_268 : f32 to vector<8x48xf32>
    %438 = arith.addf %437, %436 : vector<8x48xf32>
    %439 = arith.divf %437, %438 : vector<8x48xf32>
    %440 = vector.extract_strided_slice %431 {offsets = [0, 128], sizes = [8, 48], strides = [1, 1]} : vector<8x384xf32> to vector<8x48xf32>
    %441 = vector.extract_strided_slice %430 {offsets = [0, 128], sizes = [8, 48], strides = [1, 1]} : vector<8x384xf32> to vector<8x48xf32>
    %442 = arith.addf %440, %441 : vector<8x48xf32>
    %443 = arith.negf %442 : vector<8x48xf32>
    %444 = math.exp %443 : vector<8x48xf32>
    %cst_269 = arith.constant 1.000000e+00 : f32
    %445 = vector.broadcast %cst_269 : f32 to vector<8x48xf32>
    %446 = arith.addf %445, %444 : vector<8x48xf32>
    %447 = arith.divf %445, %446 : vector<8x48xf32>
    %448 = vector.extract_strided_slice %431 {offsets = [0, 256], sizes = [8, 48], strides = [1, 1]} : vector<8x384xf32> to vector<8x48xf32>
    %449 = vector.extract_strided_slice %430 {offsets = [0, 256], sizes = [8, 48], strides = [1, 1]} : vector<8x384xf32> to vector<8x48xf32>
    %450 = vector.broadcast %365 : vector<1x48xf32> to vector<8x48xf32>
    %451 = arith.addf %449, %450 : vector<8x48xf32>
    %452 = arith.mulf %439, %451 : vector<8x48xf32>
    %453 = arith.addf %448, %452 : vector<8x48xf32>
    %454 = math.tanh %453 : vector<8x48xf32>
    %cst_270 = arith.constant 1.000000e+00 : f32
    %455 = vector.broadcast %cst_270 : f32 to vector<8x48xf32>
    %456 = arith.subf %455, %447 : vector<8x48xf32>
    %457 = arith.mulf %456, %454 : vector<8x48xf32>
    %458 = arith.mulf %447, %429 : vector<8x48xf32>
    %459 = arith.addf %457, %458 : vector<8x48xf32>
    %c0_271 = arith.constant 0 : index
    %c0_272 = arith.constant 0 : index
    %460 = vector.load %arg3[%c0_271, %c0_272] : memref<8x5xf32, #tpu.memory_space<vmem>>, vector<8x5xf32>
    %cst_273 = arith.constant 5.000000e+01 : f32
    %461 = vector.broadcast %cst_273 : f32 to vector<8x5xf32>
    %462 = arith.subf %460, %461 : vector<8x5xf32>
    %cst_274 = arith.constant 1.000000e+02 : f32
    %463 = vector.broadcast %cst_274 : f32 to vector<8x5xf32>
    %464 = arith.divf %462, %463 : vector<8x5xf32>
    %c0_275 = arith.constant 0 : index
    %c0_276 = arith.constant 0 : index
    %465 = vector.load %arg12[%c0_275, %c0_276] : memref<5x32xf32, #tpu.memory_space<vmem>>, vector<5x32xf32>
    %cst_277 = arith.constant dense<0.000000e+00> : vector<8x32xf32>
    %466 = tpu.matmul %464, %465, %cst_277 {dimension_numbers = #tpu.dot_dimension_numbers<[1], [0], [0], [1], [0, 0, 1, 1], [], []>} : vector<8x5xf32>, vector<5x32xf32>, vector<8x32xf32> -> vector<8x32xf32>
    %c0_278 = arith.constant 0 : index
    %c0_279 = arith.constant 0 : index
    %467 = vector.load %arg13[%c0_278, %c0_279] : memref<1x32xf32, #tpu.memory_space<vmem>>, vector<1x32xf32>
    %468 = vector.broadcast %467 : vector<1x32xf32> to vector<8x32xf32>
    %469 = arith.addf %466, %468 : vector<8x32xf32>
    %cst_280 = arith.constant 0.000000e+00 : f32
    %470 = vector.broadcast %cst_280 : f32 to vector<8x32xf32>
    %471 = arith.maximumf %469, %470 : vector<8x32xf32>
    %c0_281 = arith.constant 0 : index
    %c0_282 = arith.constant 0 : index
    %472 = vector.load %arg14[%c0_281, %c0_282] : memref<32x2xf32, #tpu.memory_space<vmem>>, vector<32x2xf32>
    %cst_283 = arith.constant dense<0.000000e+00> : vector<8x2xf32>
    %473 = tpu.matmul %471, %472, %cst_283 {dimension_numbers = #tpu.dot_dimension_numbers<[1], [0], [0], [1], [0, 0, 1, 1], [], []>} : vector<8x32xf32>, vector<32x2xf32>, vector<8x2xf32> -> vector<8x2xf32>
    %c0_284 = arith.constant 0 : index
    %c0_285 = arith.constant 0 : index
    %474 = vector.load %arg15[%c0_284, %c0_285] : memref<1x2xf32, #tpu.memory_space<vmem>>, vector<1x2xf32>
    %475 = vector.broadcast %474 : vector<1x2xf32> to vector<8x2xf32>
    %476 = arith.addf %473, %475 : vector<8x2xf32>
    %cst_286 = arith.constant 0.000000e+00 : f32
    %477 = vector.broadcast %cst_286 : f32 to vector<8x2xf32>
    %478 = arith.maximumf %476, %477 : vector<8x2xf32>
    %479 = tpu.concatenate %229, %459, %478 in 1 : vector<8x48xf32>, vector<8x48xf32>, vector<8x2xf32> -> vector<8x98xf32>
    %c0_287 = arith.constant 0 : index
    %c0_288 = arith.constant 0 : index
    %480 = vector.load %arg2[%c0_287, %c0_288] : memref<8x1xf32, #tpu.memory_space<vmem>>, vector<8x1xf32>
    %481 = vector.broadcast %480 : vector<8x1xf32> to vector<8x98xf32>
    %482 = arith.mulf %481, %479 : vector<8x98xf32>
    %cst_289 = arith.constant dense<0.000000e+00> : vector<98xf32>
    %483 = vector.multi_reduction <add>, %482, %cst_289 [0] : vector<8x98xf32> to vector<98xf32>
    %484 = vector.shape_cast %483 : vector<98xf32> to vector<1x98xf32>
    %485 = vector.broadcast %480 : vector<8x1xf32> to vector<8x98xf32>
    %486 = arith.mulf %485, %479 : vector<8x98xf32>
    %487 = arith.mulf %486, %479 : vector<8x98xf32>
    %cst_290 = arith.constant dense<0.000000e+00> : vector<98xf32>
    %488 = vector.multi_reduction <add>, %487, %cst_290 [0] : vector<8x98xf32> to vector<98xf32>
    %489 = vector.shape_cast %488 : vector<98xf32> to vector<1x98xf32>
    %490 = arith.mulf %484, %484 : vector<1x98xf32>
    %491 = arith.subf %489, %490 : vector<1x98xf32>
    %492 = tpu.concatenate %484, %491 in 1 : vector<1x98xf32>, vector<1x98xf32> -> vector<1x196xf32>
    %c0_291 = arith.constant 0 : index
    %c0_292 = arith.constant 0 : index
    %493 = vector.load %arg17[%c0_291, %c0_292] : memref<98x32xf32, #tpu.memory_space<vmem>>, vector<98x32xf32>
    %cst_293 = arith.constant dense<0.000000e+00> : vector<8x32xf32>
    %494 = tpu.matmul %479, %493, %cst_293 {dimension_numbers = #tpu.dot_dimension_numbers<[1], [0], [0], [1], [0, 0, 1, 1], [], []>} : vector<8x98xf32>, vector<98x32xf32>, vector<8x32xf32> -> vector<8x32xf32>
    %c0_294 = arith.constant 0 : index
    %c0_295 = arith.constant 0 : index
    %495 = vector.load %arg16[%c0_294, %c0_295] : memref<196x32xf32, #tpu.memory_space<vmem>>, vector<196x32xf32>
    %cst_296 = arith.constant dense<0.000000e+00> : vector<1x32xf32>
    %496 = tpu.matmul %492, %495, %cst_296 {dimension_numbers = #tpu.dot_dimension_numbers<[1], [0], [0], [1], [0, 0, 1, 1], [], []>} : vector<1x196xf32>, vector<196x32xf32>, vector<1x32xf32> -> vector<1x32xf32>
    %497 = vector.broadcast %496 : vector<1x32xf32> to vector<8x32xf32>
    %498 = arith.addf %494, %497 : vector<8x32xf32>
    %c0_297 = arith.constant 0 : index
    %c0_298 = arith.constant 0 : index
    %499 = vector.load %arg18[%c0_297, %c0_298] : memref<1x32xf32, #tpu.memory_space<vmem>>, vector<1x32xf32>
    %500 = vector.broadcast %499 : vector<1x32xf32> to vector<8x32xf32>
    %501 = arith.addf %498, %500 : vector<8x32xf32>
    %cst_299 = arith.constant 0.000000e+00 : f32
    %502 = vector.broadcast %cst_299 : f32 to vector<8x32xf32>
    %503 = arith.maximumf %501, %502 : vector<8x32xf32>
    %c0_300 = arith.constant 0 : index
    %c0_301 = arith.constant 0 : index
    %504 = vector.load %arg19[%c0_300, %c0_301] : memref<32x1xf32, #tpu.memory_space<vmem>>, vector<32x1xf32>
    %cst_302 = arith.constant dense<0.000000e+00> : vector<8x1xf32>
    %505 = tpu.matmul %503, %504, %cst_302 {dimension_numbers = #tpu.dot_dimension_numbers<[1], [0], [0], [1], [0, 0, 1, 1], [], []>} : vector<8x32xf32>, vector<32x1xf32>, vector<8x1xf32> -> vector<8x1xf32>
    %c0_303 = arith.constant 0 : index
    %c0_304 = arith.constant 0 : index
    %506 = vector.load %arg20[%c0_303, %c0_304] : memref<1x1xf32, #tpu.memory_space<vmem>>, vector<1x1xf32>
    %507 = vector.broadcast %506 : vector<1x1xf32> to vector<8x1xf32>
    %508 = arith.addf %505, %507 : vector<8x1xf32>
    %c0_305 = arith.constant 0 : index
    %c0_306 = arith.constant 0 : index
    %509 = vector.load %arg21[%c0_305, %c0_306] : memref<8x1xf32, #tpu.memory_space<vmem>>, vector<8x1xf32>
    tpu.vector_store %arg21[%c0_305, %c0_306], %508 {strides = array<i32>} : memref<8x1xf32, #tpu.memory_space<vmem>>, vector<8x1xf32>,
    return
  }
  func.func @transform_0(%arg0: i32) -> (i32, i32, i32, i32) {
    %c0_i32 = arith.constant 0 : i32
    %c0_i32_0 = arith.constant 0 : i32
    %c0_i32_1 = arith.constant 0 : i32
    %c0_i32_2 = arith.constant 0 : i32
    %c0_i32_3 = arith.constant 0 : i32
    return %c0_i32, %c0_i32_0, %c0_i32_1, %c0_i32_2 : i32, i32, i32, i32
  }
  func.func @transform_1(%arg0: i32) -> (i32, i32) {
    %c0_i32 = arith.constant 0 : i32
    %c0_i32_0 = arith.constant 0 : i32
    %c0_i32_1 = arith.constant 0 : i32
    return %c0_i32, %c0_i32_0 : i32, i32
  }
  func.func @transform_2(%arg0: i32) -> (i32, i32) {
    %c0_i32 = arith.constant 0 : i32
    %c0_i32_0 = arith.constant 0 : i32
    %c0_i32_1 = arith.constant 0 : i32
    return %c0_i32, %c0_i32_0 : i32, i32
  }
  func.func @transform_3(%arg0: i32) -> (i32, i32, i32) {
    %c0_i32 = arith.constant 0 : i32
    %c0_i32_0 = arith.constant 0 : i32
    %c0_i32_1 = arith.constant 0 : i32
    %c0_i32_2 = arith.constant 0 : i32
    return %c0_i32, %c0_i32_0, %c0_i32_1 : i32, i32, i32
  }
  func.func @transform_4(%arg0: i32) -> (i32, i32, i32) {
    %c0_i32 = arith.constant 0 : i32
    %c0_i32_0 = arith.constant 0 : i32
    %c0_i32_1 = arith.constant 0 : i32
    %c0_i32_2 = arith.constant 0 : i32
    return %c0_i32, %c0_i32_0, %c0_i32_1 : i32, i32, i32
  }
  func.func @transform_5(%arg0: i32) -> (i32, i32, i32) {
    %c0_i32 = arith.constant 0 : i32
    %c0_i32_0 = arith.constant 0 : i32
    %c0_i32_1 = arith.constant 0 : i32
    %c0_i32_2 = arith.constant 0 : i32
    return %c0_i32, %c0_i32_0, %c0_i32_1 : i32, i32, i32
  }
  func.func @transform_6(%arg0: i32) -> (i32, i32) {
    %c0_i32 = arith.constant 0 : i32
    %c0_i32_0 = arith.constant 0 : i32
    %c0_i32_1 = arith.constant 0 : i32
    return %c0_i32, %c0_i32_0 : i32, i32
  }
  func.func @transform_7(%arg0: i32) -> (i32, i32, i32) {
    %c0_i32 = arith.constant 0 : i32
    %c0_i32_0 = arith.constant 0 : i32
    %c0_i32_1 = arith.constant 0 : i32
    %c0_i32_2 = arith.constant 0 : i32
    return %c0_i32, %c0_i32_0, %c0_i32_1 : i32, i32, i32
  }
  func.func @transform_8(%arg0: i32) -> (i32, i32, i32) {
    %c0_i32 = arith.constant 0 : i32
    %c0_i32_0 = arith.constant 0 : i32
    %c0_i32_1 = arith.constant 0 : i32
    %c0_i32_2 = arith.constant 0 : i32
    return %c0_i32, %c0_i32_0, %c0_i32_1 : i32, i32, i32
  }
  func.func @transform_9(%arg0: i32) -> (i32, i32, i32) {
    %c0_i32 = arith.constant 0 : i32
    %c0_i32_0 = arith.constant 0 : i32
    %c0_i32_1 = arith.constant 0 : i32
    %c0_i32_2 = arith.constant 0 : i32
    return %c0_i32, %c0_i32_0, %c0_i32_1 : i32, i32, i32
  }
  func.func @transform_10(%arg0: i32) -> (i32, i32, i32) {
    %c0_i32 = arith.constant 0 : i32
    %c0_i32_0 = arith.constant 0 : i32
    %c0_i32_1 = arith.constant 0 : i32
    %c0_i32_2 = arith.constant 0 : i32
    return %c0_i32, %c0_i32_0, %c0_i32_1 : i32, i32, i32
  }
  func.func @transform_11(%arg0: i32) -> (i32, i32) {
    %c0_i32 = arith.constant 0 : i32
    %c0_i32_0 = arith.constant 0 : i32
    %c0_i32_1 = arith.constant 0 : i32
    return %c0_i32, %c0_i32_0 : i32, i32
  }
  func.func @transform_12(%arg0: i32) -> (i32, i32) {
    %c0_i32 = arith.constant 0 : i32
    %c0_i32_0 = arith.constant 0 : i32
    %c0_i32_1 = arith.constant 0 : i32
    return %c0_i32, %c0_i32_0 : i32, i32
  }
  func.func @transform_13(%arg0: i32) -> (i32, i32) {
    %c0_i32 = arith.constant 0 : i32
    %c0_i32_0 = arith.constant 0 : i32
    %c0_i32_1 = arith.constant 0 : i32
    return %c0_i32, %c0_i32_0 : i32, i32
  }
  func.func @transform_14(%arg0: i32) -> (i32, i32) {
    %c0_i32 = arith.constant 0 : i32
    %c0_i32_0 = arith.constant 0 : i32
    %c0_i32_1 = arith.constant 0 : i32
    return %c0_i32, %c0_i32_0 : i32, i32
  }
  func.func @transform_15(%arg0: i32) -> (i32, i32) {
    %c0_i32 = arith.constant 0 : i32
    %c0_i32_0 = arith.constant 0 : i32
    %c0_i32_1 = arith.constant 0 : i32
    return %c0_i32, %c0_i32_0 : i32, i32
  }
  func.func @transform_16(%arg0: i32) -> (i32, i32) {
    %c0_i32 = arith.constant 0 : i32
    %c0_i32_0 = arith.constant 0 : i32
    %c0_i32_1 = arith.constant 0 : i32
    return %c0_i32, %c0_i32_0 : i32, i32
  }
  func.func @transform_17(%arg0: i32) -> (i32, i32) {
    %c0_i32 = arith.constant 0 : i32
    %c0_i32_0 = arith.constant 0 : i32
    %c0_i32_1 = arith.constant 0 : i32
    return %c0_i32, %c0_i32_0 : i32, i32
  }
  func.func @transform_18(%arg0: i32) -> (i32, i32) {
    %c0_i32 = arith.constant 0 : i32
    %c0_i32_0 = arith.constant 0 : i32
    %c0_i32_1 = arith.constant 0 : i32
    return %c0_i32, %c0_i32_0 : i32, i32
  }
  func.func @transform_19(%arg0: i32) -> (i32, i32) {
    %c0_i32 = arith.constant 0 : i32
    %c0_i32_0 = arith.constant 0 : i32
    %c0_i32_1 = arith.constant 0 : i32
    return %c0_i32, %c0_i32_0 : i32, i32
  }
  func.func @transform_20(%arg0: i32) -> (i32, i32) {
    %c0_i32 = arith.constant 0 : i32
    %c0_i32_0 = arith.constant 0 : i32
    %c0_i32_1 = arith.constant 0 : i32
    return %c0_i32, %c0_i32_0 : i32, i32
  }
}

</mosaic_0001>

<llo_original>
// kernel: forward.1
$region0: #{forward.1}
  #allocation0 [shape = 'u32[]', space=smem, size = 0x4, offset = 0x4, fixed_abs, tag = 'smem constant byte address 0x4 - core index']
  #allocation1 [shape = 'u32[144,128]{1,0:T(1,128)}', space=vmem, size = 0x12000, scoped, tag = 'internal scratch']
  #allocation2 [shape = 'f32[176,32]{1,0:T(8,128)}', space=vmem, size = 0x16000, scoped, tag = 'scratch operand']
  #allocation3 [shape = 'f32[1,1]{1,0:T(1,128)S(1)}', space=vmem, size = 0x200, scoped, tag = 'scoped memory for forward.1']
  %s0 = inlined_call_operand.vmem [shape: f32[2,2,176,120], index: 0, kind: input, shape index: {}]
  %s1 = inlined_call_operand.vmem [shape: f32[8,1], index: 1, kind: input, shape index: {}]
  %s2 = inlined_call_operand.vmem [shape: f32[8,5], index: 2, kind: input, shape index: {}]
  %s3 = inlined_call_operand.vmem [shape: f32[2,120,32], index: 3, kind: input, shape index: {}]
  %s4 = inlined_call_operand.vmem [shape: f32[2,1,32], index: 4, kind: input, shape index: {}]
  %s5 = inlined_call_operand.vmem [shape: f32[16,32,32], index: 5, kind: input, shape index: {}]
  %s6 = inlined_call_operand.vmem [shape: f32[1,32], index: 6, kind: input, shape index: {}]
  %s7 = inlined_call_operand.vmem [shape: f32[2,32,384], index: 7, kind: input, shape index: {}]
  %s8 = inlined_call_operand.vmem [shape: f32[2,48,384], index: 8, kind: input, shape index: {}]
  %s9 = inlined_call_operand.vmem [shape: f32[2,1,384], index: 9, kind: input, shape index: {}]
  %s10 = inlined_call_operand.vmem [shape: f32[2,1,48], index: 10, kind: input, shape index: {}]
  %s11 = inlined_call_operand.vmem [shape: f32[5,32], index: 11, kind: input, shape index: {}]
  %s12 = inlined_call_operand.vmem [shape: f32[1,32], index: 12, kind: input, shape index: {}]
  %s13 = inlined_call_operand.vmem [shape: f32[32,2], index: 13, kind: input, shape index: {}]
  %s14 = inlined_call_operand.vmem [shape: f32[1,2], index: 14, kind: input, shape index: {}]
  %s15 = inlined_call_operand.vmem [shape: f32[196,32], index: 15, kind: input, shape index: {}]
  %s16 = inlined_call_operand.vmem [shape: f32[98,32], index: 16, kind: input, shape index: {}]
  %s17 = inlined_call_operand.vmem [shape: f32[1,32], index: 17, kind: input, shape index: {}]
  %s18 = inlined_call_operand.vmem [shape: f32[32,1], index: 18, kind: input, shape index: {}]
  %s19 = inlined_call_operand.<no memory space> [shape: f32[1,1], index: 19, kind: input, shape index: {}]
  %s20 = inlined_call_operand.vmem [shape: f32[8,1], index: 20, kind: output, shape index: {}]
  %s21 = sld [smem:[#allocation0]]
  $region90: #{forward.1} parent=0
    _
  %s23 = ssub.s32 1, %s21
  %s24 = scalar_select 0, %s23, %s21
  %v25 = vstv %s19
  %26 = vst [vmem:[#allocation3] sm:$0x1] %v25
  // Predicated region
  $region2: #{forward.1} parent=0 // pred_check
    _
  $region3: #{forward.1} parent=0 // pred_check_branch
    %28 = sbr.rel (0) target = $region5
  $region4: #{forward.1} parent=0 // pred_region
    _
  $region5: #{forward.1} parent=0 // pred_fallthru
    _
  // Predicated region
  $region6: #{forward.1} parent=0 // pred_check
    _
  $region7: #{forward.1} parent=0 // pred_check_branch
    %30 = sbr.rel (0) target = $region9
  $region8: #{forward.1} parent=0 // pred_region
    _
  $region9: #{forward.1} parent=0 // pred_fallthru
    _
  // Predicated region
  $region10: #{forward.1} parent=0 // pred_check
    _
  $region11: #{forward.1} parent=0 // pred_check_branch
    %32 = sbr.rel (0) target = $region13
  $region12: #{forward.1} parent=0 // pred_region
    _
  $region13: #{forward.1} parent=0 // pred_fallthru
    _
  // Predicated region
  $region14: #{forward.1} parent=0 // pred_check
    _
  $region15: #{forward.1} parent=0 // pred_check_branch
    %34 = sbr.rel (0) target = $region17
  $region16: #{forward.1} parent=0 // pred_region
    _
  $region17: #{forward.1} parent=0 // pred_fallthru
    _
  // Predicated region
  $region18: #{forward.1} parent=0 // pred_check
    _
  $region19: #{forward.1} parent=0 // pred_check_branch
    %36 = sbr.rel (0) target = $region21
  $region20: #{forward.1} parent=0 // pred_region
    _
  $region21: #{forward.1} parent=0 // pred_fallthru
    _
  // Predicated region
  $region22: #{forward.1} parent=0 // pred_check
    _
  $region23: #{forward.1} parent=0 // pred_check_branch
    %38 = sbr.rel (0) target = $region25
  $region24: #{forward.1} parent=0 // pred_region
    _
  $region25: #{forward.1} parent=0 // pred_fallthru
    _
  // Predicated region
  $region26: #{forward.1} parent=0 // pred_check
    _
  $region27: #{forward.1} parent=0 // pred_check_branch
    %40 = sbr.rel (0) target = $region29
  $region28: #{forward.1} parent=0 // pred_region
    _
  $region29: #{forward.1} parent=0 // pred_fallthru
    _
  // Predicated region
  $region30: #{forward.1} parent=0 // pred_check
    _
  $region31: #{forward.1} parent=0 // pred_check_branch
    %42 = sbr.rel (0) target = $region33
  $region32: #{forward.1} parent=0 // pred_region
    _
  $region33: #{forward.1} parent=0 // pred_fallthru
    _
  // Predicated region
  $region34: #{forward.1} parent=0 // pred_check
    _
  $region35: #{forward.1} parent=0 // pred_check_branch
    %44 = sbr.rel (0) target = $region37
  $region36: #{forward.1} parent=0 // pred_region
    _
  $region37: #{forward.1} parent=0 // pred_fallthru
    _
  // Predicated region
  $region38: #{forward.1} parent=0 // pred_check
    _
  $region39: #{forward.1} parent=0 // pred_check_branch
    %46 = sbr.rel (0) target = $region41
  $region40: #{forward.1} parent=0 // pred_region
    _
  $region41: #{forward.1} parent=0 // pred_fallthru
    _
  // Predicated region
  $region42: #{forward.1} parent=0 // pred_check
    _
  $region43: #{forward.1} parent=0 // pred_check_branch
    %48 = sbr.rel (0) target = $region45
  $region44: #{forward.1} parent=0 // pred_region
    _
  $region45: #{forward.1} parent=0 // pred_fallthru
    _
  // Predicated region
  $region46: #{forward.1} parent=0 // pred_check
    _
  $region47: #{forward.1} parent=0 // pred_check_branch
    %50 = sbr.rel (0) target = $region49
  $region48: #{forward.1} parent=0 // pred_region
    _
  $region49: #{forward.1} parent=0 // pred_fallthru
    _
  // Predicated region
  $region50: #{forward.1} parent=0 // pred_check
    _
  $region51: #{forward.1} parent=0 // pred_check_branch
    %52 = sbr.rel (0) target = $region53
  $region52: #{forward.1} parent=0 // pred_region
    _
  $region53: #{forward.1} parent=0 // pred_fallthru
    _
  // Predicated region
  $region54: #{forward.1} parent=0 // pred_check
    _
  $region55: #{forward.1} parent=0 // pred_check_branch
    %54 = sbr.rel (0) target = $region57
  $region56: #{forward.1} parent=0 // pred_region
    _
  $region57: #{forward.1} parent=0 // pred_fallthru
    _
  // Predicated region
  $region58: #{forward.1} parent=0 // pred_check
    _
  $region59: #{forward.1} parent=0 // pred_check_branch
    %56 = sbr.rel (0) target = $region61
  $region60: #{forward.1} parent=0 // pred_region
    _
  $region61: #{forward.1} parent=0 // pred_fallthru
    _
  // Predicated region
  $region62: #{forward.1} parent=0 // pred_check
    _
  $region63: #{forward.1} parent=0 // pred_check_branch
    %58 = sbr.rel (0) target = $region65
  $region64: #{forward.1} parent=0 // pred_region
    _
  $region65: #{forward.1} parent=0 // pred_fallthru
    _
  // Predicated region
  $region66: #{forward.1} parent=0 // pred_check
    _
  $region67: #{forward.1} parent=0 // pred_check_branch
    %60 = sbr.rel (0) target = $region69
  $region68: #{forward.1} parent=0 // pred_region
    _
  $region69: #{forward.1} parent=0 // pred_fallthru
    _
  // Predicated region
  $region70: #{forward.1} parent=0 // pred_check
    _
  $region71: #{forward.1} parent=0 // pred_check_branch
    %62 = sbr.rel (0) target = $region73
  $region72: #{forward.1} parent=0 // pred_region
    _
  $region73: #{forward.1} parent=0 // pred_fallthru
    _
  // Predicated region
  $region74: #{forward.1} parent=0 // pred_check
    _
  $region75: #{forward.1} parent=0 // pred_check_branch
    %64 = sbr.rel (0) target = $region77
  $region76: #{forward.1} parent=0 // pred_region
    _
  $region77: #{forward.1} parent=0 // pred_fallthru
    _
  // Predicated region
  $region78: #{forward.1} parent=0 // pred_check
    _
  $region79: #{forward.1} parent=0 // pred_check_branch
    %66 = sbr.rel (0) target = $region81
  $region80: #{forward.1} parent=0 // pred_region
    _
  $region81: #{forward.1} parent=0 // pred_fallthru
    _
  %v67 = vld [vmem:[%s3] sm:$0xff]
  %v68 = vld [vmem:[%s3 + $0x8] sm:$0xff]
  %v69 = vld [vmem:[%s3 + $0x10] sm:$0xff]
  %v70 = vld [vmem:[%s3 + $0x18] sm:$0xff]
  %v71 = vld [vmem:[%s3 + $0x20] sm:$0xff]
  %v72 = vld [vmem:[%s3 + $0x28] sm:$0xff]
  %v73 = vld [vmem:[%s3 + $0x30] sm:$0xff]
  %v74 = vld [vmem:[%s3 + $0x38] sm:$0xff]
  %v75 = vld [vmem:[%s3 + $0x40] sm:$0xff]
  %v76 = vld [vmem:[%s3 + $0x48] sm:$0xff]
  %v77 = vld [vmem:[%s3 + $0x50] sm:$0xff]
  %v78 = vld [vmem:[%s3 + $0x58] sm:$0xff]
  %v79 = vld [vmem:[%s3 + $0x60] sm:$0xff]
  %v80 = vld [vmem:[%s3 + $0x68] sm:$0xff]
  %v81 = vld [vmem:[%s3 + $0x70] sm:$0xff]
  %v82 = vld [vmem:[%s4] sm:$0x1]
  %v83 = vld [vmem:[%s0] sm:$0xff]
  %v84 = vld [vmem:[%s0 + $0x8] sm:$0xff]
  %v85 = vld [vmem:[%s0 + $0x10] sm:$0xff]
  %v86 = vld [vmem:[%s0 + $0x18] sm:$0xff]
  %v87 = vld [vmem:[%s0 + $0x20] sm:$0xff]
  %v88 = vld [vmem:[%s0 + $0x28] sm:$0xff]
  %v89 = vld [vmem:[%s0 + $0x30] sm:$0xff]
  %v90 = vld [vmem:[%s0 + $0x38] sm:$0xff]
  %v91 = vld [vmem:[%s0 + $0x40] sm:$0xff]
  %v92 = vld [vmem:[%s0 + $0x48] sm:$0xff]
  %v93 = vld [vmem:[%s0 + $0x50] sm:$0xff]
  %v94 = vld [vmem:[%s0 + $0x58] sm:$0xff]
  %v95 = vld [vmem:[%s0 + $0x60] sm:$0xff]
  %v96 = vld [vmem:[%s0 + $0x68] sm:$0xff]
  %v97 = vld [vmem:[%s0 + $0x70] sm:$0xff]
  %v98 = vld [vmem:[%s0 + $0x78] sm:$0xff]
  %v99 = vld [vmem:[%s0 + $0x80] sm:$0xff]
  %v100 = vld [vmem:[%s0 + $0x88] sm:$0xff]
  %v101 = vld [vmem:[%s0 + $0x90] sm:$0xff]
  %v102 = vld [vmem:[%s0 + $0x98] sm:$0xff]
  %v103 = vld [vmem:[%s0 + $0xa0] sm:$0xff]
  %v104 = vld [vmem:[%s0 + $0xa8] sm:$0xff]
  %vm105 = vcmask 982016
  %v107 = vsel %vm105, %v83, 0
  %v110 = vsel %vm105, %v84, 0
  %v113 = vsel %vm105, %v85, 0
  %v116 = vsel %vm105, %v86, 0
  %v119 = vsel %vm105, %v87, 0
  %v122 = vsel %vm105, %v88, 0
  %v125 = vsel %vm105, %v89, 0
  %v128 = vsel %vm105, %v90, 0
  %v131 = vsel %vm105, %v91, 0
  %v134 = vsel %vm105, %v92, 0
  %v137 = vsel %vm105, %v93, 0
  %v140 = vsel %vm105, %v94, 0
  %v143 = vsel %vm105, %v95, 0
  %v146 = vsel %vm105, %v96, 0
  %v149 = vsel %vm105, %v97, 0
  %v152 = vsel %vm105, %v98, 0
  %v155 = vsel %vm105, %v99, 0
  %v158 = vsel %vm105, %v100, 0
  %v161 = vsel %vm105, %v101, 0
  %v164 = vsel %vm105, %v102, 0
  %v167 = vsel %vm105, %v103, 0
  %v170 = vsel %vm105, %v104, 0
  %172 = vmatprep.subr.mxu0 0.0
  %173 = vmatpush1.msra.mxu0 0.0
  %174 = vmatprep.subr.mxu0 0.0
  %175 = vmatpush1.msra.mxu0 %v81
  %176 = vmatprep.subr.mxu0 0.0
  %177 = vmatpush1.msra.mxu0 %v80
  %178 = vmatprep.subr.mxu0 0.0
  %179 = vmatpush1.msra.mxu0 %v79
  %180 = vmatprep.subr.mxu0 0.0
  %181 = vmatpush1.msra.mxu0 %v78
  %182 = vmatprep.subr.mxu0 0.0
  %183 = vmatpush1.msra.mxu0 %v77
  %184 = vmatprep.subr.mxu0 0.0
  %185 = vmatpush1.msra.mxu0 %v76
  %186 = vmatprep.subr.mxu0 0.0
  %187 = vmatpush1.msra.mxu0 %v75
  %188 = vmatprep.subr.mxu0 0.0
  %189 = vmatpush1.msra.mxu0 %v74
  %190 = vmatprep.subr.mxu0 0.0
  %191 = vmatpush1.msra.mxu0 %v73
  %192 = vmatprep.subr.mxu0 0.0
  %193 = vmatpush1.msra.mxu0 %v72
  %194 = vmatprep.subr.mxu0 0.0
  %195 = vmatpush1.msra.mxu0 %v71
  %196 = vmatprep.subr.mxu0 0.0
  %197 = vmatpush1.msra.mxu0 %v70
  %198 = vmatprep.subr.mxu0 0.0
  %199 = vmatpush1.msra.mxu0 %v69
  %200 = vmatprep.subr.mxu0 0.0
  %201 = vmatpush1.msra.mxu0 %v68
  %202 = vmatprep.subr.mxu0 0.0
  %203 = vmatpush1.msra.mxu0 %v67
  %204 = vmatprep.subr.mxu0 0.0
  %205 = vmatpush2.msra.mxu0 0.0
  %206 = vmatprep.subr.mxu0 0.0
  %207 = vmatpush2.msra.mxu0 0.0
  %208 = vmatprep.subr.mxu0 0.0
  %209 = vmatpush2.msra.mxu0 0.0
  %210 = vmatprep.subr.mxu0 0.0
  %211 = vmatpush2.msra.mxu0 0.0
  %212 = vmatprep.subr.mxu0 0.0
  %213 = vmatpush2.msra.mxu0 0.0
  %214 = vmatprep.subr.mxu0 0.0
  %215 = vmatpush2.msra.mxu0 0.0
  %216 = vmatprep.subr.mxu0 0.0
  %217 = vmatpush2.msra.mxu0 0.0
  %218 = vmatprep.subr.mxu0 0.0
  %219 = vmatpush2.msra.mxu0 0.0
  %220 = vmatprep.subr.mxu0 0.0
  %221 = vmatpush2.msra.mxu0 0.0
  %222 = vmatprep.subr.mxu0 0.0
  %223 = vmatpush2.msra.mxu0 0.0
  %224 = vmatprep.subr.mxu0 0.0
  %225 = vmatpush2.msra.mxu0 0.0
  %226 = vmatprep.subr.mxu0 0.0
  %227 = vmatpush2.msra.mxu0 0.0
  %228 = vmatprep.subr.mxu0 0.0
  %229 = vmatpush2.msra.mxu0 0.0
  %230 = vmatprep.subr.mxu0 0.0
  %231 = vmatpush2.msra.mxu0 0.0
  %232 = vmatprep.subr.mxu0 0.0
  %233 = vmatpush2.msra.mxu0 0.0
  %234 = vmatprep.subr.mxu0 0.0
  %235 = vmatpush2.msra.mxu0 0.0
  %236 = vmatprep.mubr.f32.mxu0 0.0
  %237 = vmatmul.mubr.f32.gmra.mxu0 %v107
  %v238 = vpop.f32.mrf.mxu0
  %v239 = vadd.f32 0.0, %v238
  %v240 = vpop.f32.mrf.mxu0
  %241 = vmatprep.mubr.f32.mxu0 0.0
  %242 = vmatmul.mubr.f32.gmra.mxu0 %v110
  %v243 = vpop.f32.mrf.mxu0
  %v244 = vadd.f32 0.0, %v243
  %v245 = vpop.f32.mrf.mxu0
  %246 = vmatprep.mubr.f32.mxu0 0.0
  %247 = vmatmul.mubr.f32.gmra.mxu0 %v113
  %v248 = vpop.f32.mrf.mxu0
  %v249 = vadd.f32 0.0, %v248
  %v250 = vpop.f32.mrf.mxu0
  %251 = vmatprep.mubr.f32.mxu0 0.0
  %252 = vmatmul.mubr.f32.gmra.mxu0 %v116
  %v253 = vpop.f32.mrf.mxu0
  %v254 = vadd.f32 0.0, %v253
  %v255 = vpop.f32.mrf.mxu0
  %256 = vmatprep.mubr.f32.mxu0 0.0
  %257 = vmatmul.mubr.f32.gmra.mxu0 %v119
  %v258 = vpop.f32.mrf.mxu0
  %v259 = vadd.f32 0.0, %v258
  %v260 = vpop.f32.mrf.mxu0
  %261 = vmatprep.mubr.f32.mxu0 0.0
  %262 = vmatmul.mubr.f32.gmra.mxu0 %v122
  %v263 = vpop.f32.mrf.mxu0
  %v264 = vadd.f32 0.0, %v263
  %v265 = vpop.f32.mrf.mxu0
  %266 = vmatprep.mubr.f32.mxu0 0.0
  %267 = vmatmul.mubr.f32.gmra.mxu0 %v125
  %v268 = vpop.f32.mrf.mxu0
  %v269 = vadd.f32 0.0, %v268
  %v270 = vpop.f32.mrf.mxu0
  %271 = vmatprep.mubr.f32.mxu0 0.0
  %272 = vmatmul.mubr.f32.gmra.mxu0 %v128
  %v273 = vpop.f32.mrf.mxu0
  %v274 = vadd.f32 0.0, %v273
  %v275 = vpop.f32.mrf.mxu0
  %276 = vmatprep.mubr.f32.mxu0 0.0
  %277 = vmatmul.mubr.f32.gmra.mxu0 %v131
  %v278 = vpop.f32.mrf.mxu0
  %v279 = vadd.f32 0.0, %v278
  %v280 = vpop.f32.mrf.mxu0
  %281 = vmatprep.mubr.f32.mxu0 0.0
  %282 = vmatmul.mubr.f32.gmra.mxu0 %v134
  %v283 = vpop.f32.mrf.mxu0
  %v284 = vadd.f32 0.0, %v283
  %v285 = vpop.f32.mrf.mxu0
  %286 = vmatprep.mubr.f32.mxu0 0.0
  %287 = vmatmul.mubr.f32.gmra.mxu0 %v137
  %v288 = vpop.f32.mrf.mxu0
  %v289 = vadd.f32 0.0, %v288
  %v290 = vpop.f32.mrf.mxu0
  %291 = vmatprep.mubr.f32.mxu0 0.0
  %292 = vmatmul.mubr.f32.gmra.mxu0 %v140
  %v293 = vpop.f32.mrf.mxu0
  %v294 = vadd.f32 0.0, %v293
  %v295 = vpop.f32.mrf.mxu0
  %296 = vmatprep.mubr.f32.mxu0 0.0
  %297 = vmatmul.mubr.f32.gmra.mxu0 %v143
  %v298 = vpop.f32.mrf.mxu0
  %v299 = vadd.f32 0.0, %v298
  %v300 = vpop.f32.mrf.mxu0
  %301 = vmatprep.mubr.f32.mxu0 0.0
  %302 = vmatmul.mubr.f32.gmra.mxu0 %v146
  %v303 = vpop.f32.mrf.mxu0
  %v304 = vadd.f32 0.0, %v303
  %v305 = vpop.f32.mrf.mxu0
  %306 = vmatprep.mubr.f32.mxu0 0.0
  %307 = vmatmul.mubr.f32.gmra.mxu0 %v149
  %v308 = vpop.f32.mrf.mxu0
  %v309 = vadd.f32 0.0, %v308
  %v310 = vpop.f32.mrf.mxu0
  %311 = vmatprep.mubr.f32.mxu0 0.0
  %312 = vmatmul.mubr.f32.gmra.mxu0 %v152
  %v313 = vpop.f32.mrf.mxu0
  %v314 = vadd.f32 0.0, %v313
  %v315 = vpop.f32.mrf.mxu0
  %316 = vmatprep.mubr.f32.mxu0 0.0
  %317 = vmatmul.mubr.f32.gmra.mxu0 %v155
  %v318 = vpop.f32.mrf.mxu0
  %v319 = vadd.f32 0.0, %v318
  %v320 = vpop.f32.mrf.mxu0
  %321 = vmatprep.mubr.f32.mxu0 0.0
  %322 = vmatmul.mubr.f32.gmra.mxu0 %v158
  %v323 = vpop.f32.mrf.mxu0
  %v324 = vadd.f32 0.0, %v323
  %v325 = vpop.f32.mrf.mxu0
  %326 = vmatprep.mubr.f32.mxu0 0.0
  %327 = vmatmul.mubr.f32.gmra.mxu0 %v161
  %v328 = vpop.f32.mrf.mxu0
  %v329 = vadd.f32 0.0, %v328
  %v330 = vpop.f32.mrf.mxu0
  %331 = vmatprep.mubr.f32.mxu0 0.0
  %332 = vmatmul.mubr.f32.gmra.mxu0 %v164
  %v333 = vpop.f32.mrf.mxu0
  %v334 = vadd.f32 0.0, %v333
  %v335 = vpop.f32.mrf.mxu0
  %336 = vmatprep.mubr.f32.mxu0 0.0
  %337 = vmatmul.mubr.f32.gmra.mxu0 %v167
  %v338 = vpop.f32.mrf.mxu0
  %v339 = vadd.f32 0.0, %v338
  %v340 = vpop.f32.mrf.mxu0
  %341 = vmatprep.mubr.f32.mxu0 0.0
  %342 = vmatmul.mubr.f32.gmra.mxu0 %v170
  %v343 = vpop.f32.mrf.mxu0
  %v344 = vadd.f32 0.0, %v343
  %v345 = vpop.f32.mrf.mxu0
  %346 = vdwg.mxu0
  %s347 = scalar_lea.vmem %s0, 176
  %v348 = vld [vmem:[%s347] sm:$0xff]
  %v349 = vld [vmem:[%s347 + $0x8] sm:$0xff]
  %v350 = vld [vmem:[%s347 + $0x10] sm:$0xff]
  %v351 = vld [vmem:[%s347 + $0x18] sm:$0xff]
  %v352 = vld [vmem:[%s347 + $0x20] sm:$0xff]
  %v353 = vld [vmem:[%s347 + $0x28] sm:$0xff]
  %v354 = vld [vmem:[%s347 + $0x30] sm:$0xff]
  %v355 = vld [vmem:[%s347 + $0x38] sm:$0xff]
  %v356 = vld [vmem:[%s347 + $0x40] sm:$0xff]
  %v357 = vld [vmem:[%s347 + $0x48] sm:$0xff]
  %v358 = vld [vmem:[%s347 + $0x50] sm:$0xff]
  %v359 = vld [vmem:[%s347 + $0x58] sm:$0xff]
  %v360 = vld [vmem:[%s347 + $0x60] sm:$0xff]
  %v361 = vld [vmem:[%s347 + $0x68] sm:$0xff]
  %v362 = vld [vmem:[%s347 + $0x70] sm:$0xff]
  %v363 = vld [vmem:[%s347 + $0x78] sm:$0xff]
  %v364 = vld [vmem:[%s347 + $0x80] sm:$0xff]
  %v365 = vld [vmem:[%s347 + $0x88] sm:$0xff]
  %v366 = vld [vmem:[%s347 + $0x90] sm:$0xff]
  %v367 = vld [vmem:[%s347 + $0x98] sm:$0xff]
  %v368 = vld [vmem:[%s347 + $0xa0] sm:$0xff]
  %v369 = vld [vmem:[%s347 + $0xa8] sm:$0xff]
  %v371 = vsel %vm105, %v348, 0
  %v374 = vsel %vm105, %v349, 0
  %v377 = vsel %vm105, %v350, 0
  %v380 = vsel %vm105, %v351, 0
  %v383 = vsel %vm105, %v352, 0
  %v386 = vsel %vm105, %v353, 0
  %v389 = vsel %vm105, %v354, 0
  %v392 = vsel %vm105, %v355, 0
  %v395 = vsel %vm105, %v356, 0
  %v398 = vsel %vm105, %v357, 0
  %v401 = vsel %vm105, %v358, 0
  %v404 = vsel %vm105, %v359, 0
  %v407 = vsel %vm105, %v360, 0
  %v410 = vsel %vm105, %v361, 0
  %v413 = vsel %vm105, %v362, 0
  %v416 = vsel %vm105, %v363, 0
  %v419 = vsel %vm105, %v364, 0
  %v422 = vsel %vm105, %v365, 0
  %v425 = vsel %vm105, %v366, 0
  %v428 = vsel %vm105, %v367, 0
  %v431 = vsel %vm105, %v368, 0
  %v434 = vsel %vm105, %v369, 0
  %436 = vmatprep.subr.mxu0 0.0
  %437 = vmatpush1.msra.mxu0 0.0
  %438 = vmatprep.subr.mxu0 0.0
  %439 = vmatpush1.msra.mxu0 %v81
  %440 = vmatprep.subr.mxu0 0.0
  %441 = vmatpush1.msra.mxu0 %v80
  %442 = vmatprep.subr.mxu0 0.0
  %443 = vmatpush1.msra.mxu0 %v79
  %444 = vmatprep.subr.mxu0 0.0
  %445 = vmatpush1.msra.mxu0 %v78
  %446 = vmatprep.subr.mxu0 0.0
  %447 = vmatpush1.msra.mxu0 %v77
  %448 = vmatprep.subr.mxu0 0.0
  %449 = vmatpush1.msra.mxu0 %v76
  %450 = vmatprep.subr.mxu0 0.0
  %451 = vmatpush1.msra.mxu0 %v75
  %452 = vmatprep.subr.mxu0 0.0
  %453 = vmatpush1.msra.mxu0 %v74
  %454 = vmatprep.subr.mxu0 0.0
  %455 = vmatpush1.msra.mxu0 %v73
  %456 = vmatprep.subr.mxu0 0.0
  %457 = vmatpush1.msra.mxu0 %v72
  %458 = vmatprep.subr.mxu0 0.0
  %459 = vmatpush1.msra.mxu0 %v71
  %460 = vmatprep.subr.mxu0 0.0
  %461 = vmatpush1.msra.mxu0 %v70
  %462 = vmatprep.subr.mxu0 0.0
  %463 = vmatpush1.msra.mxu0 %v69
  %464 = vmatprep.subr.mxu0 0.0
  %465 = vmatpush1.msra.mxu0 %v68
  %466 = vmatprep.subr.mxu0 0.0
  %467 = vmatpush1.msra.mxu0 %v67
  %468 = vmatprep.subr.mxu0 0.0
  %469 = vmatpush2.msra.mxu0 0.0
  %470 = vmatprep.subr.mxu0 0.0
  %471 = vmatpush2.msra.mxu0 0.0
  %472 = vmatprep.subr.mxu0 0.0
  %473 = vmatpush2.msra.mxu0 0.0
  %474 = vmatprep.subr.mxu0 0.0
  %475 = vmatpush2.msra.mxu0 0.0
  %476 = vmatprep.subr.mxu0 0.0
  %477 = vmatpush2.msra.mxu0 0.0
  %478 = vmatprep.subr.mxu0 0.0
  %479 = vmatpush2.msra.mxu0 0.0
  %480 = vmatprep.subr.mxu0 0.0
  %481 = vmatpush2.msra.mxu0 0.0
  %482 = vmatprep.subr.mxu0 0.0
  %483 = vmatpush2.msra.mxu0 0.0
  %484 = vmatprep.subr.mxu0 0.0
  %485 = vmatpush2.msra.mxu0 0.0
  %486 = vmatprep.subr.mxu0 0.0
  %487 = vmatpush2.msra.mxu0 0.0
  %488 = vmatprep.subr.mxu0 0.0
  %489 = vmatpush2.msra.mxu0 0.0
  %490 = vmatprep.subr.mxu0 0.0
  %491 = vmatpush2.msra.mxu0 0.0
  %492 = vmatprep.subr.mxu0 0.0
  %493 = vmatpush2.msra.mxu0 0.0
  %494 = vmatprep.subr.mxu0 0.0
  %495 = vmatpush2.msra.mxu0 0.0
  %496 = vmatprep.subr.mxu0 0.0
  %497 = vmatpush2.msra.mxu0 0.0
  %498 = vmatprep.subr.mxu0 0.0
  %499 = vmatpush2.msra.mxu0 0.0
  %500 = vmatprep.mubr.f32.mxu0 0.0
  %501 = vmatmul.mubr.f32.gmra.mxu0 %v371
  %v502 = vpop.f32.mrf.mxu0
  %v503 = vadd.f32 0.0, %v502
  %v504 = vpop.f32.mrf.mxu0
  %505 = vmatprep.mubr.f32.mxu0 0.0
  %506 = vmatmul.mubr.f32.gmra.mxu0 %v374
  %v507 = vpop.f32.mrf.mxu0
  %v508 = vadd.f32 0.0, %v507
  %v509 = vpop.f32.mrf.mxu0
  %510 = vmatprep.mubr.f32.mxu0 0.0
  %511 = vmatmul.mubr.f32.gmra.mxu0 %v377
  %v512 = vpop.f32.mrf.mxu0
  %v513 = vadd.f32 0.0, %v512
  %v514 = vpop.f32.mrf.mxu0
  %515 = vmatprep.mubr.f32.mxu0 0.0
  %516 = vmatmul.mubr.f32.gmra.mxu0 %v380
  %v517 = vpop.f32.mrf.mxu0
  %v518 = vadd.f32 0.0, %v517
  %v519 = vpop.f32.mrf.mxu0
  %520 = vmatprep.mubr.f32.mxu0 0.0
  %521 = vmatmul.mubr.f32.gmra.mxu0 %v383
  %v522 = vpop.f32.mrf.mxu0
  %v523 = vadd.f32 0.0, %v522
  %v524 = vpop.f32.mrf.mxu0
  %525 = vmatprep.mubr.f32.mxu0 0.0
  %526 = vmatmul.mubr.f32.gmra.mxu0 %v386
  %v527 = vpop.f32.mrf.mxu0
  %v528 = vadd.f32 0.0, %v527
  %v529 = vpop.f32.mrf.mxu0
  %530 = vmatprep.mubr.f32.mxu0 0.0
  %531 = vmatmul.mubr.f32.gmra.mxu0 %v389
  %v532 = vpop.f32.mrf.mxu0
  %v533 = vadd.f32 0.0, %v532
  %v534 = vpop.f32.mrf.mxu0
  %535 = vmatprep.mubr.f32.mxu0 0.0
  %536 = vmatmul.mubr.f32.gmra.mxu0 %v392
  %v537 = vpop.f32.mrf.mxu0
  %v538 = vadd.f32 0.0, %v537
  %v539 = vpop.f32.mrf.mxu0
  %540 = vmatprep.mubr.f32.mxu0 0.0
  %541 = vmatmul.mubr.f32.gmra.mxu0 %v395
  %v542 = vpop.f32.mrf.mxu0
  %v543 = vadd.f32 0.0, %v542
  %v544 = vpop.f32.mrf.mxu0
  %545 = vmatprep.mubr.f32.mxu0 0.0
  %546 = vmatmul.mubr.f32.gmra.mxu0 %v398
  %v547 = vpop.f32.mrf.mxu0
  %v548 = vadd.f32 0.0, %v547
  %v549 = vpop.f32.mrf.mxu0
  %550 = vmatprep.mubr.f32.mxu0 0.0
  %551 = vmatmul.mubr.f32.gmra.mxu0 %v401
  %v552 = vpop.f32.mrf.mxu0
  %v553 = vadd.f32 0.0, %v552
  %v554 = vpop.f32.mrf.mxu0
  %555 = vmatprep.mubr.f32.mxu0 0.0
  %556 = vmatmul.mubr.f32.gmra.mxu0 %v404
  %v557 = vpop.f32.mrf.mxu0
  %v558 = vadd.f32 0.0, %v557
  %v559 = vpop.f32.mrf.mxu0
  %560 = vmatprep.mubr.f32.mxu0 0.0
  %561 = vmatmul.mubr.f32.gmra.mxu0 %v407
  %v562 = vpop.f32.mrf.mxu0
  %v563 = vadd.f32 0.0, %v562
  %v564 = vpop.f32.mrf.mxu0
  %565 = vmatprep.mubr.f32.mxu0 0.0
  %566 = vmatmul.mubr.f32.gmra.mxu0 %v410
  %v567 = vpop.f32.mrf.mxu0
  %v568 = vadd.f32 0.0, %v567
  %v569 = vpop.f32.mrf.mxu0
  %570 = vmatprep.mubr.f32.mxu0 0.0
  %571 = vmatmul.mubr.f32.gmra.mxu0 %v413
  %v572 = vpop.f32.mrf.mxu0
  %v573 = vadd.f32 0.0, %v572
  %v574 = vpop.f32.mrf.mxu0
  %575 = vmatprep.mubr.f32.mxu0 0.0
  %576 = vmatmul.mubr.f32.gmra.mxu0 %v416
  %v577 = vpop.f32.mrf.mxu0
  %v578 = vadd.f32 0.0, %v577
  %v579 = vpop.f32.mrf.mxu0
  %580 = vmatprep.mubr.f32.mxu0 0.0
  %581 = vmatmul.mubr.f32.gmra.mxu0 %v419
  %v582 = vpop.f32.mrf.mxu0
  %v583 = vadd.f32 0.0, %v582
  %v584 = vpop.f32.mrf.mxu0
  %585 = vmatprep.mubr.f32.mxu0 0.0
  %586 = vmatmul.mubr.f32.gmra.mxu0 %v422
  %v587 = vpop.f32.mrf.mxu0
  %v588 = vadd.f32 0.0, %v587
  %v589 = vpop.f32.mrf.mxu0
  %590 = vmatprep.mubr.f32.mxu0 0.0
  %591 = vmatmul.mubr.f32.gmra.mxu0 %v425
  %v592 = vpop.f32.mrf.mxu0
  %v593 = vadd.f32 0.0, %v592
  %v594 = vpop.f32.mrf.mxu0
  %595 = vmatprep.mubr.f32.mxu0 0.0
  %596 = vmatmul.mubr.f32.gmra.mxu0 %v428
  %v597 = vpop.f32.mrf.mxu0
  %v598 = vadd.f32 0.0, %v597
  %v599 = vpop.f32.mrf.mxu0
  %600 = vmatprep.mubr.f32.mxu0 0.0
  %601 = vmatmul.mubr.f32.gmra.mxu0 %v431
  %v602 = vpop.f32.mrf.mxu0
  %v603 = vadd.f32 0.0, %v602
  %v604 = vpop.f32.mrf.mxu0
  %605 = vmatprep.mubr.f32.mxu0 0.0
  %606 = vmatmul.mubr.f32.gmra.mxu0 %v434
  %v607 = vpop.f32.mrf.mxu0
  %v608 = vadd.f32 0.0, %v607
  %v609 = vpop.f32.mrf.mxu0
  %610 = vdwg.mxu0
  %v611 = vmax.f32 %v239, %v503
  %v612 = vmax.f32 %v244, %v508
  %v613 = vmax.f32 %v249, %v513
  %v614 = vmax.f32 %v254, %v518
  %v615 = vmax.f32 %v259, %v523
  %v616 = vmax.f32 %v264, %v528
  %v617 = vmax.f32 %v269, %v533
  %v618 = vmax.f32 %v274, %v538
  %v619 = vmax.f32 %v279, %v543
  %v620 = vmax.f32 %v284, %v548
  %v621 = vmax.f32 %v289, %v553
  %v622 = vmax.f32 %v294, %v558
  %v623 = vmax.f32 %v299, %v563
  %v624 = vmax.f32 %v304, %v568
  %v625 = vmax.f32 %v309, %v573
  %v626 = vmax.f32 %v314, %v578
  %v627 = vmax.f32 %v319, %v583
  %v628 = vmax.f32 %v324, %v588
  %v629 = vmax.f32 %v329, %v593
  %v630 = vmax.f32 %v334, %v598
  %v631 = vmax.f32 %v339, %v603
  %v632 = vmax.f32 %v344, %v608
  %v634 = vlaneseq
  %v635 = vshrl.u32 %v634, 7
  %v636 = vsub.s32 0, %v635
  %v637 = vrot.slane %v82, %v636
  %v639 = vadd.f32 %v611, %v637
  %v640 = vadd.f32 %v612, %v637
  %v641 = vadd.f32 %v613, %v637
  %v642 = vadd.f32 %v614, %v637
  %v643 = vadd.f32 %v615, %v637
  %v644 = vadd.f32 %v616, %v637
  %v645 = vadd.f32 %v617, %v637
  %v646 = vadd.f32 %v618, %v637
  %v647 = vadd.f32 %v619, %v637
  %v648 = vadd.f32 %v620, %v637
  %v649 = vadd.f32 %v621, %v637
  %v650 = vadd.f32 %v622, %v637
  %v651 = vadd.f32 %v623, %v637
  %v652 = vadd.f32 %v624, %v637
  %v653 = vadd.f32 %v625, %v637
  %v654 = vadd.f32 %v626, %v637
  %v655 = vadd.f32 %v627, %v637
  %v656 = vadd.f32 %v628, %v637
  %v657 = vadd.f32 %v629, %v637
  %v658 = vadd.f32 %v630, %v637
  %v659 = vadd.f32 %v631, %v637
  %v660 = vadd.f32 %v632, %v637
  %vm661 = vcmp.ge.f32.partialorder %v639, 0.0
  %vm662 = vcmp.ge.f32.partialorder %v640, 0.0
  %vm663 = vcmp.ge.f32.partialorder %v641, 0.0
  %vm664 = vcmp.ge.f32.partialorder %v642, 0.0
  %vm665 = vcmp.ge.f32.partialorder %v643, 0.0
  %vm666 = vcmp.ge.f32.partialorder %v644, 0.0
  %vm667 = vcmp.ge.f32.partialorder %v645, 0.0
  %vm668 = vcmp.ge.f32.partialorder %v646, 0.0
  %vm669 = vcmp.ge.f32.partialorder %v647, 0.0
  %vm670 = vcmp.ge.f32.partialorder %v648, 0.0
  %vm671 = vcmp.ge.f32.partialorder %v649, 0.0
  %vm672 = vcmp.ge.f32.partialorder %v650, 0.0
  %vm673 = vcmp.ge.f32.partialorder %v651, 0.0
  %vm674 = vcmp.ge.f32.partialorder %v652, 0.0
  %vm675 = vcmp.ge.f32.partialorder %v653, 0.0
  %vm676 = vcmp.ge.f32.partialorder %v654, 0.0
  %vm677 = vcmp.ge.f32.partialorder %v655, 0.0
  %vm678 = vcmp.ge.f32.partialorder %v656, 0.0
  %vm679 = vcmp.ge.f32.partialorder %v657, 0.0
  %vm680 = vcmp.ge.f32.partialorder %v658, 0.0
  %vm681 = vcmp.ge.f32.partialorder %v659, 0.0
  %vm682 = vcmp.ge.f32.partialorder %v660, 0.0
  %v683 = vmul.f32 %v639, 0.01
  %v684 = vmul.f32 %v640, 0.01
  %v685 = vmul.f32 %v641, 0.01
  %v686 = vmul.f32 %v642, 0.01
  %v687 = vmul.f32 %v643, 0.01
  %v688 = vmul.f32 %v644, 0.01
  %v689 = vmul.f32 %v645, 0.01
  %v690 = vmul.f32 %v646, 0.01
  %v691 = vmul.f32 %v647, 0.01
  %v692 = vmul.f32 %v648, 0.01
  %v693 = vmul.f32 %v649, 0.01
  %v694 = vmul.f32 %v650, 0.01
  %v695 = vmul.f32 %v651, 0.01
  %v696 = vmul.f32 %v652, 0.01
  %v697 = vmul.f32 %v653, 0.01
  %v698 = vmul.f32 %v654, 0.01
  %v699 = vmul.f32 %v655, 0.01
  %v700 = vmul.f32 %v656, 0.01
  %v701 = vmul.f32 %v657, 0.01
  %v702 = vmul.f32 %v658, 0.01
  %v703 = vmul.f32 %v659, 0.01
  %v704 = vmul.f32 %v660, 0.01
  %v705 = vsel %vm661, %v639, %v683
  %v706 = vsel %vm662, %v640, %v684
  %v707 = vsel %vm663, %v641, %v685
  %v708 = vsel %vm664, %v642, %v686
  %v709 = vsel %vm665, %v643, %v687
  %v710 = vsel %vm666, %v644, %v688
  %v711 = vsel %vm667, %v645, %v689
  %v712 = vsel %vm668, %v646, %v690
  %v713 = vsel %vm669, %v647, %v691
  %v714 = vsel %vm670, %v648, %v692
  %v715 = vsel %vm671, %v649, %v693
  %v716 = vsel %vm672, %v650, %v694
  %v717 = vsel %vm673, %v651, %v695
  %v718 = vsel %vm674, %v652, %v696
  %v719 = vsel %vm675, %v653, %v697
  %v720 = vsel %vm676, %v654, %v698
  %v721 = vsel %vm677, %v655, %v699
  %v722 = vsel %vm678, %v656, %v700
  %v723 = vsel %vm679, %v657, %v701
  %v724 = vsel %vm680, %v658, %v702
  %v725 = vsel %vm681, %v659, %v703
  %v726 = vsel %vm682, %v660, %v704
  %vm727 = vcmask 261120
  %728 = vst.msk [vmem:[#allocation2] sm:$0xff] %vm727, %v705
  %729 = vst.msk [vmem:[#allocation2 + $0x8] sm:$0xff] %vm727, %v706
  %730 = vst.msk [vmem:[#allocation2 + $0x10] sm:$0xff] %vm727, %v707
  %731 = vst.msk [vmem:[#allocation2 + $0x18] sm:$0xff] %vm727, %v708
  %732 = vst.msk [vmem:[#allocation2 + $0x20] sm:$0xff] %vm727, %v709
  %733 = vst.msk [vmem:[#allocation2 + $0x28] sm:$0xff] %vm727, %v710
  %734 = vst.msk [vmem:[#allocation2 + $0x30] sm:$0xff] %vm727, %v711
  %735 = vst.msk [vmem:[#allocation2 + $0x38] sm:$0xff] %vm727, %v712
  %736 = vst.msk [vmem:[#allocation2 + $0x40] sm:$0xff] %vm727, %v713
  %737 = vst.msk [vmem:[#allocation2 + $0x48] sm:$0xff] %vm727, %v714
  %738 = vst.msk [vmem:[#allocation2 + $0x50] sm:$0xff] %vm727, %v715
  %739 = vst.msk [vmem:[#allocation2 + $0x58] sm:$0xff] %vm727, %v716
  %740 = vst.msk [vmem:[#allocation2 + $0x60] sm:$0xff] %vm727, %v717
  %741 = vst.msk [vmem:[#allocation2 + $0x68] sm:$0xff] %vm727, %v718
  %742 = vst.msk [vmem:[#allocation2 + $0x70] sm:$0xff] %vm727, %v719
  %743 = vst.msk [vmem:[#allocation2 + $0x78] sm:$0xff] %vm727, %v720
  %744 = vst.msk [vmem:[#allocation2 + $0x80] sm:$0xff] %vm727, %v721
  %745 = vst.msk [vmem:[#allocation2 + $0x88] sm:$0xff] %vm727, %v722
  %746 = vst.msk [vmem:[#allocation2 + $0x90] sm:$0xff] %vm727, %v723
  %747 = vst.msk [vmem:[#allocation2 + $0x98] sm:$0xff] %vm727, %v724
  %748 = vst.msk [vmem:[#allocation2 + $0xa0] sm:$0xff] %vm727, %v725
  %749 = vst.msk [vmem:[#allocation2 + $0xa8] sm:$0xff] %vm727, %v726
  %v750 = vld [vmem:[#allocation2] sm:$0xff]
  %v751 = vld [vmem:[#allocation2 + $0x8] sm:$0xff]
  %v752 = vld [vmem:[#allocation2 + $0x10] sm:$0xff]
  %v753 = vld [vmem:[#allocation2 + $0x18] sm:$0xff]
  %v754 = vld [vmem:[#allocation2 + $0x20] sm:$0xff]
  %v755 = vld [vmem:[#allocation2 + $0x28] sm:$0xff]
  %v756 = vld [vmem:[%s5] sm:$0xff]
  %v757 = vld [vmem:[%s5 + $0x8] sm:$0xff]
  %v758 = vld [vmem:[%s5 + $0x10] sm:$0xff]
  %v759 = vld [vmem:[%s5 + $0x18] sm:$0xff]
  %v760 = vld [vmem:[#allocation2 + $0x30] sm:$0xff]
  %s761 = scalar_lea.vmem %s5, 32
  %v762 = vld [vmem:[%s761] sm:$0xff]
  %v763 = vld [vmem:[%s761 + $0x8] sm:$0xff]
  %v764 = vld [vmem:[%s761 + $0x10] sm:$0xff]
  %v765 = vld [vmem:[%s761 + $0x18] sm:$0xff]
  %v767 = vsel %vm727, %v751, 0
  %v770 = vsel %vm727, %v752, 0
  %v773 = vsel %vm727, %v753, 0
  %v776 = vsel %vm727, %v754, 0
  %v779 = vsel %vm727, %v755, 0
  %v782 = vsel %vm727, %v760, 0
  %784 = vmatprep.subr.mxu0 0.0
  %785 = vmatpush1.msra.mxu0 0.0
  %786 = vmatprep.subr.mxu0 0.0
  %787 = vmatpush1.msra.mxu0 0.0
  %788 = vmatprep.subr.mxu0 0.0
  %789 = vmatpush1.msra.mxu0 0.0
  %790 = vmatprep.subr.mxu0 0.0
  %791 = vmatpush1.msra.mxu0 0.0
  %792 = vmatprep.subr.mxu0 0.0
  %793 = vmatpush1.msra.mxu0 0.0
  %794 = vmatprep.subr.mxu0 0.0
  %795 = vmatpush1.msra.mxu0 0.0
  %796 = vmatprep.subr.mxu0 0.0
  %797 = vmatpush1.msra.mxu0 0.0
  %798 = vmatprep.subr.mxu0 0.0
  %799 = vmatpush1.msra.mxu0 0.0
  %800 = vmatprep.subr.mxu0 0.0
  %801 = vmatpush1.msra.mxu0 0.0
  %802 = vmatprep.subr.mxu0 0.0
  %803 = vmatpush1.msra.mxu0 0.0
  %804 = vmatprep.subr.mxu0 0.0
  %805 = vmatpush1.msra.mxu0 0.0
  %806 = vmatprep.subr.mxu0 0.0
  %807 = vmatpush1.msra.mxu0 0.0
  %808 = vmatprep.subr.mxu0 0.0
  %809 = vmatpush1.msra.mxu0 %v765
  %810 = vmatprep.subr.mxu0 0.0
  %811 = vmatpush1.msra.mxu0 %v764
  %812 = vmatprep.subr.mxu0 0.0
  %813 = vmatpush1.msra.mxu0 %v763
  %814 = vmatprep.subr.mxu0 0.0
  %815 = vmatpush1.msra.mxu0 %v762
  %816 = vmatprep.subr.mxu0 0.0
  %817 = vmatpush2.msra.mxu0 0.0
  %818 = vmatprep.subr.mxu0 0.0
  %819 = vmatpush2.msra.mxu0 0.0
  %820 = vmatprep.subr.mxu0 0.0
  %821 = vmatpush2.msra.mxu0 0.0
  %822 = vmatprep.subr.mxu0 0.0
  %823 = vmatpush2.msra.mxu0 0.0
  %824 = vmatprep.subr.mxu0 0.0
  %825 = vmatpush2.msra.mxu0 0.0
  %826 = vmatprep.subr.mxu0 0.0
  %827 = vmatpush2.msra.mxu0 0.0
  %828 = vmatprep.subr.mxu0 0.0
  %829 = vmatpush2.msra.mxu0 0.0
  %830 = vmatprep.subr.mxu0 0.0
  %831 = vmatpush2.msra.mxu0 0.0
  %832 = vmatprep.subr.mxu0 0.0
  %833 = vmatpush2.msra.mxu0 0.0
  %834 = vmatprep.subr.mxu0 0.0
  %835 = vmatpush2.msra.mxu0 0.0
  %836 = vmatprep.subr.mxu0 0.0
  %837 = vmatpush2.msra.mxu0 0.0
  %838 = vmatprep.subr.mxu0 0.0
  %839 = vmatpush2.msra.mxu0 0.0
  %840 = vmatprep.subr.mxu0 0.0
  %841 = vmatpush2.msra.mxu0 0.0
  %842 = vmatprep.subr.mxu0 0.0
  %843 = vmatpush2.msra.mxu0 0.0
  %844 = vmatprep.subr.mxu0 0.0
  %845 = vmatpush2.msra.mxu0 0.0
  %846 = vmatprep.subr.mxu0 0.0
  %847 = vmatpush2.msra.mxu0 0.0
  %848 = vmatprep.mubr.f32.mxu0 0.0
  %849 = vmatmul.mubr.f32.gmra.mxu0 %v767
  %v850 = vpop.f32.mrf.mxu0
  %v851 = vadd.f32 0.0, %v850
  %v852 = vpop.f32.mrf.mxu0
  %853 = vmatprep.mubr.f32.mxu0 0.0
  %854 = vmatmul.mubr.f32.gmra.mxu0 %v770
  %v855 = vpop.f32.mrf.mxu0
  %v856 = vadd.f32 0.0, %v855
  %v857 = vpop.f32.mrf.mxu0
  %858 = vmatprep.mubr.f32.mxu0 0.0
  %859 = vmatmul.mubr.f32.gmra.mxu0 %v773
  %v860 = vpop.f32.mrf.mxu0
  %v861 = vadd.f32 0.0, %v860
  %v862 = vpop.f32.mrf.mxu0
  %863 = vmatprep.mubr.f32.mxu0 0.0
  %864 = vmatmul.mubr.f32.gmra.mxu0 %v776
  %v865 = vpop.f32.mrf.mxu0
  %v866 = vadd.f32 0.0, %v865
  %v867 = vpop.f32.mrf.mxu0
  %868 = vmatprep.mubr.f32.mxu0 0.0
  %869 = vmatmul.mubr.f32.gmra.mxu0 %v779
  %v870 = vpop.f32.mrf.mxu0
  %v871 = vadd.f32 0.0, %v870
  %v872 = vpop.f32.mrf.mxu0
  %873 = vmatprep.mubr.f32.mxu0 0.0
  %874 = vmatmul.mubr.f32.gmra.mxu0 %v782
  %v875 = vpop.f32.mrf.mxu0
  %v876 = vadd.f32 0.0, %v875
  %v877 = vpop.f32.mrf.mxu0
  %878 = vdwg.mxu0
  %v880 = vsel %vm727, %v750, 0
  %882 = vmatprep.subr.mxu0 0.0
  %883 = vmatpush1.msra.mxu0 0.0
  %884 = vmatprep.subr.mxu0 0.0
  %885 = vmatpush1.msra.mxu0 0.0
  %886 = vmatprep.subr.mxu0 0.0
  %887 = vmatpush1.msra.mxu0 0.0
  %888 = vmatprep.subr.mxu0 0.0
  %889 = vmatpush1.msra.mxu0 0.0
  %890 = vmatprep.subr.mxu0 0.0
  %891 = vmatpush1.msra.mxu0 0.0
  %892 = vmatprep.subr.mxu0 0.0
  %893 = vmatpush1.msra.mxu0 0.0
  %894 = vmatprep.subr.mxu0 0.0
  %895 = vmatpush1.msra.mxu0 0.0
  %896 = vmatprep.subr.mxu0 0.0
  %897 = vmatpush1.msra.mxu0 0.0
  %898 = vmatprep.subr.mxu0 0.0
  %899 = vmatpush1.msra.mxu0 0.0
  %900 = vmatprep.subr.mxu0 0.0
  %901 = vmatpush1.msra.mxu0 0.0
  %902 = vmatprep.subr.mxu0 0.0
  %903 = vmatpush1.msra.mxu0 0.0
  %904 = vmatprep.subr.mxu0 0.0
  %905 = vmatpush1.msra.mxu0 0.0
  %906 = vmatprep.subr.mxu0 0.0
  %907 = vmatpush1.msra.mxu0 %v759
  %908 = vmatprep.subr.mxu0 0.0
  %909 = vmatpush1.msra.mxu0 %v758
  %910 = vmatprep.subr.mxu0 0.0
  %911 = vmatpush1.msra.mxu0 %v757
  %912 = vmatprep.subr.mxu0 0.0
  %913 = vmatpush1.msra.mxu0 %v756
  %914 = vmatprep.subr.mxu0 0.0
  %915 = vmatpush2.msra.mxu0 0.0
  %916 = vmatprep.subr.mxu0 0.0
  %917 = vmatpush2.msra.mxu0 0.0
  %918 = vmatprep.subr.mxu0 0.0
  %919 = vmatpush2.msra.mxu0 0.0
  %920 = vmatprep.subr.mxu0 0.0
  %921 = vmatpush2.msra.mxu0 0.0
  %922 = vmatprep.subr.mxu0 0.0
  %923 = vmatpush2.msra.mxu0 0.0
  %924 = vmatprep.subr.mxu0 0.0
  %925 = vmatpush2.msra.mxu0 0.0
  %926 = vmatprep.subr.mxu0 0.0
  %927 = vmatpush2.msra.mxu0 0.0
  %928 = vmatprep.subr.mxu0 0.0
  %929 = vmatpush2.msra.mxu0 0.0
  %930 = vmatprep.subr.mxu0 0.0
  %931 = vmatpush2.msra.mxu0 0.0
  %932 = vmatprep.subr.mxu0 0.0
  %933 = vmatpush2.msra.mxu0 0.0
  %934 = vmatprep.subr.mxu0 0.0
  %935 = vmatpush2.msra.mxu0 0.0
  %936 = vmatprep.subr.mxu0 0.0
  %937 = vmatpush2.msra.mxu0 0.0
  %938 = vmatprep.subr.mxu0 0.0
  %939 = vmatpush2.msra.mxu0 0.0
  %940 = vmatprep.subr.mxu0 0.0
  %941 = vmatpush2.msra.mxu0 0.0
  %942 = vmatprep.subr.mxu0 0.0
  %943 = vmatpush2.msra.mxu0 0.0
  %944 = vmatprep.subr.mxu0 0.0
  %945 = vmatpush2.msra.mxu0 0.0
  %946 = vmatprep.mubr.f32.mxu0 0.0
  %947 = vmatmul.mubr.f32.gmra.mxu0 %v880
  %v948 = vpop.f32.mrf.mxu0
  %v949 = vadd.f32 %v851, %v948
  %v950 = vpop.f32.mrf.mxu0
  %951 = vmatprep.mubr.f32.mxu0 0.0
  %952 = vmatmul.mubr.f32.gmra.mxu0 %v767
  %v953 = vpop.f32.mrf.mxu0
  %v954 = vadd.f32 %v856, %v953
  %v955 = vpop.f32.mrf.mxu0
  %956 = vmatprep.mubr.f32.mxu0 0.0
  %957 = vmatmul.mubr.f32.gmra.mxu0 %v770
  %v958 = vpop.f32.mrf.mxu0
  %v959 = vadd.f32 %v861, %v958
  %v960 = vpop.f32.mrf.mxu0
  %961 = vmatprep.mubr.f32.mxu0 0.0
  %962 = vmatmul.mubr.f32.gmra.mxu0 %v773
  %v963 = vpop.f32.mrf.mxu0
  %v964 = vadd.f32 %v866, %v963
  %v965 = vpop.f32.mrf.mxu0
  %966 = vmatprep.mubr.f32.mxu0 0.0
  %967 = vmatmul.mubr.f32.gmra.mxu0 %v776
  %v968 = vpop.f32.mrf.mxu0
  %v969 = vadd.f32 %v871, %v968
  %v970 = vpop.f32.mrf.mxu0
  %971 = vmatprep.mubr.f32.mxu0 0.0
  %972 = vmatmul.mubr.f32.gmra.mxu0 %v779
  %v973 = vpop.f32.mrf.mxu0
  %v974 = vadd.f32 %v876, %v973
  %v975 = vpop.f32.mrf.mxu0
  %976 = vdwg.mxu0
  %v977 = vld [vmem:[#allocation2 + $0x10] sm:$0xff]
  %v978 = vld [vmem:[#allocation2 + $0x18] sm:$0xff]
  %v979 = vld [vmem:[#allocation2 + $0x20] sm:$0xff]
  %v980 = vld [vmem:[#allocation2 + $0x28] sm:$0xff]
  %v981 = vld [vmem:[#allocation2 + $0x30] sm:$0xff]
  %v982 = vld [vmem:[#allocation2 + $0x38] sm:$0xff]
  %s983 = scalar_lea.vmem %s5, 64
  %v984 = vld [vmem:[%s983] sm:$0xff]
  %v985 = vld [vmem:[%s983 + $0x8] sm:$0xff]
  %v986 = vld [vmem:[%s983 + $0x10] sm:$0xff]
  %v987 = vld [vmem:[%s983 + $0x18] sm:$0xff]
  %v989 = vsel %vm727, %v977, 0
  %v992 = vsel %vm727, %v978, 0
  %v995 = vsel %vm727, %v979, 0
  %v998 = vsel %vm727, %v980, 0
  %v1001 = vsel %vm727, %v981, 0
  %v1004 = vsel %vm727, %v982, 0
  %1006 = vmatprep.subr.mxu0 0.0
  %1007 = vmatpush1.msra.mxu0 0.0
  %1008 = vmatprep.subr.mxu0 0.0
  %1009 = vmatpush1.msra.mxu0 0.0
  %1010 = vmatprep.subr.mxu0 0.0
  %1011 = vmatpush1.msra.mxu0 0.0
  %1012 = vmatprep.subr.mxu0 0.0
  %1013 = vmatpush1.msra.mxu0 0.0
  %1014 = vmatprep.subr.mxu0 0.0
  %1015 = vmatpush1.msra.mxu0 0.0
  %1016 = vmatprep.subr.mxu0 0.0
  %1017 = vmatpush1.msra.mxu0 0.0
  %1018 = vmatprep.subr.mxu0 0.0
  %1019 = vmatpush1.msra.mxu0 0.0
  %1020 = vmatprep.subr.mxu0 0.0
  %1021 = vmatpush1.msra.mxu0 0.0
  %1022 = vmatprep.subr.mxu0 0.0
  %1023 = vmatpush1.msra.mxu0 0.0
  %1024 = vmatprep.subr.mxu0 0.0
  %1025 = vmatpush1.msra.mxu0 0.0
  %1026 = vmatprep.subr.mxu0 0.0
  %1027 = vmatpush1.msra.mxu0 0.0
  %1028 = vmatprep.subr.mxu0 0.0
  %1029 = vmatpush1.msra.mxu0 0.0
  %1030 = vmatprep.subr.mxu0 0.0
  %1031 = vmatpush1.msra.mxu0 %v987
  %1032 = vmatprep.subr.mxu0 0.0
  %1033 = vmatpush1.msra.mxu0 %v986
  %1034 = vmatprep.subr.mxu0 0.0
  %1035 = vmatpush1.msra.mxu0 %v985
  %1036 = vmatprep.subr.mxu0 0.0
  %1037 = vmatpush1.msra.mxu0 %v984
  %1038 = vmatprep.subr.mxu0 0.0
  %1039 = vmatpush2.msra.mxu0 0.0
  %1040 = vmatprep.subr.mxu0 0.0
  %1041 = vmatpush2.msra.mxu0 0.0
  %1042 = vmatprep.subr.mxu0 0.0
  %1043 = vmatpush2.msra.mxu0 0.0
  %1044 = vmatprep.subr.mxu0 0.0
  %1045 = vmatpush2.msra.mxu0 0.0
  %1046 = vmatprep.subr.mxu0 0.0
  %1047 = vmatpush2.msra.mxu0 0.0
  %1048 = vmatprep.subr.mxu0 0.0
  %1049 = vmatpush2.msra.mxu0 0.0
  %1050 = vmatprep.subr.mxu0 0.0
  %1051 = vmatpush2.msra.mxu0 0.0
  %1052 = vmatprep.subr.mxu0 0.0
  %1053 = vmatpush2.msra.mxu0 0.0
  %1054 = vmatprep.subr.mxu0 0.0
  %1055 = vmatpush2.msra.mxu0 0.0
  %1056 = vmatprep.subr.mxu0 0.0
  %1057 = vmatpush2.msra.mxu0 0.0
  %1058 = vmatprep.subr.mxu0 0.0
  %1059 = vmatpush2.msra.mxu0 0.0
  %1060 = vmatprep.subr.mxu0 0.0
  %1061 = vmatpush2.msra.mxu0 0.0
  %1062 = vmatprep.subr.mxu0 0.0
  %1063 = vmatpush2.msra.mxu0 0.0
  %1064 = vmatprep.subr.mxu0 0.0
  %1065 = vmatpush2.msra.mxu0 0.0
  %1066 = vmatprep.subr.mxu0 0.0
  %1067 = vmatpush2.msra.mxu0 0.0
  %1068 = vmatprep.subr.mxu0 0.0
  %1069 = vmatpush2.msra.mxu0 0.0
  %1070 = vmatprep.mubr.f32.mxu0 0.0
  %1071 = vmatmul.mubr.f32.gmra.mxu0 %v989
  %v1072 = vpop.f32.mrf.mxu0
  %v1073 = vadd.f32 0.0, %v1072
  %v1074 = vpop.f32.mrf.mxu0
  %1075 = vmatprep.mubr.f32.mxu0 0.0
  %1076 = vmatmul.mubr.f32.gmra.mxu0 %v992
  %v1077 = vpop.f32.mrf.mxu0
  %v1078 = vadd.f32 0.0, %v1077
  %v1079 = vpop.f32.mrf.mxu0
  %1080 = vmatprep.mubr.f32.mxu0 0.0
  %1081 = vmatmul.mubr.f32.gmra.mxu0 %v995
  %v1082 = vpop.f32.mrf.mxu0
  %v1083 = vadd.f32 0.0, %v1082
  %v1084 = vpop.f32.mrf.mxu0
  %1085 = vmatprep.mubr.f32.mxu0 0.0
  %1086 = vmatmul.mubr.f32.gmra.mxu0 %v998
  %v1087 = vpop.f32.mrf.mxu0
  %v1088 = vadd.f32 0.0, %v1087
  %v1089 = vpop.f32.mrf.mxu0
  %1090 = vmatprep.mubr.f32.mxu0 0.0
  %1091 = vmatmul.mubr.f32.gmra.mxu0 %v1001
  %v1092 = vpop.f32.mrf.mxu0
  %v1093 = vadd.f32 0.0, %v1092
  %v1094 = vpop.f32.mrf.mxu0
  %1095 = vmatprep.mubr.f32.mxu0 0.0
  %1096 = vmatmul.mubr.f32.gmra.mxu0 %v1004
  %v1097 = vpop.f32.mrf.mxu0
  %v1098 = vadd.f32 0.0, %v1097
  %v1099 = vpop.f32.mrf.mxu0
  %1100 = vdwg.mxu0
  %v1101 = vadd.f32 %v949, %v1073
  %v1102 = vadd.f32 %v954, %v1078
  %v1103 = vadd.f32 %v959, %v1083
  %v1104 = vadd.f32 %v964, %v1088
  %v1105 = vadd.f32 %v969, %v1093
  %v1106 = vadd.f32 %v974, %v1098
  %v1107 = vld [vmem:[#allocation2 + $0x18] sm:$0xff]
  %v1108 = vld [vmem:[#allocation2 + $0x20] sm:$0xff]
  %v1109 = vld [vmem:[#allocation2 + $0x28] sm:$0xff]
  %v1110 = vld [vmem:[#allocation2 + $0x30] sm:$0xff]
  %v1111 = vld [vmem:[#allocation2 + $0x38] sm:$0xff]
  %v1112 = vld [vmem:[#allocation2 + $0x40] sm:$0xff]
  %s1113 = scalar_lea.vmem %s5, 96
  %v1114 = vld [vmem:[%s1113] sm:$0xff]
  %v1115 = vld [vmem:[%s1113 + $0x8] sm:$0xff]
  %v1116 = vld [vmem:[%s1113 + $0x10] sm:$0xff]
  %v1117 = vld [vmem:[%s1113 + $0x18] sm:$0xff]
  %v1119 = vsel %vm727, %v1107, 0
  %v1122 = vsel %vm727, %v1108, 0
  %v1125 = vsel %vm727, %v1109, 0
  %v1128 = vsel %vm727, %v1110, 0
  %v1131 = vsel %vm727, %v1111, 0
  %v1134 = vsel %vm727, %v1112, 0
  %1136 = vmatprep.subr.mxu0 0.0
  %1137 = vmatpush1.msra.mxu0 0.0
  %1138 = vmatprep.subr.mxu0 0.0
  %1139 = vmatpush1.msra.mxu0 0.0
  %1140 = vmatprep.subr.mxu0 0.0
  %1141 = vmatpush1.msra.mxu0 0.0
  %1142 = vmatprep.subr.mxu0 0.0
  %1143 = vmatpush1.msra.mxu0 0.0
  %1144 = vmatprep.subr.mxu0 0.0
  %1145 = vmatpush1.msra.mxu0 0.0
  %1146 = vmatprep.subr.mxu0 0.0
  %1147 = vmatpush1.msra.mxu0 0.0
  %1148 = vmatprep.subr.mxu0 0.0
  %1149 = vmatpush1.msra.mxu0 0.0
  %1150 = vmatprep.subr.mxu0 0.0
  %1151 = vmatpush1.msra.mxu0 0.0
  %1152 = vmatprep.subr.mxu0 0.0
  %1153 = vmatpush1.msra.mxu0 0.0
  %1154 = vmatprep.subr.mxu0 0.0
  %1155 = vmatpush1.msra.mxu0 0.0
  %1156 = vmatprep.subr.mxu0 0.0
  %1157 = vmatpush1.msra.mxu0 0.0
  %1158 = vmatprep.subr.mxu0 0.0
  %1159 = vmatpush1.msra.mxu0 0.0
  %1160 = vmatprep.subr.mxu0 0.0
  %1161 = vmatpush1.msra.mxu0 %v1117
  %1162 = vmatprep.subr.mxu0 0.0
  %1163 = vmatpush1.msra.mxu0 %v1116
  %1164 = vmatprep.subr.mxu0 0.0
  %1165 = vmatpush1.msra.mxu0 %v1115
  %1166 = vmatprep.subr.mxu0 0.0
  %1167 = vmatpush1.msra.mxu0 %v1114
  %1168 = vmatprep.subr.mxu0 0.0
  %1169 = vmatpush2.msra.mxu0 0.0
  %1170 = vmatprep.subr.mxu0 0.0
  %1171 = vmatpush2.msra.mxu0 0.0
  %1172 = vmatprep.subr.mxu0 0.0
  %1173 = vmatpush2.msra.mxu0 0.0
  %1174 = vmatprep.subr.mxu0 0.0
  %1175 = vmatpush2.msra.mxu0 0.0
  %1176 = vmatprep.subr.mxu0 0.0
  %1177 = vmatpush2.msra.mxu0 0.0
  %1178 = vmatprep.subr.mxu0 0.0
  %1179 = vmatpush2.msra.mxu0 0.0
  %1180 = vmatprep.subr.mxu0 0.0
  %1181 = vmatpush2.msra.mxu0 0.0
  %1182 = vmatprep.subr.mxu0 0.0
  %1183 = vmatpush2.msra.mxu0 0.0
  %1184 = vmatprep.subr.mxu0 0.0
  %1185 = vmatpush2.msra.mxu0 0.0
  %1186 = vmatprep.subr.mxu0 0.0
  %1187 = vmatpush2.msra.mxu0 0.0
  %1188 = vmatprep.subr.mxu0 0.0
  %1189 = vmatpush2.msra.mxu0 0.0
  %1190 = vmatprep.subr.mxu0 0.0
  %1191 = vmatpush2.msra.mxu0 0.0
  %1192 = vmatprep.subr.mxu0 0.0
  %1193 = vmatpush2.msra.mxu0 0.0
  %1194 = vmatprep.subr.mxu0 0.0
  %1195 = vmatpush2.msra.mxu0 0.0
  %1196 = vmatprep.subr.mxu0 0.0
  %1197 = vmatpush2.msra.mxu0 0.0
  %1198 = vmatprep.subr.mxu0 0.0
  %1199 = vmatpush2.msra.mxu0 0.0
  %1200 = vmatprep.mubr.f32.mxu0 0.0
  %1201 = vmatmul.mubr.f32.gmra.mxu0 %v1119
  %v1202 = vpop.f32.mrf.mxu0
  %v1203 = vadd.f32 0.0, %v1202
  %v1204 = vpop.f32.mrf.mxu0
  %1205 = vmatprep.mubr.f32.mxu0 0.0
  %1206 = vmatmul.mubr.f32.gmra.mxu0 %v1122
  %v1207 = vpop.f32.mrf.mxu0
  %v1208 = vadd.f32 0.0, %v1207
  %v1209 = vpop.f32.mrf.mxu0
  %1210 = vmatprep.mubr.f32.mxu0 0.0
  %1211 = vmatmul.mubr.f32.gmra.mxu0 %v1125
  %v1212 = vpop.f32.mrf.mxu0
  %v1213 = vadd.f32 0.0, %v1212
  %v1214 = vpop.f32.mrf.mxu0
  %1215 = vmatprep.mubr.f32.mxu0 0.0
  %1216 = vmatmul.mubr.f32.gmra.mxu0 %v1128
  %v1217 = vpop.f32.mrf.mxu0
  %v1218 = vadd.f32 0.0, %v1217
  %v1219 = vpop.f32.mrf.mxu0
  %1220 = vmatprep.mubr.f32.mxu0 0.0
  %1221 = vmatmul.mubr.f32.gmra.mxu0 %v1131
  %v1222 = vpop.f32.mrf.mxu0
  %v1223 = vadd.f32 0.0, %v1222
  %v1224 = vpop.f32.mrf.mxu0
  %1225 = vmatprep.mubr.f32.mxu0 0.0
  %1226 = vmatmul.mubr.f32.gmra.mxu0 %v1134
  %v1227 = vpop.f32.mrf.mxu0
  %v1228 = vadd.f32 0.0, %v1227
  %v1229 = vpop.f32.mrf.mxu0
  %1230 = vdwg.mxu0
  %v1231 = vadd.f32 %v1101, %v1203
  %v1232 = vadd.f32 %v1102, %v1208
  %v1233 = vadd.f32 %v1103, %v1213
  %v1234 = vadd.f32 %v1104, %v1218
  %v1235 = vadd.f32 %v1105, %v1223
  %v1236 = vadd.f32 %v1106, %v1228
  %v1237 = vld [vmem:[#allocation2 + $0x20] sm:$0xff]
  %v1238 = vld [vmem:[#allocation2 + $0x28] sm:$0xff]
  %v1239 = vld [vmem:[#allocation2 + $0x30] sm:$0xff]
  %v1240 = vld [vmem:[#allocation2 + $0x38] sm:$0xff]
  %v1241 = vld [vmem:[#allocation2 + $0x40] sm:$0xff]
  %v1242 = vld [vmem:[#allocation2 + $0x48] sm:$0xff]
  %s1243 = scalar_lea.vmem %s5, 128
  %v1244 = vld [vmem:[%s1243] sm:$0xff]
  %v1245 = vld [vmem:[%s1243 + $0x8] sm:$0xff]
  %v1246 = vld [vmem:[%s1243 + $0x10] sm:$0xff]
  %v1247 = vld [vmem:[%s1243 + $0x18] sm:$0xff]
  %v1249 = vsel %vm727, %v1237, 0
  %v1252 = vsel %vm727, %v1238, 0
  %v1255 = vsel %vm727, %v1239, 0
  %v1258 = vsel %vm727, %v1240, 0
  %v1261 = vsel %vm727, %v1241, 0
  %v1264 = vsel %vm727, %v1242, 0
  %1266 = vmatprep.subr.mxu0 0.0
  %1267 = vmatpush1.msra.mxu0 0.0
  %1268 = vmatprep.subr.mxu0 0.0
  %1269 = vmatpush1.msra.mxu0 0.0
  %1270 = vmatprep.subr.mxu0 0.0
  %1271 = vmatpush1.msra.mxu0 0.0
  %1272 = vmatprep.subr.mxu0 0.0
  %1273 = vmatpush1.msra.mxu0 0.0
  %1274 = vmatprep.subr.mxu0 0.0
  %1275 = vmatpush1.msra.mxu0 0.0
  %1276 = vmatprep.subr.mxu0 0.0
  %1277 = vmatpush1.msra.mxu0 0.0
  %1278 = vmatprep.subr.mxu0 0.0
  %1279 = vmatpush1.msra.mxu0 0.0
  %1280 = vmatprep.subr.mxu0 0.0
  %1281 = vmatpush1.msra.mxu0 0.0
  %1282 = vmatprep.subr.mxu0 0.0
  %1283 = vmatpush1.msra.mxu0 0.0
  %1284 = vmatprep.subr.mxu0 0.0
  %1285 = vmatpush1.msra.mxu0 0.0
  %1286 = vmatprep.subr.mxu0 0.0
  %1287 = vmatpush1.msra.mxu0 0.0
  %1288 = vmatprep.subr.mxu0 0.0
  %1289 = vmatpush1.msra.mxu0 0.0
  %1290 = vmatprep.subr.mxu0 0.0
  %1291 = vmatpush1.msra.mxu0 %v1247
  %1292 = vmatprep.subr.mxu0 0.0
  %1293 = vmatpush1.msra.mxu0 %v1246
  %1294 = vmatprep.subr.mxu0 0.0
  %1295 = vmatpush1.msra.mxu0 %v1245
  %1296 = vmatprep.subr.mxu0 0.0
  %1297 = vmatpush1.msra.mxu0 %v1244
  %1298 = vmatprep.subr.mxu0 0.0
  %1299 = vmatpush2.msra.mxu0 0.0
  %1300 = vmatprep.subr.mxu0 0.0
  %1301 = vmatpush2.msra.mxu0 0.0
  %1302 = vmatprep.subr.mxu0 0.0
  %1303 = vmatpush2.msra.mxu0 0.0
  %1304 = vmatprep.subr.mxu0 0.0
  %1305 = vmatpush2.msra.mxu0 0.0
  %1306 = vmatprep.subr.mxu0 0.0
  %1307 = vmatpush2.msra.mxu0 0.0
  %1308 = vmatprep.subr.mxu0 0.0
  %1309 = vmatpush2.msra.mxu0 0.0
  %1310 = vmatprep.subr.mxu0 0.0
  %1311 = vmatpush2.msra.mxu0 0.0
  %1312 = vmatprep.subr.mxu0 0.0
  %1313 = vmatpush2.msra.mxu0 0.0
  %1314 = vmatprep.subr.mxu0 0.0
  %1315 = vmatpush2.msra.mxu0 0.0
  %1316 = vmatprep.subr.mxu0 0.0
  %1317 = vmatpush2.msra.mxu0 0.0
  %1318 = vmatprep.subr.mxu0 0.0
  %1319 = vmatpush2.msra.mxu0 0.0
  %1320 = vmatprep.subr.mxu0 0.0
  %1321 = vmatpush2.msra.mxu0 0.0
  %1322 = vmatprep.subr.mxu0 0.0
  %1323 = vmatpush2.msra.mxu0 0.0
  %1324 = vmatprep.subr.mxu0 0.0
  %1325 = vmatpush2.msra.mxu0 0.0
  %1326 = vmatprep.subr.mxu0 0.0
  %1327 = vmatpush2.msra.mxu0 0.0
  %1328 = vmatprep.subr.mxu0 0.0
  %1329 = vmatpush2.msra.mxu0 0.0
  %1330 = vmatprep.mubr.f32.mxu0 0.0
  %1331 = vmatmul.mubr.f32.gmra.mxu0 %v1249
  %v1332 = vpop.f32.mrf.mxu0
  %v1333 = vadd.f32 0.0, %v1332
  %v1334 = vpop.f32.mrf.mxu0
  %1335 = vmatprep.mubr.f32.mxu0 0.0
  %1336 = vmatmul.mubr.f32.gmra.mxu0 %v1252
  %v1337 = vpop.f32.mrf.mxu0
  %v1338 = vadd.f32 0.0, %v1337
  %v1339 = vpop.f32.mrf.mxu0
  %1340 = vmatprep.mubr.f32.mxu0 0.0
  %1341 = vmatmul.mubr.f32.gmra.mxu0 %v1255
  %v1342 = vpop.f32.mrf.mxu0
  %v1343 = vadd.f32 0.0, %v1342
  %v1344 = vpop.f32.mrf.mxu0
  %1345 = vmatprep.mubr.f32.mxu0 0.0
  %1346 = vmatmul.mubr.f32.gmra.mxu0 %v1258
  %v1347 = vpop.f32.mrf.mxu0
  %v1348 = vadd.f32 0.0, %v1347
  %v1349 = vpop.f32.mrf.mxu0
  %1350 = vmatprep.mubr.f32.mxu0 0.0
  %1351 = vmatmul.mubr.f32.gmra.mxu0 %v1261
  %v1352 = vpop.f32.mrf.mxu0
  %v1353 = vadd.f32 0.0, %v1352
  %v1354 = vpop.f32.mrf.mxu0
  %1355 = vmatprep.mubr.f32.mxu0 0.0
  %1356 = vmatmul.mubr.f32.gmra.mxu0 %v1264
  %v1357 = vpop.f32.mrf.mxu0
  %v1358 = vadd.f32 0.0, %v1357
  %v1359 = vpop.f32.mrf.mxu0
  %1360 = vdwg.mxu0
  %v1361 = vadd.f32 %v1231, %v1333
  %v1362 = vadd.f32 %v1232, %v1338
  %v1363 = vadd.f32 %v1233, %v1343
  %v1364 = vadd.f32 %v1234, %v1348
  %v1365 = vadd.f32 %v1235, %v1353
  %v1366 = vadd.f32 %v1236, %v1358
  %v1367 = vld [vmem:[#allocation2 + $0x28] sm:$0xff]
  %v1368 = vld [vmem:[#allocation2 + $0x30] sm:$0xff]
  %v1369 = vld [vmem:[#allocation2 + $0x38] sm:$0xff]
  %v1370 = vld [vmem:[#allocation2 + $0x40] sm:$0xff]
  %v1371 = vld [vmem:[#allocation2 + $0x48] sm:$0xff]
  %v1372 = vld [vmem:[#allocation2 + $0x50] sm:$0xff]
  %s1373 = scalar_lea.vmem %s5, 160
  %v1374 = vld [vmem:[%s1373] sm:$0xff]
  %v1375 = vld [vmem:[%s1373 + $0x8] sm:$0xff]
  %v1376 = vld [vmem:[%s1373 + $0x10] sm:$0xff]
  %v1377 = vld [vmem:[%s1373 + $0x18] sm:$0xff]
  %v1379 = vsel %vm727, %v1367, 0
  %v1382 = vsel %vm727, %v1368, 0
  %v1385 = vsel %vm727, %v1369, 0
  %v1388 = vsel %vm727, %v1370, 0
  %v1391 = vsel %vm727, %v1371, 0
  %v1394 = vsel %vm727, %v1372, 0
  %1396 = vmatprep.subr.mxu0 0.0
  %1397 = vmatpush1.msra.mxu0 0.0
  %1398 = vmatprep.subr.mxu0 0.0
  %1399 = vmatpush1.msra.mxu0 0.0
  %1400 = vmatprep.subr.mxu0 0.0
  %1401 = vmatpush1.msra.mxu0 0.0
  %1402 = vmatprep.subr.mxu0 0.0
  %1403 = vmatpush1.msra.mxu0 0.0
  %1404 = vmatprep.subr.mxu0 0.0
  %1405 = vmatpush1.msra.mxu0 0.0
  %1406 = vmatprep.subr.mxu0 0.0
  %1407 = vmatpush1.msra.mxu0 0.0
  %1408 = vmatprep.subr.mxu0 0.0
  %1409 = vmatpush1.msra.mxu0 0.0
  %1410 = vmatprep.subr.mxu0 0.0
  %1411 = vmatpush1.msra.mxu0 0.0
  %1412 = vmatprep.subr.mxu0 0.0
  %1413 = vmatpush1.msra.mxu0 0.0
  %1414 = vmatprep.subr.mxu0 0.0
  %1415 = vmatpush1.msra.mxu0 0.0
  %1416 = vmatprep.subr.mxu0 0.0
  %1417 = vmatpush1.msra.mxu0 0.0
  %1418 = vmatprep.subr.mxu0 0.0
  %1419 = vmatpush1.msra.mxu0 0.0
  %1420 = vmatprep.subr.mxu0 0.0
  %1421 = vmatpush1.msra.mxu0 %v1377
  %1422 = vmatprep.subr.mxu0 0.0
  %1423 = vmatpush1.msra.mxu0 %v1376
  %1424 = vmatprep.subr.mxu0 0.0
  %1425 = vmatpush1.msra.mxu0 %v1375
  %1426 = vmatprep.subr.mxu0 0.0
  %1427 = vmatpush1.msra.mxu0 %v1374
  %1428 = vmatprep.subr.mxu0 0.0
  %1429 = vmatpush2.msra.mxu0 0.0
  %1430 = vmatprep.subr.mxu0 0.0
  %1431 = vmatpush2.msra.mxu0 0.0
  %1432 = vmatprep.subr.mxu0 0.0
  %1433 = vmatpush2.msra.mxu0 0.0
  %1434 = vmatprep.subr.mxu0 0.0
  %1435 = vmatpush2.msra.mxu0 0.0
  %1436 = vmatprep.subr.mxu0 0.0
  %1437 = vmatpush2.msra.mxu0 0.0
  %1438 = vmatprep.subr.mxu0 0.0
  %1439 = vmatpush2.msra.mxu0 0.0
  %1440 = vmatprep.subr.mxu0 0.0
  %1441 = vmatpush2.msra.mxu0 0.0
  %1442 = vmatprep.subr.mxu0 0.0
  %1443 = vmatpush2.msra.mxu0 0.0
  %1444 = vmatprep.subr.mxu0 0.0
  %1445 = vmatpush2.msra.mxu0 0.0
  %1446 = vmatprep.subr.mxu0 0.0
  %1447 = vmatpush2.msra.mxu0 0.0
  %1448 = vmatprep.subr.mxu0 0.0
  %1449 = vmatpush2.msra.mxu0 0.0
  %1450 = vmatprep.subr.mxu0 0.0
  %1451 = vmatpush2.msra.mxu0 0.0
  %1452 = vmatprep.subr.mxu0 0.0
  %1453 = vmatpush2.msra.mxu0 0.0
  %1454 = vmatprep.subr.mxu0 0.0
  %1455 = vmatpush2.msra.mxu0 0.0
  %1456 = vmatprep.subr.mxu0 0.0
  %1457 = vmatpush2.msra.mxu0 0.0
  %1458 = vmatprep.subr.mxu0 0.0
  %1459 = vmatpush2.msra.mxu0 0.0
  %1460 = vmatprep.mubr.f32.mxu0 0.0
  %1461 = vmatmul.mubr.f32.gmra.mxu0 %v1379
  %v1462 = vpop.f32.mrf.mxu0
  %v1463 = vadd.f32 0.0, %v1462
  %v1464 = vpop.f32.mrf.mxu0
  %1465 = vmatprep.mubr.f32.mxu0 0.0
  %1466 = vmatmul.mubr.f32.gmra.mxu0 %v1382
  %v1467 = vpop.f32.mrf.mxu0
  %v1468 = vadd.f32 0.0, %v1467
  %v1469 = vpop.f32.mrf.mxu0
  %1470 = vmatprep.mubr.f32.mxu0 0.0
  %1471 = vmatmul.mubr.f32.gmra.mxu0 %v1385
  %v1472 = vpop.f32.mrf.mxu0
  %v1473 = vadd.f32 0.0, %v1472
  %v1474 = vpop.f32.mrf.mxu0
  %1475 = vmatprep.mubr.f32.mxu0 0.0
  %1476 = vmatmul.mubr.f32.gmra.mxu0 %v1388
  %v1477 = vpop.f32.mrf.mxu0
  %v1478 = vadd.f32 0.0, %v1477
  %v1479 = vpop.f32.mrf.mxu0
  %1480 = vmatprep.mubr.f32.mxu0 0.0
  %1481 = vmatmul.mubr.f32.gmra.mxu0 %v1391
  %v1482 = vpop.f32.mrf.mxu0
  %v1483 = vadd.f32 0.0, %v1482
  %v1484 = vpop.f32.mrf.mxu0
  %1485 = vmatprep.mubr.f32.mxu0 0.0
  %1486 = vmatmul.mubr.f32.gmra.mxu0 %v1394
  %v1487 = vpop.f32.mrf.mxu0
  %v1488 = vadd.f32 0.0, %v1487
  %v1489 = vpop.f32.mrf.mxu0
  %1490 = vdwg.mxu0
  %v1491 = vadd.f32 %v1361, %v1463
  %v1492 = vadd.f32 %v1362, %v1468
  %v1493 = vadd.f32 %v1363, %v1473
  %v1494 = vadd.f32 %v1364, %v1478
  %v1495 = vadd.f32 %v1365, %v1483
  %v1496 = vadd.f32 %v1366, %v1488
  %v1497 = vld [vmem:[#allocation2 + $0x30] sm:$0xff]
  %v1498 = vld [vmem:[#allocation2 + $0x38] sm:$0xff]
  %v1499 = vld [vmem:[#allocation2 + $0x40] sm:$0xff]
  %v1500 = vld [vmem:[#allocation2 + $0x48] sm:$0xff]
  %v1501 = vld [vmem:[#allocation2 + $0x50] sm:$0xff]
  %v1502 = vld [vmem:[#allocation2 + $0x58] sm:$0xff]
  %s1503 = scalar_lea.vmem %s5, 192
  %v1504 = vld [vmem:[%s1503] sm:$0xff]
  %v1505 = vld [vmem:[%s1503 + $0x8] sm:$0xff]
  %v1506 = vld [vmem:[%s1503 + $0x10] sm:$0xff]
  %v1507 = vld [vmem:[%s1503 + $0x18] sm:$0xff]
  %v1509 = vsel %vm727, %v1497, 0
  %v1512 = vsel %vm727, %v1498, 0
  %v1515 = vsel %vm727, %v1499, 0
  %v1518 = vsel %vm727, %v1500, 0
  %v1521 = vsel %vm727, %v1501, 0
  %v1524 = vsel %vm727, %v1502, 0
  %1526 = vmatprep.subr.mxu0 0.0
  %1527 = vmatpush1.msra.mxu0 0.0
  %1528 = vmatprep.subr.mxu0 0.0
  %1529 = vmatpush1.msra.mxu0 0.0
  %1530 = vmatprep.subr.mxu0 0.0
  %1531 = vmatpush1.msra.mxu0 0.0
  %1532 = vmatprep.subr.mxu0 0.0
  %1533 = vmatpush1.msra.mxu0 0.0
  %1534 = vmatprep.subr.mxu0 0.0
  %1535 = vmatpush1.msra.mxu0 0.0
  %1536 = vmatprep.subr.mxu0 0.0
  %1537 = vmatpush1.msra.mxu0 0.0
  %1538 = vmatprep.subr.mxu0 0.0
  %1539 = vmatpush1.msra.mxu0 0.0
  %1540 = vmatprep.subr.mxu0 0.0
  %1541 = vmatpush1.msra.mxu0 0.0
  %1542 = vmatprep.subr.mxu0 0.0
  %1543 = vmatpush1.msra.mxu0 0.0
  %1544 = vmatprep.subr.mxu0 0.0
  %1545 = vmatpush1.msra.mxu0 0.0
  %1546 = vmatprep.subr.mxu0 0.0
  %1547 = vmatpush1.msra.mxu0 0.0
  %1548 = vmatprep.subr.mxu0 0.0
  %1549 = vmatpush1.msra.mxu0 0.0
  %1550 = vmatprep.subr.mxu0 0.0
  %1551 = vmatpush1.msra.mxu0 %v1507
  %1552 = vmatprep.subr.mxu0 0.0
  %1553 = vmatpush1.msra.mxu0 %v1506
  %1554 = vmatprep.subr.mxu0 0.0
  %1555 = vmatpush1.msra.mxu0 %v1505
  %1556 = vmatprep.subr.mxu0 0.0
  %1557 = vmatpush1.msra.mxu0 %v1504
  %1558 = vmatprep.subr.mxu0 0.0
  %1559 = vmatpush2.msra.mxu0 0.0
  %1560 = vmatprep.subr.mxu0 0.0
  %1561 = vmatpush2.msra.mxu0 0.0
  %1562 = vmatprep.subr.mxu0 0.0
  %1563 = vmatpush2.msra.mxu0 0.0
  %1564 = vmatprep.subr.mxu0 0.0
  %1565 = vmatpush2.msra.mxu0 0.0
  %1566 = vmatprep.subr.mxu0 0.0
  %1567 = vmatpush2.msra.mxu0 0.0
  %1568 = vmatprep.subr.mxu0 0.0
  %1569 = vmatpush2.msra.mxu0 0.0
  %1570 = vmatprep.subr.mxu0 0.0
  %1571 = vmatpush2.msra.mxu0 0.0
  %1572 = vmatprep.subr.mxu0 0.0
  %1573 = vmatpush2.msra.mxu0 0.0
  %1574 = vmatprep.subr.mxu0 0.0
  %1575 = vmatpush2.msra.mxu0 0.0
  %1576 = vmatprep.subr.mxu0 0.0
  %1577 = vmatpush2.msra.mxu0 0.0
  %1578 = vmatprep.subr.mxu0 0.0
  %1579 = vmatpush2.msra.mxu0 0.0
  %1580 = vmatprep.subr.mxu0 0.0
  %1581 = vmatpush2.msra.mxu0 0.0
  %1582 = vmatprep.subr.mxu0 0.0
  %1583 = vmatpush2.msra.mxu0 0.0
  %1584 = vmatprep.subr.mxu0 0.0
  %1585 = vmatpush2.msra.mxu0 0.0
  %1586 = vmatprep.subr.mxu0 0.0
  %1587 = vmatpush2.msra.mxu0 0.0
  %1588 = vmatprep.subr.mxu0 0.0
  %1589 = vmatpush2.msra.mxu0 0.0
  %1590 = vmatprep.mubr.f32.mxu0 0.0
  %1591 = vmatmul.mubr.f32.gmra.mxu0 %v1509
  %v1592 = vpop.f32.mrf.mxu0
  %v1593 = vadd.f32 0.0, %v1592
  %v1594 = vpop.f32.mrf.mxu0
  %1595 = vmatprep.mubr.f32.mxu0 0.0
  %1596 = vmatmul.mubr.f32.gmra.mxu0 %v1512
  %v1597 = vpop.f32.mrf.mxu0
  %v1598 = vadd.f32 0.0, %v1597
  %v1599 = vpop.f32.mrf.mxu0
  %1600 = vmatprep.mubr.f32.mxu0 0.0
  %1601 = vmatmul.mubr.f32.gmra.mxu0 %v1515
  %v1602 = vpop.f32.mrf.mxu0
  %v1603 = vadd.f32 0.0, %v1602
  %v1604 = vpop.f32.mrf.mxu0
  %1605 = vmatprep.mubr.f32.mxu0 0.0
  %1606 = vmatmul.mubr.f32.gmra.mxu0 %v1518
  %v1607 = vpop.f32.mrf.mxu0
  %v1608 = vadd.f32 0.0, %v1607
  %v1609 = vpop.f32.mrf.mxu0
  %1610 = vmatprep.mubr.f32.mxu0 0.0
  %1611 = vmatmul.mubr.f32.gmra.mxu0 %v1521
  %v1612 = vpop.f32.mrf.mxu0
  %v1613 = vadd.f32 0.0, %v1612
  %v1614 = vpop.f32.mrf.mxu0
  %1615 = vmatprep.mubr.f32.mxu0 0.0
  %1616 = vmatmul.mubr.f32.gmra.mxu0 %v1524
  %v1617 = vpop.f32.mrf.mxu0
  %v1618 = vadd.f32 0.0, %v1617
  %v1619 = vpop.f32.mrf.mxu0
  %1620 = vdwg.mxu0
  %v1621 = vadd.f32 %v1491, %v1593
  %v1622 = vadd.f32 %v1492, %v1598
  %v1623 = vadd.f32 %v1493, %v1603
  %v1624 = vadd.f32 %v1494, %v1608
  %v1625 = vadd.f32 %v1495, %v1613
  %v1626 = vadd.f32 %v1496, %v1618
  %v1627 = vld [vmem:[#allocation2 + $0x38] sm:$0xff]
  %v1628 = vld [vmem:[#allocation2 + $0x40] sm:$0xff]
  %v1629 = vld [vmem:[#allocation2 + $0x48] sm:$0xff]
  %v1630 = vld [vmem:[#allocation2 + $0x50] sm:$0xff]
  %v1631 = vld [vmem:[#allocation2 + $0x58] sm:$0xff]
  %v1632 = vld [vmem:[#allocation2 + $0x60] sm:$0xff]
  %s1633 = scalar_lea.vmem %s5, 224
  %v1634 = vld [vmem:[%s1633] sm:$0xff]
  %v1635 = vld [vmem:[%s1633 + $0x8] sm:$0xff]
  %v1636 = vld [vmem:[%s1633 + $0x10] sm:$0xff]
  %v1637 = vld [vmem:[%s1633 + $0x18] sm:$0xff]
  %v1639 = vsel %vm727, %v1627, 0
  %v1642 = vsel %vm727, %v1628, 0
  %v1645 = vsel %vm727, %v1629, 0
  %v1648 = vsel %vm727, %v1630, 0
  %v1651 = vsel %vm727, %v1631, 0
  %v1654 = vsel %vm727, %v1632, 0
  %1656 = vmatprep.subr.mxu0 0.0
  %1657 = vmatpush1.msra.mxu0 0.0
  %1658 = vmatprep.subr.mxu0 0.0
  %1659 = vmatpush1.msra.mxu0 0.0
  %1660 = vmatprep.subr.mxu0 0.0
  %1661 = vmatpush1.msra.mxu0 0.0
  %1662 = vmatprep.subr.mxu0 0.0
  %1663 = vmatpush1.msra.mxu0 0.0
  %1664 = vmatprep.subr.mxu0 0.0
  %1665 = vmatpush1.msra.mxu0 0.0
  %1666 = vmatprep.subr.mxu0 0.0
  %1667 = vmatpush1.msra.mxu0 0.0
  %1668 = vmatprep.subr.mxu0 0.0
  %1669 = vmatpush1.msra.mxu0 0.0
  %1670 = vmatprep.subr.mxu0 0.0
  %1671 = vmatpush1.msra.mxu0 0.0
  %1672 = vmatprep.subr.mxu0 0.0
  %1673 = vmatpush1.msra.mxu0 0.0
  %1674 = vmatprep.subr.mxu0 0.0
  %1675 = vmatpush1.msra.mxu0 0.0
  %1676 = vmatprep.subr.mxu0 0.0
  %1677 = vmatpush1.msra.mxu0 0.0
  %1678 = vmatprep.subr.mxu0 0.0
  %1679 = vmatpush1.msra.mxu0 0.0
  %1680 = vmatprep.subr.mxu0 0.0
  %1681 = vmatpush1.msra.mxu0 %v1637
  %1682 = vmatprep.subr.mxu0 0.0
  %1683 = vmatpush1.msra.mxu0 %v1636
  %1684 = vmatprep.subr.mxu0 0.0
  %1685 = vmatpush1.msra.mxu0 %v1635
  %1686 = vmatprep.subr.mxu0 0.0
  %1687 = vmatpush1.msra.mxu0 %v1634
  %1688 = vmatprep.subr.mxu0 0.0
  %1689 = vmatpush2.msra.mxu0 0.0
  %1690 = vmatprep.subr.mxu0 0.0
  %1691 = vmatpush2.msra.mxu0 0.0
  %1692 = vmatprep.subr.mxu0 0.0
  %1693 = vmatpush2.msra.mxu0 0.0
  %1694 = vmatprep.subr.mxu0 0.0
  %1695 = vmatpush2.msra.mxu0 0.0
  %1696 = vmatprep.subr.mxu0 0.0
  %1697 = vmatpush2.msra.mxu0 0.0
  %1698 = vmatprep.subr.mxu0 0.0
  %1699 = vmatpush2.msra.mxu0 0.0
  %1700 = vmatprep.subr.mxu0 0.0
  %1701 = vmatpush2.msra.mxu0 0.0
  %1702 = vmatprep.subr.mxu0 0.0
  %1703 = vmatpush2.msra.mxu0 0.0
  %1704 = vmatprep.subr.mxu0 0.0
  %1705 = vmatpush2.msra.mxu0 0.0
  %1706 = vmatprep.subr.mxu0 0.0
  %1707 = vmatpush2.msra.mxu0 0.0
  %1708 = vmatprep.subr.mxu0 0.0
  %1709 = vmatpush2.msra.mxu0 0.0
  %1710 = vmatprep.subr.mxu0 0.0
  %1711 = vmatpush2.msra.mxu0 0.0
  %1712 = vmatprep.subr.mxu0 0.0
  %1713 = vmatpush2.msra.mxu0 0.0
  %1714 = vmatprep.subr.mxu0 0.0
  %1715 = vmatpush2.msra.mxu0 0.0
  %1716 = vmatprep.subr.mxu0 0.0
  %1717 = vmatpush2.msra.mxu0 0.0
  %1718 = vmatprep.subr.mxu0 0.0
  %1719 = vmatpush2.msra.mxu0 0.0
  %1720 = vmatprep.mubr.f32.mxu0 0.0
  %1721 = vmatmul.mubr.f32.gmra.mxu0 %v1639
  %v1722 = vpop.f32.mrf.mxu0
  %v1723 = vadd.f32 0.0, %v1722
  %v1724 = vpop.f32.mrf.mxu0
  %1725 = vmatprep.mubr.f32.mxu0 0.0
  %1726 = vmatmul.mubr.f32.gmra.mxu0 %v1642
  %v1727 = vpop.f32.mrf.mxu0
  %v1728 = vadd.f32 0.0, %v1727
  %v1729 = vpop.f32.mrf.mxu0
  %1730 = vmatprep.mubr.f32.mxu0 0.0
  %1731 = vmatmul.mubr.f32.gmra.mxu0 %v1645
  %v1732 = vpop.f32.mrf.mxu0
  %v1733 = vadd.f32 0.0, %v1732
  %v1734 = vpop.f32.mrf.mxu0
  %1735 = vmatprep.mubr.f32.mxu0 0.0
  %1736 = vmatmul.mubr.f32.gmra.mxu0 %v1648
  %v1737 = vpop.f32.mrf.mxu0
  %v1738 = vadd.f32 0.0, %v1737
  %v1739 = vpop.f32.mrf.mxu0
  %1740 = vmatprep.mubr.f32.mxu0 0.0
  %1741 = vmatmul.mubr.f32.gmra.mxu0 %v1651
  %v1742 = vpop.f32.mrf.mxu0
  %v1743 = vadd.f32 0.0, %v1742
  %v1744 = vpop.f32.mrf.mxu0
  %1745 = vmatprep.mubr.f32.mxu0 0.0
  %1746 = vmatmul.mubr.f32.gmra.mxu0 %v1654
  %v1747 = vpop.f32.mrf.mxu0
  %v1748 = vadd.f32 0.0, %v1747
  %v1749 = vpop.f32.mrf.mxu0
  %1750 = vdwg.mxu0
  %v1751 = vadd.f32 %v1621, %v1723
  %v1752 = vadd.f32 %v1622, %v1728
  %v1753 = vadd.f32 %v1623, %v1733
  %v1754 = vadd.f32 %v1624, %v1738
  %v1755 = vadd.f32 %v1625, %v1743
  %v1756 = vadd.f32 %v1626, %v1748
  %v1757 = vld [vmem:[#allocation2 + $0x40] sm:$0xff]
  %v1758 = vld [vmem:[#allocation2 + $0x48] sm:$0xff]
  %v1759 = vld [vmem:[#allocation2 + $0x50] sm:$0xff]
  %v1760 = vld [vmem:[#allocation2 + $0x58] sm:$0xff]
  %v1761 = vld [vmem:[#allocation2 + $0x60] sm:$0xff]
  %v1762 = vld [vmem:[#allocation2 + $0x68] sm:$0xff]
  %s1763 = scalar_lea.vmem %s5, 256
  %v1764 = vld [vmem:[%s1763] sm:$0xff]
  %v1765 = vld [vmem:[%s1763 + $0x8] sm:$0xff]
  %v1766 = vld [vmem:[%s1763 + $0x10] sm:$0xff]
  %v1767 = vld [vmem:[%s1763 + $0x18] sm:$0xff]
  %v1769 = vsel %vm727, %v1757, 0
  %v1772 = vsel %vm727, %v1758, 0
  %v1775 = vsel %vm727, %v1759, 0
  %v1778 = vsel %vm727, %v1760, 0
  %v1781 = vsel %vm727, %v1761, 0
  %v1784 = vsel %vm727, %v1762, 0
  %1786 = vmatprep.subr.mxu0 0.0
  %1787 = vmatpush1.msra.mxu0 0.0
  %1788 = vmatprep.subr.mxu0 0.0
  %1789 = vmatpush1.msra.mxu0 0.0
  %1790 = vmatprep.subr.mxu0 0.0
  %1791 = vmatpush1.msra.mxu0 0.0
  %1792 = vmatprep.subr.mxu0 0.0
  %1793 = vmatpush1.msra.mxu0 0.0
  %1794 = vmatprep.subr.mxu0 0.0
  %1795 = vmatpush1.msra.mxu0 0.0
  %1796 = vmatprep.subr.mxu0 0.0
  %1797 = vmatpush1.msra.mxu0 0.0
  %1798 = vmatprep.subr.mxu0 0.0
  %1799 = vmatpush1.msra.mxu0 0.0
  %1800 = vmatprep.subr.mxu0 0.0
  %1801 = vmatpush1.msra.mxu0 0.0
  %1802 = vmatprep.subr.mxu0 0.0
  %1803 = vmatpush1.msra.mxu0 0.0
  %1804 = vmatprep.subr.mxu0 0.0
  %1805 = vmatpush1.msra.mxu0 0.0
  %1806 = vmatprep.subr.mxu0 0.0
  %1807 = vmatpush1.msra.mxu0 0.0
  %1808 = vmatprep.subr.mxu0 0.0
  %1809 = vmatpush1.msra.mxu0 0.0
  %1810 = vmatprep.subr.mxu0 0.0
  %1811 = vmatpush1.msra.mxu0 %v1767
  %1812 = vmatprep.subr.mxu0 0.0
  %1813 = vmatpush1.msra.mxu0 %v1766
  %1814 = vmatprep.subr.mxu0 0.0
  %1815 = vmatpush1.msra.mxu0 %v1765
  %1816 = vmatprep.subr.mxu0 0.0
  %1817 = vmatpush1.msra.mxu0 %v1764
  %1818 = vmatprep.subr.mxu0 0.0
  %1819 = vmatpush2.msra.mxu0 0.0
  %1820 = vmatprep.subr.mxu0 0.0
  %1821 = vmatpush2.msra.mxu0 0.0
  %1822 = vmatprep.subr.mxu0 0.0
  %1823 = vmatpush2.msra.mxu0 0.0
  %1824 = vmatprep.subr.mxu0 0.0
  %1825 = vmatpush2.msra.mxu0 0.0
  %1826 = vmatprep.subr.mxu0 0.0
  %1827 = vmatpush2.msra.mxu0 0.0
  %1828 = vmatprep.subr.mxu0 0.0
  %1829 = vmatpush2.msra.mxu0 0.0
  %1830 = vmatprep.subr.mxu0 0.0
  %1831 = vmatpush2.msra.mxu0 0.0
  %1832 = vmatprep.subr.mxu0 0.0
  %1833 = vmatpush2.msra.mxu0 0.0
  %1834 = vmatprep.subr.mxu0 0.0
  %1835 = vmatpush2.msra.mxu0 0.0
  %1836 = vmatprep.subr.mxu0 0.0
  %1837 = vmatpush2.msra.mxu0 0.0
  %1838 = vmatprep.subr.mxu0 0.0
  %1839 = vmatpush2.msra.mxu0 0.0
  %1840 = vmatprep.subr.mxu0 0.0
  %1841 = vmatpush2.msra.mxu0 0.0
  %1842 = vmatprep.subr.mxu0 0.0
  %1843 = vmatpush2.msra.mxu0 0.0
  %1844 = vmatprep.subr.mxu0 0.0
  %1845 = vmatpush2.msra.mxu0 0.0
  %1846 = vmatprep.subr.mxu0 0.0
  %1847 = vmatpush2.msra.mxu0 0.0
  %1848 = vmatprep.subr.mxu0 0.0
  %1849 = vmatpush2.msra.mxu0 0.0
  %1850 = vmatprep.mubr.f32.mxu0 0.0
  %1851 = vmatmul.mubr.f32.gmra.mxu0 %v1769
  %v1852 = vpop.f32.mrf.mxu0
  %v1853 = vadd.f32 0.0, %v1852
  %v1854 = vpop.f32.mrf.mxu0
  %1855 = vmatprep.mubr.f32.mxu0 0.0
  %1856 = vmatmul.mubr.f32.gmra.mxu0 %v1772
  %v1857 = vpop.f32.mrf.mxu0
  %v1858 = vadd.f32 0.0, %v1857
  %v1859 = vpop.f32.mrf.mxu0
  %1860 = vmatprep.mubr.f32.mxu0 0.0
  %1861 = vmatmul.mubr.f32.gmra.mxu0 %v1775
  %v1862 = vpop.f32.mrf.mxu0
  %v1863 = vadd.f32 0.0, %v1862
  %v1864 = vpop.f32.mrf.mxu0
  %1865 = vmatprep.mubr.f32.mxu0 0.0
  %1866 = vmatmul.mubr.f32.gmra.mxu0 %v1778
  %v1867 = vpop.f32.mrf.mxu0
  %v1868 = vadd.f32 0.0, %v1867
  %v1869 = vpop.f32.mrf.mxu0
  %1870 = vmatprep.mubr.f32.mxu0 0.0
  %1871 = vmatmul.mubr.f32.gmra.mxu0 %v1781
  %v1872 = vpop.f32.mrf.mxu0
  %v1873 = vadd.f32 0.0, %v1872
  %v1874 = vpop.f32.mrf.mxu0
  %1875 = vmatprep.mubr.f32.mxu0 0.0
  %1876 = vmatmul.mubr.f32.gmra.mxu0 %v1784
  %v1877 = vpop.f32.mrf.mxu0
  %v1878 = vadd.f32 0.0, %v1877
  %v1879 = vpop.f32.mrf.mxu0
  %1880 = vdwg.mxu0
  %v1881 = vadd.f32 %v1751, %v1853
  %v1882 = vadd.f32 %v1752, %v1858
  %v1883 = vadd.f32 %v1753, %v1863
  %v1884 = vadd.f32 %v1754, %v1868
  %v1885 = vadd.f32 %v1755, %v1873
  %v1886 = vadd.f32 %v1756, %v1878
  %v1887 = vld [vmem:[#allocation2 + $0x48] sm:$0xff]
  %v1888 = vld [vmem:[#allocation2 + $0x50] sm:$0xff]
  %v1889 = vld [vmem:[#allocation2 + $0x58] sm:$0xff]
  %v1890 = vld [vmem:[#allocation2 + $0x60] sm:$0xff]
  %v1891 = vld [vmem:[#allocation2 + $0x68] sm:$0xff]
  %v1892 = vld [vmem:[#allocation2 + $0x70] sm:$0xff]
  %s1893 = scalar_lea.vmem %s5, 288
  %v1894 = vld [vmem:[%s1893] sm:$0xff]
  %v1895 = vld [vmem:[%s1893 + $0x8] sm:$0xff]
  %v1896 = vld [vmem:[%s1893 + $0x10] sm:$0xff]
  %v1897 = vld [vmem:[%s1893 + $0x18] sm:$0xff]
  %v1899 = vsel %vm727, %v1887, 0
  %v1902 = vsel %vm727, %v1888, 0
  %v1905 = vsel %vm727, %v1889, 0
  %v1908 = vsel %vm727, %v1890, 0
  %v1911 = vsel %vm727, %v1891, 0
  %v1914 = vsel %vm727, %v1892, 0
  %1916 = vmatprep.subr.mxu0 0.0
  %1917 = vmatpush1.msra.mxu0 0.0
  %1918 = vmatprep.subr.mxu0 0.0
  %1919 = vmatpush1.msra.mxu0 0.0
  %1920 = vmatprep.subr.mxu0 0.0
  %1921 = vmatpush1.msra.mxu0 0.0
  %1922 = vmatprep.subr.mxu0 0.0
  %1923 = vmatpush1.msra.mxu0 0.0
  %1924 = vmatprep.subr.mxu0 0.0
  %1925 = vmatpush1.msra.mxu0 0.0
  %1926 = vmatprep.subr.mxu0 0.0
  %1927 = vmatpush1.msra.mxu0 0.0
  %1928 = vmatprep.subr.mxu0 0.0
  %1929 = vmatpush1.msra.mxu0 0.0
  %1930 = vmatprep.subr.mxu0 0.0
  %1931 = vmatpush1.msra.mxu0 0.0
  %1932 = vmatprep.subr.mxu0 0.0
  %1933 = vmatpush1.msra.mxu0 0.0
  %1934 = vmatprep.subr.mxu0 0.0
  %1935 = vmatpush1.msra.mxu0 0.0
  %1936 = vmatprep.subr.mxu0 0.0
  %1937 = vmatpush1.msra.mxu0 0.0
  %1938 = vmatprep.subr.mxu0 0.0
  %1939 = vmatpush1.msra.mxu0 0.0
  %1940 = vmatprep.subr.mxu0 0.0
  %1941 = vmatpush1.msra.mxu0 %v1897
  %1942 = vmatprep.subr.mxu0 0.0
  %1943 = vmatpush1.msra.mxu0 %v1896
  %1944 = vmatprep.subr.mxu0 0.0
  %1945 = vmatpush1.msra.mxu0 %v1895
  %1946 = vmatprep.subr.mxu0 0.0
  %1947 = vmatpush1.msra.mxu0 %v1894
  %1948 = vmatprep.subr.mxu0 0.0
  %1949 = vmatpush2.msra.mxu0 0.0
  %1950 = vmatprep.subr.mxu0 0.0
  %1951 = vmatpush2.msra.mxu0 0.0
  %1952 = vmatprep.subr.mxu0 0.0
  %1953 = vmatpush2.msra.mxu0 0.0
  %1954 = vmatprep.subr.mxu0 0.0
  %1955 = vmatpush2.msra.mxu0 0.0
  %1956 = vmatprep.subr.mxu0 0.0
  %1957 = vmatpush2.msra.mxu0 0.0
  %1958 = vmatprep.subr.mxu0 0.0
  %1959 = vmatpush2.msra.mxu0 0.0
  %1960 = vmatprep.subr.mxu0 0.0
  %1961 = vmatpush2.msra.mxu0 0.0
  %1962 = vmatprep.subr.mxu0 0.0
  %1963 = vmatpush2.msra.mxu0 0.0
  %1964 = vmatprep.subr.mxu0 0.0
  %1965 = vmatpush2.msra.mxu0 0.0
  %1966 = vmatprep.subr.mxu0 0.0
  %1967 = vmatpush2.msra.mxu0 0.0
  %1968 = vmatprep.subr.mxu0 0.0
  %1969 = vmatpush2.msra.mxu0 0.0
  %1970 = vmatprep.subr.mxu0 0.0
  %1971 = vmatpush2.msra.mxu0 0.0
  %1972 = vmatprep.subr.mxu0 0.0
  %1973 = vmatpush2.msra.mxu0 0.0
  %1974 = vmatprep.subr.mxu0 0.0
  %1975 = vmatpush2.msra.mxu0 0.0
  %1976 = vmatprep.subr.mxu0 0.0
  %1977 = vmatpush2.msra.mxu0 0.0
  %1978 = vmatprep.subr.mxu0 0.0
  %1979 = vmatpush2.msra.mxu0 0.0
  %1980 = vmatprep.mubr.f32.mxu0 0.0
  %1981 = vmatmul.mubr.f32.gmra.mxu0 %v1899
  %v1982 = vpop.f32.mrf.mxu0
  %v1983 = vadd.f32 0.0, %v1982
  %v1984 = vpop.f32.mrf.mxu0
  %1985 = vmatprep.mubr.f32.mxu0 0.0
  %1986 = vmatmul.mubr.f32.gmra.mxu0 %v1902
  %v1987 = vpop.f32.mrf.mxu0
  %v1988 = vadd.f32 0.0, %v1987
  %v1989 = vpop.f32.mrf.mxu0
  %1990 = vmatprep.mubr.f32.mxu0 0.0
  %1991 = vmatmul.mubr.f32.gmra.mxu0 %v1905
  %v1992 = vpop.f32.mrf.mxu0
  %v1993 = vadd.f32 0.0, %v1992
  %v1994 = vpop.f32.mrf.mxu0
  %1995 = vmatprep.mubr.f32.mxu0 0.0
  %1996 = vmatmul.mubr.f32.gmra.mxu0 %v1908
  %v1997 = vpop.f32.mrf.mxu0
  %v1998 = vadd.f32 0.0, %v1997
  %v1999 = vpop.f32.mrf.mxu0
  %2000 = vmatprep.mubr.f32.mxu0 0.0
  %2001 = vmatmul.mubr.f32.gmra.mxu0 %v1911
  %v2002 = vpop.f32.mrf.mxu0
  %v2003 = vadd.f32 0.0, %v2002
  %v2004 = vpop.f32.mrf.mxu0
  %2005 = vmatprep.mubr.f32.mxu0 0.0
  %2006 = vmatmul.mubr.f32.gmra.mxu0 %v1914
  %v2007 = vpop.f32.mrf.mxu0
  %v2008 = vadd.f32 0.0, %v2007
  %v2009 = vpop.f32.mrf.mxu0
  %2010 = vdwg.mxu0
  %v2011 = vadd.f32 %v1881, %v1983
  %v2012 = vadd.f32 %v1882, %v1988
  %v2013 = vadd.f32 %v1883, %v1993
  %v2014 = vadd.f32 %v1884, %v1998
  %v2015 = vadd.f32 %v1885, %v2003
  %v2016 = vadd.f32 %v1886, %v2008
  %v2017 = vld [vmem:[#allocation2 + $0x50] sm:$0xff]
  %v2018 = vld [vmem:[#allocation2 + $0x58] sm:$0xff]
  %v2019 = vld [vmem:[#allocation2 + $0x60] sm:$0xff]
  %v2020 = vld [vmem:[#allocation2 + $0x68] sm:$0xff]
  %v2021 = vld [vmem:[#allocation2 + $0x70] sm:$0xff]
  %v2022 = vld [vmem:[#allocation2 + $0x78] sm:$0xff]
  %s2023 = scalar_lea.vmem %s5, 320
  %v2024 = vld [vmem:[%s2023] sm:$0xff]
  %v2025 = vld [vmem:[%s2023 + $0x8] sm:$0xff]
  %v2026 = vld [vmem:[%s2023 + $0x10] sm:$0xff]
  %v2027 = vld [vmem:[%s2023 + $0x18] sm:$0xff]
  %v2029 = vsel %vm727, %v2017, 0
  %v2032 = vsel %vm727, %v2018, 0
  %v2035 = vsel %vm727, %v2019, 0
  %v2038 = vsel %vm727, %v2020, 0
  %v2041 = vsel %vm727, %v2021, 0
  %v2044 = vsel %vm727, %v2022, 0
  %2046 = vmatprep.subr.mxu0 0.0
  %2047 = vmatpush1.msra.mxu0 0.0
  %2048 = vmatprep.subr.mxu0 0.0
  %2049 = vmatpush1.msra.mxu0 0.0
  %2050 = vmatprep.subr.mxu0 0.0
  %2051 = vmatpush1.msra.mxu0 0.0
  %2052 = vmatprep.subr.mxu0 0.0
  %2053 = vmatpush1.msra.mxu0 0.0
  %2054 = vmatprep.subr.mxu0 0.0
  %2055 = vmatpush1.msra.mxu0 0.0
  %2056 = vmatprep.subr.mxu0 0.0
  %2057 = vmatpush1.msra.mxu0 0.0
  %2058 = vmatprep.subr.mxu0 0.0
  %2059 = vmatpush1.msra.mxu0 0.0
  %2060 = vmatprep.subr.mxu0 0.0
  %2061 = vmatpush1.msra.mxu0 0.0
  %2062 = vmatprep.subr.mxu0 0.0
  %2063 = vmatpush1.msra.mxu0 0.0
  %2064 = vmatprep.subr.mxu0 0.0
  %2065 = vmatpush1.msra.mxu0 0.0
  %2066 = vmatprep.subr.mxu0 0.0
  %2067 = vmatpush1.msra.mxu0 0.0
  %2068 = vmatprep.subr.mxu0 0.0
  %2069 = vmatpush1.msra.mxu0 0.0
  %2070 = vmatprep.subr.mxu0 0.0
  %2071 = vmatpush1.msra.mxu0 %v2027
  %2072 = vmatprep.subr.mxu0 0.0
  %2073 = vmatpush1.msra.mxu0 %v2026
  %2074 = vmatprep.subr.mxu0 0.0
  %2075 = vmatpush1.msra.mxu0 %v2025
  %2076 = vmatprep.subr.mxu0 0.0
  %2077 = vmatpush1.msra.mxu0 %v2024
  %2078 = vmatprep.subr.mxu0 0.0
  %2079 = vmatpush2.msra.mxu0 0.0
  %2080 = vmatprep.subr.mxu0 0.0
  %2081 = vmatpush2.msra.mxu0 0.0
  %2082 = vmatprep.subr.mxu0 0.0
  %2083 = vmatpush2.msra.mxu0 0.0
  %2084 = vmatprep.subr.mxu0 0.0
  %2085 = vmatpush2.msra.mxu0 0.0
  %2086 = vmatprep.subr.mxu0 0.0
  %2087 = vmatpush2.msra.mxu0 0.0
  %2088 = vmatprep.subr.mxu0 0.0
  %2089 = vmatpush2.msra.mxu0 0.0
  %2090 = vmatprep.subr.mxu0 0.0
  %2091 = vmatpush2.msra.mxu0 0.0
  %2092 = vmatprep.subr.mxu0 0.0
  %2093 = vmatpush2.msra.mxu0 0.0
  %2094 = vmatprep.subr.mxu0 0.0
  %2095 = vmatpush2.msra.mxu0 0.0
  %2096 = vmatprep.subr.mxu0 0.0
  %2097 = vmatpush2.msra.mxu0 0.0
  %2098 = vmatprep.subr.mxu0 0.0
  %2099 = vmatpush2.msra.mxu0 0.0
  %2100 = vmatprep.subr.mxu0 0.0
  %2101 = vmatpush2.msra.mxu0 0.0
  %2102 = vmatprep.subr.mxu0 0.0
  %2103 = vmatpush2.msra.mxu0 0.0
  %2104 = vmatprep.subr.mxu0 0.0
  %2105 = vmatpush2.msra.mxu0 0.0
  %2106 = vmatprep.subr.mxu0 0.0
  %2107 = vmatpush2.msra.mxu0 0.0
  %2108 = vmatprep.subr.mxu0 0.0
  %2109 = vmatpush2.msra.mxu0 0.0
  %2110 = vmatprep.mubr.f32.mxu0 0.0
  %2111 = vmatmul.mubr.f32.gmra.mxu0 %v2029
  %v2112 = vpop.f32.mrf.mxu0
  %v2113 = vadd.f32 0.0, %v2112
  %v2114 = vpop.f32.mrf.mxu0
  %2115 = vmatprep.mubr.f32.mxu0 0.0
  %2116 = vmatmul.mubr.f32.gmra.mxu0 %v2032
  %v2117 = vpop.f32.mrf.mxu0
  %v2118 = vadd.f32 0.0, %v2117
  %v2119 = vpop.f32.mrf.mxu0
  %2120 = vmatprep.mubr.f32.mxu0 0.0
  %2121 = vmatmul.mubr.f32.gmra.mxu0 %v2035
  %v2122 = vpop.f32.mrf.mxu0
  %v2123 = vadd.f32 0.0, %v2122
  %v2124 = vpop.f32.mrf.mxu0
  %2125 = vmatprep.mubr.f32.mxu0 0.0
  %2126 = vmatmul.mubr.f32.gmra.mxu0 %v2038
  %v2127 = vpop.f32.mrf.mxu0
  %v2128 = vadd.f32 0.0, %v2127
  %v2129 = vpop.f32.mrf.mxu0
  %2130 = vmatprep.mubr.f32.mxu0 0.0
  %2131 = vmatmul.mubr.f32.gmra.mxu0 %v2041
  %v2132 = vpop.f32.mrf.mxu0
  %v2133 = vadd.f32 0.0, %v2132
  %v2134 = vpop.f32.mrf.mxu0
  %2135 = vmatprep.mubr.f32.mxu0 0.0
  %2136 = vmatmul.mubr.f32.gmra.mxu0 %v2044
  %v2137 = vpop.f32.mrf.mxu0
  %v2138 = vadd.f32 0.0, %v2137
  %v2139 = vpop.f32.mrf.mxu0
  %2140 = vdwg.mxu0
  %v2141 = vadd.f32 %v2011, %v2113
  %v2142 = vadd.f32 %v2012, %v2118
  %v2143 = vadd.f32 %v2013, %v2123
  %v2144 = vadd.f32 %v2014, %v2128
  %v2145 = vadd.f32 %v2015, %v2133
  %v2146 = vadd.f32 %v2016, %v2138
  %v2147 = vld [vmem:[#allocation2 + $0x58] sm:$0xff]
  %v2148 = vld [vmem:[#allocation2 + $0x60] sm:$0xff]
  %v2149 = vld [vmem:[#allocation2 + $0x68] sm:$0xff]
  %v2150 = vld [vmem:[#allocation2 + $0x70] sm:$0xff]
  %v2151 = vld [vmem:[#allocation2 + $0x78] sm:$0xff]
  %v2152 = vld [vmem:[#allocation2 + $0x80] sm:$0xff]
  %s2153 = scalar_lea.vmem %s5, 352
  %v2154 = vld [vmem:[%s2153] sm:$0xff]
  %v2155 = vld [vmem:[%s2153 + $0x8] sm:$0xff]
  %v2156 = vld [vmem:[%s2153 + $0x10] sm:$0xff]
  %v2157 = vld [vmem:[%s2153 + $0x18] sm:$0xff]
  %v2159 = vsel %vm727, %v2147, 0
  %v2162 = vsel %vm727, %v2148, 0
  %v2165 = vsel %vm727, %v2149, 0
  %v2168 = vsel %vm727, %v2150, 0
  %v2171 = vsel %vm727, %v2151, 0
  %v2174 = vsel %vm727, %v2152, 0
  %2176 = vmatprep.subr.mxu0 0.0
  %2177 = vmatpush1.msra.mxu0 0.0
  %2178 = vmatprep.subr.mxu0 0.0
  %2179 = vmatpush1.msra.mxu0 0.0
  %2180 = vmatprep.subr.mxu0 0.0
  %2181 = vmatpush1.msra.mxu0 0.0
  %2182 = vmatprep.subr.mxu0 0.0
  %2183 = vmatpush1.msra.mxu0 0.0
  %2184 = vmatprep.subr.mxu0 0.0
  %2185 = vmatpush1.msra.mxu0 0.0
  %2186 = vmatprep.subr.mxu0 0.0
  %2187 = vmatpush1.msra.mxu0 0.0
  %2188 = vmatprep.subr.mxu0 0.0
  %2189 = vmatpush1.msra.mxu0 0.0
  %2190 = vmatprep.subr.mxu0 0.0
  %2191 = vmatpush1.msra.mxu0 0.0
  %2192 = vmatprep.subr.mxu0 0.0
  %2193 = vmatpush1.msra.mxu0 0.0
  %2194 = vmatprep.subr.mxu0 0.0
  %2195 = vmatpush1.msra.mxu0 0.0
  %2196 = vmatprep.subr.mxu0 0.0
  %2197 = vmatpush1.msra.mxu0 0.0
  %2198 = vmatprep.subr.mxu0 0.0
  %2199 = vmatpush1.msra.mxu0 0.0
  %2200 = vmatprep.subr.mxu0 0.0
  %2201 = vmatpush1.msra.mxu0 %v2157
  %2202 = vmatprep.subr.mxu0 0.0
  %2203 = vmatpush1.msra.mxu0 %v2156
  %2204 = vmatprep.subr.mxu0 0.0
  %2205 = vmatpush1.msra.mxu0 %v2155
  %2206 = vmatprep.subr.mxu0 0.0
  %2207 = vmatpush1.msra.mxu0 %v2154
  %2208 = vmatprep.subr.mxu0 0.0
  %2209 = vmatpush2.msra.mxu0 0.0
  %2210 = vmatprep.subr.mxu0 0.0
  %2211 = vmatpush2.msra.mxu0 0.0
  %2212 = vmatprep.subr.mxu0 0.0
  %2213 = vmatpush2.msra.mxu0 0.0
  %2214 = vmatprep.subr.mxu0 0.0
  %2215 = vmatpush2.msra.mxu0 0.0
  %2216 = vmatprep.subr.mxu0 0.0
  %2217 = vmatpush2.msra.mxu0 0.0
  %2218 = vmatprep.subr.mxu0 0.0
  %2219 = vmatpush2.msra.mxu0 0.0
  %2220 = vmatprep.subr.mxu0 0.0
  %2221 = vmatpush2.msra.mxu0 0.0
  %2222 = vmatprep.subr.mxu0 0.0
  %2223 = vmatpush2.msra.mxu0 0.0
  %2224 = vmatprep.subr.mxu0 0.0
  %2225 = vmatpush2.msra.mxu0 0.0
  %2226 = vmatprep.subr.mxu0 0.0
  %2227 = vmatpush2.msra.mxu0 0.0
  %2228 = vmatprep.subr.mxu0 0.0
  %2229 = vmatpush2.msra.mxu0 0.0
  %2230 = vmatprep.subr.mxu0 0.0
  %2231 = vmatpush2.msra.mxu0 0.0
  %2232 = vmatprep.subr.mxu0 0.0
  %2233 = vmatpush2.msra.mxu0 0.0
  %2234 = vmatprep.subr.mxu0 0.0
  %2235 = vmatpush2.msra.mxu0 0.0
  %2236 = vmatprep.subr.mxu0 0.0
  %2237 = vmatpush2.msra.mxu0 0.0
  %2238 = vmatprep.subr.mxu0 0.0
  %2239 = vmatpush2.msra.mxu0 0.0
  %2240 = vmatprep.mubr.f32.mxu0 0.0
  %2241 = vmatmul.mubr.f32.gmra.mxu0 %v2159
  %v2242 = vpop.f32.mrf.mxu0
  %v2243 = vadd.f32 0.0, %v2242
  %v2244 = vpop.f32.mrf.mxu0
  %2245 = vmatprep.mubr.f32.mxu0 0.0
  %2246 = vmatmul.mubr.f32.gmra.mxu0 %v2162
  %v2247 = vpop.f32.mrf.mxu0
  %v2248 = vadd.f32 0.0, %v2247
  %v2249 = vpop.f32.mrf.mxu0
  %2250 = vmatprep.mubr.f32.mxu0 0.0
  %2251 = vmatmul.mubr.f32.gmra.mxu0 %v2165
  %v2252 = vpop.f32.mrf.mxu0
  %v2253 = vadd.f32 0.0, %v2252
  %v2254 = vpop.f32.mrf.mxu0
  %2255 = vmatprep.mubr.f32.mxu0 0.0
  %2256 = vmatmul.mubr.f32.gmra.mxu0 %v2168
  %v2257 = vpop.f32.mrf.mxu0
  %v2258 = vadd.f32 0.0, %v2257
  %v2259 = vpop.f32.mrf.mxu0
  %2260 = vmatprep.mubr.f32.mxu0 0.0
  %2261 = vmatmul.mubr.f32.gmra.mxu0 %v2171
  %v2262 = vpop.f32.mrf.mxu0
  %v2263 = vadd.f32 0.0, %v2262
  %v2264 = vpop.f32.mrf.mxu0
  %2265 = vmatprep.mubr.f32.mxu0 0.0
  %2266 = vmatmul.mubr.f32.gmra.mxu0 %v2174
  %v2267 = vpop.f32.mrf.mxu0
  %v2268 = vadd.f32 0.0, %v2267
  %v2269 = vpop.f32.mrf.mxu0
  %2270 = vdwg.mxu0
  %v2271 = vadd.f32 %v2141, %v2243
  %v2272 = vadd.f32 %v2142, %v2248
  %v2273 = vadd.f32 %v2143, %v2253
  %v2274 = vadd.f32 %v2144, %v2258
  %v2275 = vadd.f32 %v2145, %v2263
  %v2276 = vadd.f32 %v2146, %v2268
  %v2277 = vld [vmem:[#allocation2 + $0x60] sm:$0xff]
  %v2278 = vld [vmem:[#allocation2 + $0x68] sm:$0xff]
  %v2279 = vld [vmem:[#allocation2 + $0x70] sm:$0xff]
  %v2280 = vld [vmem:[#allocation2 + $0x78] sm:$0xff]
  %v2281 = vld [vmem:[#allocation2 + $0x80] sm:$0xff]
  %v2282 = vld [vmem:[#allocation2 + $0x88] sm:$0xff]
  %s2283 = scalar_lea.vmem %s5, 384
  %v2284 = vld [vmem:[%s2283] sm:$0xff]
  %v2285 = vld [vmem:[%s2283 + $0x8] sm:$0xff]
  %v2286 = vld [vmem:[%s2283 + $0x10] sm:$0xff]
  %v2287 = vld [vmem:[%s2283 + $0x18] sm:$0xff]
  %v2289 = vsel %vm727, %v2277, 0
  %v2292 = vsel %vm727, %v2278, 0
  %v2295 = vsel %vm727, %v2279, 0
  %v2298 = vsel %vm727, %v2280, 0
  %v2301 = vsel %vm727, %v2281, 0
  %v2304 = vsel %vm727, %v2282, 0
  %2306 = vmatprep.subr.mxu0 0.0
  %2307 = vmatpush1.msra.mxu0 0.0
  %2308 = vmatprep.subr.mxu0 0.0
  %2309 = vmatpush1.msra.mxu0 0.0
  %2310 = vmatprep.subr.mxu0 0.0
  %2311 = vmatpush1.msra.mxu0 0.0
  %2312 = vmatprep.subr.mxu0 0.0
  %2313 = vmatpush1.msra.mxu0 0.0
  %2314 = vmatprep.subr.mxu0 0.0
  %2315 = vmatpush1.msra.mxu0 0.0
  %2316 = vmatprep.subr.mxu0 0.0
  %2317 = vmatpush1.msra.mxu0 0.0
  %2318 = vmatprep.subr.mxu0 0.0
  %2319 = vmatpush1.msra.mxu0 0.0
  %2320 = vmatprep.subr.mxu0 0.0
  %2321 = vmatpush1.msra.mxu0 0.0
  %2322 = vmatprep.subr.mxu0 0.0
  %2323 = vmatpush1.msra.mxu0 0.0
  %2324 = vmatprep.subr.mxu0 0.0
  %2325 = vmatpush1.msra.mxu0 0.0
  %2326 = vmatprep.subr.mxu0 0.0
  %2327 = vmatpush1.msra.mxu0 0.0
  %2328 = vmatprep.subr.mxu0 0.0
  %2329 = vmatpush1.msra.mxu0 0.0
  %2330 = vmatprep.subr.mxu0 0.0
  %2331 = vmatpush1.msra.mxu0 %v2287
  %2332 = vmatprep.subr.mxu0 0.0
  %2333 = vmatpush1.msra.mxu0 %v2286
  %2334 = vmatprep.subr.mxu0 0.0
  %2335 = vmatpush1.msra.mxu0 %v2285
  %2336 = vmatprep.subr.mxu0 0.0
  %2337 = vmatpush1.msra.mxu0 %v2284
  %2338 = vmatprep.subr.mxu0 0.0
  %2339 = vmatpush2.msra.mxu0 0.0
  %2340 = vmatprep.subr.mxu0 0.0
  %2341 = vmatpush2.msra.mxu0 0.0
  %2342 = vmatprep.subr.mxu0 0.0
  %2343 = vmatpush2.msra.mxu0 0.0
  %2344 = vmatprep.subr.mxu0 0.0
  %2345 = vmatpush2.msra.mxu0 0.0
  %2346 = vmatprep.subr.mxu0 0.0
  %2347 = vmatpush2.msra.mxu0 0.0
  %2348 = vmatprep.subr.mxu0 0.0
  %2349 = vmatpush2.msra.mxu0 0.0
  %2350 = vmatprep.subr.mxu0 0.0
  %2351 = vmatpush2.msra.mxu0 0.0
  %2352 = vmatprep.subr.mxu0 0.0
  %2353 = vmatpush2.msra.mxu0 0.0
  %2354 = vmatprep.subr.mxu0 0.0
  %2355 = vmatpush2.msra.mxu0 0.0
  %2356 = vmatprep.subr.mxu0 0.0
  %2357 = vmatpush2.msra.mxu0 0.0
  %2358 = vmatprep.subr.mxu0 0.0
  %2359 = vmatpush2.msra.mxu0 0.0
  %2360 = vmatprep.subr.mxu0 0.0
  %2361 = vmatpush2.msra.mxu0 0.0
  %2362 = vmatprep.subr.mxu0 0.0
  %2363 = vmatpush2.msra.mxu0 0.0
  %2364 = vmatprep.subr.mxu0 0.0
  %2365 = vmatpush2.msra.mxu0 0.0
  %2366 = vmatprep.subr.mxu0 0.0
  %2367 = vmatpush2.msra.mxu0 0.0
  %2368 = vmatprep.subr.mxu0 0.0
  %2369 = vmatpush2.msra.mxu0 0.0
  %2370 = vmatprep.mubr.f32.mxu0 0.0
  %2371 = vmatmul.mubr.f32.gmra.mxu0 %v2289
  %v2372 = vpop.f32.mrf.mxu0
  %v2373 = vadd.f32 0.0, %v2372
  %v2374 = vpop.f32.mrf.mxu0
  %2375 = vmatprep.mubr.f32.mxu0 0.0
  %2376 = vmatmul.mubr.f32.gmra.mxu0 %v2292
  %v2377 = vpop.f32.mrf.mxu0
  %v2378 = vadd.f32 0.0, %v2377
  %v2379 = vpop.f32.mrf.mxu0
  %2380 = vmatprep.mubr.f32.mxu0 0.0
  %2381 = vmatmul.mubr.f32.gmra.mxu0 %v2295
  %v2382 = vpop.f32.mrf.mxu0
  %v2383 = vadd.f32 0.0, %v2382
  %v2384 = vpop.f32.mrf.mxu0
  %2385 = vmatprep.mubr.f32.mxu0 0.0
  %2386 = vmatmul.mubr.f32.gmra.mxu0 %v2298
  %v2387 = vpop.f32.mrf.mxu0
  %v2388 = vadd.f32 0.0, %v2387
  %v2389 = vpop.f32.mrf.mxu0
  %2390 = vmatprep.mubr.f32.mxu0 0.0
  %2391 = vmatmul.mubr.f32.gmra.mxu0 %v2301
  %v2392 = vpop.f32.mrf.mxu0
  %v2393 = vadd.f32 0.0, %v2392
  %v2394 = vpop.f32.mrf.mxu0
  %2395 = vmatprep.mubr.f32.mxu0 0.0
  %2396 = vmatmul.mubr.f32.gmra.mxu0 %v2304
  %v2397 = vpop.f32.mrf.mxu0
  %v2398 = vadd.f32 0.0, %v2397
  %v2399 = vpop.f32.mrf.mxu0
  %2400 = vdwg.mxu0
  %v2401 = vadd.f32 %v2271, %v2373
  %v2402 = vadd.f32 %v2272, %v2378
  %v2403 = vadd.f32 %v2273, %v2383
  %v2404 = vadd.f32 %v2274, %v2388
  %v2405 = vadd.f32 %v2275, %v2393
  %v2406 = vadd.f32 %v2276, %v2398
  %v2407 = vld [vmem:[#allocation2 + $0x68] sm:$0xff]
  %v2408 = vld [vmem:[#allocation2 + $0x70] sm:$0xff]
  %v2409 = vld [vmem:[#allocation2 + $0x78] sm:$0xff]
  %v2410 = vld [vmem:[#allocation2 + $0x80] sm:$0xff]
  %v2411 = vld [vmem:[#allocation2 + $0x88] sm:$0xff]
  %v2412 = vld [vmem:[#allocation2 + $0x90] sm:$0xff]
  %s2413 = scalar_lea.vmem %s5, 416
  %v2414 = vld [vmem:[%s2413] sm:$0xff]
  %v2415 = vld [vmem:[%s2413 + $0x8] sm:$0xff]
  %v2416 = vld [vmem:[%s2413 + $0x10] sm:$0xff]
  %v2417 = vld [vmem:[%s2413 + $0x18] sm:$0xff]
  %v2419 = vsel %vm727, %v2407, 0
  %v2422 = vsel %vm727, %v2408, 0
  %v2425 = vsel %vm727, %v2409, 0
  %v2428 = vsel %vm727, %v2410, 0
  %v2431 = vsel %vm727, %v2411, 0
  %v2434 = vsel %vm727, %v2412, 0
  %2436 = vmatprep.subr.mxu0 0.0
  %2437 = vmatpush1.msra.mxu0 0.0
  %2438 = vmatprep.subr.mxu0 0.0
  %2439 = vmatpush1.msra.mxu0 0.0
  %2440 = vmatprep.subr.mxu0 0.0
  %2441 = vmatpush1.msra.mxu0 0.0
  %2442 = vmatprep.subr.mxu0 0.0
  %2443 = vmatpush1.msra.mxu0 0.0
  %2444 = vmatprep.subr.mxu0 0.0
  %2445 = vmatpush1.msra.mxu0 0.0
  %2446 = vmatprep.subr.mxu0 0.0
  %2447 = vmatpush1.msra.mxu0 0.0
  %2448 = vmatprep.subr.mxu0 0.0
  %2449 = vmatpush1.msra.mxu0 0.0
  %2450 = vmatprep.subr.mxu0 0.0
  %2451 = vmatpush1.msra.mxu0 0.0
  %2452 = vmatprep.subr.mxu0 0.0
  %2453 = vmatpush1.msra.mxu0 0.0
  %2454 = vmatprep.subr.mxu0 0.0
  %2455 = vmatpush1.msra.mxu0 0.0
  %2456 = vmatprep.subr.mxu0 0.0
  %2457 = vmatpush1.msra.mxu0 0.0
  %2458 = vmatprep.subr.mxu0 0.0
  %2459 = vmatpush1.msra.mxu0 0.0
  %2460 = vmatprep.subr.mxu0 0.0
  %2461 = vmatpush1.msra.mxu0 %v2417
  %2462 = vmatprep.subr.mxu0 0.0
  %2463 = vmatpush1.msra.mxu0 %v2416
  %2464 = vmatprep.subr.mxu0 0.0
  %2465 = vmatpush1.msra.mxu0 %v2415
  %2466 = vmatprep.subr.mxu0 0.0
  %2467 = vmatpush1.msra.mxu0 %v2414
  %2468 = vmatprep.subr.mxu0 0.0
  %2469 = vmatpush2.msra.mxu0 0.0
  %2470 = vmatprep.subr.mxu0 0.0
  %2471 = vmatpush2.msra.mxu0 0.0
  %2472 = vmatprep.subr.mxu0 0.0
  %2473 = vmatpush2.msra.mxu0 0.0
  %2474 = vmatprep.subr.mxu0 0.0
  %2475 = vmatpush2.msra.mxu0 0.0
  %2476 = vmatprep.subr.mxu0 0.0
  %2477 = vmatpush2.msra.mxu0 0.0
  %2478 = vmatprep.subr.mxu0 0.0
  %2479 = vmatpush2.msra.mxu0 0.0
  %2480 = vmatprep.subr.mxu0 0.0
  %2481 = vmatpush2.msra.mxu0 0.0
  %2482 = vmatprep.subr.mxu0 0.0
  %2483 = vmatpush2.msra.mxu0 0.0
  %2484 = vmatprep.subr.mxu0 0.0
  %2485 = vmatpush2.msra.mxu0 0.0
  %2486 = vmatprep.subr.mxu0 0.0
  %2487 = vmatpush2.msra.mxu0 0.0
  %2488 = vmatprep.subr.mxu0 0.0
  %2489 = vmatpush2.msra.mxu0 0.0
  %2490 = vmatprep.subr.mxu0 0.0
  %2491 = vmatpush2.msra.mxu0 0.0
  %2492 = vmatprep.subr.mxu0 0.0
  %2493 = vmatpush2.msra.mxu0 0.0
  %2494 = vmatprep.subr.mxu0 0.0
  %2495 = vmatpush2.msra.mxu0 0.0
  %2496 = vmatprep.subr.mxu0 0.0
  %2497 = vmatpush2.msra.mxu0 0.0
  %2498 = vmatprep.subr.mxu0 0.0
  %2499 = vmatpush2.msra.mxu0 0.0
  %2500 = vmatprep.mubr.f32.mxu0 0.0
  %2501 = vmatmul.mubr.f32.gmra.mxu0 %v2419
  %v2502 = vpop.f32.mrf.mxu0
  %v2503 = vadd.f32 0.0, %v2502
  %v2504 = vpop.f32.mrf.mxu0
  %2505 = vmatprep.mubr.f32.mxu0 0.0
  %2506 = vmatmul.mubr.f32.gmra.mxu0 %v2422
  %v2507 = vpop.f32.mrf.mxu0
  %v2508 = vadd.f32 0.0, %v2507
  %v2509 = vpop.f32.mrf.mxu0
  %2510 = vmatprep.mubr.f32.mxu0 0.0
  %2511 = vmatmul.mubr.f32.gmra.mxu0 %v2425
  %v2512 = vpop.f32.mrf.mxu0
  %v2513 = vadd.f32 0.0, %v2512
  %v2514 = vpop.f32.mrf.mxu0
  %2515 = vmatprep.mubr.f32.mxu0 0.0
  %2516 = vmatmul.mubr.f32.gmra.mxu0 %v2428
  %v2517 = vpop.f32.mrf.mxu0
  %v2518 = vadd.f32 0.0, %v2517
  %v2519 = vpop.f32.mrf.mxu0
  %2520 = vmatprep.mubr.f32.mxu0 0.0
  %2521 = vmatmul.mubr.f32.gmra.mxu0 %v2431
  %v2522 = vpop.f32.mrf.mxu0
  %v2523 = vadd.f32 0.0, %v2522
  %v2524 = vpop.f32.mrf.mxu0
  %2525 = vmatprep.mubr.f32.mxu0 0.0
  %2526 = vmatmul.mubr.f32.gmra.mxu0 %v2434
  %v2527 = vpop.f32.mrf.mxu0
  %v2528 = vadd.f32 0.0, %v2527
  %v2529 = vpop.f32.mrf.mxu0
  %2530 = vdwg.mxu0
  %v2531 = vadd.f32 %v2401, %v2503
  %v2532 = vadd.f32 %v2402, %v2508
  %v2533 = vadd.f32 %v2403, %v2513
  %v2534 = vadd.f32 %v2404, %v2518
  %v2535 = vadd.f32 %v2405, %v2523
  %v2536 = vadd.f32 %v2406, %v2528
  %v2537 = vld [vmem:[#allocation2 + $0x70] sm:$0xff]
  %v2538 = vld [vmem:[#allocation2 + $0x78] sm:$0xff]
  %v2539 = vld [vmem:[#allocation2 + $0x80] sm:$0xff]
  %v2540 = vld [vmem:[#allocation2 + $0x88] sm:$0xff]
  %v2541 = vld [vmem:[#allocation2 + $0x90] sm:$0xff]
  %v2542 = vld [vmem:[#allocation2 + $0x98] sm:$0xff]
  %s2543 = scalar_lea.vmem %s5, 448
  %v2544 = vld [vmem:[%s2543] sm:$0xff]
  %v2545 = vld [vmem:[%s2543 + $0x8] sm:$0xff]
  %v2546 = vld [vmem:[%s2543 + $0x10] sm:$0xff]
  %v2547 = vld [vmem:[%s2543 + $0x18] sm:$0xff]
  %v2549 = vsel %vm727, %v2537, 0
  %v2552 = vsel %vm727, %v2538, 0
  %v2555 = vsel %vm727, %v2539, 0
  %v2558 = vsel %vm727, %v2540, 0
  %v2561 = vsel %vm727, %v2541, 0
  %v2564 = vsel %vm727, %v2542, 0
  %2566 = vmatprep.subr.mxu0 0.0
  %2567 = vmatpush1.msra.mxu0 0.0
  %2568 = vmatprep.subr.mxu0 0.0
  %2569 = vmatpush1.msra.mxu0 0.0
  %2570 = vmatprep.subr.mxu0 0.0
  %2571 = vmatpush1.msra.mxu0 0.0
  %2572 = vmatprep.subr.mxu0 0.0
  %2573 = vmatpush1.msra.mxu0 0.0
  %2574 = vmatprep.subr.mxu0 0.0
  %2575 = vmatpush1.msra.mxu0 0.0
  %2576 = vmatprep.subr.mxu0 0.0
  %2577 = vmatpush1.msra.mxu0 0.0
  %2578 = vmatprep.subr.mxu0 0.0
  %2579 = vmatpush1.msra.mxu0 0.0
  %2580 = vmatprep.subr.mxu0 0.0
  %2581 = vmatpush1.msra.mxu0 0.0
  %2582 = vmatprep.subr.mxu0 0.0
  %2583 = vmatpush1.msra.mxu0 0.0
  %2584 = vmatprep.subr.mxu0 0.0
  %2585 = vmatpush1.msra.mxu0 0.0
  %2586 = vmatprep.subr.mxu0 0.0
  %2587 = vmatpush1.msra.mxu0 0.0
  %2588 = vmatprep.subr.mxu0 0.0
  %2589 = vmatpush1.msra.mxu0 0.0
  %2590 = vmatprep.subr.mxu0 0.0
  %2591 = vmatpush1.msra.mxu0 %v2547
  %2592 = vmatprep.subr.mxu0 0.0
  %2593 = vmatpush1.msra.mxu0 %v2546
  %2594 = vmatprep.subr.mxu0 0.0
  %2595 = vmatpush1.msra.mxu0 %v2545
  %2596 = vmatprep.subr.mxu0 0.0
  %2597 = vmatpush1.msra.mxu0 %v2544
  %2598 = vmatprep.subr.mxu0 0.0
  %2599 = vmatpush2.msra.mxu0 0.0
  %2600 = vmatprep.subr.mxu0 0.0
  %2601 = vmatpush2.msra.mxu0 0.0
  %2602 = vmatprep.subr.mxu0 0.0
  %2603 = vmatpush2.msra.mxu0 0.0
  %2604 = vmatprep.subr.mxu0 0.0
  %2605 = vmatpush2.msra.mxu0 0.0
  %2606 = vmatprep.subr.mxu0 0.0
  %2607 = vmatpush2.msra.mxu0 0.0
  %2608 = vmatprep.subr.mxu0 0.0
  %2609 = vmatpush2.msra.mxu0 0.0
  %2610 = vmatprep.subr.mxu0 0.0
  %2611 = vmatpush2.msra.mxu0 0.0
  %2612 = vmatprep.subr.mxu0 0.0
  %2613 = vmatpush2.msra.mxu0 0.0
  %2614 = vmatprep.subr.mxu0 0.0
  %2615 = vmatpush2.msra.mxu0 0.0
  %2616 = vmatprep.subr.mxu0 0.0
  %2617 = vmatpush2.msra.mxu0 0.0
  %2618 = vmatprep.subr.mxu0 0.0
  %2619 = vmatpush2.msra.mxu0 0.0
  %2620 = vmatprep.subr.mxu0 0.0
  %2621 = vmatpush2.msra.mxu0 0.0
  %2622 = vmatprep.subr.mxu0 0.0
  %2623 = vmatpush2.msra.mxu0 0.0
  %2624 = vmatprep.subr.mxu0 0.0
  %2625 = vmatpush2.msra.mxu0 0.0
  %2626 = vmatprep.subr.mxu0 0.0
  %2627 = vmatpush2.msra.mxu0 0.0
  %2628 = vmatprep.subr.mxu0 0.0
  %2629 = vmatpush2.msra.mxu0 0.0
  %2630 = vmatprep.mubr.f32.mxu0 0.0
  %2631 = vmatmul.mubr.f32.gmra.mxu0 %v2549
  %v2632 = vpop.f32.mrf.mxu0
  %v2633 = vadd.f32 0.0, %v2632
  %v2634 = vpop.f32.mrf.mxu0
  %2635 = vmatprep.mubr.f32.mxu0 0.0
  %2636 = vmatmul.mubr.f32.gmra.mxu0 %v2552
  %v2637 = vpop.f32.mrf.mxu0
  %v2638 = vadd.f32 0.0, %v2637
  %v2639 = vpop.f32.mrf.mxu0
  %2640 = vmatprep.mubr.f32.mxu0 0.0
  %2641 = vmatmul.mubr.f32.gmra.mxu0 %v2555
  %v2642 = vpop.f32.mrf.mxu0
  %v2643 = vadd.f32 0.0, %v2642
  %v2644 = vpop.f32.mrf.mxu0
  %2645 = vmatprep.mubr.f32.mxu0 0.0
  %2646 = vmatmul.mubr.f32.gmra.mxu0 %v2558
  %v2647 = vpop.f32.mrf.mxu0
  %v2648 = vadd.f32 0.0, %v2647
  %v2649 = vpop.f32.mrf.mxu0
  %2650 = vmatprep.mubr.f32.mxu0 0.0
  %2651 = vmatmul.mubr.f32.gmra.mxu0 %v2561
  %v2652 = vpop.f32.mrf.mxu0
  %v2653 = vadd.f32 0.0, %v2652
  %v2654 = vpop.f32.mrf.mxu0
  %2655 = vmatprep.mubr.f32.mxu0 0.0
  %2656 = vmatmul.mubr.f32.gmra.mxu0 %v2564
  %v2657 = vpop.f32.mrf.mxu0
  %v2658 = vadd.f32 0.0, %v2657
  %v2659 = vpop.f32.mrf.mxu0
  %2660 = vdwg.mxu0
  %v2661 = vadd.f32 %v2531, %v2633
  %v2662 = vadd.f32 %v2532, %v2638
  %v2663 = vadd.f32 %v2533, %v2643
  %v2664 = vadd.f32 %v2534, %v2648
  %v2665 = vadd.f32 %v2535, %v2653
  %v2666 = vadd.f32 %v2536, %v2658
  %v2667 = vld [vmem:[#allocation2 + $0x78] sm:$0xff]
  %v2668 = vld [vmem:[#allocation2 + $0x80] sm:$0xff]
  %v2669 = vld [vmem:[#allocation2 + $0x88] sm:$0xff]
  %v2670 = vld [vmem:[#allocation2 + $0x90] sm:$0xff]
  %v2671 = vld [vmem:[#allocation2 + $0x98] sm:$0xff]
  %v2672 = vld [vmem:[#allocation2 + $0xa0] sm:$0xff]
  %s2673 = scalar_lea.vmem %s5, 480
  %v2674 = vld [vmem:[%s2673] sm:$0xff]
  %v2675 = vld [vmem:[%s2673 + $0x8] sm:$0xff]
  %v2676 = vld [vmem:[%s2673 + $0x10] sm:$0xff]
  %v2677 = vld [vmem:[%s2673 + $0x18] sm:$0xff]
  %v2679 = vsel %vm727, %v2667, 0
  %v2682 = vsel %vm727, %v2668, 0
  %v2685 = vsel %vm727, %v2669, 0
  %v2688 = vsel %vm727, %v2670, 0
  %v2691 = vsel %vm727, %v2671, 0
  %v2694 = vsel %vm727, %v2672, 0
  %2696 = vmatprep.subr.mxu0 0.0
  %2697 = vmatpush1.msra.mxu0 0.0
  %2698 = vmatprep.subr.mxu0 0.0
  %2699 = vmatpush1.msra.mxu0 0.0
  %2700 = vmatprep.subr.mxu0 0.0
  %2701 = vmatpush1.msra.mxu0 0.0
  %2702 = vmatprep.subr.mxu0 0.0
  %2703 = vmatpush1.msra.mxu0 0.0
  %2704 = vmatprep.subr.mxu0 0.0
  %2705 = vmatpush1.msra.mxu0 0.0
  %2706 = vmatprep.subr.mxu0 0.0
  %2707 = vmatpush1.msra.mxu0 0.0
  %2708 = vmatprep.subr.mxu0 0.0
  %2709 = vmatpush1.msra.mxu0 0.0
  %2710 = vmatprep.subr.mxu0 0.0
  %2711 = vmatpush1.msra.mxu0 0.0
  %2712 = vmatprep.subr.mxu0 0.0
  %2713 = vmatpush1.msra.mxu0 0.0
  %2714 = vmatprep.subr.mxu0 0.0
  %2715 = vmatpush1.msra.mxu0 0.0
  %2716 = vmatprep.subr.mxu0 0.0
  %2717 = vmatpush1.msra.mxu0 0.0
  %2718 = vmatprep.subr.mxu0 0.0
  %2719 = vmatpush1.msra.mxu0 0.0
  %2720 = vmatprep.subr.mxu0 0.0
  %2721 = vmatpush1.msra.mxu0 %v2677
  %2722 = vmatprep.subr.mxu0 0.0
  %2723 = vmatpush1.msra.mxu0 %v2676
  %2724 = vmatprep.subr.mxu0 0.0
  %2725 = vmatpush1.msra.mxu0 %v2675
  %2726 = vmatprep.subr.mxu0 0.0
  %2727 = vmatpush1.msra.mxu0 %v2674
  %2728 = vmatprep.subr.mxu0 0.0
  %2729 = vmatpush2.msra.mxu0 0.0
  %2730 = vmatprep.subr.mxu0 0.0
  %2731 = vmatpush2.msra.mxu0 0.0
  %2732 = vmatprep.subr.mxu0 0.0
  %2733 = vmatpush2.msra.mxu0 0.0
  %2734 = vmatprep.subr.mxu0 0.0
  %2735 = vmatpush2.msra.mxu0 0.0
  %2736 = vmatprep.subr.mxu0 0.0
  %2737 = vmatpush2.msra.mxu0 0.0
  %2738 = vmatprep.subr.mxu0 0.0
  %2739 = vmatpush2.msra.mxu0 0.0
  %2740 = vmatprep.subr.mxu0 0.0
  %2741 = vmatpush2.msra.mxu0 0.0
  %2742 = vmatprep.subr.mxu0 0.0
  %2743 = vmatpush2.msra.mxu0 0.0
  %2744 = vmatprep.subr.mxu0 0.0
  %2745 = vmatpush2.msra.mxu0 0.0
  %2746 = vmatprep.subr.mxu0 0.0
  %2747 = vmatpush2.msra.mxu0 0.0
  %2748 = vmatprep.subr.mxu0 0.0
  %2749 = vmatpush2.msra.mxu0 0.0
  %2750 = vmatprep.subr.mxu0 0.0
  %2751 = vmatpush2.msra.mxu0 0.0
  %2752 = vmatprep.subr.mxu0 0.0
  %2753 = vmatpush2.msra.mxu0 0.0
  %2754 = vmatprep.subr.mxu0 0.0
  %2755 = vmatpush2.msra.mxu0 0.0
  %2756 = vmatprep.subr.mxu0 0.0
  %2757 = vmatpush2.msra.mxu0 0.0
  %2758 = vmatprep.subr.mxu0 0.0
  %2759 = vmatpush2.msra.mxu0 0.0
  %2760 = vmatprep.mubr.f32.mxu0 0.0
  %2761 = vmatmul.mubr.f32.gmra.mxu0 %v2679
  %v2762 = vpop.f32.mrf.mxu0
  %v2763 = vadd.f32 0.0, %v2762
  %v2764 = vpop.f32.mrf.mxu0
  %2765 = vmatprep.mubr.f32.mxu0 0.0
  %2766 = vmatmul.mubr.f32.gmra.mxu0 %v2682
  %v2767 = vpop.f32.mrf.mxu0
  %v2768 = vadd.f32 0.0, %v2767
  %v2769 = vpop.f32.mrf.mxu0
  %2770 = vmatprep.mubr.f32.mxu0 0.0
  %2771 = vmatmul.mubr.f32.gmra.mxu0 %v2685
  %v2772 = vpop.f32.mrf.mxu0
  %v2773 = vadd.f32 0.0, %v2772
  %v2774 = vpop.f32.mrf.mxu0
  %2775 = vmatprep.mubr.f32.mxu0 0.0
  %2776 = vmatmul.mubr.f32.gmra.mxu0 %v2688
  %v2777 = vpop.f32.mrf.mxu0
  %v2778 = vadd.f32 0.0, %v2777
  %v2779 = vpop.f32.mrf.mxu0
  %2780 = vmatprep.mubr.f32.mxu0 0.0
  %2781 = vmatmul.mubr.f32.gmra.mxu0 %v2691
  %v2782 = vpop.f32.mrf.mxu0
  %v2783 = vadd.f32 0.0, %v2782
  %v2784 = vpop.f32.mrf.mxu0
  %2785 = vmatprep.mubr.f32.mxu0 0.0
  %2786 = vmatmul.mubr.f32.gmra.mxu0 %v2694
  %v2787 = vpop.f32.mrf.mxu0
  %v2788 = vadd.f32 0.0, %v2787
  %v2789 = vpop.f32.mrf.mxu0
  %2790 = vdwg.mxu0
  %v2791 = vadd.f32 %v2661, %v2763
  %v2792 = vadd.f32 %v2662, %v2768
  %v2793 = vadd.f32 %v2663, %v2773
  %v2794 = vadd.f32 %v2664, %v2778
  %v2795 = vadd.f32 %v2665, %v2783
  %v2796 = vadd.f32 %v2666, %v2788
  %v2797 = vld [vmem:[%s6] sm:$0x1]
  %v2799 = vlaneseq
  %v2800 = vshrl.u32 %v2799, 7
  %v2801 = vsub.s32 0, %v2800
  %v2802 = vrot.slane %v2797, %v2801
  %v2804 = vadd.f32 %v2791, %v2802
  %v2805 = vadd.f32 %v2792, %v2802
  %v2806 = vadd.f32 %v2793, %v2802
  %v2807 = vadd.f32 %v2794, %v2802
  %v2808 = vadd.f32 %v2795, %v2802
  %v2809 = vadd.f32 %v2796, %v2802
  %v2810 = vmax.f32 %v2804, %v2805
  %vm2811 = vcmp.ge.f32.partialorder %v2810, 0.0
  %v2812 = vmul.f32 %v2810, 0.01
  %v2813 = vsel %vm2811, %v2810, %v2812
  %v2814 = vmax.f32 %v2806, %v2807
  %vm2815 = vcmp.ge.f32.partialorder %v2814, 0.0
  %v2816 = vmul.f32 %v2814, 0.01
  %v2817 = vsel %vm2815, %v2814, %v2816
  %v2818 = vmax.f32 %v2808, %v2809
  %vm2819 = vcmp.ge.f32.partialorder %v2818, 0.0
  %v2820 = vmul.f32 %v2818, 0.01
  %v2821 = vsel %vm2819, %v2818, %v2820
  %v2822 = vld [vmem:[%s7] sm:$0xff]
  %v2823 = vld [vmem:[%s7 + $0x8] sm:$0xff]
  %v2824 = vld [vmem:[%s7 + $0x10] sm:$0xff]
  %v2825 = vld [vmem:[%s7 + $0x18] sm:$0xff]
  %v2826 = vld [vmem:[%s7 + $0x20] sm:$0xff]
  %v2827 = vld [vmem:[%s7 + $0x28] sm:$0xff]
  %v2828 = vld [vmem:[%s7 + $0x30] sm:$0xff]
  %v2829 = vld [vmem:[%s7 + $0x38] sm:$0xff]
  %v2830 = vld [vmem:[%s7 + $0x40] sm:$0xff]
  %v2831 = vld [vmem:[%s7 + $0x48] sm:$0xff]
  %v2832 = vld [vmem:[%s7 + $0x50] sm:$0xff]
  %v2833 = vld [vmem:[%s7 + $0x58] sm:$0xff]
  %v2834 = vld [vmem:[%s8] sm:$0xff]
  %v2835 = vld [vmem:[%s8 + $0x8] sm:$0xff]
  %v2836 = vld [vmem:[%s8 + $0x10] sm:$0xff]
  %v2837 = vld [vmem:[%s8 + $0x18] sm:$0xff]
  %v2838 = vld [vmem:[%s8 + $0x20] sm:$0xff]
  %v2839 = vld [vmem:[%s8 + $0x28] sm:$0xff]
  %v2840 = vld [vmem:[%s8 + $0x30] sm:$0xff]
  %v2841 = vld [vmem:[%s8 + $0x38] sm:$0xff]
  %v2842 = vld [vmem:[%s8 + $0x40] sm:$0xff]
  %v2843 = vld [vmem:[%s8 + $0x48] sm:$0xff]
  %v2844 = vld [vmem:[%s8 + $0x50] sm:$0xff]
  %v2845 = vld [vmem:[%s8 + $0x58] sm:$0xff]
  %v2846 = vld [vmem:[%s8 + $0x60] sm:$0xff]
  %v2847 = vld [vmem:[%s8 + $0x68] sm:$0xff]
  %v2848 = vld [vmem:[%s8 + $0x70] sm:$0xff]
  %v2849 = vld [vmem:[%s8 + $0x78] sm:$0xff]
  %v2850 = vld [vmem:[%s8 + $0x80] sm:$0xff]
  %v2851 = vld [vmem:[%s8 + $0x88] sm:$0xff]
  %v2852 = vld [vmem:[%s9] sm:$0x7]
  %v2853 = vld [vmem:[%s10] sm:$0x1]
  %v2855 = vlaneseq
  %v2856 = vshrl.u32 %v2855, 7
  %v2857 = vsub.s32 0, %v2856
  %v2858 = vrot.slane %v2852, %v2857
  %v2859 = vlaneseq
  %v2860 = vshrl.u32 %v2859, 7
  %v2861 = vsub.s32 1, %v2860
  %v2862 = vrot.slane %v2852, %v2861
  %v2863 = vlaneseq
  %v2864 = vshrl.u32 %v2863, 7
  %v2865 = vsub.s32 2, %v2864
  %v2866 = vrot.slane %v2852, %v2865
  %v2871 = vsel %vm727, %v2813, 0
  %v2874 = vsel %vm727, %v2817, 0
  %v2877 = vsel %vm727, %v2821, 0
  %2879 = vmatprep.subr.mxu0 0.0
  %2880 = vmatpush1.msra.mxu0 0.0
  %2881 = vmatprep.subr.mxu0 0.0
  %2882 = vmatpush1.msra.mxu0 0.0
  %2883 = vmatprep.subr.mxu0 0.0
  %2884 = vmatpush1.msra.mxu0 0.0
  %2885 = vmatprep.subr.mxu0 0.0
  %2886 = vmatpush1.msra.mxu0 0.0
  %2887 = vmatprep.subr.mxu0 0.0
  %2888 = vmatpush1.msra.mxu0 0.0
  %2889 = vmatprep.subr.mxu0 0.0
  %2890 = vmatpush1.msra.mxu0 0.0
  %2891 = vmatprep.subr.mxu0 0.0
  %2892 = vmatpush1.msra.mxu0 0.0
  %2893 = vmatprep.subr.mxu0 0.0
  %2894 = vmatpush1.msra.mxu0 0.0
  %2895 = vmatprep.subr.mxu0 0.0
  %2896 = vmatpush1.msra.mxu0 0.0
  %2897 = vmatprep.subr.mxu0 0.0
  %2898 = vmatpush1.msra.mxu0 0.0
  %2899 = vmatprep.subr.mxu0 0.0
  %2900 = vmatpush1.msra.mxu0 0.0
  %2901 = vmatprep.subr.mxu0 0.0
  %2902 = vmatpush1.msra.mxu0 0.0
  %2903 = vmatprep.subr.mxu0 %v2832
  %2904 = vmatpush1.msra.mxu0 %v2831
  %2905 = vmatprep.subr.mxu0 %v2829
  %2906 = vmatpush1.msra.mxu0 %v2828
  %2907 = vmatprep.subr.mxu0 %v2826
  %2908 = vmatpush1.msra.mxu0 %v2825
  %2909 = vmatprep.subr.mxu0 %v2823
  %2910 = vmatpush1.msra.mxu0 %v2822
  %2911 = vmatprep.subr.mxu0 0.0
  %2912 = vmatpush2.msra.mxu0 0.0
  %2913 = vmatprep.subr.mxu0 0.0
  %2914 = vmatpush2.msra.mxu0 0.0
  %2915 = vmatprep.subr.mxu0 0.0
  %2916 = vmatpush2.msra.mxu0 0.0
  %2917 = vmatprep.subr.mxu0 0.0
  %2918 = vmatpush2.msra.mxu0 0.0
  %2919 = vmatprep.subr.mxu0 0.0
  %2920 = vmatpush2.msra.mxu0 0.0
  %2921 = vmatprep.subr.mxu0 0.0
  %2922 = vmatpush2.msra.mxu0 0.0
  %2923 = vmatprep.subr.mxu0 0.0
  %2924 = vmatpush2.msra.mxu0 0.0
  %2925 = vmatprep.subr.mxu0 0.0
  %2926 = vmatpush2.msra.mxu0 0.0
  %2927 = vmatprep.subr.mxu0 0.0
  %2928 = vmatpush2.msra.mxu0 0.0
  %2929 = vmatprep.subr.mxu0 0.0
  %2930 = vmatpush2.msra.mxu0 0.0
  %2931 = vmatprep.subr.mxu0 0.0
  %2932 = vmatpush2.msra.mxu0 0.0
  %2933 = vmatprep.subr.mxu0 0.0
  %2934 = vmatpush2.msra.mxu0 0.0
  %2935 = vmatprep.subr.mxu0 0.0
  %2936 = vmatpush2.msra.mxu0 0.0
  %2937 = vmatprep.subr.mxu0 0.0
  %2938 = vmatpush2.msra.mxu0 0.0
  %2939 = vmatprep.subr.mxu0 0.0
  %2940 = vmatpush2.msra.mxu0 0.0
  %2941 = vmatprep.subr.mxu0 0.0
  %2942 = vmatpush2.msra.mxu0 0.0
  %2943 = vmatprep.mubr.f32.mxu0 0.0
  %2944 = vmatmul.mubr.f32.gmra.mxu0 %v2871
  %v2945 = vpop.f32.mrf.mxu0
  %v2946 = vadd.f32 %v2858, %v2945
  %v2947 = vpop.f32.mrf.mxu0
  %v2948 = vadd.f32 %v2862, %v2947
  %2949 = vmatprep.mubr.f32.mxu0 0.0
  %2950 = vmatmul.mubr.f32.gmra.mxu0 %v2874
  %v2951 = vpop.f32.mrf.mxu0
  %v2952 = vadd.f32 %v2858, %v2951
  %v2953 = vpop.f32.mrf.mxu0
  %v2954 = vadd.f32 %v2862, %v2953
  %2955 = vmatprep.mubr.f32.mxu0 0.0
  %2956 = vmatmul.mubr.f32.gmra.mxu0 %v2877
  %v2957 = vpop.f32.mrf.mxu0
  %v2958 = vadd.f32 %v2858, %v2957
  %v2959 = vpop.f32.mrf.mxu0
  %v2960 = vadd.f32 %v2862, %v2959
  %2961 = vdwg.mxu0
  %2962 = vmatprep.subr.mxu0 0.0
  %2963 = vmatpush1.msra.mxu0 0.0
  %2964 = vmatprep.subr.mxu0 0.0
  %2965 = vmatpush1.msra.mxu0 0.0
  %2966 = vmatprep.subr.mxu0 0.0
  %2967 = vmatpush1.msra.mxu0 0.0
  %2968 = vmatprep.subr.mxu0 0.0
  %2969 = vmatpush1.msra.mxu0 0.0
  %2970 = vmatprep.subr.mxu0 0.0
  %2971 = vmatpush1.msra.mxu0 0.0
  %2972 = vmatprep.subr.mxu0 0.0
  %2973 = vmatpush1.msra.mxu0 0.0
  %2974 = vmatprep.subr.mxu0 0.0
  %2975 = vmatpush1.msra.mxu0 0.0
  %2976 = vmatprep.subr.mxu0 0.0
  %2977 = vmatpush1.msra.mxu0 0.0
  %2978 = vmatprep.subr.mxu0 0.0
  %2979 = vmatpush1.msra.mxu0 0.0
  %2980 = vmatprep.subr.mxu0 0.0
  %2981 = vmatpush1.msra.mxu0 0.0
  %2982 = vmatprep.subr.mxu0 0.0
  %2983 = vmatpush1.msra.mxu0 0.0
  %2984 = vmatprep.subr.mxu0 0.0
  %2985 = vmatpush1.msra.mxu0 0.0
  %2986 = vmatprep.subr.mxu0 0.0
  %2987 = vmatpush1.msra.mxu0 %v2833
  %2988 = vmatprep.subr.mxu0 0.0
  %2989 = vmatpush1.msra.mxu0 %v2830
  %2990 = vmatprep.subr.mxu0 0.0
  %2991 = vmatpush1.msra.mxu0 %v2827
  %2992 = vmatprep.subr.mxu0 0.0
  %2993 = vmatpush1.msra.mxu0 %v2824
  %2994 = vmatprep.subr.mxu0 0.0
  %2995 = vmatpush2.msra.mxu0 0.0
  %2996 = vmatprep.subr.mxu0 0.0
  %2997 = vmatpush2.msra.mxu0 0.0
  %2998 = vmatprep.subr.mxu0 0.0
  %2999 = vmatpush2.msra.mxu0 0.0
  %3000 = vmatprep.subr.mxu0 0.0
  %3001 = vmatpush2.msra.mxu0 0.0
  %3002 = vmatprep.subr.mxu0 0.0
  %3003 = vmatpush2.msra.mxu0 0.0
  %3004 = vmatprep.subr.mxu0 0.0
  %3005 = vmatpush2.msra.mxu0 0.0
  %3006 = vmatprep.subr.mxu0 0.0
  %3007 = vmatpush2.msra.mxu0 0.0
  %3008 = vmatprep.subr.mxu0 0.0
  %3009 = vmatpush2.msra.mxu0 0.0
  %3010 = vmatprep.subr.mxu0 0.0
  %3011 = vmatpush2.msra.mxu0 0.0
  %3012 = vmatprep.subr.mxu0 0.0
  %3013 = vmatpush2.msra.mxu0 0.0
  %3014 = vmatprep.subr.mxu0 0.0
  %3015 = vmatpush2.msra.mxu0 0.0
  %3016 = vmatprep.subr.mxu0 0.0
  %3017 = vmatpush2.msra.mxu0 0.0
  %3018 = vmatprep.subr.mxu0 0.0
  %3019 = vmatpush2.msra.mxu0 0.0
  %3020 = vmatprep.subr.mxu0 0.0
  %3021 = vmatpush2.msra.mxu0 0.0
  %3022 = vmatprep.subr.mxu0 0.0
  %3023 = vmatpush2.msra.mxu0 0.0
  %3024 = vmatprep.subr.mxu0 0.0
  %3025 = vmatpush2.msra.mxu0 0.0
  %3026 = vmatprep.mubr.f32.mxu0 0.0
  %3027 = vmatmul.mubr.f32.gmra.mxu0 %v2871
  %v3028 = vpop.f32.mrf.mxu0
  %v3029 = vadd.f32 %v2866, %v3028
  %v3030 = vpop.f32.mrf.mxu0
  %3031 = vmatprep.mubr.f32.mxu0 0.0
  %3032 = vmatmul.mubr.f32.gmra.mxu0 %v2874
  %v3033 = vpop.f32.mrf.mxu0
  %v3034 = vadd.f32 %v2866, %v3033
  %v3035 = vpop.f32.mrf.mxu0
  %3036 = vmatprep.mubr.f32.mxu0 0.0
  %3037 = vmatmul.mubr.f32.gmra.mxu0 %v2877
  %v3038 = vpop.f32.mrf.mxu0
  %v3039 = vadd.f32 %v2866, %v3038
  %v3040 = vpop.f32.mrf.mxu0
  %3041 = vdwg.mxu0
  %vm3042 = vcmask 392192
  %v3044 = vsel %vm3042, 0.0, 0
  %3046 = vmatprep.subr.mxu0 0.0
  %3047 = vmatpush1.msra.mxu0 0.0
  %3048 = vmatprep.subr.mxu0 0.0
  %3049 = vmatpush1.msra.mxu0 0.0
  %3050 = vmatprep.subr.mxu0 0.0
  %3051 = vmatpush1.msra.mxu0 0.0
  %3052 = vmatprep.subr.mxu0 0.0
  %3053 = vmatpush1.msra.mxu0 0.0
  %3054 = vmatprep.subr.mxu0 0.0
  %3055 = vmatpush1.msra.mxu0 0.0
  %3056 = vmatprep.subr.mxu0 0.0
  %3057 = vmatpush1.msra.mxu0 0.0
  %3058 = vmatprep.subr.mxu0 0.0
  %3059 = vmatpush1.msra.mxu0 0.0
  %3060 = vmatprep.subr.mxu0 0.0
  %3061 = vmatpush1.msra.mxu0 0.0
  %3062 = vmatprep.subr.mxu0 0.0
  %3063 = vmatpush1.msra.mxu0 0.0
  %3064 = vmatprep.subr.mxu0 0.0
  %3065 = vmatpush1.msra.mxu0 0.0
  %3066 = vmatprep.subr.mxu0 %v2850
  %3067 = vmatpush1.msra.mxu0 %v2849
  %3068 = vmatprep.subr.mxu0 %v2847
  %3069 = vmatpush1.msra.mxu0 %v2846
  %3070 = vmatprep.subr.mxu0 %v2844
  %3071 = vmatpush1.msra.mxu0 %v2843
  %3072 = vmatprep.subr.mxu0 %v2841
  %3073 = vmatpush1.msra.mxu0 %v2840
  %3074 = vmatprep.subr.mxu0 %v2838
  %3075 = vmatpush1.msra.mxu0 %v2837
  %3076 = vmatprep.subr.mxu0 %v2835
  %3077 = vmatpush1.msra.mxu0 %v2834
  %3078 = vmatprep.subr.mxu0 0.0
  %3079 = vmatpush2.msra.mxu0 0.0
  %3080 = vmatprep.subr.mxu0 0.0
  %3081 = vmatpush2.msra.mxu0 0.0
  %3082 = vmatprep.subr.mxu0 0.0
  %3083 = vmatpush2.msra.mxu0 0.0
  %3084 = vmatprep.subr.mxu0 0.0
  %3085 = vmatpush2.msra.mxu0 0.0
  %3086 = vmatprep.subr.mxu0 0.0
  %3087 = vmatpush2.msra.mxu0 0.0
  %3088 = vmatprep.subr.mxu0 0.0
  %3089 = vmatpush2.msra.mxu0 0.0
  %3090 = vmatprep.subr.mxu0 0.0
  %3091 = vmatpush2.msra.mxu0 0.0
  %3092 = vmatprep.subr.mxu0 0.0
  %3093 = vmatpush2.msra.mxu0 0.0
  %3094 = vmatprep.subr.mxu0 0.0
  %3095 = vmatpush2.msra.mxu0 0.0
  %3096 = vmatprep.subr.mxu0 0.0
  %3097 = vmatpush2.msra.mxu0 0.0
  %3098 = vmatprep.subr.mxu0 0.0
  %3099 = vmatpush2.msra.mxu0 0.0
  %3100 = vmatprep.subr.mxu0 0.0
  %3101 = vmatpush2.msra.mxu0 0.0
  %3102 = vmatprep.subr.mxu0 0.0
  %3103 = vmatpush2.msra.mxu0 0.0
  %3104 = vmatprep.subr.mxu0 0.0
  %3105 = vmatpush2.msra.mxu0 0.0
  %3106 = vmatprep.subr.mxu0 0.0
  %3107 = vmatpush2.msra.mxu0 0.0
  %3108 = vmatprep.subr.mxu0 0.0
  %3109 = vmatpush2.msra.mxu0 0.0
  %3110 = vmatprep.mubr.f32.mxu0 0.0
  %3111 = vmatmul.mubr.f32.gmra.mxu0 %v3044
  %v3112 = vpop.f32.mrf.mxu0
  %v3113 = vadd.f32 0.0, %v3112
  %v3114 = vpop.f32.mrf.mxu0
  %v3115 = vadd.f32 0.0, %v3114
  %3116 = vdwg.mxu0
  %3117 = vmatprep.subr.mxu0 0.0
  %3118 = vmatpush1.msra.mxu0 0.0
  %3119 = vmatprep.subr.mxu0 0.0
  %3120 = vmatpush1.msra.mxu0 0.0
  %3121 = vmatprep.subr.mxu0 0.0
  %3122 = vmatpush1.msra.mxu0 0.0
  %3123 = vmatprep.subr.mxu0 0.0
  %3124 = vmatpush1.msra.mxu0 0.0
  %3125 = vmatprep.subr.mxu0 0.0
  %3126 = vmatpush1.msra.mxu0 0.0
  %3127 = vmatprep.subr.mxu0 0.0
  %3128 = vmatpush1.msra.mxu0 0.0
  %3129 = vmatprep.subr.mxu0 0.0
  %3130 = vmatpush1.msra.mxu0 0.0
  %3131 = vmatprep.subr.mxu0 0.0
  %3132 = vmatpush1.msra.mxu0 0.0
  %3133 = vmatprep.subr.mxu0 0.0
  %3134 = vmatpush1.msra.mxu0 0.0
  %3135 = vmatprep.subr.mxu0 0.0
  %3136 = vmatpush1.msra.mxu0 0.0
  %3137 = vmatprep.subr.mxu0 0.0
  %3138 = vmatpush1.msra.mxu0 %v2851
  %3139 = vmatprep.subr.mxu0 0.0
  %3140 = vmatpush1.msra.mxu0 %v2848
  %3141 = vmatprep.subr.mxu0 0.0
  %3142 = vmatpush1.msra.mxu0 %v2845
  %3143 = vmatprep.subr.mxu0 0.0
  %3144 = vmatpush1.msra.mxu0 %v2842
  %3145 = vmatprep.subr.mxu0 0.0
  %3146 = vmatpush1.msra.mxu0 %v2839
  %3147 = vmatprep.subr.mxu0 0.0
  %3148 = vmatpush1.msra.mxu0 %v2836
  %3149 = vmatprep.subr.mxu0 0.0
  %3150 = vmatpush2.msra.mxu0 0.0
  %3151 = vmatprep.subr.mxu0 0.0
  %3152 = vmatpush2.msra.mxu0 0.0
  %3153 = vmatprep.subr.mxu0 0.0
  %3154 = vmatpush2.msra.mxu0 0.0
  %3155 = vmatprep.subr.mxu0 0.0
  %3156 = vmatpush2.msra.mxu0 0.0
  %3157 = vmatprep.subr.mxu0 0.0
  %3158 = vmatpush2.msra.mxu0 0.0
  %3159 = vmatprep.subr.mxu0 0.0
  %3160 = vmatpush2.msra.mxu0 0.0
  %3161 = vmatprep.subr.mxu0 0.0
  %3162 = vmatpush2.msra.mxu0 0.0
  %3163 = vmatprep.subr.mxu0 0.0
  %3164 = vmatpush2.msra.mxu0 0.0
  %3165 = vmatprep.subr.mxu0 0.0
  %3166 = vmatpush2.msra.mxu0 0.0
  %3167 = vmatprep.subr.mxu0 0.0
  %3168 = vmatpush2.msra.mxu0 0.0
  %3169 = vmatprep.subr.mxu0 0.0
  %3170 = vmatpush2.msra.mxu0 0.0
  %3171 = vmatprep.subr.mxu0 0.0
  %3172 = vmatpush2.msra.mxu0 0.0
  %3173 = vmatprep.subr.mxu0 0.0
  %3174 = vmatpush2.msra.mxu0 0.0
  %3175 = vmatprep.subr.mxu0 0.0
  %3176 = vmatpush2.msra.mxu0 0.0
  %3177 = vmatprep.subr.mxu0 0.0
  %3178 = vmatpush2.msra.mxu0 0.0
  %3179 = vmatprep.subr.mxu0 0.0
  %3180 = vmatpush2.msra.mxu0 0.0
  %3181 = vmatprep.mubr.f32.mxu0 0.0
  %3182 = vmatmul.mubr.f32.gmra.mxu0 %v3044
  %v3183 = vpop.f32.mrf.mxu0
  %v3184 = vadd.f32 0.0, %v3183
  %v3185 = vpop.f32.mrf.mxu0
  %3186 = vdwg.mxu0
  %v3187 = vadd.f32 %v2946, %v3113
  %v3188 = vxor.u32 %v3187, 2147483648
  %v3189 = vmul.f32 %v3188, 1.442695
  %v3190 = vpow.pop %v3189
  %v3191 = vadd.f32 %v3190, 1.0
  %v3192 = vrcp.pop %v3191
  %v3193 = vmul.f32 1.0, %v3192
  %v3194 = vadd.f32 %v2948, %v3115
  %v3195 = vxor.u32 %v3194, 2147483648
  %v3196 = vmul.f32 %v3195, 1.442695
  %v3197 = vpow.pop %v3196
  %v3198 = vadd.f32 %v3197, 1.0
  %v3199 = vrcp.pop %v3198
  %v3200 = vmul.f32 1.0, %v3199
  %v3202 = vlaneseq
  %v3203 = vshrl.u32 %v3202, 7
  %v3204 = vsub.s32 0, %v3203
  %v3205 = vrot.slane %v2853, %v3204
  %v3207 = vadd.f32 %v3184, %v3205
  %v3208 = vmul.f32 %v3193, %v3207
  %v3209 = vadd.f32 %v3029, %v3208
  %v3210 = vtanh.pop %v3209
  %v3211 = vsub.f32 1.0, %v3200
  %v3212 = vmul.f32 %v3211, %v3210
  %v3213 = vmul.f32 %v3200, 0.0
  %v3214 = vadd.f32 %v3212, %v3213
  %v3216 = vsel %vm3042, %v3214, 0
  %3218 = vmatprep.subr.mxu0 0.0
  %3219 = vmatpush1.msra.mxu0 0.0
  %3220 = vmatprep.subr.mxu0 0.0
  %3221 = vmatpush1.msra.mxu0 0.0
  %3222 = vmatprep.subr.mxu0 0.0
  %3223 = vmatpush1.msra.mxu0 0.0
  %3224 = vmatprep.subr.mxu0 0.0
  %3225 = vmatpush1.msra.mxu0 0.0
  %3226 = vmatprep.subr.mxu0 0.0
  %3227 = vmatpush1.msra.mxu0 0.0
  %3228 = vmatprep.subr.mxu0 0.0
  %3229 = vmatpush1.msra.mxu0 0.0
  %3230 = vmatprep.subr.mxu0 0.0
  %3231 = vmatpush1.msra.mxu0 0.0
  %3232 = vmatprep.subr.mxu0 0.0
  %3233 = vmatpush1.msra.mxu0 0.0
  %3234 = vmatprep.subr.mxu0 0.0
  %3235 = vmatpush1.msra.mxu0 0.0
  %3236 = vmatprep.subr.mxu0 0.0
  %3237 = vmatpush1.msra.mxu0 0.0
  %3238 = vmatprep.subr.mxu0 %v2850
  %3239 = vmatpush1.msra.mxu0 %v2849
  %3240 = vmatprep.subr.mxu0 %v2847
  %3241 = vmatpush1.msra.mxu0 %v2846
  %3242 = vmatprep.subr.mxu0 %v2844
  %3243 = vmatpush1.msra.mxu0 %v2843
  %3244 = vmatprep.subr.mxu0 %v2841
  %3245 = vmatpush1.msra.mxu0 %v2840
  %3246 = vmatprep.subr.mxu0 %v2838
  %3247 = vmatpush1.msra.mxu0 %v2837
  %3248 = vmatprep.subr.mxu0 %v2835
  %3249 = vmatpush1.msra.mxu0 %v2834
  %3250 = vmatprep.subr.mxu0 0.0
  %3251 = vmatpush2.msra.mxu0 0.0
  %3252 = vmatprep.subr.mxu0 0.0
  %3253 = vmatpush2.msra.mxu0 0.0
  %3254 = vmatprep.subr.mxu0 0.0
  %3255 = vmatpush2.msra.mxu0 0.0
  %3256 = vmatprep.subr.mxu0 0.0
  %3257 = vmatpush2.msra.mxu0 0.0
  %3258 = vmatprep.subr.mxu0 0.0
  %3259 = vmatpush2.msra.mxu0 0.0
  %3260 = vmatprep.subr.mxu0 0.0
  %3261 = vmatpush2.msra.mxu0 0.0
  %3262 = vmatprep.subr.mxu0 0.0
  %3263 = vmatpush2.msra.mxu0 0.0
  %3264 = vmatprep.subr.mxu0 0.0
  %3265 = vmatpush2.msra.mxu0 0.0
  %3266 = vmatprep.subr.mxu0 0.0
  %3267 = vmatpush2.msra.mxu0 0.0
  %3268 = vmatprep.subr.mxu0 0.0
  %3269 = vmatpush2.msra.mxu0 0.0
  %3270 = vmatprep.subr.mxu0 0.0
  %3271 = vmatpush2.msra.mxu0 0.0
  %3272 = vmatprep.subr.mxu0 0.0
  %3273 = vmatpush2.msra.mxu0 0.0
  %3274 = vmatprep.subr.mxu0 0.0
  %3275 = vmatpush2.msra.mxu0 0.0
  %3276 = vmatprep.subr.mxu0 0.0
  %3277 = vmatpush2.msra.mxu0 0.0
  %3278 = vmatprep.subr.mxu0 0.0
  %3279 = vmatpush2.msra.mxu0 0.0
  %3280 = vmatprep.subr.mxu0 0.0
  %3281 = vmatpush2.msra.mxu0 0.0
  %3282 = vmatprep.mubr.f32.mxu0 0.0
  %3283 = vmatmul.mubr.f32.gmra.mxu0 %v3216
  %v3284 = vpop.f32.mrf.mxu0
  %v3285 = vadd.f32 0.0, %v3284
  %v3286 = vpop.f32.mrf.mxu0
  %v3287 = vadd.f32 0.0, %v3286
  %3288 = vdwg.mxu0
  %3289 = vmatprep.subr.mxu0 0.0
  %3290 = vmatpush1.msra.mxu0 0.0
  %3291 = vmatprep.subr.mxu0 0.0
  %3292 = vmatpush1.msra.mxu0 0.0
  %3293 = vmatprep.subr.mxu0 0.0
  %3294 = vmatpush1.msra.mxu0 0.0
  %3295 = vmatprep.subr.mxu0 0.0
  %3296 = vmatpush1.msra.mxu0 0.0
  %3297 = vmatprep.subr.mxu0 0.0
  %3298 = vmatpush1.msra.mxu0 0.0
  %3299 = vmatprep.subr.mxu0 0.0
  %3300 = vmatpush1.msra.mxu0 0.0
  %3301 = vmatprep.subr.mxu0 0.0
  %3302 = vmatpush1.msra.mxu0 0.0
  %3303 = vmatprep.subr.mxu0 0.0
  %3304 = vmatpush1.msra.mxu0 0.0
  %3305 = vmatprep.subr.mxu0 0.0
  %3306 = vmatpush1.msra.mxu0 0.0
  %3307 = vmatprep.subr.mxu0 0.0
  %3308 = vmatpush1.msra.mxu0 0.0
  %3309 = vmatprep.subr.mxu0 0.0
  %3310 = vmatpush1.msra.mxu0 %v2851
  %3311 = vmatprep.subr.mxu0 0.0
  %3312 = vmatpush1.msra.mxu0 %v2848
  %3313 = vmatprep.subr.mxu0 0.0
  %3314 = vmatpush1.msra.mxu0 %v2845
  %3315 = vmatprep.subr.mxu0 0.0
  %3316 = vmatpush1.msra.mxu0 %v2842
  %3317 = vmatprep.subr.mxu0 0.0
  %3318 = vmatpush1.msra.mxu0 %v2839
  %3319 = vmatprep.subr.mxu0 0.0
  %3320 = vmatpush1.msra.mxu0 %v2836
  %3321 = vmatprep.subr.mxu0 0.0
  %3322 = vmatpush2.msra.mxu0 0.0
  %3323 = vmatprep.subr.mxu0 0.0
  %3324 = vmatpush2.msra.mxu0 0.0
  %3325 = vmatprep.subr.mxu0 0.0
  %3326 = vmatpush2.msra.mxu0 0.0
  %3327 = vmatprep.subr.mxu0 0.0
  %3328 = vmatpush2.msra.mxu0 0.0
  %3329 = vmatprep.subr.mxu0 0.0
  %3330 = vmatpush2.msra.mxu0 0.0
  %3331 = vmatprep.subr.mxu0 0.0
  %3332 = vmatpush2.msra.mxu0 0.0
  %3333 = vmatprep.subr.mxu0 0.0
  %3334 = vmatpush2.msra.mxu0 0.0
  %3335 = vmatprep.subr.mxu0 0.0
  %3336 = vmatpush2.msra.mxu0 0.0
  %3337 = vmatprep.subr.mxu0 0.0
  %3338 = vmatpush2.msra.mxu0 0.0
  %3339 = vmatprep.subr.mxu0 0.0
  %3340 = vmatpush2.msra.mxu0 0.0
  %3341 = vmatprep.subr.mxu0 0.0
  %3342 = vmatpush2.msra.mxu0 0.0
  %3343 = vmatprep.subr.mxu0 0.0
  %3344 = vmatpush2.msra.mxu0 0.0
  %3345 = vmatprep.subr.mxu0 0.0
  %3346 = vmatpush2.msra.mxu0 0.0
  %3347 = vmatprep.subr.mxu0 0.0
  %3348 = vmatpush2.msra.mxu0 0.0
  %3349 = vmatprep.subr.mxu0 0.0
  %3350 = vmatpush2.msra.mxu0 0.0
  %3351 = vmatprep.subr.mxu0 0.0
  %3352 = vmatpush2.msra.mxu0 0.0
  %3353 = vmatprep.mubr.f32.mxu0 0.0
  %3354 = vmatmul.mubr.f32.gmra.mxu0 %v3216
  %v3355 = vpop.f32.mrf.mxu0
  %v3356 = vadd.f32 0.0, %v3355
  %v3357 = vpop.f32.mrf.mxu0
  %3358 = vdwg.mxu0
  %v3359 = vadd.f32 %v2952, %v3285
  %v3360 = vxor.u32 %v3359, 2147483648
  %v3361 = vmul.f32 %v3360, 1.442695
  %v3362 = vpow.pop %v3361
  %v3363 = vadd.f32 %v3362, 1.0
  %v3364 = vrcp.pop %v3363
  %v3365 = vmul.f32 1.0, %v3364
  %v3366 = vadd.f32 %v2954, %v3287
  %v3367 = vxor.u32 %v3366, 2147483648
  %v3368 = vmul.f32 %v3367, 1.442695
  %v3369 = vpow.pop %v3368
  %v3370 = vadd.f32 %v3369, 1.0
  %v3371 = vrcp.pop %v3370
  %v3372 = vmul.f32 1.0, %v3371
  %v3373 = vadd.f32 %v3356, %v3205
  %v3374 = vmul.f32 %v3365, %v3373
  %v3375 = vadd.f32 %v3034, %v3374
  %v3376 = vtanh.pop %v3375
  %v3377 = vsub.f32 1.0, %v3372
  %v3378 = vmul.f32 %v3377, %v3376
  %v3379 = vmul.f32 %v3372, %v3214
  %v3380 = vadd.f32 %v3378, %v3379
  %v3382 = vsel %vm3042, %v3380, 0
  %3384 = vmatprep.subr.mxu0 0.0
  %3385 = vmatpush1.msra.mxu0 0.0
  %3386 = vmatprep.subr.mxu0 0.0
  %3387 = vmatpush1.msra.mxu0 0.0
  %3388 = vmatprep.subr.mxu0 0.0
  %3389 = vmatpush1.msra.mxu0 0.0
  %3390 = vmatprep.subr.mxu0 0.0
  %3391 = vmatpush1.msra.mxu0 0.0
  %3392 = vmatprep.subr.mxu0 0.0
  %3393 = vmatpush1.msra.mxu0 0.0
  %3394 = vmatprep.subr.mxu0 0.0
  %3395 = vmatpush1.msra.mxu0 0.0
  %3396 = vmatprep.subr.mxu0 0.0
  %3397 = vmatpush1.msra.mxu0 0.0
  %3398 = vmatprep.subr.mxu0 0.0
  %3399 = vmatpush1.msra.mxu0 0.0
  %3400 = vmatprep.subr.mxu0 0.0
  %3401 = vmatpush1.msra.mxu0 0.0
  %3402 = vmatprep.subr.mxu0 0.0
  %3403 = vmatpush1.msra.mxu0 0.0
  %3404 = vmatprep.subr.mxu0 %v2850
  %3405 = vmatpush1.msra.mxu0 %v2849
  %3406 = vmatprep.subr.mxu0 %v2847
  %3407 = vmatpush1.msra.mxu0 %v2846
  %3408 = vmatprep.subr.mxu0 %v2844
  %3409 = vmatpush1.msra.mxu0 %v2843
  %3410 = vmatprep.subr.mxu0 %v2841
  %3411 = vmatpush1.msra.mxu0 %v2840
  %3412 = vmatprep.subr.mxu0 %v2838
  %3413 = vmatpush1.msra.mxu0 %v2837
  %3414 = vmatprep.subr.mxu0 %v2835
  %3415 = vmatpush1.msra.mxu0 %v2834
  %3416 = vmatprep.subr.mxu0 0.0
  %3417 = vmatpush2.msra.mxu0 0.0
  %3418 = vmatprep.subr.mxu0 0.0
  %3419 = vmatpush2.msra.mxu0 0.0
  %3420 = vmatprep.subr.mxu0 0.0
  %3421 = vmatpush2.msra.mxu0 0.0
  %3422 = vmatprep.subr.mxu0 0.0
  %3423 = vmatpush2.msra.mxu0 0.0
  %3424 = vmatprep.subr.mxu0 0.0
  %3425 = vmatpush2.msra.mxu0 0.0
  %3426 = vmatprep.subr.mxu0 0.0
  %3427 = vmatpush2.msra.mxu0 0.0
  %3428 = vmatprep.subr.mxu0 0.0
  %3429 = vmatpush2.msra.mxu0 0.0
  %3430 = vmatprep.subr.mxu0 0.0
  %3431 = vmatpush2.msra.mxu0 0.0
  %3432 = vmatprep.subr.mxu0 0.0
  %3433 = vmatpush2.msra.mxu0 0.0
  %3434 = vmatprep.subr.mxu0 0.0
  %3435 = vmatpush2.msra.mxu0 0.0
  %3436 = vmatprep.subr.mxu0 0.0
  %3437 = vmatpush2.msra.mxu0 0.0
  %3438 = vmatprep.subr.mxu0 0.0
  %3439 = vmatpush2.msra.mxu0 0.0
  %3440 = vmatprep.subr.mxu0 0.0
  %3441 = vmatpush2.msra.mxu0 0.0
  %3442 = vmatprep.subr.mxu0 0.0
  %3443 = vmatpush2.msra.mxu0 0.0
  %3444 = vmatprep.subr.mxu0 0.0
  %3445 = vmatpush2.msra.mxu0 0.0
  %3446 = vmatprep.subr.mxu0 0.0
  %3447 = vmatpush2.msra.mxu0 0.0
  %3448 = vmatprep.mubr.f32.mxu0 0.0
  %3449 = vmatmul.mubr.f32.gmra.mxu0 %v3382
  %v3450 = vpop.f32.mrf.mxu0
  %v3451 = vadd.f32 0.0, %v3450
  %v3452 = vpop.f32.mrf.mxu0
  %v3453 = vadd.f32 0.0, %v3452
  %3454 = vdwg.mxu0
  %3455 = vmatprep.subr.mxu0 0.0
  %3456 = vmatpush1.msra.mxu0 0.0
  %3457 = vmatprep.subr.mxu0 0.0
  %3458 = vmatpush1.msra.mxu0 0.0
  %3459 = vmatprep.subr.mxu0 0.0
  %3460 = vmatpush1.msra.mxu0 0.0
  %3461 = vmatprep.subr.mxu0 0.0
  %3462 = vmatpush1.msra.mxu0 0.0
  %3463 = vmatprep.subr.mxu0 0.0
  %3464 = vmatpush1.msra.mxu0 0.0
  %3465 = vmatprep.subr.mxu0 0.0
  %3466 = vmatpush1.msra.mxu0 0.0
  %3467 = vmatprep.subr.mxu0 0.0
  %3468 = vmatpush1.msra.mxu0 0.0
  %3469 = vmatprep.subr.mxu0 0.0
  %3470 = vmatpush1.msra.mxu0 0.0
  %3471 = vmatprep.subr.mxu0 0.0
  %3472 = vmatpush1.msra.mxu0 0.0
  %3473 = vmatprep.subr.mxu0 0.0
  %3474 = vmatpush1.msra.mxu0 0.0
  %3475 = vmatprep.subr.mxu0 0.0
  %3476 = vmatpush1.msra.mxu0 %v2851
  %3477 = vmatprep.subr.mxu0 0.0
  %3478 = vmatpush1.msra.mxu0 %v2848
  %3479 = vmatprep.subr.mxu0 0.0
  %3480 = vmatpush1.msra.mxu0 %v2845
  %3481 = vmatprep.subr.mxu0 0.0
  %3482 = vmatpush1.msra.mxu0 %v2842
  %3483 = vmatprep.subr.mxu0 0.0
  %3484 = vmatpush1.msra.mxu0 %v2839
  %3485 = vmatprep.subr.mxu0 0.0
  %3486 = vmatpush1.msra.mxu0 %v2836
  %3487 = vmatprep.subr.mxu0 0.0
  %3488 = vmatpush2.msra.mxu0 0.0
  %3489 = vmatprep.subr.mxu0 0.0
  %3490 = vmatpush2.msra.mxu0 0.0
  %3491 = vmatprep.subr.mxu0 0.0
  %3492 = vmatpush2.msra.mxu0 0.0
  %3493 = vmatprep.subr.mxu0 0.0
  %3494 = vmatpush2.msra.mxu0 0.0
  %3495 = vmatprep.subr.mxu0 0.0
  %3496 = vmatpush2.msra.mxu0 0.0
  %3497 = vmatprep.subr.mxu0 0.0
  %3498 = vmatpush2.msra.mxu0 0.0
  %3499 = vmatprep.subr.mxu0 0.0
  %3500 = vmatpush2.msra.mxu0 0.0
  %3501 = vmatprep.subr.mxu0 0.0
  %3502 = vmatpush2.msra.mxu0 0.0
  %3503 = vmatprep.subr.mxu0 0.0
  %3504 = vmatpush2.msra.mxu0 0.0
  %3505 = vmatprep.subr.mxu0 0.0
  %3506 = vmatpush2.msra.mxu0 0.0
  %3507 = vmatprep.subr.mxu0 0.0
  %3508 = vmatpush2.msra.mxu0 0.0
  %3509 = vmatprep.subr.mxu0 0.0
  %3510 = vmatpush2.msra.mxu0 0.0
  %3511 = vmatprep.subr.mxu0 0.0
  %3512 = vmatpush2.msra.mxu0 0.0
  %3513 = vmatprep.subr.mxu0 0.0
  %3514 = vmatpush2.msra.mxu0 0.0
  %3515 = vmatprep.subr.mxu0 0.0
  %3516 = vmatpush2.msra.mxu0 0.0
  %3517 = vmatprep.subr.mxu0 0.0
  %3518 = vmatpush2.msra.mxu0 0.0
  %3519 = vmatprep.mubr.f32.mxu0 0.0
  %3520 = vmatmul.mubr.f32.gmra.mxu0 %v3382
  %v3521 = vpop.f32.mrf.mxu0
  %v3522 = vadd.f32 0.0, %v3521
  %v3523 = vpop.f32.mrf.mxu0
  %3524 = vdwg.mxu0
  %v3525 = vadd.f32 %v2958, %v3451
  %v3526 = vxor.u32 %v3525, 2147483648
  %v3527 = vmul.f32 %v3526, 1.442695
  %v3528 = vpow.pop %v3527
  %v3529 = vadd.f32 %v3528, 1.0
  %v3530 = vrcp.pop %v3529
  %v3531 = vmul.f32 1.0, %v3530
  %v3532 = vadd.f32 %v2960, %v3453
  %v3533 = vxor.u32 %v3532, 2147483648
  %v3534 = vmul.f32 %v3533, 1.442695
  %v3535 = vpow.pop %v3534
  %v3536 = vadd.f32 %v3535, 1.0
  %v3537 = vrcp.pop %v3536
  %v3538 = vmul.f32 1.0, %v3537
  %v3539 = vadd.f32 %v3522, %v3205
  %v3540 = vmul.f32 %v3531, %v3539
  %v3541 = vadd.f32 %v3039, %v3540
  %v3542 = vtanh.pop %v3541
  %v3543 = vsub.f32 1.0, %v3538
  %v3544 = vmul.f32 %v3543, %v3542
  %v3545 = vmul.f32 %v3538, %v3380
  %v3546 = vadd.f32 %v3544, %v3545
  %s3547 = scalar_lea.vmem %s3, 120
  %v3548 = vld [vmem:[%s3547] sm:$0xff]
  %v3549 = vld [vmem:[%s3547 + $0x8] sm:$0xff]
  %v3550 = vld [vmem:[%s3547 + $0x10] sm:$0xff]
  %v3551 = vld [vmem:[%s3547 + $0x18] sm:$0xff]
  %v3552 = vld [vmem:[%s3547 + $0x20] sm:$0xff]
  %v3553 = vld [vmem:[%s3547 + $0x28] sm:$0xff]
  %v3554 = vld [vmem:[%s3547 + $0x30] sm:$0xff]
  %v3555 = vld [vmem:[%s3547 + $0x38] sm:$0xff]
  %v3556 = vld [vmem:[%s3547 + $0x40] sm:$0xff]
  %v3557 = vld [vmem:[%s3547 + $0x48] sm:$0xff]
  %v3558 = vld [vmem:[%s3547 + $0x50] sm:$0xff]
  %v3559 = vld [vmem:[%s3547 + $0x58] sm:$0xff]
  %v3560 = vld [vmem:[%s3547 + $0x60] sm:$0xff]
  %v3561 = vld [vmem:[%s3547 + $0x68] sm:$0xff]
  %v3562 = vld [vmem:[%s3547 + $0x70] sm:$0xff]
  %s3563 = scalar_lea.vmem %s4, 1
  %v3564 = vld [vmem:[%s3563] sm:$0x1]
  %s3565 = scalar_lea.vmem %s0, 352
  %v3566 = vld [vmem:[%s3565] sm:$0xff]
  %v3567 = vld [vmem:[%s3565 + $0x8] sm:$0xff]
  %v3568 = vld [vmem:[%s3565 + $0x10] sm:$0xff]
  %v3569 = vld [vmem:[%s3565 + $0x18] sm:$0xff]
  %v3570 = vld [vmem:[%s3565 + $0x20] sm:$0xff]
  %v3571 = vld [vmem:[%s3565 + $0x28] sm:$0xff]
  %v3572 = vld [vmem:[%s3565 + $0x30] sm:$0xff]
  %v3573 = vld [vmem:[%s3565 + $0x38] sm:$0xff]
  %v3574 = vld [vmem:[%s3565 + $0x40] sm:$0xff]
  %v3575 = vld [vmem:[%s3565 + $0x48] sm:$0xff]
  %v3576 = vld [vmem:[%s3565 + $0x50] sm:$0xff]
  %v3577 = vld [vmem:[%s3565 + $0x58] sm:$0xff]
  %v3578 = vld [vmem:[%s3565 + $0x60] sm:$0xff]
  %v3579 = vld [vmem:[%s3565 + $0x68] sm:$0xff]
  %v3580 = vld [vmem:[%s3565 + $0x70] sm:$0xff]
  %v3581 = vld [vmem:[%s3565 + $0x78] sm:$0xff]
  %v3582 = vld [vmem:[%s3565 + $0x80] sm:$0xff]
  %v3583 = vld [vmem:[%s3565 + $0x88] sm:$0xff]
  %v3584 = vld [vmem:[%s3565 + $0x90] sm:$0xff]
  %v3585 = vld [vmem:[%s3565 + $0x98] sm:$0xff]
  %v3586 = vld [vmem:[%s3565 + $0xa0] sm:$0xff]
  %v3587 = vld [vmem:[%s3565 + $0xa8] sm:$0xff]
  %v3589 = vsel %vm105, %v3566, 0
  %v3592 = vsel %vm105, %v3567, 0
  %v3595 = vsel %vm105, %v3568, 0
  %v3598 = vsel %vm105, %v3569, 0
  %v3601 = vsel %vm105, %v3570, 0
  %v3604 = vsel %vm105, %v3571, 0
  %v3607 = vsel %vm105, %v3572, 0
  %v3610 = vsel %vm105, %v3573, 0
  %v3613 = vsel %vm105, %v3574, 0
  %v3616 = vsel %vm105, %v3575, 0
  %v3619 = vsel %vm105, %v3576, 0
  %v3622 = vsel %vm105, %v3577, 0
  %v3625 = vsel %vm105, %v3578, 0
  %v3628 = vsel %vm105, %v3579, 0
  %v3631 = vsel %vm105, %v3580, 0
  %v3634 = vsel %vm105, %v3581, 0
  %v3637 = vsel %vm105, %v3582, 0
  %v3640 = vsel %vm105, %v3583, 0
  %v3643 = vsel %vm105, %v3584, 0
  %v3646 = vsel %vm105, %v3585, 0
  %v3649 = vsel %vm105, %v3586, 0
  %v3652 = vsel %vm105, %v3587, 0
  %3654 = vmatprep.subr.mxu0 0.0
  %3655 = vmatpush1.msra.mxu0 0.0
  %3656 = vmatprep.subr.mxu0 0.0
  %3657 = vmatpush1.msra.mxu0 %v3562
  %3658 = vmatprep.subr.mxu0 0.0
  %3659 = vmatpush1.msra.mxu0 %v3561
  %3660 = vmatprep.subr.mxu0 0.0
  %3661 = vmatpush1.msra.mxu0 %v3560
  %3662 = vmatprep.subr.mxu0 0.0
  %3663 = vmatpush1.msra.mxu0 %v3559
  %3664 = vmatprep.subr.mxu0 0.0
  %3665 = vmatpush1.msra.mxu0 %v3558
  %3666 = vmatprep.subr.mxu0 0.0
  %3667 = vmatpush1.msra.mxu0 %v3557
  %3668 = vmatprep.subr.mxu0 0.0
  %3669 = vmatpush1.msra.mxu0 %v3556
  %3670 = vmatprep.subr.mxu0 0.0
  %3671 = vmatpush1.msra.mxu0 %v3555
  %3672 = vmatprep.subr.mxu0 0.0
  %3673 = vmatpush1.msra.mxu0 %v3554
  %3674 = vmatprep.subr.mxu0 0.0
  %3675 = vmatpush1.msra.mxu0 %v3553
  %3676 = vmatprep.subr.mxu0 0.0
  %3677 = vmatpush1.msra.mxu0 %v3552
  %3678 = vmatprep.subr.mxu0 0.0
  %3679 = vmatpush1.msra.mxu0 %v3551
  %3680 = vmatprep.subr.mxu0 0.0
  %3681 = vmatpush1.msra.mxu0 %v3550
  %3682 = vmatprep.subr.mxu0 0.0
  %3683 = vmatpush1.msra.mxu0 %v3549
  %3684 = vmatprep.subr.mxu0 0.0
  %3685 = vmatpush1.msra.mxu0 %v3548
  %3686 = vmatprep.subr.mxu0 0.0
  %3687 = vmatpush2.msra.mxu0 0.0
  %3688 = vmatprep.subr.mxu0 0.0
  %3689 = vmatpush2.msra.mxu0 0.0
  %3690 = vmatprep.subr.mxu0 0.0
  %3691 = vmatpush2.msra.mxu0 0.0
  %3692 = vmatprep.subr.mxu0 0.0
  %3693 = vmatpush2.msra.mxu0 0.0
  %3694 = vmatprep.subr.mxu0 0.0
  %3695 = vmatpush2.msra.mxu0 0.0
  %3696 = vmatprep.subr.mxu0 0.0
  %3697 = vmatpush2.msra.mxu0 0.0
  %3698 = vmatprep.subr.mxu0 0.0
  %3699 = vmatpush2.msra.mxu0 0.0
  %3700 = vmatprep.subr.mxu0 0.0
  %3701 = vmatpush2.msra.mxu0 0.0
  %3702 = vmatprep.subr.mxu0 0.0
  %3703 = vmatpush2.msra.mxu0 0.0
  %3704 = vmatprep.subr.mxu0 0.0
  %3705 = vmatpush2.msra.mxu0 0.0
  %3706 = vmatprep.subr.mxu0 0.0
  %3707 = vmatpush2.msra.mxu0 0.0
  %3708 = vmatprep.subr.mxu0 0.0
  %3709 = vmatpush2.msra.mxu0 0.0
  %3710 = vmatprep.subr.mxu0 0.0
  %3711 = vmatpush2.msra.mxu0 0.0
  %3712 = vmatprep.subr.mxu0 0.0
  %3713 = vmatpush2.msra.mxu0 0.0
  %3714 = vmatprep.subr.mxu0 0.0
  %3715 = vmatpush2.msra.mxu0 0.0
  %3716 = vmatprep.subr.mxu0 0.0
  %3717 = vmatpush2.msra.mxu0 0.0
  %3718 = vmatprep.mubr.f32.mxu0 0.0
  %3719 = vmatmul.mubr.f32.gmra.mxu0 %v3589
  %v3720 = vpop.f32.mrf.mxu0
  %v3721 = vadd.f32 0.0, %v3720
  %v3722 = vpop.f32.mrf.mxu0
  %3723 = vmatprep.mubr.f32.mxu0 0.0
  %3724 = vmatmul.mubr.f32.gmra.mxu0 %v3592
  %v3725 = vpop.f32.mrf.mxu0
  %v3726 = vadd.f32 0.0, %v3725
  %v3727 = vpop.f32.mrf.mxu0
  %3728 = vmatprep.mubr.f32.mxu0 0.0
  %3729 = vmatmul.mubr.f32.gmra.mxu0 %v3595
  %v3730 = vpop.f32.mrf.mxu0
  %v3731 = vadd.f32 0.0, %v3730
  %v3732 = vpop.f32.mrf.mxu0
  %3733 = vmatprep.mubr.f32.mxu0 0.0
  %3734 = vmatmul.mubr.f32.gmra.mxu0 %v3598
  %v3735 = vpop.f32.mrf.mxu0
  %v3736 = vadd.f32 0.0, %v3735
  %v3737 = vpop.f32.mrf.mxu0
  %3738 = vmatprep.mubr.f32.mxu0 0.0
  %3739 = vmatmul.mubr.f32.gmra.mxu0 %v3601
  %v3740 = vpop.f32.mrf.mxu0
  %v3741 = vadd.f32 0.0, %v3740
  %v3742 = vpop.f32.mrf.mxu0
  %3743 = vmatprep.mubr.f32.mxu0 0.0
  %3744 = vmatmul.mubr.f32.gmra.mxu0 %v3604
  %v3745 = vpop.f32.mrf.mxu0
  %v3746 = vadd.f32 0.0, %v3745
  %v3747 = vpop.f32.mrf.mxu0
  %3748 = vmatprep.mubr.f32.mxu0 0.0
  %3749 = vmatmul.mubr.f32.gmra.mxu0 %v3607
  %v3750 = vpop.f32.mrf.mxu0
  %v3751 = vadd.f32 0.0, %v3750
  %v3752 = vpop.f32.mrf.mxu0
  %3753 = vmatprep.mubr.f32.mxu0 0.0
  %3754 = vmatmul.mubr.f32.gmra.mxu0 %v3610
  %v3755 = vpop.f32.mrf.mxu0
  %v3756 = vadd.f32 0.0, %v3755
  %v3757 = vpop.f32.mrf.mxu0
  %3758 = vmatprep.mubr.f32.mxu0 0.0
  %3759 = vmatmul.mubr.f32.gmra.mxu0 %v3613
  %v3760 = vpop.f32.mrf.mxu0
  %v3761 = vadd.f32 0.0, %v3760
  %v3762 = vpop.f32.mrf.mxu0
  %3763 = vmatprep.mubr.f32.mxu0 0.0
  %3764 = vmatmul.mubr.f32.gmra.mxu0 %v3616
  %v3765 = vpop.f32.mrf.mxu0
  %v3766 = vadd.f32 0.0, %v3765
  %v3767 = vpop.f32.mrf.mxu0
  %3768 = vmatprep.mubr.f32.mxu0 0.0
  %3769 = vmatmul.mubr.f32.gmra.mxu0 %v3619
  %v3770 = vpop.f32.mrf.mxu0
  %v3771 = vadd.f32 0.0, %v3770
  %v3772 = vpop.f32.mrf.mxu0
  %3773 = vmatprep.mubr.f32.mxu0 0.0
  %3774 = vmatmul.mubr.f32.gmra.mxu0 %v3622
  %v3775 = vpop.f32.mrf.mxu0
  %v3776 = vadd.f32 0.0, %v3775
  %v3777 = vpop.f32.mrf.mxu0
  %3778 = vmatprep.mubr.f32.mxu0 0.0
  %3779 = vmatmul.mubr.f32.gmra.mxu0 %v3625
  %v3780 = vpop.f32.mrf.mxu0
  %v3781 = vadd.f32 0.0, %v3780
  %v3782 = vpop.f32.mrf.mxu0
  %3783 = vmatprep.mubr.f32.mxu0 0.0
  %3784 = vmatmul.mubr.f32.gmra.mxu0 %v3628
  %v3785 = vpop.f32.mrf.mxu0
  %v3786 = vadd.f32 0.0, %v3785
  %v3787 = vpop.f32.mrf.mxu0
  %3788 = vmatprep.mubr.f32.mxu0 0.0
  %3789 = vmatmul.mubr.f32.gmra.mxu0 %v3631
  %v3790 = vpop.f32.mrf.mxu0
  %v3791 = vadd.f32 0.0, %v3790
  %v3792 = vpop.f32.mrf.mxu0
  %3793 = vmatprep.mubr.f32.mxu0 0.0
  %3794 = vmatmul.mubr.f32.gmra.mxu0 %v3634
  %v3795 = vpop.f32.mrf.mxu0
  %v3796 = vadd.f32 0.0, %v3795
  %v3797 = vpop.f32.mrf.mxu0
  %3798 = vmatprep.mubr.f32.mxu0 0.0
  %3799 = vmatmul.mubr.f32.gmra.mxu0 %v3637
  %v3800 = vpop.f32.mrf.mxu0
  %v3801 = vadd.f32 0.0, %v3800
  %v3802 = vpop.f32.mrf.mxu0
  %3803 = vmatprep.mubr.f32.mxu0 0.0
  %3804 = vmatmul.mubr.f32.gmra.mxu0 %v3640
  %v3805 = vpop.f32.mrf.mxu0
  %v3806 = vadd.f32 0.0, %v3805
  %v3807 = vpop.f32.mrf.mxu0
  %3808 = vmatprep.mubr.f32.mxu0 0.0
  %3809 = vmatmul.mubr.f32.gmra.mxu0 %v3643
  %v3810 = vpop.f32.mrf.mxu0
  %v3811 = vadd.f32 0.0, %v3810
  %v3812 = vpop.f32.mrf.mxu0
  %3813 = vmatprep.mubr.f32.mxu0 0.0
  %3814 = vmatmul.mubr.f32.gmra.mxu0 %v3646
  %v3815 = vpop.f32.mrf.mxu0
  %v3816 = vadd.f32 0.0, %v3815
  %v3817 = vpop.f32.mrf.mxu0
  %3818 = vmatprep.mubr.f32.mxu0 0.0
  %3819 = vmatmul.mubr.f32.gmra.mxu0 %v3649
  %v3820 = vpop.f32.mrf.mxu0
  %v3821 = vadd.f32 0.0, %v3820
  %v3822 = vpop.f32.mrf.mxu0
  %3823 = vmatprep.mubr.f32.mxu0 0.0
  %3824 = vmatmul.mubr.f32.gmra.mxu0 %v3652
  %v3825 = vpop.f32.mrf.mxu0
  %v3826 = vadd.f32 0.0, %v3825
  %v3827 = vpop.f32.mrf.mxu0
  %3828 = vdwg.mxu0
  %s3829 = scalar_lea.vmem %s0, 528
  %v3830 = vld [vmem:[%s3829] sm:$0xff]
  %v3831 = vld [vmem:[%s3829 + $0x8] sm:$0xff]
  %v3832 = vld [vmem:[%s3829 + $0x10] sm:$0xff]
  %v3833 = vld [vmem:[%s3829 + $0x18] sm:$0xff]
  %v3834 = vld [vmem:[%s3829 + $0x20] sm:$0xff]
  %v3835 = vld [vmem:[%s3829 + $0x28] sm:$0xff]
  %v3836 = vld [vmem:[%s3829 + $0x30] sm:$0xff]
  %v3837 = vld [vmem:[%s3829 + $0x38] sm:$0xff]
  %v3838 = vld [vmem:[%s3829 + $0x40] sm:$0xff]
  %v3839 = vld [vmem:[%s3829 + $0x48] sm:$0xff]
  %v3840 = vld [vmem:[%s3829 + $0x50] sm:$0xff]
  %v3841 = vld [vmem:[%s3829 + $0x58] sm:$0xff]
  %v3842 = vld [vmem:[%s3829 + $0x60] sm:$0xff]
  %v3843 = vld [vmem:[%s3829 + $0x68] sm:$0xff]
  %v3844 = vld [vmem:[%s3829 + $0x70] sm:$0xff]
  %v3845 = vld [vmem:[%s3829 + $0x78] sm:$0xff]
  %v3846 = vld [vmem:[%s3829 + $0x80] sm:$0xff]
  %v3847 = vld [vmem:[%s3829 + $0x88] sm:$0xff]
  %v3848 = vld [vmem:[%s3829 + $0x90] sm:$0xff]
  %v3849 = vld [vmem:[%s3829 + $0x98] sm:$0xff]
  %v3850 = vld [vmem:[%s3829 + $0xa0] sm:$0xff]
  %v3851 = vld [vmem:[%s3829 + $0xa8] sm:$0xff]
  %v3853 = vsel %vm105, %v3830, 0
  %v3856 = vsel %vm105, %v3831, 0
  %v3859 = vsel %vm105, %v3832, 0
  %v3862 = vsel %vm105, %v3833, 0
  %v3865 = vsel %vm105, %v3834, 0
  %v3868 = vsel %vm105, %v3835, 0
  %v3871 = vsel %vm105, %v3836, 0
  %v3874 = vsel %vm105, %v3837, 0
  %v3877 = vsel %vm105, %v3838, 0
  %v3880 = vsel %vm105, %v3839, 0
  %v3883 = vsel %vm105, %v3840, 0
  %v3886 = vsel %vm105, %v3841, 0
  %v3889 = vsel %vm105, %v3842, 0
  %v3892 = vsel %vm105, %v3843, 0
  %v3895 = vsel %vm105, %v3844, 0
  %v3898 = vsel %vm105, %v3845, 0
  %v3901 = vsel %vm105, %v3846, 0
  %v3904 = vsel %vm105, %v3847, 0
  %v3907 = vsel %vm105, %v3848, 0
  %v3910 = vsel %vm105, %v3849, 0
  %v3913 = vsel %vm105, %v3850, 0
  %v3916 = vsel %vm105, %v3851, 0
  %3918 = vmatprep.subr.mxu0 0.0
  %3919 = vmatpush1.msra.mxu0 0.0
  %3920 = vmatprep.subr.mxu0 0.0
  %3921 = vmatpush1.msra.mxu0 %v3562
  %3922 = vmatprep.subr.mxu0 0.0
  %3923 = vmatpush1.msra.mxu0 %v3561
  %3924 = vmatprep.subr.mxu0 0.0
  %3925 = vmatpush1.msra.mxu0 %v3560
  %3926 = vmatprep.subr.mxu0 0.0
  %3927 = vmatpush1.msra.mxu0 %v3559
  %3928 = vmatprep.subr.mxu0 0.0
  %3929 = vmatpush1.msra.mxu0 %v3558
  %3930 = vmatprep.subr.mxu0 0.0
  %3931 = vmatpush1.msra.mxu0 %v3557
  %3932 = vmatprep.subr.mxu0 0.0
  %3933 = vmatpush1.msra.mxu0 %v3556
  %3934 = vmatprep.subr.mxu0 0.0
  %3935 = vmatpush1.msra.mxu0 %v3555
  %3936 = vmatprep.subr.mxu0 0.0
  %3937 = vmatpush1.msra.mxu0 %v3554
  %3938 = vmatprep.subr.mxu0 0.0
  %3939 = vmatpush1.msra.mxu0 %v3553
  %3940 = vmatprep.subr.mxu0 0.0
  %3941 = vmatpush1.msra.mxu0 %v3552
  %3942 = vmatprep.subr.mxu0 0.0
  %3943 = vmatpush1.msra.mxu0 %v3551
  %3944 = vmatprep.subr.mxu0 0.0
  %3945 = vmatpush1.msra.mxu0 %v3550
  %3946 = vmatprep.subr.mxu0 0.0
  %3947 = vmatpush1.msra.mxu0 %v3549
  %3948 = vmatprep.subr.mxu0 0.0
  %3949 = vmatpush1.msra.mxu0 %v3548
  %3950 = vmatprep.subr.mxu0 0.0
  %3951 = vmatpush2.msra.mxu0 0.0
  %3952 = vmatprep.subr.mxu0 0.0
  %3953 = vmatpush2.msra.mxu0 0.0
  %3954 = vmatprep.subr.mxu0 0.0
  %3955 = vmatpush2.msra.mxu0 0.0
  %3956 = vmatprep.subr.mxu0 0.0
  %3957 = vmatpush2.msra.mxu0 0.0
  %3958 = vmatprep.subr.mxu0 0.0
  %3959 = vmatpush2.msra.mxu0 0.0
  %3960 = vmatprep.subr.mxu0 0.0
  %3961 = vmatpush2.msra.mxu0 0.0
  %3962 = vmatprep.subr.mxu0 0.0
  %3963 = vmatpush2.msra.mxu0 0.0
  %3964 = vmatprep.subr.mxu0 0.0
  %3965 = vmatpush2.msra.mxu0 0.0
  %3966 = vmatprep.subr.mxu0 0.0
  %3967 = vmatpush2.msra.mxu0 0.0
  %3968 = vmatprep.subr.mxu0 0.0
  %3969 = vmatpush2.msra.mxu0 0.0
  %3970 = vmatprep.subr.mxu0 0.0
  %3971 = vmatpush2.msra.mxu0 0.0
  %3972 = vmatprep.subr.mxu0 0.0
  %3973 = vmatpush2.msra.mxu0 0.0
  %3974 = vmatprep.subr.mxu0 0.0
  %3975 = vmatpush2.msra.mxu0 0.0
  %3976 = vmatprep.subr.mxu0 0.0
  %3977 = vmatpush2.msra.mxu0 0.0
  %3978 = vmatprep.subr.mxu0 0.0
  %3979 = vmatpush2.msra.mxu0 0.0
  %3980 = vmatprep.subr.mxu0 0.0
  %3981 = vmatpush2.msra.mxu0 0.0
  %3982 = vmatprep.mubr.f32.mxu0 0.0
  %3983 = vmatmul.mubr.f32.gmra.mxu0 %v3853
  %v3984 = vpop.f32.mrf.mxu0
  %v3985 = vadd.f32 0.0, %v3984
  %v3986 = vpop.f32.mrf.mxu0
  %3987 = vmatprep.mubr.f32.mxu0 0.0
  %3988 = vmatmul.mubr.f32.gmra.mxu0 %v3856
  %v3989 = vpop.f32.mrf.mxu0
  %v3990 = vadd.f32 0.0, %v3989
  %v3991 = vpop.f32.mrf.mxu0
  %3992 = vmatprep.mubr.f32.mxu0 0.0
  %3993 = vmatmul.mubr.f32.gmra.mxu0 %v3859
  %v3994 = vpop.f32.mrf.mxu0
  %v3995 = vadd.f32 0.0, %v3994
  %v3996 = vpop.f32.mrf.mxu0
  %3997 = vmatprep.mubr.f32.mxu0 0.0
  %3998 = vmatmul.mubr.f32.gmra.mxu0 %v3862
  %v3999 = vpop.f32.mrf.mxu0
  %v4000 = vadd.f32 0.0, %v3999
  %v4001 = vpop.f32.mrf.mxu0
  %4002 = vmatprep.mubr.f32.mxu0 0.0
  %4003 = vmatmul.mubr.f32.gmra.mxu0 %v3865
  %v4004 = vpop.f32.mrf.mxu0
  %v4005 = vadd.f32 0.0, %v4004
  %v4006 = vpop.f32.mrf.mxu0
  %4007 = vmatprep.mubr.f32.mxu0 0.0
  %4008 = vmatmul.mubr.f32.gmra.mxu0 %v3868
  %v4009 = vpop.f32.mrf.mxu0
  %v4010 = vadd.f32 0.0, %v4009
  %v4011 = vpop.f32.mrf.mxu0
  %4012 = vmatprep.mubr.f32.mxu0 0.0
  %4013 = vmatmul.mubr.f32.gmra.mxu0 %v3871
  %v4014 = vpop.f32.mrf.mxu0
  %v4015 = vadd.f32 0.0, %v4014
  %v4016 = vpop.f32.mrf.mxu0
  %4017 = vmatprep.mubr.f32.mxu0 0.0
  %4018 = vmatmul.mubr.f32.gmra.mxu0 %v3874
  %v4019 = vpop.f32.mrf.mxu0
  %v4020 = vadd.f32 0.0, %v4019
  %v4021 = vpop.f32.mrf.mxu0
  %4022 = vmatprep.mubr.f32.mxu0 0.0
  %4023 = vmatmul.mubr.f32.gmra.mxu0 %v3877
  %v4024 = vpop.f32.mrf.mxu0
  %v4025 = vadd.f32 0.0, %v4024
  %v4026 = vpop.f32.mrf.mxu0
  %4027 = vmatprep.mubr.f32.mxu0 0.0
  %4028 = vmatmul.mubr.f32.gmra.mxu0 %v3880
  %v4029 = vpop.f32.mrf.mxu0
  %v4030 = vadd.f32 0.0, %v4029
  %v4031 = vpop.f32.mrf.mxu0
  %4032 = vmatprep.mubr.f32.mxu0 0.0
  %4033 = vmatmul.mubr.f32.gmra.mxu0 %v3883
  %v4034 = vpop.f32.mrf.mxu0
  %v4035 = vadd.f32 0.0, %v4034
  %v4036 = vpop.f32.mrf.mxu0
  %4037 = vmatprep.mubr.f32.mxu0 0.0
  %4038 = vmatmul.mubr.f32.gmra.mxu0 %v3886
  %v4039 = vpop.f32.mrf.mxu0
  %v4040 = vadd.f32 0.0, %v4039
  %v4041 = vpop.f32.mrf.mxu0
  %4042 = vmatprep.mubr.f32.mxu0 0.0
  %4043 = vmatmul.mubr.f32.gmra.mxu0 %v3889
  %v4044 = vpop.f32.mrf.mxu0
  %v4045 = vadd.f32 0.0, %v4044
  %v4046 = vpop.f32.mrf.mxu0
  %4047 = vmatprep.mubr.f32.mxu0 0.0
  %4048 = vmatmul.mubr.f32.gmra.mxu0 %v3892
  %v4049 = vpop.f32.mrf.mxu0
  %v4050 = vadd.f32 0.0, %v4049
  %v4051 = vpop.f32.mrf.mxu0
  %4052 = vmatprep.mubr.f32.mxu0 0.0
  %4053 = vmatmul.mubr.f32.gmra.mxu0 %v3895
  %v4054 = vpop.f32.mrf.mxu0
  %v4055 = vadd.f32 0.0, %v4054
  %v4056 = vpop.f32.mrf.mxu0
  %4057 = vmatprep.mubr.f32.mxu0 0.0
  %4058 = vmatmul.mubr.f32.gmra.mxu0 %v3898
  %v4059 = vpop.f32.mrf.mxu0
  %v4060 = vadd.f32 0.0, %v4059
  %v4061 = vpop.f32.mrf.mxu0
  %4062 = vmatprep.mubr.f32.mxu0 0.0
  %4063 = vmatmul.mubr.f32.gmra.mxu0 %v3901
  %v4064 = vpop.f32.mrf.mxu0
  %v4065 = vadd.f32 0.0, %v4064
  %v4066 = vpop.f32.mrf.mxu0
  %4067 = vmatprep.mubr.f32.mxu0 0.0
  %4068 = vmatmul.mubr.f32.gmra.mxu0 %v3904
  %v4069 = vpop.f32.mrf.mxu0
  %v4070 = vadd.f32 0.0, %v4069
  %v4071 = vpop.f32.mrf.mxu0
  %4072 = vmatprep.mubr.f32.mxu0 0.0
  %4073 = vmatmul.mubr.f32.gmra.mxu0 %v3907
  %v4074 = vpop.f32.mrf.mxu0
  %v4075 = vadd.f32 0.0, %v4074
  %v4076 = vpop.f32.mrf.mxu0
  %4077 = vmatprep.mubr.f32.mxu0 0.0
  %4078 = vmatmul.mubr.f32.gmra.mxu0 %v3910
  %v4079 = vpop.f32.mrf.mxu0
  %v4080 = vadd.f32 0.0, %v4079
  %v4081 = vpop.f32.mrf.mxu0
  %4082 = vmatprep.mubr.f32.mxu0 0.0
  %4083 = vmatmul.mubr.f32.gmra.mxu0 %v3913
  %v4084 = vpop.f32.mrf.mxu0
  %v4085 = vadd.f32 0.0, %v4084
  %v4086 = vpop.f32.mrf.mxu0
  %4087 = vmatprep.mubr.f32.mxu0 0.0
  %4088 = vmatmul.mubr.f32.gmra.mxu0 %v3916
  %v4089 = vpop.f32.mrf.mxu0
  %v4090 = vadd.f32 0.0, %v4089
  %v4091 = vpop.f32.mrf.mxu0
  %4092 = vdwg.mxu0
  %v4093 = vmax.f32 %v3721, %v3985
  %v4094 = vmax.f32 %v3726, %v3990
  %v4095 = vmax.f32 %v3731, %v3995
  %v4096 = vmax.f32 %v3736, %v4000
  %v4097 = vmax.f32 %v3741, %v4005
  %v4098 = vmax.f32 %v3746, %v4010
  %v4099 = vmax.f32 %v3751, %v4015
  %v4100 = vmax.f32 %v3756, %v4020
  %v4101 = vmax.f32 %v3761, %v4025
  %v4102 = vmax.f32 %v3766, %v4030
  %v4103 = vmax.f32 %v3771, %v4035
  %v4104 = vmax.f32 %v3776, %v4040
  %v4105 = vmax.f32 %v3781, %v4045
  %v4106 = vmax.f32 %v3786, %v4050
  %v4107 = vmax.f32 %v3791, %v4055
  %v4108 = vmax.f32 %v3796, %v4060
  %v4109 = vmax.f32 %v3801, %v4065
  %v4110 = vmax.f32 %v3806, %v4070
  %v4111 = vmax.f32 %v3811, %v4075
  %v4112 = vmax.f32 %v3816, %v4080
  %v4113 = vmax.f32 %v3821, %v4085
  %v4114 = vmax.f32 %v3826, %v4090
  %v4116 = vlaneseq
  %v4117 = vshrl.u32 %v4116, 7
  %v4118 = vsub.s32 0, %v4117
  %v4119 = vrot.slane %v3564, %v4118
  %v4121 = vadd.f32 %v4093, %v4119
  %v4122 = vadd.f32 %v4094, %v4119
  %v4123 = vadd.f32 %v4095, %v4119
  %v4124 = vadd.f32 %v4096, %v4119
  %v4125 = vadd.f32 %v4097, %v4119
  %v4126 = vadd.f32 %v4098, %v4119
  %v4127 = vadd.f32 %v4099, %v4119
  %v4128 = vadd.f32 %v4100, %v4119
  %v4129 = vadd.f32 %v4101, %v4119
  %v4130 = vadd.f32 %v4102, %v4119
  %v4131 = vadd.f32 %v4103, %v4119
  %v4132 = vadd.f32 %v4104, %v4119
  %v4133 = vadd.f32 %v4105, %v4119
  %v4134 = vadd.f32 %v4106, %v4119
  %v4135 = vadd.f32 %v4107, %v4119
  %v4136 = vadd.f32 %v4108, %v4119
  %v4137 = vadd.f32 %v4109, %v4119
  %v4138 = vadd.f32 %v4110, %v4119
  %v4139 = vadd.f32 %v4111, %v4119
  %v4140 = vadd.f32 %v4112, %v4119
  %v4141 = vadd.f32 %v4113, %v4119
  %v4142 = vadd.f32 %v4114, %v4119
  %vm4143 = vcmp.ge.f32.partialorder %v4121, 0.0
  %vm4144 = vcmp.ge.f32.partialorder %v4122, 0.0
  %vm4145 = vcmp.ge.f32.partialorder %v4123, 0.0
  %vm4146 = vcmp.ge.f32.partialorder %v4124, 0.0
  %vm4147 = vcmp.ge.f32.partialorder %v4125, 0.0
  %vm4148 = vcmp.ge.f32.partialorder %v4126, 0.0
  %vm4149 = vcmp.ge.f32.partialorder %v4127, 0.0
  %vm4150 = vcmp.ge.f32.partialorder %v4128, 0.0
  %vm4151 = vcmp.ge.f32.partialorder %v4129, 0.0
  %vm4152 = vcmp.ge.f32.partialorder %v4130, 0.0
  %vm4153 = vcmp.ge.f32.partialorder %v4131, 0.0
  %vm4154 = vcmp.ge.f32.partialorder %v4132, 0.0
  %vm4155 = vcmp.ge.f32.partialorder %v4133, 0.0
  %vm4156 = vcmp.ge.f32.partialorder %v4134, 0.0
  %vm4157 = vcmp.ge.f32.partialorder %v4135, 0.0
  %vm4158 = vcmp.ge.f32.partialorder %v4136, 0.0
  %vm4159 = vcmp.ge.f32.partialorder %v4137, 0.0
  %vm4160 = vcmp.ge.f32.partialorder %v4138, 0.0
  %vm4161 = vcmp.ge.f32.partialorder %v4139, 0.0
  %vm4162 = vcmp.ge.f32.partialorder %v4140, 0.0
  %vm4163 = vcmp.ge.f32.partialorder %v4141, 0.0
  %vm4164 = vcmp.ge.f32.partialorder %v4142, 0.0
  %v4165 = vmul.f32 %v4121, 0.01
  %v4166 = vmul.f32 %v4122, 0.01
  %v4167 = vmul.f32 %v4123, 0.01
  %v4168 = vmul.f32 %v4124, 0.01
  %v4169 = vmul.f32 %v4125, 0.01
  %v4170 = vmul.f32 %v4126, 0.01
  %v4171 = vmul.f32 %v4127, 0.01
  %v4172 = vmul.f32 %v4128, 0.01
  %v4173 = vmul.f32 %v4129, 0.01
  %v4174 = vmul.f32 %v4130, 0.01
  %v4175 = vmul.f32 %v4131, 0.01
  %v4176 = vmul.f32 %v4132, 0.01
  %v4177 = vmul.f32 %v4133, 0.01
  %v4178 = vmul.f32 %v4134, 0.01
  %v4179 = vmul.f32 %v4135, 0.01
  %v4180 = vmul.f32 %v4136, 0.01
  %v4181 = vmul.f32 %v4137, 0.01
  %v4182 = vmul.f32 %v4138, 0.01
  %v4183 = vmul.f32 %v4139, 0.01
  %v4184 = vmul.f32 %v4140, 0.01
  %v4185 = vmul.f32 %v4141, 0.01
  %v4186 = vmul.f32 %v4142, 0.01
  %v4187 = vsel %vm4143, %v4121, %v4165
  %v4188 = vsel %vm4144, %v4122, %v4166
  %v4189 = vsel %vm4145, %v4123, %v4167
  %v4190 = vsel %vm4146, %v4124, %v4168
  %v4191 = vsel %vm4147, %v4125, %v4169
  %v4192 = vsel %vm4148, %v4126, %v4170
  %v4193 = vsel %vm4149, %v4127, %v4171
  %v4194 = vsel %vm4150, %v4128, %v4172
  %v4195 = vsel %vm4151, %v4129, %v4173
  %v4196 = vsel %vm4152, %v4130, %v4174
  %v4197 = vsel %vm4153, %v4131, %v4175
  %v4198 = vsel %vm4154, %v4132, %v4176
  %v4199 = vsel %vm4155, %v4133, %v4177
  %v4200 = vsel %vm4156, %v4134, %v4178
  %v4201 = vsel %vm4157, %v4135, %v4179
  %v4202 = vsel %vm4158, %v4136, %v4180
  %v4203 = vsel %vm4159, %v4137, %v4181
  %v4204 = vsel %vm4160, %v4138, %v4182
  %v4205 = vsel %vm4161, %v4139, %v4183
  %v4206 = vsel %vm4162, %v4140, %v4184
  %v4207 = vsel %vm4163, %v4141, %v4185
  %v4208 = vsel %vm4164, %v4142, %v4186
  %4209 = vst.msk [vmem:[#allocation2] sm:$0xff] %vm727, %v4187
  %4210 = vst.msk [vmem:[#allocation2 + $0x8] sm:$0xff] %vm727, %v4188
  %4211 = vst.msk [vmem:[#allocation2 + $0x10] sm:$0xff] %vm727, %v4189
  %4212 = vst.msk [vmem:[#allocation2 + $0x18] sm:$0xff] %vm727, %v4190
  %4213 = vst.msk [vmem:[#allocation2 + $0x20] sm:$0xff] %vm727, %v4191
  %4214 = vst.msk [vmem:[#allocation2 + $0x28] sm:$0xff] %vm727, %v4192
  %4215 = vst.msk [vmem:[#allocation2 + $0x30] sm:$0xff] %vm727, %v4193
  %4216 = vst.msk [vmem:[#allocation2 + $0x38] sm:$0xff] %vm727, %v4194
  %4217 = vst.msk [vmem:[#allocation2 + $0x40] sm:$0xff] %vm727, %v4195
  %4218 = vst.msk [vmem:[#allocation2 + $0x48] sm:$0xff] %vm727, %v4196
  %4219 = vst.msk [vmem:[#allocation2 + $0x50] sm:$0xff] %vm727, %v4197
  %4220 = vst.msk [vmem:[#allocation2 + $0x58] sm:$0xff] %vm727, %v4198
  %4221 = vst.msk [vmem:[#allocation2 + $0x60] sm:$0xff] %vm727, %v4199
  %4222 = vst.msk [vmem:[#allocation2 + $0x68] sm:$0xff] %vm727, %v4200
  %4223 = vst.msk [vmem:[#allocation2 + $0x70] sm:$0xff] %vm727, %v4201
  %4224 = vst.msk [vmem:[#allocation2 + $0x78] sm:$0xff] %vm727, %v4202
  %4225 = vst.msk [vmem:[#allocation2 + $0x80] sm:$0xff] %vm727, %v4203
  %4226 = vst.msk [vmem:[#allocation2 + $0x88] sm:$0xff] %vm727, %v4204
  %4227 = vst.msk [vmem:[#allocation2 + $0x90] sm:$0xff] %vm727, %v4205
  %4228 = vst.msk [vmem:[#allocation2 + $0x98] sm:$0xff] %vm727, %v4206
  %4229 = vst.msk [vmem:[#allocation2 + $0xa0] sm:$0xff] %vm727, %v4207
  %4230 = vst.msk [vmem:[#allocation2 + $0xa8] sm:$0xff] %vm727, %v4208
  %v4231 = vld [vmem:[#allocation2] sm:$0xff]
  %v4232 = vld [vmem:[#allocation2 + $0x8] sm:$0xff]
  %v4233 = vld [vmem:[#allocation2 + $0x10] sm:$0xff]
  %v4234 = vld [vmem:[#allocation2 + $0x18] sm:$0xff]
  %v4235 = vld [vmem:[#allocation2 + $0x20] sm:$0xff]
  %v4236 = vld [vmem:[#allocation2 + $0x28] sm:$0xff]
  %v4237 = vld [vmem:[%s5] sm:$0xff]
  %v4238 = vld [vmem:[%s5 + $0x8] sm:$0xff]
  %v4239 = vld [vmem:[%s5 + $0x10] sm:$0xff]
  %v4240 = vld [vmem:[%s5 + $0x18] sm:$0xff]
  %v4241 = vld [vmem:[#allocation2 + $0x30] sm:$0xff]
  %v4242 = vld [vmem:[%s761] sm:$0xff]
  %v4243 = vld [vmem:[%s761 + $0x8] sm:$0xff]
  %v4244 = vld [vmem:[%s761 + $0x10] sm:$0xff]
  %v4245 = vld [vmem:[%s761 + $0x18] sm:$0xff]
  %v4247 = vsel %vm727, %v4232, 0
  %v4250 = vsel %vm727, %v4233, 0
  %v4253 = vsel %vm727, %v4234, 0
  %v4256 = vsel %vm727, %v4235, 0
  %v4259 = vsel %vm727, %v4236, 0
  %v4262 = vsel %vm727, %v4241, 0
  %4264 = vmatprep.subr.mxu0 0.0
  %4265 = vmatpush1.msra.mxu0 0.0
  %4266 = vmatprep.subr.mxu0 0.0
  %4267 = vmatpush1.msra.mxu0 0.0
  %4268 = vmatprep.subr.mxu0 0.0
  %4269 = vmatpush1.msra.mxu0 0.0
  %4270 = vmatprep.subr.mxu0 0.0
  %4271 = vmatpush1.msra.mxu0 0.0
  %4272 = vmatprep.subr.mxu0 0.0
  %4273 = vmatpush1.msra.mxu0 0.0
  %4274 = vmatprep.subr.mxu0 0.0
  %4275 = vmatpush1.msra.mxu0 0.0
  %4276 = vmatprep.subr.mxu0 0.0
  %4277 = vmatpush1.msra.mxu0 0.0
  %4278 = vmatprep.subr.mxu0 0.0
  %4279 = vmatpush1.msra.mxu0 0.0
  %4280 = vmatprep.subr.mxu0 0.0
  %4281 = vmatpush1.msra.mxu0 0.0
  %4282 = vmatprep.subr.mxu0 0.0
  %4283 = vmatpush1.msra.mxu0 0.0
  %4284 = vmatprep.subr.mxu0 0.0
  %4285 = vmatpush1.msra.mxu0 0.0
  %4286 = vmatprep.subr.mxu0 0.0
  %4287 = vmatpush1.msra.mxu0 0.0
  %4288 = vmatprep.subr.mxu0 0.0
  %4289 = vmatpush1.msra.mxu0 %v4245
  %4290 = vmatprep.subr.mxu0 0.0
  %4291 = vmatpush1.msra.mxu0 %v4244
  %4292 = vmatprep.subr.mxu0 0.0
  %4293 = vmatpush1.msra.mxu0 %v4243
  %4294 = vmatprep.subr.mxu0 0.0
  %4295 = vmatpush1.msra.mxu0 %v4242
  %4296 = vmatprep.subr.mxu0 0.0
  %4297 = vmatpush2.msra.mxu0 0.0
  %4298 = vmatprep.subr.mxu0 0.0
  %4299 = vmatpush2.msra.mxu0 0.0
  %4300 = vmatprep.subr.mxu0 0.0
  %4301 = vmatpush2.msra.mxu0 0.0
  %4302 = vmatprep.subr.mxu0 0.0
  %4303 = vmatpush2.msra.mxu0 0.0
  %4304 = vmatprep.subr.mxu0 0.0
  %4305 = vmatpush2.msra.mxu0 0.0
  %4306 = vmatprep.subr.mxu0 0.0
  %4307 = vmatpush2.msra.mxu0 0.0
  %4308 = vmatprep.subr.mxu0 0.0
  %4309 = vmatpush2.msra.mxu0 0.0
  %4310 = vmatprep.subr.mxu0 0.0
  %4311 = vmatpush2.msra.mxu0 0.0
  %4312 = vmatprep.subr.mxu0 0.0
  %4313 = vmatpush2.msra.mxu0 0.0
  %4314 = vmatprep.subr.mxu0 0.0
  %4315 = vmatpush2.msra.mxu0 0.0
  %4316 = vmatprep.subr.mxu0 0.0
  %4317 = vmatpush2.msra.mxu0 0.0
  %4318 = vmatprep.subr.mxu0 0.0
  %4319 = vmatpush2.msra.mxu0 0.0
  %4320 = vmatprep.subr.mxu0 0.0
  %4321 = vmatpush2.msra.mxu0 0.0
  %4322 = vmatprep.subr.mxu0 0.0
  %4323 = vmatpush2.msra.mxu0 0.0
  %4324 = vmatprep.subr.mxu0 0.0
  %4325 = vmatpush2.msra.mxu0 0.0
  %4326 = vmatprep.subr.mxu0 0.0
  %4327 = vmatpush2.msra.mxu0 0.0
  %4328 = vmatprep.mubr.f32.mxu0 0.0
  %4329 = vmatmul.mubr.f32.gmra.mxu0 %v4247
  %v4330 = vpop.f32.mrf.mxu0
  %v4331 = vadd.f32 0.0, %v4330
  %v4332 = vpop.f32.mrf.mxu0
  %4333 = vmatprep.mubr.f32.mxu0 0.0
  %4334 = vmatmul.mubr.f32.gmra.mxu0 %v4250
  %v4335 = vpop.f32.mrf.mxu0
  %v4336 = vadd.f32 0.0, %v4335
  %v4337 = vpop.f32.mrf.mxu0
  %4338 = vmatprep.mubr.f32.mxu0 0.0
  %4339 = vmatmul.mubr.f32.gmra.mxu0 %v4253
  %v4340 = vpop.f32.mrf.mxu0
  %v4341 = vadd.f32 0.0, %v4340
  %v4342 = vpop.f32.mrf.mxu0
  %4343 = vmatprep.mubr.f32.mxu0 0.0
  %4344 = vmatmul.mubr.f32.gmra.mxu0 %v4256
  %v4345 = vpop.f32.mrf.mxu0
  %v4346 = vadd.f32 0.0, %v4345
  %v4347 = vpop.f32.mrf.mxu0
  %4348 = vmatprep.mubr.f32.mxu0 0.0
  %4349 = vmatmul.mubr.f32.gmra.mxu0 %v4259
  %v4350 = vpop.f32.mrf.mxu0
  %v4351 = vadd.f32 0.0, %v4350
  %v4352 = vpop.f32.mrf.mxu0
  %4353 = vmatprep.mubr.f32.mxu0 0.0
  %4354 = vmatmul.mubr.f32.gmra.mxu0 %v4262
  %v4355 = vpop.f32.mrf.mxu0
  %v4356 = vadd.f32 0.0, %v4355
  %v4357 = vpop.f32.mrf.mxu0
  %4358 = vdwg.mxu0
  %v4360 = vsel %vm727, %v4231, 0
  %4362 = vmatprep.subr.mxu0 0.0
  %4363 = vmatpush1.msra.mxu0 0.0
  %4364 = vmatprep.subr.mxu0 0.0
  %4365 = vmatpush1.msra.mxu0 0.0
  %4366 = vmatprep.subr.mxu0 0.0
  %4367 = vmatpush1.msra.mxu0 0.0
  %4368 = vmatprep.subr.mxu0 0.0
  %4369 = vmatpush1.msra.mxu0 0.0
  %4370 = vmatprep.subr.mxu0 0.0
  %4371 = vmatpush1.msra.mxu0 0.0
  %4372 = vmatprep.subr.mxu0 0.0
  %4373 = vmatpush1.msra.mxu0 0.0
  %4374 = vmatprep.subr.mxu0 0.0
  %4375 = vmatpush1.msra.mxu0 0.0
  %4376 = vmatprep.subr.mxu0 0.0
  %4377 = vmatpush1.msra.mxu0 0.0
  %4378 = vmatprep.subr.mxu0 0.0
  %4379 = vmatpush1.msra.mxu0 0.0
  %4380 = vmatprep.subr.mxu0 0.0
  %4381 = vmatpush1.msra.mxu0 0.0
  %4382 = vmatprep.subr.mxu0 0.0
  %4383 = vmatpush1.msra.mxu0 0.0
  %4384 = vmatprep.subr.mxu0 0.0
  %4385 = vmatpush1.msra.mxu0 0.0
  %4386 = vmatprep.subr.mxu0 0.0
  %4387 = vmatpush1.msra.mxu0 %v4240
  %4388 = vmatprep.subr.mxu0 0.0
  %4389 = vmatpush1.msra.mxu0 %v4239
  %4390 = vmatprep.subr.mxu0 0.0
  %4391 = vmatpush1.msra.mxu0 %v4238
  %4392 = vmatprep.subr.mxu0 0.0
  %4393 = vmatpush1.msra.mxu0 %v4237
  %4394 = vmatprep.subr.mxu0 0.0
  %4395 = vmatpush2.msra.mxu0 0.0
  %4396 = vmatprep.subr.mxu0 0.0
  %4397 = vmatpush2.msra.mxu0 0.0
  %4398 = vmatprep.subr.mxu0 0.0
  %4399 = vmatpush2.msra.mxu0 0.0
  %4400 = vmatprep.subr.mxu0 0.0
  %4401 = vmatpush2.msra.mxu0 0.0
  %4402 = vmatprep.subr.mxu0 0.0
  %4403 = vmatpush2.msra.mxu0 0.0
  %4404 = vmatprep.subr.mxu0 0.0
  %4405 = vmatpush2.msra.mxu0 0.0
  %4406 = vmatprep.subr.mxu0 0.0
  %4407 = vmatpush2.msra.mxu0 0.0
  %4408 = vmatprep.subr.mxu0 0.0
  %4409 = vmatpush2.msra.mxu0 0.0
  %4410 = vmatprep.subr.mxu0 0.0
  %4411 = vmatpush2.msra.mxu0 0.0
  %4412 = vmatprep.subr.mxu0 0.0
  %4413 = vmatpush2.msra.mxu0 0.0
  %4414 = vmatprep.subr.mxu0 0.0
  %4415 = vmatpush2.msra.mxu0 0.0
  %4416 = vmatprep.subr.mxu0 0.0
  %4417 = vmatpush2.msra.mxu0 0.0
  %4418 = vmatprep.subr.mxu0 0.0
  %4419 = vmatpush2.msra.mxu0 0.0
  %4420 = vmatprep.subr.mxu0 0.0
  %4421 = vmatpush2.msra.mxu0 0.0
  %4422 = vmatprep.subr.mxu0 0.0
  %4423 = vmatpush2.msra.mxu0 0.0
  %4424 = vmatprep.subr.mxu0 0.0
  %4425 = vmatpush2.msra.mxu0 0.0
  %4426 = vmatprep.mubr.f32.mxu0 0.0
  %4427 = vmatmul.mubr.f32.gmra.mxu0 %v4360
  %v4428 = vpop.f32.mrf.mxu0
  %v4429 = vadd.f32 %v4331, %v4428
  %v4430 = vpop.f32.mrf.mxu0
  %4431 = vmatprep.mubr.f32.mxu0 0.0
  %4432 = vmatmul.mubr.f32.gmra.mxu0 %v4247
  %v4433 = vpop.f32.mrf.mxu0
  %v4434 = vadd.f32 %v4336, %v4433
  %v4435 = vpop.f32.mrf.mxu0
  %4436 = vmatprep.mubr.f32.mxu0 0.0
  %4437 = vmatmul.mubr.f32.gmra.mxu0 %v4250
  %v4438 = vpop.f32.mrf.mxu0
  %v4439 = vadd.f32 %v4341, %v4438
  %v4440 = vpop.f32.mrf.mxu0
  %4441 = vmatprep.mubr.f32.mxu0 0.0
  %4442 = vmatmul.mubr.f32.gmra.mxu0 %v4253
  %v4443 = vpop.f32.mrf.mxu0
  %v4444 = vadd.f32 %v4346, %v4443
  %v4445 = vpop.f32.mrf.mxu0
  %4446 = vmatprep.mubr.f32.mxu0 0.0
  %4447 = vmatmul.mubr.f32.gmra.mxu0 %v4256
  %v4448 = vpop.f32.mrf.mxu0
  %v4449 = vadd.f32 %v4351, %v4448
  %v4450 = vpop.f32.mrf.mxu0
  %4451 = vmatprep.mubr.f32.mxu0 0.0
  %4452 = vmatmul.mubr.f32.gmra.mxu0 %v4259
  %v4453 = vpop.f32.mrf.mxu0
  %v4454 = vadd.f32 %v4356, %v4453
  %v4455 = vpop.f32.mrf.mxu0
  %4456 = vdwg.mxu0
  %v4457 = vld [vmem:[#allocation2 + $0x10] sm:$0xff]
  %v4458 = vld [vmem:[#allocation2 + $0x18] sm:$0xff]
  %v4459 = vld [vmem:[#allocation2 + $0x20] sm:$0xff]
  %v4460 = vld [vmem:[#allocation2 + $0x28] sm:$0xff]
  %v4461 = vld [vmem:[#allocation2 + $0x30] sm:$0xff]
  %v4462 = vld [vmem:[#allocation2 + $0x38] sm:$0xff]
  %v4463 = vld [vmem:[%s983] sm:$0xff]
  %v4464 = vld [vmem:[%s983 + $0x8] sm:$0xff]
  %v4465 = vld [vmem:[%s983 + $0x10] sm:$0xff]
  %v4466 = vld [vmem:[%s983 + $0x18] sm:$0xff]
  %v4468 = vsel %vm727, %v4457, 0
  %v4471 = vsel %vm727, %v4458, 0
  %v4474 = vsel %vm727, %v4459, 0
  %v4477 = vsel %vm727, %v4460, 0
  %v4480 = vsel %vm727, %v4461, 0
  %v4483 = vsel %vm727, %v4462, 0
  %4485 = vmatprep.subr.mxu0 0.0
  %4486 = vmatpush1.msra.mxu0 0.0
  %4487 = vmatprep.subr.mxu0 0.0
  %4488 = vmatpush1.msra.mxu0 0.0
  %4489 = vmatprep.subr.mxu0 0.0
  %4490 = vmatpush1.msra.mxu0 0.0
  %4491 = vmatprep.subr.mxu0 0.0
  %4492 = vmatpush1.msra.mxu0 0.0
  %4493 = vmatprep.subr.mxu0 0.0
  %4494 = vmatpush1.msra.mxu0 0.0
  %4495 = vmatprep.subr.mxu0 0.0
  %4496 = vmatpush1.msra.mxu0 0.0
  %4497 = vmatprep.subr.mxu0 0.0
  %4498 = vmatpush1.msra.mxu0 0.0
  %4499 = vmatprep.subr.mxu0 0.0
  %4500 = vmatpush1.msra.mxu0 0.0
  %4501 = vmatprep.subr.mxu0 0.0
  %4502 = vmatpush1.msra.mxu0 0.0
  %4503 = vmatprep.subr.mxu0 0.0
  %4504 = vmatpush1.msra.mxu0 0.0
  %4505 = vmatprep.subr.mxu0 0.0
  %4506 = vmatpush1.msra.mxu0 0.0
  %4507 = vmatprep.subr.mxu0 0.0
  %4508 = vmatpush1.msra.mxu0 0.0
  %4509 = vmatprep.subr.mxu0 0.0
  %4510 = vmatpush1.msra.mxu0 %v4466
  %4511 = vmatprep.subr.mxu0 0.0
  %4512 = vmatpush1.msra.mxu0 %v4465
  %4513 = vmatprep.subr.mxu0 0.0
  %4514 = vmatpush1.msra.mxu0 %v4464
  %4515 = vmatprep.subr.mxu0 0.0
  %4516 = vmatpush1.msra.mxu0 %v4463
  %4517 = vmatprep.subr.mxu0 0.0
  %4518 = vmatpush2.msra.mxu0 0.0
  %4519 = vmatprep.subr.mxu0 0.0
  %4520 = vmatpush2.msra.mxu0 0.0
  %4521 = vmatprep.subr.mxu0 0.0
  %4522 = vmatpush2.msra.mxu0 0.0
  %4523 = vmatprep.subr.mxu0 0.0
  %4524 = vmatpush2.msra.mxu0 0.0
  %4525 = vmatprep.subr.mxu0 0.0
  %4526 = vmatpush2.msra.mxu0 0.0
  %4527 = vmatprep.subr.mxu0 0.0
  %4528 = vmatpush2.msra.mxu0 0.0
  %4529 = vmatprep.subr.mxu0 0.0
  %4530 = vmatpush2.msra.mxu0 0.0
  %4531 = vmatprep.subr.mxu0 0.0
  %4532 = vmatpush2.msra.mxu0 0.0
  %4533 = vmatprep.subr.mxu0 0.0
  %4534 = vmatpush2.msra.mxu0 0.0
  %4535 = vmatprep.subr.mxu0 0.0
  %4536 = vmatpush2.msra.mxu0 0.0
  %4537 = vmatprep.subr.mxu0 0.0
  %4538 = vmatpush2.msra.mxu0 0.0
  %4539 = vmatprep.subr.mxu0 0.0
  %4540 = vmatpush2.msra.mxu0 0.0
  %4541 = vmatprep.subr.mxu0 0.0
  %4542 = vmatpush2.msra.mxu0 0.0
  %4543 = vmatprep.subr.mxu0 0.0
  %4544 = vmatpush2.msra.mxu0 0.0
  %4545 = vmatprep.subr.mxu0 0.0
  %4546 = vmatpush2.msra.mxu0 0.0
  %4547 = vmatprep.subr.mxu0 0.0
  %4548 = vmatpush2.msra.mxu0 0.0
  %4549 = vmatprep.mubr.f32.mxu0 0.0
  %4550 = vmatmul.mubr.f32.gmra.mxu0 %v4468
  %v4551 = vpop.f32.mrf.mxu0
  %v4552 = vadd.f32 0.0, %v4551
  %v4553 = vpop.f32.mrf.mxu0
  %4554 = vmatprep.mubr.f32.mxu0 0.0
  %4555 = vmatmul.mubr.f32.gmra.mxu0 %v4471
  %v4556 = vpop.f32.mrf.mxu0
  %v4557 = vadd.f32 0.0, %v4556
  %v4558 = vpop.f32.mrf.mxu0
  %4559 = vmatprep.mubr.f32.mxu0 0.0
  %4560 = vmatmul.mubr.f32.gmra.mxu0 %v4474
  %v4561 = vpop.f32.mrf.mxu0
  %v4562 = vadd.f32 0.0, %v4561
  %v4563 = vpop.f32.mrf.mxu0
  %4564 = vmatprep.mubr.f32.mxu0 0.0
  %4565 = vmatmul.mubr.f32.gmra.mxu0 %v4477
  %v4566 = vpop.f32.mrf.mxu0
  %v4567 = vadd.f32 0.0, %v4566
  %v4568 = vpop.f32.mrf.mxu0
  %4569 = vmatprep.mubr.f32.mxu0 0.0
  %4570 = vmatmul.mubr.f32.gmra.mxu0 %v4480
  %v4571 = vpop.f32.mrf.mxu0
  %v4572 = vadd.f32 0.0, %v4571
  %v4573 = vpop.f32.mrf.mxu0
  %4574 = vmatprep.mubr.f32.mxu0 0.0
  %4575 = vmatmul.mubr.f32.gmra.mxu0 %v4483
  %v4576 = vpop.f32.mrf.mxu0
  %v4577 = vadd.f32 0.0, %v4576
  %v4578 = vpop.f32.mrf.mxu0
  %4579 = vdwg.mxu0
  %v4580 = vadd.f32 %v4429, %v4552
  %v4581 = vadd.f32 %v4434, %v4557
  %v4582 = vadd.f32 %v4439, %v4562
  %v4583 = vadd.f32 %v4444, %v4567
  %v4584 = vadd.f32 %v4449, %v4572
  %v4585 = vadd.f32 %v4454, %v4577
  %v4586 = vld [vmem:[#allocation2 + $0x18] sm:$0xff]
  %v4587 = vld [vmem:[#allocation2 + $0x20] sm:$0xff]
  %v4588 = vld [vmem:[#allocation2 + $0x28] sm:$0xff]
  %v4589 = vld [vmem:[#allocation2 + $0x30] sm:$0xff]
  %v4590 = vld [vmem:[#allocation2 + $0x38] sm:$0xff]
  %v4591 = vld [vmem:[#allocation2 + $0x40] sm:$0xff]
  %v4592 = vld [vmem:[%s1113] sm:$0xff]
  %v4593 = vld [vmem:[%s1113 + $0x8] sm:$0xff]
  %v4594 = vld [vmem:[%s1113 + $0x10] sm:$0xff]
  %v4595 = vld [vmem:[%s1113 + $0x18] sm:$0xff]
  %v4597 = vsel %vm727, %v4586, 0
  %v4600 = vsel %vm727, %v4587, 0
  %v4603 = vsel %vm727, %v4588, 0
  %v4606 = vsel %vm727, %v4589, 0
  %v4609 = vsel %vm727, %v4590, 0
  %v4612 = vsel %vm727, %v4591, 0
  %4614 = vmatprep.subr.mxu0 0.0
  %4615 = vmatpush1.msra.mxu0 0.0
  %4616 = vmatprep.subr.mxu0 0.0
  %4617 = vmatpush1.msra.mxu0 0.0
  %4618 = vmatprep.subr.mxu0 0.0
  %4619 = vmatpush1.msra.mxu0 0.0
  %4620 = vmatprep.subr.mxu0 0.0
  %4621 = vmatpush1.msra.mxu0 0.0
  %4622 = vmatprep.subr.mxu0 0.0
  %4623 = vmatpush1.msra.mxu0 0.0
  %4624 = vmatprep.subr.mxu0 0.0
  %4625 = vmatpush1.msra.mxu0 0.0
  %4626 = vmatprep.subr.mxu0 0.0
  %4627 = vmatpush1.msra.mxu0 0.0
  %4628 = vmatprep.subr.mxu0 0.0
  %4629 = vmatpush1.msra.mxu0 0.0
  %4630 = vmatprep.subr.mxu0 0.0
  %4631 = vmatpush1.msra.mxu0 0.0
  %4632 = vmatprep.subr.mxu0 0.0
  %4633 = vmatpush1.msra.mxu0 0.0
  %4634 = vmatprep.subr.mxu0 0.0
  %4635 = vmatpush1.msra.mxu0 0.0
  %4636 = vmatprep.subr.mxu0 0.0
  %4637 = vmatpush1.msra.mxu0 0.0
  %4638 = vmatprep.subr.mxu0 0.0
  %4639 = vmatpush1.msra.mxu0 %v4595
  %4640 = vmatprep.subr.mxu0 0.0
  %4641 = vmatpush1.msra.mxu0 %v4594
  %4642 = vmatprep.subr.mxu0 0.0
  %4643 = vmatpush1.msra.mxu0 %v4593
  %4644 = vmatprep.subr.mxu0 0.0
  %4645 = vmatpush1.msra.mxu0 %v4592
  %4646 = vmatprep.subr.mxu0 0.0
  %4647 = vmatpush2.msra.mxu0 0.0
  %4648 = vmatprep.subr.mxu0 0.0
  %4649 = vmatpush2.msra.mxu0 0.0
  %4650 = vmatprep.subr.mxu0 0.0
  %4651 = vmatpush2.msra.mxu0 0.0
  %4652 = vmatprep.subr.mxu0 0.0
  %4653 = vmatpush2.msra.mxu0 0.0
  %4654 = vmatprep.subr.mxu0 0.0
  %4655 = vmatpush2.msra.mxu0 0.0
  %4656 = vmatprep.subr.mxu0 0.0
  %4657 = vmatpush2.msra.mxu0 0.0
  %4658 = vmatprep.subr.mxu0 0.0
  %4659 = vmatpush2.msra.mxu0 0.0
  %4660 = vmatprep.subr.mxu0 0.0
  %4661 = vmatpush2.msra.mxu0 0.0
  %4662 = vmatprep.subr.mxu0 0.0
  %4663 = vmatpush2.msra.mxu0 0.0
  %4664 = vmatprep.subr.mxu0 0.0
  %4665 = vmatpush2.msra.mxu0 0.0
  %4666 = vmatprep.subr.mxu0 0.0
  %4667 = vmatpush2.msra.mxu0 0.0
  %4668 = vmatprep.subr.mxu0 0.0
  %4669 = vmatpush2.msra.mxu0 0.0
  %4670 = vmatprep.subr.mxu0 0.0
  %4671 = vmatpush2.msra.mxu0 0.0
  %4672 = vmatprep.subr.mxu0 0.0
  %4673 = vmatpush2.msra.mxu0 0.0
  %4674 = vmatprep.subr.mxu0 0.0
  %4675 = vmatpush2.msra.mxu0 0.0
  %4676 = vmatprep.subr.mxu0 0.0
  %4677 = vmatpush2.msra.mxu0 0.0
  %4678 = vmatprep.mubr.f32.mxu0 0.0
  %4679 = vmatmul.mubr.f32.gmra.mxu0 %v4597
  %v4680 = vpop.f32.mrf.mxu0
  %v4681 = vadd.f32 0.0, %v4680
  %v4682 = vpop.f32.mrf.mxu0
  %4683 = vmatprep.mubr.f32.mxu0 0.0
  %4684 = vmatmul.mubr.f32.gmra.mxu0 %v4600
  %v4685 = vpop.f32.mrf.mxu0
  %v4686 = vadd.f32 0.0, %v4685
  %v4687 = vpop.f32.mrf.mxu0
  %4688 = vmatprep.mubr.f32.mxu0 0.0
  %4689 = vmatmul.mubr.f32.gmra.mxu0 %v4603
  %v4690 = vpop.f32.mrf.mxu0
  %v4691 = vadd.f32 0.0, %v4690
  %v4692 = vpop.f32.mrf.mxu0
  %4693 = vmatprep.mubr.f32.mxu0 0.0
  %4694 = vmatmul.mubr.f32.gmra.mxu0 %v4606
  %v4695 = vpop.f32.mrf.mxu0
  %v4696 = vadd.f32 0.0, %v4695
  %v4697 = vpop.f32.mrf.mxu0
  %4698 = vmatprep.mubr.f32.mxu0 0.0
  %4699 = vmatmul.mubr.f32.gmra.mxu0 %v4609
  %v4700 = vpop.f32.mrf.mxu0
  %v4701 = vadd.f32 0.0, %v4700
  %v4702 = vpop.f32.mrf.mxu0
  %4703 = vmatprep.mubr.f32.mxu0 0.0
  %4704 = vmatmul.mubr.f32.gmra.mxu0 %v4612
  %v4705 = vpop.f32.mrf.mxu0
  %v4706 = vadd.f32 0.0, %v4705
  %v4707 = vpop.f32.mrf.mxu0
  %4708 = vdwg.mxu0
  %v4709 = vadd.f32 %v4580, %v4681
  %v4710 = vadd.f32 %v4581, %v4686
  %v4711 = vadd.f32 %v4582, %v4691
  %v4712 = vadd.f32 %v4583, %v4696
  %v4713 = vadd.f32 %v4584, %v4701
  %v4714 = vadd.f32 %v4585, %v4706
  %v4715 = vld [vmem:[#allocation2 + $0x20] sm:$0xff]
  %v4716 = vld [vmem:[#allocation2 + $0x28] sm:$0xff]
  %v4717 = vld [vmem:[#allocation2 + $0x30] sm:$0xff]
  %v4718 = vld [vmem:[#allocation2 + $0x38] sm:$0xff]
  %v4719 = vld [vmem:[#allocation2 + $0x40] sm:$0xff]
  %v4720 = vld [vmem:[#allocation2 + $0x48] sm:$0xff]
  %v4721 = vld [vmem:[%s1243] sm:$0xff]
  %v4722 = vld [vmem:[%s1243 + $0x8] sm:$0xff]
  %v4723 = vld [vmem:[%s1243 + $0x10] sm:$0xff]
  %v4724 = vld [vmem:[%s1243 + $0x18] sm:$0xff]
  %v4726 = vsel %vm727, %v4715, 0
  %v4729 = vsel %vm727, %v4716, 0
  %v4732 = vsel %vm727, %v4717, 0
  %v4735 = vsel %vm727, %v4718, 0
  %v4738 = vsel %vm727, %v4719, 0
  %v4741 = vsel %vm727, %v4720, 0
  %4743 = vmatprep.subr.mxu0 0.0
  %4744 = vmatpush1.msra.mxu0 0.0
  %4745 = vmatprep.subr.mxu0 0.0
  %4746 = vmatpush1.msra.mxu0 0.0
  %4747 = vmatprep.subr.mxu0 0.0
  %4748 = vmatpush1.msra.mxu0 0.0
  %4749 = vmatprep.subr.mxu0 0.0
  %4750 = vmatpush1.msra.mxu0 0.0
  %4751 = vmatprep.subr.mxu0 0.0
  %4752 = vmatpush1.msra.mxu0 0.0
  %4753 = vmatprep.subr.mxu0 0.0
  %4754 = vmatpush1.msra.mxu0 0.0
  %4755 = vmatprep.subr.mxu0 0.0
  %4756 = vmatpush1.msra.mxu0 0.0
  %4757 = vmatprep.subr.mxu0 0.0
  %4758 = vmatpush1.msra.mxu0 0.0
  %4759 = vmatprep.subr.mxu0 0.0
  %4760 = vmatpush1.msra.mxu0 0.0
  %4761 = vmatprep.subr.mxu0 0.0
  %4762 = vmatpush1.msra.mxu0 0.0
  %4763 = vmatprep.subr.mxu0 0.0
  %4764 = vmatpush1.msra.mxu0 0.0
  %4765 = vmatprep.subr.mxu0 0.0
  %4766 = vmatpush1.msra.mxu0 0.0
  %4767 = vmatprep.subr.mxu0 0.0
  %4768 = vmatpush1.msra.mxu0 %v4724
  %4769 = vmatprep.subr.mxu0 0.0
  %4770 = vmatpush1.msra.mxu0 %v4723
  %4771 = vmatprep.subr.mxu0 0.0
  %4772 = vmatpush1.msra.mxu0 %v4722
  %4773 = vmatprep.subr.mxu0 0.0
  %4774 = vmatpush1.msra.mxu0 %v4721
  %4775 = vmatprep.subr.mxu0 0.0
  %4776 = vmatpush2.msra.mxu0 0.0
  %4777 = vmatprep.subr.mxu0 0.0
  %4778 = vmatpush2.msra.mxu0 0.0
  %4779 = vmatprep.subr.mxu0 0.0
  %4780 = vmatpush2.msra.mxu0 0.0
  %4781 = vmatprep.subr.mxu0 0.0
  %4782 = vmatpush2.msra.mxu0 0.0
  %4783 = vmatprep.subr.mxu0 0.0
  %4784 = vmatpush2.msra.mxu0 0.0
  %4785 = vmatprep.subr.mxu0 0.0
  %4786 = vmatpush2.msra.mxu0 0.0
  %4787 = vmatprep.subr.mxu0 0.0
  %4788 = vmatpush2.msra.mxu0 0.0
  %4789 = vmatprep.subr.mxu0 0.0
  %4790 = vmatpush2.msra.mxu0 0.0
  %4791 = vmatprep.subr.mxu0 0.0
  %4792 = vmatpush2.msra.mxu0 0.0
  %4793 = vmatprep.subr.mxu0 0.0
  %4794 = vmatpush2.msra.mxu0 0.0
  %4795 = vmatprep.subr.mxu0 0.0
  %4796 = vmatpush2.msra.mxu0 0.0
  %4797 = vmatprep.subr.mxu0 0.0
  %4798 = vmatpush2.msra.mxu0 0.0
  %4799 = vmatprep.subr.mxu0 0.0
  %4800 = vmatpush2.msra.mxu0 0.0
  %4801 = vmatprep.subr.mxu0 0.0
  %4802 = vmatpush2.msra.mxu0 0.0
  %4803 = vmatprep.subr.mxu0 0.0
  %4804 = vmatpush2.msra.mxu0 0.0
  %4805 = vmatprep.subr.mxu0 0.0
  %4806 = vmatpush2.msra.mxu0 0.0
  %4807 = vmatprep.mubr.f32.mxu0 0.0
  %4808 = vmatmul.mubr.f32.gmra.mxu0 %v4726
  %v4809 = vpop.f32.mrf.mxu0
  %v4810 = vadd.f32 0.0, %v4809
  %v4811 = vpop.f32.mrf.mxu0
  %4812 = vmatprep.mubr.f32.mxu0 0.0
  %4813 = vmatmul.mubr.f32.gmra.mxu0 %v4729
  %v4814 = vpop.f32.mrf.mxu0
  %v4815 = vadd.f32 0.0, %v4814
  %v4816 = vpop.f32.mrf.mxu0
  %4817 = vmatprep.mubr.f32.mxu0 0.0
  %4818 = vmatmul.mubr.f32.gmra.mxu0 %v4732
  %v4819 = vpop.f32.mrf.mxu0
  %v4820 = vadd.f32 0.0, %v4819
  %v4821 = vpop.f32.mrf.mxu0
  %4822 = vmatprep.mubr.f32.mxu0 0.0
  %4823 = vmatmul.mubr.f32.gmra.mxu0 %v4735
  %v4824 = vpop.f32.mrf.mxu0
  %v4825 = vadd.f32 0.0, %v4824
  %v4826 = vpop.f32.mrf.mxu0
  %4827 = vmatprep.mubr.f32.mxu0 0.0
  %4828 = vmatmul.mubr.f32.gmra.mxu0 %v4738
  %v4829 = vpop.f32.mrf.mxu0
  %v4830 = vadd.f32 0.0, %v4829
  %v4831 = vpop.f32.mrf.mxu0
  %4832 = vmatprep.mubr.f32.mxu0 0.0
  %4833 = vmatmul.mubr.f32.gmra.mxu0 %v4741
  %v4834 = vpop.f32.mrf.mxu0
  %v4835 = vadd.f32 0.0, %v4834
  %v4836 = vpop.f32.mrf.mxu0
  %4837 = vdwg.mxu0
  %v4838 = vadd.f32 %v4709, %v4810
  %v4839 = vadd.f32 %v4710, %v4815
  %v4840 = vadd.f32 %v4711, %v4820
  %v4841 = vadd.f32 %v4712, %v4825
  %v4842 = vadd.f32 %v4713, %v4830
  %v4843 = vadd.f32 %v4714, %v4835
  %v4844 = vld [vmem:[#allocation2 + $0x28] sm:$0xff]
  %v4845 = vld [vmem:[#allocation2 + $0x30] sm:$0xff]
  %v4846 = vld [vmem:[#allocation2 + $0x38] sm:$0xff]
  %v4847 = vld [vmem:[#allocation2 + $0x40] sm:$0xff]
  %v4848 = vld [vmem:[#allocation2 + $0x48] sm:$0xff]
  %v4849 = vld [vmem:[#allocation2 + $0x50] sm:$0xff]
  %v4850 = vld [vmem:[%s1373] sm:$0xff]
  %v4851 = vld [vmem:[%s1373 + $0x8] sm:$0xff]
  %v4852 = vld [vmem:[%s1373 + $0x10] sm:$0xff]
  %v4853 = vld [vmem:[%s1373 + $0x18] sm:$0xff]
  %v4855 = vsel %vm727, %v4844, 0
  %v4858 = vsel %vm727, %v4845, 0
  %v4861 = vsel %vm727, %v4846, 0
  %v4864 = vsel %vm727, %v4847, 0
  %v4867 = vsel %vm727, %v4848, 0
  %v4870 = vsel %vm727, %v4849, 0
  %4872 = vmatprep.subr.mxu0 0.0
  %4873 = vmatpush1.msra.mxu0 0.0
  %4874 = vmatprep.subr.mxu0 0.0
  %4875 = vmatpush1.msra.mxu0 0.0
  %4876 = vmatprep.subr.mxu0 0.0
  %4877 = vmatpush1.msra.mxu0 0.0
  %4878 = vmatprep.subr.mxu0 0.0
  %4879 = vmatpush1.msra.mxu0 0.0
  %4880 = vmatprep.subr.mxu0 0.0
  %4881 = vmatpush1.msra.mxu0 0.0
  %4882 = vmatprep.subr.mxu0 0.0
  %4883 = vmatpush1.msra.mxu0 0.0
  %4884 = vmatprep.subr.mxu0 0.0
  %4885 = vmatpush1.msra.mxu0 0.0
  %4886 = vmatprep.subr.mxu0 0.0
  %4887 = vmatpush1.msra.mxu0 0.0
  %4888 = vmatprep.subr.mxu0 0.0
  %4889 = vmatpush1.msra.mxu0 0.0
  %4890 = vmatprep.subr.mxu0 0.0
  %4891 = vmatpush1.msra.mxu0 0.0
  %4892 = vmatprep.subr.mxu0 0.0
  %4893 = vmatpush1.msra.mxu0 0.0
  %4894 = vmatprep.subr.mxu0 0.0
  %4895 = vmatpush1.msra.mxu0 0.0
  %4896 = vmatprep.subr.mxu0 0.0
  %4897 = vmatpush1.msra.mxu0 %v4853
  %4898 = vmatprep.subr.mxu0 0.0
  %4899 = vmatpush1.msra.mxu0 %v4852
  %4900 = vmatprep.subr.mxu0 0.0
  %4901 = vmatpush1.msra.mxu0 %v4851
  %4902 = vmatprep.subr.mxu0 0.0
  %4903 = vmatpush1.msra.mxu0 %v4850
  %4904 = vmatprep.subr.mxu0 0.0
  %4905 = vmatpush2.msra.mxu0 0.0
  %4906 = vmatprep.subr.mxu0 0.0
  %4907 = vmatpush2.msra.mxu0 0.0
  %4908 = vmatprep.subr.mxu0 0.0
  %4909 = vmatpush2.msra.mxu0 0.0
  %4910 = vmatprep.subr.mxu0 0.0
  %4911 = vmatpush2.msra.mxu0 0.0
  %4912 = vmatprep.subr.mxu0 0.0
  %4913 = vmatpush2.msra.mxu0 0.0
  %4914 = vmatprep.subr.mxu0 0.0
  %4915 = vmatpush2.msra.mxu0 0.0
  %4916 = vmatprep.subr.mxu0 0.0
  %4917 = vmatpush2.msra.mxu0 0.0
  %4918 = vmatprep.subr.mxu0 0.0
  %4919 = vmatpush2.msra.mxu0 0.0
  %4920 = vmatprep.subr.mxu0 0.0
  %4921 = vmatpush2.msra.mxu0 0.0
  %4922 = vmatprep.subr.mxu0 0.0
  %4923 = vmatpush2.msra.mxu0 0.0
  %4924 = vmatprep.subr.mxu0 0.0
  %4925 = vmatpush2.msra.mxu0 0.0
  %4926 = vmatprep.subr.mxu0 0.0
  %4927 = vmatpush2.msra.mxu0 0.0
  %4928 = vmatprep.subr.mxu0 0.0
  %4929 = vmatpush2.msra.mxu0 0.0
  %4930 = vmatprep.subr.mxu0 0.0
  %4931 = vmatpush2.msra.mxu0 0.0
  %4932 = vmatprep.subr.mxu0 0.0
  %4933 = vmatpush2.msra.mxu0 0.0
  %4934 = vmatprep.subr.mxu0 0.0
  %4935 = vmatpush2.msra.mxu0 0.0
  %4936 = vmatprep.mubr.f32.mxu0 0.0
  %4937 = vmatmul.mubr.f32.gmra.mxu0 %v4855
  %v4938 = vpop.f32.mrf.mxu0
  %v4939 = vadd.f32 0.0, %v4938
  %v4940 = vpop.f32.mrf.mxu0
  %4941 = vmatprep.mubr.f32.mxu0 0.0
  %4942 = vmatmul.mubr.f32.gmra.mxu0 %v4858
  %v4943 = vpop.f32.mrf.mxu0
  %v4944 = vadd.f32 0.0, %v4943
  %v4945 = vpop.f32.mrf.mxu0
  %4946 = vmatprep.mubr.f32.mxu0 0.0
  %4947 = vmatmul.mubr.f32.gmra.mxu0 %v4861
  %v4948 = vpop.f32.mrf.mxu0
  %v4949 = vadd.f32 0.0, %v4948
  %v4950 = vpop.f32.mrf.mxu0
  %4951 = vmatprep.mubr.f32.mxu0 0.0
  %4952 = vmatmul.mubr.f32.gmra.mxu0 %v4864
  %v4953 = vpop.f32.mrf.mxu0
  %v4954 = vadd.f32 0.0, %v4953
  %v4955 = vpop.f32.mrf.mxu0
  %4956 = vmatprep.mubr.f32.mxu0 0.0
  %4957 = vmatmul.mubr.f32.gmra.mxu0 %v4867
  %v4958 = vpop.f32.mrf.mxu0
  %v4959 = vadd.f32 0.0, %v4958
  %v4960 = vpop.f32.mrf.mxu0
  %4961 = vmatprep.mubr.f32.mxu0 0.0
  %4962 = vmatmul.mubr.f32.gmra.mxu0 %v4870
  %v4963 = vpop.f32.mrf.mxu0
  %v4964 = vadd.f32 0.0, %v4963
  %v4965 = vpop.f32.mrf.mxu0
  %4966 = vdwg.mxu0
  %v4967 = vadd.f32 %v4838, %v4939
  %v4968 = vadd.f32 %v4839, %v4944
  %v4969 = vadd.f32 %v4840, %v4949
  %v4970 = vadd.f32 %v4841, %v4954
  %v4971 = vadd.f32 %v4842, %v4959
  %v4972 = vadd.f32 %v4843, %v4964
  %v4973 = vld [vmem:[#allocation2 + $0x30] sm:$0xff]
  %v4974 = vld [vmem:[#allocation2 + $0x38] sm:$0xff]
  %v4975 = vld [vmem:[#allocation2 + $0x40] sm:$0xff]
  %v4976 = vld [vmem:[#allocation2 + $0x48] sm:$0xff]
  %v4977 = vld [vmem:[#allocation2 + $0x50] sm:$0xff]
  %v4978 = vld [vmem:[#allocation2 + $0x58] sm:$0xff]
  %v4979 = vld [vmem:[%s1503] sm:$0xff]
  %v4980 = vld [vmem:[%s1503 + $0x8] sm:$0xff]
  %v4981 = vld [vmem:[%s1503 + $0x10] sm:$0xff]
  %v4982 = vld [vmem:[%s1503 + $0x18] sm:$0xff]
  %v4984 = vsel %vm727, %v4973, 0
  %v4987 = vsel %vm727, %v4974, 0
  %v4990 = vsel %vm727, %v4975, 0
  %v4993 = vsel %vm727, %v4976, 0
  %v4996 = vsel %vm727, %v4977, 0
  %v4999 = vsel %vm727, %v4978, 0
  %5001 = vmatprep.subr.mxu0 0.0
  %5002 = vmatpush1.msra.mxu0 0.0
  %5003 = vmatprep.subr.mxu0 0.0
  %5004 = vmatpush1.msra.mxu0 0.0
  %5005 = vmatprep.subr.mxu0 0.0
  %5006 = vmatpush1.msra.mxu0 0.0
  %5007 = vmatprep.subr.mxu0 0.0
  %5008 = vmatpush1.msra.mxu0 0.0
  %5009 = vmatprep.subr.mxu0 0.0
  %5010 = vmatpush1.msra.mxu0 0.0
  %5011 = vmatprep.subr.mxu0 0.0
  %5012 = vmatpush1.msra.mxu0 0.0
  %5013 = vmatprep.subr.mxu0 0.0
  %5014 = vmatpush1.msra.mxu0 0.0
  %5015 = vmatprep.subr.mxu0 0.0
  %5016 = vmatpush1.msra.mxu0 0.0
  %5017 = vmatprep.subr.mxu0 0.0
  %5018 = vmatpush1.msra.mxu0 0.0
  %5019 = vmatprep.subr.mxu0 0.0
  %5020 = vmatpush1.msra.mxu0 0.0
  %5021 = vmatprep.subr.mxu0 0.0
  %5022 = vmatpush1.msra.mxu0 0.0
  %5023 = vmatprep.subr.mxu0 0.0
  %5024 = vmatpush1.msra.mxu0 0.0
  %5025 = vmatprep.subr.mxu0 0.0
  %5026 = vmatpush1.msra.mxu0 %v4982
  %5027 = vmatprep.subr.mxu0 0.0
  %5028 = vmatpush1.msra.mxu0 %v4981
  %5029 = vmatprep.subr.mxu0 0.0
  %5030 = vmatpush1.msra.mxu0 %v4980
  %5031 = vmatprep.subr.mxu0 0.0
  %5032 = vmatpush1.msra.mxu0 %v4979
  %5033 = vmatprep.subr.mxu0 0.0
  %5034 = vmatpush2.msra.mxu0 0.0
  %5035 = vmatprep.subr.mxu0 0.0
  %5036 = vmatpush2.msra.mxu0 0.0
  %5037 = vmatprep.subr.mxu0 0.0
  %5038 = vmatpush2.msra.mxu0 0.0
  %5039 = vmatprep.subr.mxu0 0.0
  %5040 = vmatpush2.msra.mxu0 0.0
  %5041 = vmatprep.subr.mxu0 0.0
  %5042 = vmatpush2.msra.mxu0 0.0
  %5043 = vmatprep.subr.mxu0 0.0
  %5044 = vmatpush2.msra.mxu0 0.0
  %5045 = vmatprep.subr.mxu0 0.0
  %5046 = vmatpush2.msra.mxu0 0.0
  %5047 = vmatprep.subr.mxu0 0.0
  %5048 = vmatpush2.msra.mxu0 0.0
  %5049 = vmatprep.subr.mxu0 0.0
  %5050 = vmatpush2.msra.mxu0 0.0
  %5051 = vmatprep.subr.mxu0 0.0
  %5052 = vmatpush2.msra.mxu0 0.0
  %5053 = vmatprep.subr.mxu0 0.0
  %5054 = vmatpush2.msra.mxu0 0.0
  %5055 = vmatprep.subr.mxu0 0.0
  %5056 = vmatpush2.msra.mxu0 0.0
  %5057 = vmatprep.subr.mxu0 0.0
  %5058 = vmatpush2.msra.mxu0 0.0
  %5059 = vmatprep.subr.mxu0 0.0
  %5060 = vmatpush2.msra.mxu0 0.0
  %5061 = vmatprep.subr.mxu0 0.0
  %5062 = vmatpush2.msra.mxu0 0.0
  %5063 = vmatprep.subr.mxu0 0.0
  %5064 = vmatpush2.msra.mxu0 0.0
  %5065 = vmatprep.mubr.f32.mxu0 0.0
  %5066 = vmatmul.mubr.f32.gmra.mxu0 %v4984
  %v5067 = vpop.f32.mrf.mxu0
  %v5068 = vadd.f32 0.0, %v5067
  %v5069 = vpop.f32.mrf.mxu0
  %5070 = vmatprep.mubr.f32.mxu0 0.0
  %5071 = vmatmul.mubr.f32.gmra.mxu0 %v4987
  %v5072 = vpop.f32.mrf.mxu0
  %v5073 = vadd.f32 0.0, %v5072
  %v5074 = vpop.f32.mrf.mxu0
  %5075 = vmatprep.mubr.f32.mxu0 0.0
  %5076 = vmatmul.mubr.f32.gmra.mxu0 %v4990
  %v5077 = vpop.f32.mrf.mxu0
  %v5078 = vadd.f32 0.0, %v5077
  %v5079 = vpop.f32.mrf.mxu0
  %5080 = vmatprep.mubr.f32.mxu0 0.0
  %5081 = vmatmul.mubr.f32.gmra.mxu0 %v4993
  %v5082 = vpop.f32.mrf.mxu0
  %v5083 = vadd.f32 0.0, %v5082
  %v5084 = vpop.f32.mrf.mxu0
  %5085 = vmatprep.mubr.f32.mxu0 0.0
  %5086 = vmatmul.mubr.f32.gmra.mxu0 %v4996
  %v5087 = vpop.f32.mrf.mxu0
  %v5088 = vadd.f32 0.0, %v5087
  %v5089 = vpop.f32.mrf.mxu0
  %5090 = vmatprep.mubr.f32.mxu0 0.0
  %5091 = vmatmul.mubr.f32.gmra.mxu0 %v4999
  %v5092 = vpop.f32.mrf.mxu0
  %v5093 = vadd.f32 0.0, %v5092
  %v5094 = vpop.f32.mrf.mxu0
  %5095 = vdwg.mxu0
  %v5096 = vadd.f32 %v4967, %v5068
  %v5097 = vadd.f32 %v4968, %v5073
  %v5098 = vadd.f32 %v4969, %v5078
  %v5099 = vadd.f32 %v4970, %v5083
  %v5100 = vadd.f32 %v4971, %v5088
  %v5101 = vadd.f32 %v4972, %v5093
  %v5102 = vld [vmem:[#allocation2 + $0x38] sm:$0xff]
  %v5103 = vld [vmem:[#allocation2 + $0x40] sm:$0xff]
  %v5104 = vld [vmem:[#allocation2 + $0x48] sm:$0xff]
  %v5105 = vld [vmem:[#allocation2 + $0x50] sm:$0xff]
  %v5106 = vld [vmem:[#allocation2 + $0x58] sm:$0xff]
  %v5107 = vld [vmem:[#allocation2 + $0x60] sm:$0xff]
  %v5108 = vld [vmem:[%s1633] sm:$0xff]
  %v5109 = vld [vmem:[%s1633 + $0x8] sm:$0xff]
  %v5110 = vld [vmem:[%s1633 + $0x10] sm:$0xff]
  %v5111 = vld [vmem:[%s1633 + $0x18] sm:$0xff]
  %v5113 = vsel %vm727, %v5102, 0
  %v5116 = vsel %vm727, %v5103, 0
  %v5119 = vsel %vm727, %v5104, 0
  %v5122 = vsel %vm727, %v5105, 0
  %v5125 = vsel %vm727, %v5106, 0
  %v5128 = vsel %vm727, %v5107, 0
  %5130 = vmatprep.subr.mxu0 0.0
  %5131 = vmatpush1.msra.mxu0 0.0
  %5132 = vmatprep.subr.mxu0 0.0
  %5133 = vmatpush1.msra.mxu0 0.0
  %5134 = vmatprep.subr.mxu0 0.0
  %5135 = vmatpush1.msra.mxu0 0.0
  %5136 = vmatprep.subr.mxu0 0.0
  %5137 = vmatpush1.msra.mxu0 0.0
  %5138 = vmatprep.subr.mxu0 0.0
  %5139 = vmatpush1.msra.mxu0 0.0
  %5140 = vmatprep.subr.mxu0 0.0
  %5141 = vmatpush1.msra.mxu0 0.0
  %5142 = vmatprep.subr.mxu0 0.0
  %5143 = vmatpush1.msra.mxu0 0.0
  %5144 = vmatprep.subr.mxu0 0.0
  %5145 = vmatpush1.msra.mxu0 0.0
  %5146 = vmatprep.subr.mxu0 0.0
  %5147 = vmatpush1.msra.mxu0 0.0
  %5148 = vmatprep.subr.mxu0 0.0
  %5149 = vmatpush1.msra.mxu0 0.0
  %5150 = vmatprep.subr.mxu0 0.0
  %5151 = vmatpush1.msra.mxu0 0.0
  %5152 = vmatprep.subr.mxu0 0.0
  %5153 = vmatpush1.msra.mxu0 0.0
  %5154 = vmatprep.subr.mxu0 0.0
  %5155 = vmatpush1.msra.mxu0 %v5111
  %5156 = vmatprep.subr.mxu0 0.0
  %5157 = vmatpush1.msra.mxu0 %v5110
  %5158 = vmatprep.subr.mxu0 0.0
  %5159 = vmatpush1.msra.mxu0 %v5109
  %5160 = vmatprep.subr.mxu0 0.0
  %5161 = vmatpush1.msra.mxu0 %v5108
  %5162 = vmatprep.subr.mxu0 0.0
  %5163 = vmatpush2.msra.mxu0 0.0
  %5164 = vmatprep.subr.mxu0 0.0
  %5165 = vmatpush2.msra.mxu0 0.0
  %5166 = vmatprep.subr.mxu0 0.0
  %5167 = vmatpush2.msra.mxu0 0.0
  %5168 = vmatprep.subr.mxu0 0.0
  %5169 = vmatpush2.msra.mxu0 0.0
  %5170 = vmatprep.subr.mxu0 0.0
  %5171 = vmatpush2.msra.mxu0 0.0
  %5172 = vmatprep.subr.mxu0 0.0
  %5173 = vmatpush2.msra.mxu0 0.0
  %5174 = vmatprep.subr.mxu0 0.0
  %5175 = vmatpush2.msra.mxu0 0.0
  %5176 = vmatprep.subr.mxu0 0.0
  %5177 = vmatpush2.msra.mxu0 0.0
  %5178 = vmatprep.subr.mxu0 0.0
  %5179 = vmatpush2.msra.mxu0 0.0
  %5180 = vmatprep.subr.mxu0 0.0
  %5181 = vmatpush2.msra.mxu0 0.0
  %5182 = vmatprep.subr.mxu0 0.0
  %5183 = vmatpush2.msra.mxu0 0.0
  %5184 = vmatprep.subr.mxu0 0.0
  %5185 = vmatpush2.msra.mxu0 0.0
  %5186 = vmatprep.subr.mxu0 0.0
  %5187 = vmatpush2.msra.mxu0 0.0
  %5188 = vmatprep.subr.mxu0 0.0
  %5189 = vmatpush2.msra.mxu0 0.0
  %5190 = vmatprep.subr.mxu0 0.0
  %5191 = vmatpush2.msra.mxu0 0.0
  %5192 = vmatprep.subr.mxu0 0.0
  %5193 = vmatpush2.msra.mxu0 0.0
  %5194 = vmatprep.mubr.f32.mxu0 0.0
  %5195 = vmatmul.mubr.f32.gmra.mxu0 %v5113
  %v5196 = vpop.f32.mrf.mxu0
  %v5197 = vadd.f32 0.0, %v5196
  %v5198 = vpop.f32.mrf.mxu0
  %5199 = vmatprep.mubr.f32.mxu0 0.0
  %5200 = vmatmul.mubr.f32.gmra.mxu0 %v5116
  %v5201 = vpop.f32.mrf.mxu0
  %v5202 = vadd.f32 0.0, %v5201
  %v5203 = vpop.f32.mrf.mxu0
  %5204 = vmatprep.mubr.f32.mxu0 0.0
  %5205 = vmatmul.mubr.f32.gmra.mxu0 %v5119
  %v5206 = vpop.f32.mrf.mxu0
  %v5207 = vadd.f32 0.0, %v5206
  %v5208 = vpop.f32.mrf.mxu0
  %5209 = vmatprep.mubr.f32.mxu0 0.0
  %5210 = vmatmul.mubr.f32.gmra.mxu0 %v5122
  %v5211 = vpop.f32.mrf.mxu0
  %v5212 = vadd.f32 0.0, %v5211
  %v5213 = vpop.f32.mrf.mxu0
  %5214 = vmatprep.mubr.f32.mxu0 0.0
  %5215 = vmatmul.mubr.f32.gmra.mxu0 %v5125
  %v5216 = vpop.f32.mrf.mxu0
  %v5217 = vadd.f32 0.0, %v5216
  %v5218 = vpop.f32.mrf.mxu0
  %5219 = vmatprep.mubr.f32.mxu0 0.0
  %5220 = vmatmul.mubr.f32.gmra.mxu0 %v5128
  %v5221 = vpop.f32.mrf.mxu0
  %v5222 = vadd.f32 0.0, %v5221
  %v5223 = vpop.f32.mrf.mxu0
  %5224 = vdwg.mxu0
  %v5225 = vadd.f32 %v5096, %v5197
  %v5226 = vadd.f32 %v5097, %v5202
  %v5227 = vadd.f32 %v5098, %v5207
  %v5228 = vadd.f32 %v5099, %v5212
  %v5229 = vadd.f32 %v5100, %v5217
  %v5230 = vadd.f32 %v5101, %v5222
  %v5231 = vld [vmem:[#allocation2 + $0x40] sm:$0xff]
  %v5232 = vld [vmem:[#allocation2 + $0x48] sm:$0xff]
  %v5233 = vld [vmem:[#allocation2 + $0x50] sm:$0xff]
  %v5234 = vld [vmem:[#allocation2 + $0x58] sm:$0xff]
  %v5235 = vld [vmem:[#allocation2 + $0x60] sm:$0xff]
  %v5236 = vld [vmem:[#allocation2 + $0x68] sm:$0xff]
  %v5237 = vld [vmem:[%s1763] sm:$0xff]
  %v5238 = vld [vmem:[%s1763 + $0x8] sm:$0xff]
  %v5239 = vld [vmem:[%s1763 + $0x10] sm:$0xff]
  %v5240 = vld [vmem:[%s1763 + $0x18] sm:$0xff]
  %v5242 = vsel %vm727, %v5231, 0
  %v5245 = vsel %vm727, %v5232, 0
  %v5248 = vsel %vm727, %v5233, 0
  %v5251 = vsel %vm727, %v5234, 0
  %v5254 = vsel %vm727, %v5235, 0
  %v5257 = vsel %vm727, %v5236, 0
  %5259 = vmatprep.subr.mxu0 0.0
  %5260 = vmatpush1.msra.mxu0 0.0
  %5261 = vmatprep.subr.mxu0 0.0
  %5262 = vmatpush1.msra.mxu0 0.0
  %5263 = vmatprep.subr.mxu0 0.0
  %5264 = vmatpush1.msra.mxu0 0.0
  %5265 = vmatprep.subr.mxu0 0.0
  %5266 = vmatpush1.msra.mxu0 0.0
  %5267 = vmatprep.subr.mxu0 0.0
  %5268 = vmatpush1.msra.mxu0 0.0
  %5269 = vmatprep.subr.mxu0 0.0
  %5270 = vmatpush1.msra.mxu0 0.0
  %5271 = vmatprep.subr.mxu0 0.0
  %5272 = vmatpush1.msra.mxu0 0.0
  %5273 = vmatprep.subr.mxu0 0.0
  %5274 = vmatpush1.msra.mxu0 0.0
  %5275 = vmatprep.subr.mxu0 0.0
  %5276 = vmatpush1.msra.mxu0 0.0
  %5277 = vmatprep.subr.mxu0 0.0
  %5278 = vmatpush1.msra.mxu0 0.0
  %5279 = vmatprep.subr.mxu0 0.0
  %5280 = vmatpush1.msra.mxu0 0.0
  %5281 = vmatprep.subr.mxu0 0.0
  %5282 = vmatpush1.msra.mxu0 0.0
  %5283 = vmatprep.subr.mxu0 0.0
  %5284 = vmatpush1.msra.mxu0 %v5240
  %5285 = vmatprep.subr.mxu0 0.0
  %5286 = vmatpush1.msra.mxu0 %v5239
  %5287 = vmatprep.subr.mxu0 0.0
  %5288 = vmatpush1.msra.mxu0 %v5238
  %5289 = vmatprep.subr.mxu0 0.0
  %5290 = vmatpush1.msra.mxu0 %v5237
  %5291 = vmatprep.subr.mxu0 0.0
  %5292 = vmatpush2.msra.mxu0 0.0
  %5293 = vmatprep.subr.mxu0 0.0
  %5294 = vmatpush2.msra.mxu0 0.0
  %5295 = vmatprep.subr.mxu0 0.0
  %5296 = vmatpush2.msra.mxu0 0.0
  %5297 = vmatprep.subr.mxu0 0.0
  %5298 = vmatpush2.msra.mxu0 0.0
  %5299 = vmatprep.subr.mxu0 0.0
  %5300 = vmatpush2.msra.mxu0 0.0
  %5301 = vmatprep.subr.mxu0 0.0
  %5302 = vmatpush2.msra.mxu0 0.0
  %5303 = vmatprep.subr.mxu0 0.0
  %5304 = vmatpush2.msra.mxu0 0.0
  %5305 = vmatprep.subr.mxu0 0.0
  %5306 = vmatpush2.msra.mxu0 0.0
  %5307 = vmatprep.subr.mxu0 0.0
  %5308 = vmatpush2.msra.mxu0 0.0
  %5309 = vmatprep.subr.mxu0 0.0
  %5310 = vmatpush2.msra.mxu0 0.0
  %5311 = vmatprep.subr.mxu0 0.0
  %5312 = vmatpush2.msra.mxu0 0.0
  %5313 = vmatprep.subr.mxu0 0.0
  %5314 = vmatpush2.msra.mxu0 0.0
  %5315 = vmatprep.subr.mxu0 0.0
  %5316 = vmatpush2.msra.mxu0 0.0
  %5317 = vmatprep.subr.mxu0 0.0
  %5318 = vmatpush2.msra.mxu0 0.0
  %5319 = vmatprep.subr.mxu0 0.0
  %5320 = vmatpush2.msra.mxu0 0.0
  %5321 = vmatprep.subr.mxu0 0.0
  %5322 = vmatpush2.msra.mxu0 0.0
  %5323 = vmatprep.mubr.f32.mxu0 0.0
  %5324 = vmatmul.mubr.f32.gmra.mxu0 %v5242
  %v5325 = vpop.f32.mrf.mxu0
  %v5326 = vadd.f32 0.0, %v5325
  %v5327 = vpop.f32.mrf.mxu0
  %5328 = vmatprep.mubr.f32.mxu0 0.0
  %5329 = vmatmul.mubr.f32.gmra.mxu0 %v5245
  %v5330 = vpop.f32.mrf.mxu0
  %v5331 = vadd.f32 0.0, %v5330
  %v5332 = vpop.f32.mrf.mxu0
  %5333 = vmatprep.mubr.f32.mxu0 0.0
  %5334 = vmatmul.mubr.f32.gmra.mxu0 %v5248
  %v5335 = vpop.f32.mrf.mxu0
  %v5336 = vadd.f32 0.0, %v5335
  %v5337 = vpop.f32.mrf.mxu0
  %5338 = vmatprep.mubr.f32.mxu0 0.0
  %5339 = vmatmul.mubr.f32.gmra.mxu0 %v5251
  %v5340 = vpop.f32.mrf.mxu0
  %v5341 = vadd.f32 0.0, %v5340
  %v5342 = vpop.f32.mrf.mxu0
  %5343 = vmatprep.mubr.f32.mxu0 0.0
  %5344 = vmatmul.mubr.f32.gmra.mxu0 %v5254
  %v5345 = vpop.f32.mrf.mxu0
  %v5346 = vadd.f32 0.0, %v5345
  %v5347 = vpop.f32.mrf.mxu0
  %5348 = vmatprep.mubr.f32.mxu0 0.0
  %5349 = vmatmul.mubr.f32.gmra.mxu0 %v5257
  %v5350 = vpop.f32.mrf.mxu0
  %v5351 = vadd.f32 0.0, %v5350
  %v5352 = vpop.f32.mrf.mxu0
  %5353 = vdwg.mxu0
  %v5354 = vadd.f32 %v5225, %v5326
  %v5355 = vadd.f32 %v5226, %v5331
  %v5356 = vadd.f32 %v5227, %v5336
  %v5357 = vadd.f32 %v5228, %v5341
  %v5358 = vadd.f32 %v5229, %v5346
  %v5359 = vadd.f32 %v5230, %v5351
  %v5360 = vld [vmem:[#allocation2 + $0x48] sm:$0xff]
  %v5361 = vld [vmem:[#allocation2 + $0x50] sm:$0xff]
  %v5362 = vld [vmem:[#allocation2 + $0x58] sm:$0xff]
  %v5363 = vld [vmem:[#allocation2 + $0x60] sm:$0xff]
  %v5364 = vld [vmem:[#allocation2 + $0x68] sm:$0xff]
  %v5365 = vld [vmem:[#allocation2 + $0x70] sm:$0xff]
  %v5366 = vld [vmem:[%s1893] sm:$0xff]
  %v5367 = vld [vmem:[%s1893 + $0x8] sm:$0xff]
  %v5368 = vld [vmem:[%s1893 + $0x10] sm:$0xff]
  %v5369 = vld [vmem:[%s1893 + $0x18] sm:$0xff]
  %v5371 = vsel %vm727, %v5360, 0
  %v5374 = vsel %vm727, %v5361, 0
  %v5377 = vsel %vm727, %v5362, 0
  %v5380 = vsel %vm727, %v5363, 0
  %v5383 = vsel %vm727, %v5364, 0
  %v5386 = vsel %vm727, %v5365, 0
  %5388 = vmatprep.subr.mxu0 0.0
  %5389 = vmatpush1.msra.mxu0 0.0
  %5390 = vmatprep.subr.mxu0 0.0
  %5391 = vmatpush1.msra.mxu0 0.0
  %5392 = vmatprep.subr.mxu0 0.0
  %5393 = vmatpush1.msra.mxu0 0.0
  %5394 = vmatprep.subr.mxu0 0.0
  %5395 = vmatpush1.msra.mxu0 0.0
  %5396 = vmatprep.subr.mxu0 0.0
  %5397 = vmatpush1.msra.mxu0 0.0
  %5398 = vmatprep.subr.mxu0 0.0
  %5399 = vmatpush1.msra.mxu0 0.0
  %5400 = vmatprep.subr.mxu0 0.0
  %5401 = vmatpush1.msra.mxu0 0.0
  %5402 = vmatprep.subr.mxu0 0.0
  %5403 = vmatpush1.msra.mxu0 0.0
  %5404 = vmatprep.subr.mxu0 0.0
  %5405 = vmatpush1.msra.mxu0 0.0
  %5406 = vmatprep.subr.mxu0 0.0
  %5407 = vmatpush1.msra.mxu0 0.0
  %5408 = vmatprep.subr.mxu0 0.0
  %5409 = vmatpush1.msra.mxu0 0.0
  %5410 = vmatprep.subr.mxu0 0.0
  %5411 = vmatpush1.msra.mxu0 0.0
  %5412 = vmatprep.subr.mxu0 0.0
  %5413 = vmatpush1.msra.mxu0 %v5369
  %5414 = vmatprep.subr.mxu0 0.0
  %5415 = vmatpush1.msra.mxu0 %v5368
  %5416 = vmatprep.subr.mxu0 0.0
  %5417 = vmatpush1.msra.mxu0 %v5367
  %5418 = vmatprep.subr.mxu0 0.0
  %5419 = vmatpush1.msra.mxu0 %v5366
  %5420 = vmatprep.subr.mxu0 0.0
  %5421 = vmatpush2.msra.mxu0 0.0
  %5422 = vmatprep.subr.mxu0 0.0
  %5423 = vmatpush2.msra.mxu0 0.0
  %5424 = vmatprep.subr.mxu0 0.0
  %5425 = vmatpush2.msra.mxu0 0.0
  %5426 = vmatprep.subr.mxu0 0.0
  %5427 = vmatpush2.msra.mxu0 0.0
  %5428 = vmatprep.subr.mxu0 0.0
  %5429 = vmatpush2.msra.mxu0 0.0
  %5430 = vmatprep.subr.mxu0 0.0
  %5431 = vmatpush2.msra.mxu0 0.0
  %5432 = vmatprep.subr.mxu0 0.0
  %5433 = vmatpush2.msra.mxu0 0.0
  %5434 = vmatprep.subr.mxu0 0.0
  %5435 = vmatpush2.msra.mxu0 0.0
  %5436 = vmatprep.subr.mxu0 0.0
  %5437 = vmatpush2.msra.mxu0 0.0
  %5438 = vmatprep.subr.mxu0 0.0
  %5439 = vmatpush2.msra.mxu0 0.0
  %5440 = vmatprep.subr.mxu0 0.0
  %5441 = vmatpush2.msra.mxu0 0.0
  %5442 = vmatprep.subr.mxu0 0.0
  %5443 = vmatpush2.msra.mxu0 0.0
  %5444 = vmatprep.subr.mxu0 0.0
  %5445 = vmatpush2.msra.mxu0 0.0
  %5446 = vmatprep.subr.mxu0 0.0
  %5447 = vmatpush2.msra.mxu0 0.0
  %5448 = vmatprep.subr.mxu0 0.0
  %5449 = vmatpush2.msra.mxu0 0.0
  %5450 = vmatprep.subr.mxu0 0.0
  %5451 = vmatpush2.msra.mxu0 0.0
  %5452 = vmatprep.mubr.f32.mxu0 0.0
  %5453 = vmatmul.mubr.f32.gmra.mxu0 %v5371
  %v5454 = vpop.f32.mrf.mxu0
  %v5455 = vadd.f32 0.0, %v5454
  %v5456 = vpop.f32.mrf.mxu0
  %5457 = vmatprep.mubr.f32.mxu0 0.0
  %5458 = vmatmul.mubr.f32.gmra.mxu0 %v5374
  %v5459 = vpop.f32.mrf.mxu0
  %v5460 = vadd.f32 0.0, %v5459
  %v5461 = vpop.f32.mrf.mxu0
  %5462 = vmatprep.mubr.f32.mxu0 0.0
  %5463 = vmatmul.mubr.f32.gmra.mxu0 %v5377
  %v5464 = vpop.f32.mrf.mxu0
  %v5465 = vadd.f32 0.0, %v5464
  %v5466 = vpop.f32.mrf.mxu0
  %5467 = vmatprep.mubr.f32.mxu0 0.0
  %5468 = vmatmul.mubr.f32.gmra.mxu0 %v5380
  %v5469 = vpop.f32.mrf.mxu0
  %v5470 = vadd.f32 0.0, %v5469
  %v5471 = vpop.f32.mrf.mxu0
  %5472 = vmatprep.mubr.f32.mxu0 0.0
  %5473 = vmatmul.mubr.f32.gmra.mxu0 %v5383
  %v5474 = vpop.f32.mrf.mxu0
  %v5475 = vadd.f32 0.0, %v5474
  %v5476 = vpop.f32.mrf.mxu0
  %5477 = vmatprep.mubr.f32.mxu0 0.0
  %5478 = vmatmul.mubr.f32.gmra.mxu0 %v5386
  %v5479 = vpop.f32.mrf.mxu0
  %v5480 = vadd.f32 0.0, %v5479
  %v5481 = vpop.f32.mrf.mxu0
  %5482 = vdwg.mxu0
  %v5483 = vadd.f32 %v5354, %v5455
  %v5484 = vadd.f32 %v5355, %v5460
  %v5485 = vadd.f32 %v5356, %v5465
  %v5486 = vadd.f32 %v5357, %v5470
  %v5487 = vadd.f32 %v5358, %v5475
  %v5488 = vadd.f32 %v5359, %v5480
  %v5489 = vld [vmem:[#allocation2 + $0x50] sm:$0xff]
  %v5490 = vld [vmem:[#allocation2 + $0x58] sm:$0xff]
  %v5491 = vld [vmem:[#allocation2 + $0x60] sm:$0xff]
  %v5492 = vld [vmem:[#allocation2 + $0x68] sm:$0xff]
  %v5493 = vld [vmem:[#allocation2 + $0x70] sm:$0xff]
  %v5494 = vld [vmem:[#allocation2 + $0x78] sm:$0xff]
  %v5495 = vld [vmem:[%s2023] sm:$0xff]
  %v5496 = vld [vmem:[%s2023 + $0x8] sm:$0xff]
  %v5497 = vld [vmem:[%s2023 + $0x10] sm:$0xff]
  %v5498 = vld [vmem:[%s2023 + $0x18] sm:$0xff]
  %v5500 = vsel %vm727, %v5489, 0
  %v5503 = vsel %vm727, %v5490, 0
  %v5506 = vsel %vm727, %v5491, 0
  %v5509 = vsel %vm727, %v5492, 0
  %v5512 = vsel %vm727, %v5493, 0
  %v5515 = vsel %vm727, %v5494, 0
  %5517 = vmatprep.subr.mxu0 0.0
  %5518 = vmatpush1.msra.mxu0 0.0
  %5519 = vmatprep.subr.mxu0 0.0
  %5520 = vmatpush1.msra.mxu0 0.0
  %5521 = vmatprep.subr.mxu0 0.0
  %5522 = vmatpush1.msra.mxu0 0.0
  %5523 = vmatprep.subr.mxu0 0.0
  %5524 = vmatpush1.msra.mxu0 0.0
  %5525 = vmatprep.subr.mxu0 0.0
  %5526 = vmatpush1.msra.mxu0 0.0
  %5527 = vmatprep.subr.mxu0 0.0
  %5528 = vmatpush1.msra.mxu0 0.0
  %5529 = vmatprep.subr.mxu0 0.0
  %5530 = vmatpush1.msra.mxu0 0.0
  %5531 = vmatprep.subr.mxu0 0.0
  %5532 = vmatpush1.msra.mxu0 0.0
  %5533 = vmatprep.subr.mxu0 0.0
  %5534 = vmatpush1.msra.mxu0 0.0
  %5535 = vmatprep.subr.mxu0 0.0
  %5536 = vmatpush1.msra.mxu0 0.0
  %5537 = vmatprep.subr.mxu0 0.0
  %5538 = vmatpush1.msra.mxu0 0.0
  %5539 = vmatprep.subr.mxu0 0.0
  %5540 = vmatpush1.msra.mxu0 0.0
  %5541 = vmatprep.subr.mxu0 0.0
  %5542 = vmatpush1.msra.mxu0 %v5498
  %5543 = vmatprep.subr.mxu0 0.0
  %5544 = vmatpush1.msra.mxu0 %v5497
  %5545 = vmatprep.subr.mxu0 0.0
  %5546 = vmatpush1.msra.mxu0 %v5496
  %5547 = vmatprep.subr.mxu0 0.0
  %5548 = vmatpush1.msra.mxu0 %v5495
  %5549 = vmatprep.subr.mxu0 0.0
  %5550 = vmatpush2.msra.mxu0 0.0
  %5551 = vmatprep.subr.mxu0 0.0
  %5552 = vmatpush2.msra.mxu0 0.0
  %5553 = vmatprep.subr.mxu0 0.0
  %5554 = vmatpush2.msra.mxu0 0.0
  %5555 = vmatprep.subr.mxu0 0.0
  %5556 = vmatpush2.msra.mxu0 0.0
  %5557 = vmatprep.subr.mxu0 0.0
  %5558 = vmatpush2.msra.mxu0 0.0
  %5559 = vmatprep.subr.mxu0 0.0
  %5560 = vmatpush2.msra.mxu0 0.0
  %5561 = vmatprep.subr.mxu0 0.0
  %5562 = vmatpush2.msra.mxu0 0.0
  %5563 = vmatprep.subr.mxu0 0.0
  %5564 = vmatpush2.msra.mxu0 0.0
  %5565 = vmatprep.subr.mxu0 0.0
  %5566 = vmatpush2.msra.mxu0 0.0
  %5567 = vmatprep.subr.mxu0 0.0
  %5568 = vmatpush2.msra.mxu0 0.0
  %5569 = vmatprep.subr.mxu0 0.0
  %5570 = vmatpush2.msra.mxu0 0.0
  %5571 = vmatprep.subr.mxu0 0.0
  %5572 = vmatpush2.msra.mxu0 0.0
  %5573 = vmatprep.subr.mxu0 0.0
  %5574 = vmatpush2.msra.mxu0 0.0
  %5575 = vmatprep.subr.mxu0 0.0
  %5576 = vmatpush2.msra.mxu0 0.0
  %5577 = vmatprep.subr.mxu0 0.0
  %5578 = vmatpush2.msra.mxu0 0.0
  %5579 = vmatprep.subr.mxu0 0.0
  %5580 = vmatpush2.msra.mxu0 0.0
  %5581 = vmatprep.mubr.f32.mxu0 0.0
  %5582 = vmatmul.mubr.f32.gmra.mxu0 %v5500
  %v5583 = vpop.f32.mrf.mxu0
  %v5584 = vadd.f32 0.0, %v5583
  %v5585 = vpop.f32.mrf.mxu0
  %5586 = vmatprep.mubr.f32.mxu0 0.0
  %5587 = vmatmul.mubr.f32.gmra.mxu0 %v5503
  %v5588 = vpop.f32.mrf.mxu0
  %v5589 = vadd.f32 0.0, %v5588
  %v5590 = vpop.f32.mrf.mxu0
  %5591 = vmatprep.mubr.f32.mxu0 0.0
  %5592 = vmatmul.mubr.f32.gmra.mxu0 %v5506
  %v5593 = vpop.f32.mrf.mxu0
  %v5594 = vadd.f32 0.0, %v5593
  %v5595 = vpop.f32.mrf.mxu0
  %5596 = vmatprep.mubr.f32.mxu0 0.0
  %5597 = vmatmul.mubr.f32.gmra.mxu0 %v5509
  %v5598 = vpop.f32.mrf.mxu0
  %v5599 = vadd.f32 0.0, %v5598
  %v5600 = vpop.f32.mrf.mxu0
  %5601 = vmatprep.mubr.f32.mxu0 0.0
  %5602 = vmatmul.mubr.f32.gmra.mxu0 %v5512
  %v5603 = vpop.f32.mrf.mxu0
  %v5604 = vadd.f32 0.0, %v5603
  %v5605 = vpop.f32.mrf.mxu0
  %5606 = vmatprep.mubr.f32.mxu0 0.0
  %5607 = vmatmul.mubr.f32.gmra.mxu0 %v5515
  %v5608 = vpop.f32.mrf.mxu0
  %v5609 = vadd.f32 0.0, %v5608
  %v5610 = vpop.f32.mrf.mxu0
  %5611 = vdwg.mxu0
  %v5612 = vadd.f32 %v5483, %v5584
  %v5613 = vadd.f32 %v5484, %v5589
  %v5614 = vadd.f32 %v5485, %v5594
  %v5615 = vadd.f32 %v5486, %v5599
  %v5616 = vadd.f32 %v5487, %v5604
  %v5617 = vadd.f32 %v5488, %v5609
  %v5618 = vld [vmem:[#allocation2 + $0x58] sm:$0xff]
  %v5619 = vld [vmem:[#allocation2 + $0x60] sm:$0xff]
  %v5620 = vld [vmem:[#allocation2 + $0x68] sm:$0xff]
  %v5621 = vld [vmem:[#allocation2 + $0x70] sm:$0xff]
  %v5622 = vld [vmem:[#allocation2 + $0x78] sm:$0xff]
  %v5623 = vld [vmem:[#allocation2 + $0x80] sm:$0xff]
  %v5624 = vld [vmem:[%s2153] sm:$0xff]
  %v5625 = vld [vmem:[%s2153 + $0x8] sm:$0xff]
  %v5626 = vld [vmem:[%s2153 + $0x10] sm:$0xff]
  %v5627 = vld [vmem:[%s2153 + $0x18] sm:$0xff]
  %v5629 = vsel %vm727, %v5618, 0
  %v5632 = vsel %vm727, %v5619, 0
  %v5635 = vsel %vm727, %v5620, 0
  %v5638 = vsel %vm727, %v5621, 0
  %v5641 = vsel %vm727, %v5622, 0
  %v5644 = vsel %vm727, %v5623, 0
  %5646 = vmatprep.subr.mxu0 0.0
  %5647 = vmatpush1.msra.mxu0 0.0
  %5648 = vmatprep.subr.mxu0 0.0
  %5649 = vmatpush1.msra.mxu0 0.0
  %5650 = vmatprep.subr.mxu0 0.0
  %5651 = vmatpush1.msra.mxu0 0.0
  %5652 = vmatprep.subr.mxu0 0.0
  %5653 = vmatpush1.msra.mxu0 0.0
  %5654 = vmatprep.subr.mxu0 0.0
  %5655 = vmatpush1.msra.mxu0 0.0
  %5656 = vmatprep.subr.mxu0 0.0
  %5657 = vmatpush1.msra.mxu0 0.0
  %5658 = vmatprep.subr.mxu0 0.0
  %5659 = vmatpush1.msra.mxu0 0.0
  %5660 = vmatprep.subr.mxu0 0.0
  %5661 = vmatpush1.msra.mxu0 0.0
  %5662 = vmatprep.subr.mxu0 0.0
  %5663 = vmatpush1.msra.mxu0 0.0
  %5664 = vmatprep.subr.mxu0 0.0
  %5665 = vmatpush1.msra.mxu0 0.0
  %5666 = vmatprep.subr.mxu0 0.0
  %5667 = vmatpush1.msra.mxu0 0.0
  %5668 = vmatprep.subr.mxu0 0.0
  %5669 = vmatpush1.msra.mxu0 0.0
  %5670 = vmatprep.subr.mxu0 0.0
  %5671 = vmatpush1.msra.mxu0 %v5627
  %5672 = vmatprep.subr.mxu0 0.0
  %5673 = vmatpush1.msra.mxu0 %v5626
  %5674 = vmatprep.subr.mxu0 0.0
  %5675 = vmatpush1.msra.mxu0 %v5625
  %5676 = vmatprep.subr.mxu0 0.0
  %5677 = vmatpush1.msra.mxu0 %v5624
  %5678 = vmatprep.subr.mxu0 0.0
  %5679 = vmatpush2.msra.mxu0 0.0
  %5680 = vmatprep.subr.mxu0 0.0
  %5681 = vmatpush2.msra.mxu0 0.0
  %5682 = vmatprep.subr.mxu0 0.0
  %5683 = vmatpush2.msra.mxu0 0.0
  %5684 = vmatprep.subr.mxu0 0.0
  %5685 = vmatpush2.msra.mxu0 0.0
  %5686 = vmatprep.subr.mxu0 0.0
  %5687 = vmatpush2.msra.mxu0 0.0
  %5688 = vmatprep.subr.mxu0 0.0
  %5689 = vmatpush2.msra.mxu0 0.0
  %5690 = vmatprep.subr.mxu0 0.0
  %5691 = vmatpush2.msra.mxu0 0.0
  %5692 = vmatprep.subr.mxu0 0.0
  %5693 = vmatpush2.msra.mxu0 0.0
  %5694 = vmatprep.subr.mxu0 0.0
  %5695 = vmatpush2.msra.mxu0 0.0
  %5696 = vmatprep.subr.mxu0 0.0
  %5697 = vmatpush2.msra.mxu0 0.0
  %5698 = vmatprep.subr.mxu0 0.0
  %5699 = vmatpush2.msra.mxu0 0.0
  %5700 = vmatprep.subr.mxu0 0.0
  %5701 = vmatpush2.msra.mxu0 0.0
  %5702 = vmatprep.subr.mxu0 0.0
  %5703 = vmatpush2.msra.mxu0 0.0
  %5704 = vmatprep.subr.mxu0 0.0
  %5705 = vmatpush2.msra.mxu0 0.0
  %5706 = vmatprep.subr.mxu0 0.0
  %5707 = vmatpush2.msra.mxu0 0.0
  %5708 = vmatprep.subr.mxu0 0.0
  %5709 = vmatpush2.msra.mxu0 0.0
  %5710 = vmatprep.mubr.f32.mxu0 0.0
  %5711 = vmatmul.mubr.f32.gmra.mxu0 %v5629
  %v5712 = vpop.f32.mrf.mxu0
  %v5713 = vadd.f32 0.0, %v5712
  %v5714 = vpop.f32.mrf.mxu0
  %5715 = vmatprep.mubr.f32.mxu0 0.0
  %5716 = vmatmul.mubr.f32.gmra.mxu0 %v5632
  %v5717 = vpop.f32.mrf.mxu0
  %v5718 = vadd.f32 0.0, %v5717
  %v5719 = vpop.f32.mrf.mxu0
  %5720 = vmatprep.mubr.f32.mxu0 0.0
  %5721 = vmatmul.mubr.f32.gmra.mxu0 %v5635
  %v5722 = vpop.f32.mrf.mxu0
  %v5723 = vadd.f32 0.0, %v5722
  %v5724 = vpop.f32.mrf.mxu0
  %5725 = vmatprep.mubr.f32.mxu0 0.0
  %5726 = vmatmul.mubr.f32.gmra.mxu0 %v5638
  %v5727 = vpop.f32.mrf.mxu0
  %v5728 = vadd.f32 0.0, %v5727
  %v5729 = vpop.f32.mrf.mxu0
  %5730 = vmatprep.mubr.f32.mxu0 0.0
  %5731 = vmatmul.mubr.f32.gmra.mxu0 %v5641
  %v5732 = vpop.f32.mrf.mxu0
  %v5733 = vadd.f32 0.0, %v5732
  %v5734 = vpop.f32.mrf.mxu0
  %5735 = vmatprep.mubr.f32.mxu0 0.0
  %5736 = vmatmul.mubr.f32.gmra.mxu0 %v5644
  %v5737 = vpop.f32.mrf.mxu0
  %v5738 = vadd.f32 0.0, %v5737
  %v5739 = vpop.f32.mrf.mxu0
  %5740 = vdwg.mxu0
  %v5741 = vadd.f32 %v5612, %v5713
  %v5742 = vadd.f32 %v5613, %v5718
  %v5743 = vadd.f32 %v5614, %v5723
  %v5744 = vadd.f32 %v5615, %v5728
  %v5745 = vadd.f32 %v5616, %v5733
  %v5746 = vadd.f32 %v5617, %v5738
  %v5747 = vld [vmem:[#allocation2 + $0x60] sm:$0xff]
  %v5748 = vld [vmem:[#allocation2 + $0x68] sm:$0xff]
  %v5749 = vld [vmem:[#allocation2 + $0x70] sm:$0xff]
  %v5750 = vld [vmem:[#allocation2 + $0x78] sm:$0xff]
  %v5751 = vld [vmem:[#allocation2 + $0x80] sm:$0xff]
  %v5752 = vld [vmem:[#allocation2 + $0x88] sm:$0xff]
  %v5753 = vld [vmem:[%s2283] sm:$0xff]
  %v5754 = vld [vmem:[%s2283 + $0x8] sm:$0xff]
  %v5755 = vld [vmem:[%s2283 + $0x10] sm:$0xff]
  %v5756 = vld [vmem:[%s2283 + $0x18] sm:$0xff]
  %v5758 = vsel %vm727, %v5747, 0
  %v5761 = vsel %vm727, %v5748, 0
  %v5764 = vsel %vm727, %v5749, 0
  %v5767 = vsel %vm727, %v5750, 0
  %v5770 = vsel %vm727, %v5751, 0
  %v5773 = vsel %vm727, %v5752, 0
  %5775 = vmatprep.subr.mxu0 0.0
  %5776 = vmatpush1.msra.mxu0 0.0
  %5777 = vmatprep.subr.mxu0 0.0
  %5778 = vmatpush1.msra.mxu0 0.0
  %5779 = vmatprep.subr.mxu0 0.0
  %5780 = vmatpush1.msra.mxu0 0.0
  %5781 = vmatprep.subr.mxu0 0.0
  %5782 = vmatpush1.msra.mxu0 0.0
  %5783 = vmatprep.subr.mxu0 0.0
  %5784 = vmatpush1.msra.mxu0 0.0
  %5785 = vmatprep.subr.mxu0 0.0
  %5786 = vmatpush1.msra.mxu0 0.0
  %5787 = vmatprep.subr.mxu0 0.0
  %5788 = vmatpush1.msra.mxu0 0.0
  %5789 = vmatprep.subr.mxu0 0.0
  %5790 = vmatpush1.msra.mxu0 0.0
  %5791 = vmatprep.subr.mxu0 0.0
  %5792 = vmatpush1.msra.mxu0 0.0
  %5793 = vmatprep.subr.mxu0 0.0
  %5794 = vmatpush1.msra.mxu0 0.0
  %5795 = vmatprep.subr.mxu0 0.0
  %5796 = vmatpush1.msra.mxu0 0.0
  %5797 = vmatprep.subr.mxu0 0.0
  %5798 = vmatpush1.msra.mxu0 0.0
  %5799 = vmatprep.subr.mxu0 0.0
  %5800 = vmatpush1.msra.mxu0 %v5756
  %5801 = vmatprep.subr.mxu0 0.0
  %5802 = vmatpush1.msra.mxu0 %v5755
  %5803 = vmatprep.subr.mxu0 0.0
  %5804 = vmatpush1.msra.mxu0 %v5754
  %5805 = vmatprep.subr.mxu0 0.0
  %5806 = vmatpush1.msra.mxu0 %v5753
  %5807 = vmatprep.subr.mxu0 0.0
  %5808 = vmatpush2.msra.mxu0 0.0
  %5809 = vmatprep.subr.mxu0 0.0
  %5810 = vmatpush2.msra.mxu0 0.0
  %5811 = vmatprep.subr.mxu0 0.0
  %5812 = vmatpush2.msra.mxu0 0.0
  %5813 = vmatprep.subr.mxu0 0.0
  %5814 = vmatpush2.msra.mxu0 0.0
  %5815 = vmatprep.subr.mxu0 0.0
  %5816 = vmatpush2.msra.mxu0 0.0
  %5817 = vmatprep.subr.mxu0 0.0
  %5818 = vmatpush2.msra.mxu0 0.0
  %5819 = vmatprep.subr.mxu0 0.0
  %5820 = vmatpush2.msra.mxu0 0.0
  %5821 = vmatprep.subr.mxu0 0.0
  %5822 = vmatpush2.msra.mxu0 0.0
  %5823 = vmatprep.subr.mxu0 0.0
  %5824 = vmatpush2.msra.mxu0 0.0
  %5825 = vmatprep.subr.mxu0 0.0
  %5826 = vmatpush2.msra.mxu0 0.0
  %5827 = vmatprep.subr.mxu0 0.0
  %5828 = vmatpush2.msra.mxu0 0.0
  %5829 = vmatprep.subr.mxu0 0.0
  %5830 = vmatpush2.msra.mxu0 0.0
  %5831 = vmatprep.subr.mxu0 0.0
  %5832 = vmatpush2.msra.mxu0 0.0
  %5833 = vmatprep.subr.mxu0 0.0
  %5834 = vmatpush2.msra.mxu0 0.0
  %5835 = vmatprep.subr.mxu0 0.0
  %5836 = vmatpush2.msra.mxu0 0.0
  %5837 = vmatprep.subr.mxu0 0.0
  %5838 = vmatpush2.msra.mxu0 0.0
  %5839 = vmatprep.mubr.f32.mxu0 0.0
  %5840 = vmatmul.mubr.f32.gmra.mxu0 %v5758
  %v5841 = vpop.f32.mrf.mxu0
  %v5842 = vadd.f32 0.0, %v5841
  %v5843 = vpop.f32.mrf.mxu0
  %5844 = vmatprep.mubr.f32.mxu0 0.0
  %5845 = vmatmul.mubr.f32.gmra.mxu0 %v5761
  %v5846 = vpop.f32.mrf.mxu0
  %v5847 = vadd.f32 0.0, %v5846
  %v5848 = vpop.f32.mrf.mxu0
  %5849 = vmatprep.mubr.f32.mxu0 0.0
  %5850 = vmatmul.mubr.f32.gmra.mxu0 %v5764
  %v5851 = vpop.f32.mrf.mxu0
  %v5852 = vadd.f32 0.0, %v5851
  %v5853 = vpop.f32.mrf.mxu0
  %5854 = vmatprep.mubr.f32.mxu0 0.0
  %5855 = vmatmul.mubr.f32.gmra.mxu0 %v5767
  %v5856 = vpop.f32.mrf.mxu0
  %v5857 = vadd.f32 0.0, %v5856
  %v5858 = vpop.f32.mrf.mxu0
  %5859 = vmatprep.mubr.f32.mxu0 0.0
  %5860 = vmatmul.mubr.f32.gmra.mxu0 %v5770
  %v5861 = vpop.f32.mrf.mxu0
  %v5862 = vadd.f32 0.0, %v5861
  %v5863 = vpop.f32.mrf.mxu0
  %5864 = vmatprep.mubr.f32.mxu0 0.0
  %5865 = vmatmul.mubr.f32.gmra.mxu0 %v5773
  %v5866 = vpop.f32.mrf.mxu0
  %v5867 = vadd.f32 0.0, %v5866
  %v5868 = vpop.f32.mrf.mxu0
  %5869 = vdwg.mxu0
  %v5870 = vadd.f32 %v5741, %v5842
  %v5871 = vadd.f32 %v5742, %v5847
  %v5872 = vadd.f32 %v5743, %v5852
  %v5873 = vadd.f32 %v5744, %v5857
  %v5874 = vadd.f32 %v5745, %v5862
  %v5875 = vadd.f32 %v5746, %v5867
  %v5876 = vld [vmem:[#allocation2 + $0x68] sm:$0xff]
  %v5877 = vld [vmem:[#allocation2 + $0x70] sm:$0xff]
  %v5878 = vld [vmem:[#allocation2 + $0x78] sm:$0xff]
  %v5879 = vld [vmem:[#allocation2 + $0x80] sm:$0xff]
  %v5880 = vld [vmem:[#allocation2 + $0x88] sm:$0xff]
  %v5881 = vld [vmem:[#allocation2 + $0x90] sm:$0xff]
  %v5882 = vld [vmem:[%s2413] sm:$0xff]
  %v5883 = vld [vmem:[%s2413 + $0x8] sm:$0xff]
  %v5884 = vld [vmem:[%s2413 + $0x10] sm:$0xff]
  %v5885 = vld [vmem:[%s2413 + $0x18] sm:$0xff]
  %v5887 = vsel %vm727, %v5876, 0
  %v5890 = vsel %vm727, %v5877, 0
  %v5893 = vsel %vm727, %v5878, 0
  %v5896 = vsel %vm727, %v5879, 0
  %v5899 = vsel %vm727, %v5880, 0
  %v5902 = vsel %vm727, %v5881, 0
  %5904 = vmatprep.subr.mxu0 0.0
  %5905 = vmatpush1.msra.mxu0 0.0
  %5906 = vmatprep.subr.mxu0 0.0
  %5907 = vmatpush1.msra.mxu0 0.0
  %5908 = vmatprep.subr.mxu0 0.0
  %5909 = vmatpush1.msra.mxu0 0.0
  %5910 = vmatprep.subr.mxu0 0.0
  %5911 = vmatpush1.msra.mxu0 0.0
  %5912 = vmatprep.subr.mxu0 0.0
  %5913 = vmatpush1.msra.mxu0 0.0
  %5914 = vmatprep.subr.mxu0 0.0
  %5915 = vmatpush1.msra.mxu0 0.0
  %5916 = vmatprep.subr.mxu0 0.0
  %5917 = vmatpush1.msra.mxu0 0.0
  %5918 = vmatprep.subr.mxu0 0.0
  %5919 = vmatpush1.msra.mxu0 0.0
  %5920 = vmatprep.subr.mxu0 0.0
  %5921 = vmatpush1.msra.mxu0 0.0
  %5922 = vmatprep.subr.mxu0 0.0
  %5923 = vmatpush1.msra.mxu0 0.0
  %5924 = vmatprep.subr.mxu0 0.0
  %5925 = vmatpush1.msra.mxu0 0.0
  %5926 = vmatprep.subr.mxu0 0.0
  %5927 = vmatpush1.msra.mxu0 0.0
  %5928 = vmatprep.subr.mxu0 0.0
  %5929 = vmatpush1.msra.mxu0 %v5885
  %5930 = vmatprep.subr.mxu0 0.0
  %5931 = vmatpush1.msra.mxu0 %v5884
  %5932 = vmatprep.subr.mxu0 0.0
  %5933 = vmatpush1.msra.mxu0 %v5883
  %5934 = vmatprep.subr.mxu0 0.0
  %5935 = vmatpush1.msra.mxu0 %v5882
  %5936 = vmatprep.subr.mxu0 0.0
  %5937 = vmatpush2.msra.mxu0 0.0
  %5938 = vmatprep.subr.mxu0 0.0
  %5939 = vmatpush2.msra.mxu0 0.0
  %5940 = vmatprep.subr.mxu0 0.0
  %5941 = vmatpush2.msra.mxu0 0.0
  %5942 = vmatprep.subr.mxu0 0.0
  %5943 = vmatpush2.msra.mxu0 0.0
  %5944 = vmatprep.subr.mxu0 0.0
  %5945 = vmatpush2.msra.mxu0 0.0
  %5946 = vmatprep.subr.mxu0 0.0
  %5947 = vmatpush2.msra.mxu0 0.0
  %5948 = vmatprep.subr.mxu0 0.0
  %5949 = vmatpush2.msra.mxu0 0.0
  %5950 = vmatprep.subr.mxu0 0.0
  %5951 = vmatpush2.msra.mxu0 0.0
  %5952 = vmatprep.subr.mxu0 0.0
  %5953 = vmatpush2.msra.mxu0 0.0
  %5954 = vmatprep.subr.mxu0 0.0
  %5955 = vmatpush2.msra.mxu0 0.0
  %5956 = vmatprep.subr.mxu0 0.0
  %5957 = vmatpush2.msra.mxu0 0.0
  %5958 = vmatprep.subr.mxu0 0.0
  %5959 = vmatpush2.msra.mxu0 0.0
  %5960 = vmatprep.subr.mxu0 0.0
  %5961 = vmatpush2.msra.mxu0 0.0
  %5962 = vmatprep.subr.mxu0 0.0
  %5963 = vmatpush2.msra.mxu0 0.0
  %5964 = vmatprep.subr.mxu0 0.0
  %5965 = vmatpush2.msra.mxu0 0.0
  %5966 = vmatprep.subr.mxu0 0.0
  %5967 = vmatpush2.msra.mxu0 0.0
  %5968 = vmatprep.mubr.f32.mxu0 0.0
  %5969 = vmatmul.mubr.f32.gmra.mxu0 %v5887
  %v5970 = vpop.f32.mrf.mxu0
  %v5971 = vadd.f32 0.0, %v5970
  %v5972 = vpop.f32.mrf.mxu0
  %5973 = vmatprep.mubr.f32.mxu0 0.0
  %5974 = vmatmul.mubr.f32.gmra.mxu0 %v5890
  %v5975 = vpop.f32.mrf.mxu0
  %v5976 = vadd.f32 0.0, %v5975
  %v5977 = vpop.f32.mrf.mxu0
  %5978 = vmatprep.mubr.f32.mxu0 0.0
  %5979 = vmatmul.mubr.f32.gmra.mxu0 %v5893
  %v5980 = vpop.f32.mrf.mxu0
  %v5981 = vadd.f32 0.0, %v5980
  %v5982 = vpop.f32.mrf.mxu0
  %5983 = vmatprep.mubr.f32.mxu0 0.0
  %5984 = vmatmul.mubr.f32.gmra.mxu0 %v5896
  %v5985 = vpop.f32.mrf.mxu0
  %v5986 = vadd.f32 0.0, %v5985
  %v5987 = vpop.f32.mrf.mxu0
  %5988 = vmatprep.mubr.f32.mxu0 0.0
  %5989 = vmatmul.mubr.f32.gmra.mxu0 %v5899
  %v5990 = vpop.f32.mrf.mxu0
  %v5991 = vadd.f32 0.0, %v5990
  %v5992 = vpop.f32.mrf.mxu0
  %5993 = vmatprep.mubr.f32.mxu0 0.0
  %5994 = vmatmul.mubr.f32.gmra.mxu0 %v5902
  %v5995 = vpop.f32.mrf.mxu0
  %v5996 = vadd.f32 0.0, %v5995
  %v5997 = vpop.f32.mrf.mxu0
  %5998 = vdwg.mxu0
  %v5999 = vadd.f32 %v5870, %v5971
  %v6000 = vadd.f32 %v5871, %v5976
  %v6001 = vadd.f32 %v5872, %v5981
  %v6002 = vadd.f32 %v5873, %v5986
  %v6003 = vadd.f32 %v5874, %v5991
  %v6004 = vadd.f32 %v5875, %v5996
  %v6005 = vld [vmem:[#allocation2 + $0x70] sm:$0xff]
  %v6006 = vld [vmem:[#allocation2 + $0x78] sm:$0xff]
  %v6007 = vld [vmem:[#allocation2 + $0x80] sm:$0xff]
  %v6008 = vld [vmem:[#allocation2 + $0x88] sm:$0xff]
  %v6009 = vld [vmem:[#allocation2 + $0x90] sm:$0xff]
  %v6010 = vld [vmem:[#allocation2 + $0x98] sm:$0xff]
  %v6011 = vld [vmem:[%s2543] sm:$0xff]
  %v6012 = vld [vmem:[%s2543 + $0x8] sm:$0xff]
  %v6013 = vld [vmem:[%s2543 + $0x10] sm:$0xff]
  %v6014 = vld [vmem:[%s2543 + $0x18] sm:$0xff]
  %v6016 = vsel %vm727, %v6005, 0
  %v6019 = vsel %vm727, %v6006, 0
  %v6022 = vsel %vm727, %v6007, 0
  %v6025 = vsel %vm727, %v6008, 0
  %v6028 = vsel %vm727, %v6009, 0
  %v6031 = vsel %vm727, %v6010, 0
  %6033 = vmatprep.subr.mxu0 0.0
  %6034 = vmatpush1.msra.mxu0 0.0
  %6035 = vmatprep.subr.mxu0 0.0
  %6036 = vmatpush1.msra.mxu0 0.0
  %6037 = vmatprep.subr.mxu0 0.0
  %6038 = vmatpush1.msra.mxu0 0.0
  %6039 = vmatprep.subr.mxu0 0.0
  %6040 = vmatpush1.msra.mxu0 0.0
  %6041 = vmatprep.subr.mxu0 0.0
  %6042 = vmatpush1.msra.mxu0 0.0
  %6043 = vmatprep.subr.mxu0 0.0
  %6044 = vmatpush1.msra.mxu0 0.0
  %6045 = vmatprep.subr.mxu0 0.0
  %6046 = vmatpush1.msra.mxu0 0.0
  %6047 = vmatprep.subr.mxu0 0.0
  %6048 = vmatpush1.msra.mxu0 0.0
  %6049 = vmatprep.subr.mxu0 0.0
  %6050 = vmatpush1.msra.mxu0 0.0
  %6051 = vmatprep.subr.mxu0 0.0
  %6052 = vmatpush1.msra.mxu0 0.0
  %6053 = vmatprep.subr.mxu0 0.0
  %6054 = vmatpush1.msra.mxu0 0.0
  %6055 = vmatprep.subr.mxu0 0.0
  %6056 = vmatpush1.msra.mxu0 0.0
  %6057 = vmatprep.subr.mxu0 0.0
  %6058 = vmatpush1.msra.mxu0 %v6014
  %6059 = vmatprep.subr.mxu0 0.0
  %6060 = vmatpush1.msra.mxu0 %v6013
  %6061 = vmatprep.subr.mxu0 0.0
  %6062 = vmatpush1.msra.mxu0 %v6012
  %6063 = vmatprep.subr.mxu0 0.0
  %6064 = vmatpush1.msra.mxu0 %v6011
  %6065 = vmatprep.subr.mxu0 0.0
  %6066 = vmatpush2.msra.mxu0 0.0
  %6067 = vmatprep.subr.mxu0 0.0
  %6068 = vmatpush2.msra.mxu0 0.0
  %6069 = vmatprep.subr.mxu0 0.0
  %6070 = vmatpush2.msra.mxu0 0.0
  %6071 = vmatprep.subr.mxu0 0.0
  %6072 = vmatpush2.msra.mxu0 0.0
  %6073 = vmatprep.subr.mxu0 0.0
  %6074 = vmatpush2.msra.mxu0 0.0
  %6075 = vmatprep.subr.mxu0 0.0
  %6076 = vmatpush2.msra.mxu0 0.0
  %6077 = vmatprep.subr.mxu0 0.0
  %6078 = vmatpush2.msra.mxu0 0.0
  %6079 = vmatprep.subr.mxu0 0.0
  %6080 = vmatpush2.msra.mxu0 0.0
  %6081 = vmatprep.subr.mxu0 0.0
  %6082 = vmatpush2.msra.mxu0 0.0
  %6083 = vmatprep.subr.mxu0 0.0
  %6084 = vmatpush2.msra.mxu0 0.0
  %6085 = vmatprep.subr.mxu0 0.0
  %6086 = vmatpush2.msra.mxu0 0.0
  %6087 = vmatprep.subr.mxu0 0.0
  %6088 = vmatpush2.msra.mxu0 0.0
  %6089 = vmatprep.subr.mxu0 0.0
  %6090 = vmatpush2.msra.mxu0 0.0
  %6091 = vmatprep.subr.mxu0 0.0
  %6092 = vmatpush2.msra.mxu0 0.0
  %6093 = vmatprep.subr.mxu0 0.0
  %6094 = vmatpush2.msra.mxu0 0.0
  %6095 = vmatprep.subr.mxu0 0.0
  %6096 = vmatpush2.msra.mxu0 0.0
  %6097 = vmatprep.mubr.f32.mxu0 0.0
  %6098 = vmatmul.mubr.f32.gmra.mxu0 %v6016
  %v6099 = vpop.f32.mrf.mxu0
  %v6100 = vadd.f32 0.0, %v6099
  %v6101 = vpop.f32.mrf.mxu0
  %6102 = vmatprep.mubr.f32.mxu0 0.0
  %6103 = vmatmul.mubr.f32.gmra.mxu0 %v6019
  %v6104 = vpop.f32.mrf.mxu0
  %v6105 = vadd.f32 0.0, %v6104
  %v6106 = vpop.f32.mrf.mxu0
  %6107 = vmatprep.mubr.f32.mxu0 0.0
  %6108 = vmatmul.mubr.f32.gmra.mxu0 %v6022
  %v6109 = vpop.f32.mrf.mxu0
  %v6110 = vadd.f32 0.0, %v6109
  %v6111 = vpop.f32.mrf.mxu0
  %6112 = vmatprep.mubr.f32.mxu0 0.0
  %6113 = vmatmul.mubr.f32.gmra.mxu0 %v6025
  %v6114 = vpop.f32.mrf.mxu0
  %v6115 = vadd.f32 0.0, %v6114
  %v6116 = vpop.f32.mrf.mxu0
  %6117 = vmatprep.mubr.f32.mxu0 0.0
  %6118 = vmatmul.mubr.f32.gmra.mxu0 %v6028
  %v6119 = vpop.f32.mrf.mxu0
  %v6120 = vadd.f32 0.0, %v6119
  %v6121 = vpop.f32.mrf.mxu0
  %6122 = vmatprep.mubr.f32.mxu0 0.0
  %6123 = vmatmul.mubr.f32.gmra.mxu0 %v6031
  %v6124 = vpop.f32.mrf.mxu0
  %v6125 = vadd.f32 0.0, %v6124
  %v6126 = vpop.f32.mrf.mxu0
  %6127 = vdwg.mxu0
  %v6128 = vadd.f32 %v5999, %v6100
  %v6129 = vadd.f32 %v6000, %v6105
  %v6130 = vadd.f32 %v6001, %v6110
  %v6131 = vadd.f32 %v6002, %v6115
  %v6132 = vadd.f32 %v6003, %v6120
  %v6133 = vadd.f32 %v6004, %v6125
  %v6134 = vld [vmem:[#allocation2 + $0x78] sm:$0xff]
  %v6135 = vld [vmem:[#allocation2 + $0x80] sm:$0xff]
  %v6136 = vld [vmem:[#allocation2 + $0x88] sm:$0xff]
  %v6137 = vld [vmem:[#allocation2 + $0x90] sm:$0xff]
  %v6138 = vld [vmem:[#allocation2 + $0x98] sm:$0xff]
  %v6139 = vld [vmem:[#allocation2 + $0xa0] sm:$0xff]
  %v6140 = vld [vmem:[%s2673] sm:$0xff]
  %v6141 = vld [vmem:[%s2673 + $0x8] sm:$0xff]
  %v6142 = vld [vmem:[%s2673 + $0x10] sm:$0xff]
  %v6143 = vld [vmem:[%s2673 + $0x18] sm:$0xff]
  %v6145 = vsel %vm727, %v6134, 0
  %v6148 = vsel %vm727, %v6135, 0
  %v6151 = vsel %vm727, %v6136, 0
  %v6154 = vsel %vm727, %v6137, 0
  %v6157 = vsel %vm727, %v6138, 0
  %v6160 = vsel %vm727, %v6139, 0
  %6162 = vmatprep.subr.mxu0 0.0
  %6163 = vmatpush1.msra.mxu0 0.0
  %6164 = vmatprep.subr.mxu0 0.0
  %6165 = vmatpush1.msra.mxu0 0.0
  %6166 = vmatprep.subr.mxu0 0.0
  %6167 = vmatpush1.msra.mxu0 0.0
  %6168 = vmatprep.subr.mxu0 0.0
  %6169 = vmatpush1.msra.mxu0 0.0
  %6170 = vmatprep.subr.mxu0 0.0
  %6171 = vmatpush1.msra.mxu0 0.0
  %6172 = vmatprep.subr.mxu0 0.0
  %6173 = vmatpush1.msra.mxu0 0.0
  %6174 = vmatprep.subr.mxu0 0.0
  %6175 = vmatpush1.msra.mxu0 0.0
  %6176 = vmatprep.subr.mxu0 0.0
  %6177 = vmatpush1.msra.mxu0 0.0
  %6178 = vmatprep.subr.mxu0 0.0
  %6179 = vmatpush1.msra.mxu0 0.0
  %6180 = vmatprep.subr.mxu0 0.0
  %6181 = vmatpush1.msra.mxu0 0.0
  %6182 = vmatprep.subr.mxu0 0.0
  %6183 = vmatpush1.msra.mxu0 0.0
  %6184 = vmatprep.subr.mxu0 0.0
  %6185 = vmatpush1.msra.mxu0 0.0
  %6186 = vmatprep.subr.mxu0 0.0
  %6187 = vmatpush1.msra.mxu0 %v6143
  %6188 = vmatprep.subr.mxu0 0.0
  %6189 = vmatpush1.msra.mxu0 %v6142
  %6190 = vmatprep.subr.mxu0 0.0
  %6191 = vmatpush1.msra.mxu0 %v6141
  %6192 = vmatprep.subr.mxu0 0.0
  %6193 = vmatpush1.msra.mxu0 %v6140
  %6194 = vmatprep.subr.mxu0 0.0
  %6195 = vmatpush2.msra.mxu0 0.0
  %6196 = vmatprep.subr.mxu0 0.0
  %6197 = vmatpush2.msra.mxu0 0.0
  %6198 = vmatprep.subr.mxu0 0.0
  %6199 = vmatpush2.msra.mxu0 0.0
  %6200 = vmatprep.subr.mxu0 0.0
  %6201 = vmatpush2.msra.mxu0 0.0
  %6202 = vmatprep.subr.mxu0 0.0
  %6203 = vmatpush2.msra.mxu0 0.0
  %6204 = vmatprep.subr.mxu0 0.0
  %6205 = vmatpush2.msra.mxu0 0.0
  %6206 = vmatprep.subr.mxu0 0.0
  %6207 = vmatpush2.msra.mxu0 0.0
  %6208 = vmatprep.subr.mxu0 0.0
  %6209 = vmatpush2.msra.mxu0 0.0
  %6210 = vmatprep.subr.mxu0 0.0
  %6211 = vmatpush2.msra.mxu0 0.0
  %6212 = vmatprep.subr.mxu0 0.0
  %6213 = vmatpush2.msra.mxu0 0.0
  %6214 = vmatprep.subr.mxu0 0.0
  %6215 = vmatpush2.msra.mxu0 0.0
  %6216 = vmatprep.subr.mxu0 0.0
  %6217 = vmatpush2.msra.mxu0 0.0
  %6218 = vmatprep.subr.mxu0 0.0
  %6219 = vmatpush2.msra.mxu0 0.0
  %6220 = vmatprep.subr.mxu0 0.0
  %6221 = vmatpush2.msra.mxu0 0.0
  %6222 = vmatprep.subr.mxu0 0.0
  %6223 = vmatpush2.msra.mxu0 0.0
  %6224 = vmatprep.subr.mxu0 0.0
  %6225 = vmatpush2.msra.mxu0 0.0
  %6226 = vmatprep.mubr.f32.mxu0 0.0
  %6227 = vmatmul.mubr.f32.gmra.mxu0 %v6145
  %v6228 = vpop.f32.mrf.mxu0
  %v6229 = vadd.f32 0.0, %v6228
  %v6230 = vpop.f32.mrf.mxu0
  %6231 = vmatprep.mubr.f32.mxu0 0.0
  %6232 = vmatmul.mubr.f32.gmra.mxu0 %v6148
  %v6233 = vpop.f32.mrf.mxu0
  %v6234 = vadd.f32 0.0, %v6233
  %v6235 = vpop.f32.mrf.mxu0
  %6236 = vmatprep.mubr.f32.mxu0 0.0
  %6237 = vmatmul.mubr.f32.gmra.mxu0 %v6151
  %v6238 = vpop.f32.mrf.mxu0
  %v6239 = vadd.f32 0.0, %v6238
  %v6240 = vpop.f32.mrf.mxu0
  %6241 = vmatprep.mubr.f32.mxu0 0.0
  %6242 = vmatmul.mubr.f32.gmra.mxu0 %v6154
  %v6243 = vpop.f32.mrf.mxu0
  %v6244 = vadd.f32 0.0, %v6243
  %v6245 = vpop.f32.mrf.mxu0
  %6246 = vmatprep.mubr.f32.mxu0 0.0
  %6247 = vmatmul.mubr.f32.gmra.mxu0 %v6157
  %v6248 = vpop.f32.mrf.mxu0
  %v6249 = vadd.f32 0.0, %v6248
  %v6250 = vpop.f32.mrf.mxu0
  %6251 = vmatprep.mubr.f32.mxu0 0.0
  %6252 = vmatmul.mubr.f32.gmra.mxu0 %v6160
  %v6253 = vpop.f32.mrf.mxu0
  %v6254 = vadd.f32 0.0, %v6253
  %v6255 = vpop.f32.mrf.mxu0
  %6256 = vdwg.mxu0
  %v6257 = vadd.f32 %v6128, %v6229
  %v6258 = vadd.f32 %v6129, %v6234
  %v6259 = vadd.f32 %v6130, %v6239
  %v6260 = vadd.f32 %v6131, %v6244
  %v6261 = vadd.f32 %v6132, %v6249
  %v6262 = vadd.f32 %v6133, %v6254
  %v6263 = vld [vmem:[%s6] sm:$0x1]
  %v6265 = vlaneseq
  %v6266 = vshrl.u32 %v6265, 7
  %v6267 = vsub.s32 0, %v6266
  %v6268 = vrot.slane %v6263, %v6267
  %v6270 = vadd.f32 %v6257, %v6268
  %v6271 = vadd.f32 %v6258, %v6268
  %v6272 = vadd.f32 %v6259, %v6268
  %v6273 = vadd.f32 %v6260, %v6268
  %v6274 = vadd.f32 %v6261, %v6268
  %v6275 = vadd.f32 %v6262, %v6268
  %v6276 = vmax.f32 %v6270, %v6271
  %vm6277 = vcmp.ge.f32.partialorder %v6276, 0.0
  %v6278 = vmul.f32 %v6276, 0.01
  %v6279 = vsel %vm6277, %v6276, %v6278
  %v6280 = vmax.f32 %v6272, %v6273
  %vm6281 = vcmp.ge.f32.partialorder %v6280, 0.0
  %v6282 = vmul.f32 %v6280, 0.01
  %v6283 = vsel %vm6281, %v6280, %v6282
  %v6284 = vmax.f32 %v6274, %v6275
  %vm6285 = vcmp.ge.f32.partialorder %v6284, 0.0
  %v6286 = vmul.f32 %v6284, 0.01
  %v6287 = vsel %vm6285, %v6284, %v6286
  %s6288 = scalar_lea.vmem %s7, 96
  %v6289 = vld [vmem:[%s6288] sm:$0xff]
  %v6290 = vld [vmem:[%s6288 + $0x8] sm:$0xff]
  %v6291 = vld [vmem:[%s6288 + $0x10] sm:$0xff]
  %v6292 = vld [vmem:[%s6288 + $0x18] sm:$0xff]
  %v6293 = vld [vmem:[%s6288 + $0x20] sm:$0xff]
  %v6294 = vld [vmem:[%s6288 + $0x28] sm:$0xff]
  %v6295 = vld [vmem:[%s6288 + $0x30] sm:$0xff]
  %v6296 = vld [vmem:[%s6288 + $0x38] sm:$0xff]
  %v6297 = vld [vmem:[%s6288 + $0x40] sm:$0xff]
  %v6298 = vld [vmem:[%s6288 + $0x48] sm:$0xff]
  %v6299 = vld [vmem:[%s6288 + $0x50] sm:$0xff]
  %v6300 = vld [vmem:[%s6288 + $0x58] sm:$0xff]
  %s6301 = scalar_lea.vmem %s8, 144
  %v6302 = vld [vmem:[%s6301] sm:$0xff]
  %v6303 = vld [vmem:[%s6301 + $0x8] sm:$0xff]
  %v6304 = vld [vmem:[%s6301 + $0x10] sm:$0xff]
  %v6305 = vld [vmem:[%s6301 + $0x18] sm:$0xff]
  %v6306 = vld [vmem:[%s6301 + $0x20] sm:$0xff]
  %v6307 = vld [vmem:[%s6301 + $0x28] sm:$0xff]
  %v6308 = vld [vmem:[%s6301 + $0x30] sm:$0xff]
  %v6309 = vld [vmem:[%s6301 + $0x38] sm:$0xff]
  %v6310 = vld [vmem:[%s6301 + $0x40] sm:$0xff]
  %v6311 = vld [vmem:[%s6301 + $0x48] sm:$0xff]
  %v6312 = vld [vmem:[%s6301 + $0x50] sm:$0xff]
  %v6313 = vld [vmem:[%s6301 + $0x58] sm:$0xff]
  %v6314 = vld [vmem:[%s6301 + $0x60] sm:$0xff]
  %v6315 = vld [vmem:[%s6301 + $0x68] sm:$0xff]
  %v6316 = vld [vmem:[%s6301 + $0x70] sm:$0xff]
  %v6317 = vld [vmem:[%s6301 + $0x78] sm:$0xff]
  %v6318 = vld [vmem:[%s6301 + $0x80] sm:$0xff]
  %v6319 = vld [vmem:[%s6301 + $0x88] sm:$0xff]
  %s6320 = scalar_lea.vmem %s9, 3
  %v6321 = vld [vmem:[%s6320] sm:$0x7]
  %s6322 = scalar_lea.vmem %s10, 1
  %v6323 = vld [vmem:[%s6322] sm:$0x1]
  %v6325 = vlaneseq
  %v6326 = vshrl.u32 %v6325, 7
  %v6327 = vsub.s32 0, %v6326
  %v6328 = vrot.slane %v6321, %v6327
  %v6329 = vlaneseq
  %v6330 = vshrl.u32 %v6329, 7
  %v6331 = vsub.s32 1, %v6330
  %v6332 = vrot.slane %v6321, %v6331
  %v6333 = vlaneseq
  %v6334 = vshrl.u32 %v6333, 7
  %v6335 = vsub.s32 2, %v6334
  %v6336 = vrot.slane %v6321, %v6335
  %v6341 = vsel %vm727, %v6279, 0
  %v6344 = vsel %vm727, %v6283, 0
  %v6347 = vsel %vm727, %v6287, 0
  %6349 = vmatprep.subr.mxu0 0.0
  %6350 = vmatpush1.msra.mxu0 0.0
  %6351 = vmatprep.subr.mxu0 0.0
  %6352 = vmatpush1.msra.mxu0 0.0
  %6353 = vmatprep.subr.mxu0 0.0
  %6354 = vmatpush1.msra.mxu0 0.0
  %6355 = vmatprep.subr.mxu0 0.0
  %6356 = vmatpush1.msra.mxu0 0.0
  %6357 = vmatprep.subr.mxu0 0.0
  %6358 = vmatpush1.msra.mxu0 0.0
  %6359 = vmatprep.subr.mxu0 0.0
  %6360 = vmatpush1.msra.mxu0 0.0
  %6361 = vmatprep.subr.mxu0 0.0
  %6362 = vmatpush1.msra.mxu0 0.0
  %6363 = vmatprep.subr.mxu0 0.0
  %6364 = vmatpush1.msra.mxu0 0.0
  %6365 = vmatprep.subr.mxu0 0.0
  %6366 = vmatpush1.msra.mxu0 0.0
  %6367 = vmatprep.subr.mxu0 0.0
  %6368 = vmatpush1.msra.mxu0 0.0
  %6369 = vmatprep.subr.mxu0 0.0
  %6370 = vmatpush1.msra.mxu0 0.0
  %6371 = vmatprep.subr.mxu0 0.0
  %6372 = vmatpush1.msra.mxu0 0.0
  %6373 = vmatprep.subr.mxu0 %v6299
  %6374 = vmatpush1.msra.mxu0 %v6298
  %6375 = vmatprep.subr.mxu0 %v6296
  %6376 = vmatpush1.msra.mxu0 %v6295
  %6377 = vmatprep.subr.mxu0 %v6293
  %6378 = vmatpush1.msra.mxu0 %v6292
  %6379 = vmatprep.subr.mxu0 %v6290
  %6380 = vmatpush1.msra.mxu0 %v6289
  %6381 = vmatprep.subr.mxu0 0.0
  %6382 = vmatpush2.msra.mxu0 0.0
  %6383 = vmatprep.subr.mxu0 0.0
  %6384 = vmatpush2.msra.mxu0 0.0
  %6385 = vmatprep.subr.mxu0 0.0
  %6386 = vmatpush2.msra.mxu0 0.0
  %6387 = vmatprep.subr.mxu0 0.0
  %6388 = vmatpush2.msra.mxu0 0.0
  %6389 = vmatprep.subr.mxu0 0.0
  %6390 = vmatpush2.msra.mxu0 0.0
  %6391 = vmatprep.subr.mxu0 0.0
  %6392 = vmatpush2.msra.mxu0 0.0
  %6393 = vmatprep.subr.mxu0 0.0
  %6394 = vmatpush2.msra.mxu0 0.0
  %6395 = vmatprep.subr.mxu0 0.0
  %6396 = vmatpush2.msra.mxu0 0.0
  %6397 = vmatprep.subr.mxu0 0.0
  %6398 = vmatpush2.msra.mxu0 0.0
  %6399 = vmatprep.subr.mxu0 0.0
  %6400 = vmatpush2.msra.mxu0 0.0
  %6401 = vmatprep.subr.mxu0 0.0
  %6402 = vmatpush2.msra.mxu0 0.0
  %6403 = vmatprep.subr.mxu0 0.0
  %6404 = vmatpush2.msra.mxu0 0.0
  %6405 = vmatprep.subr.mxu0 0.0
  %6406 = vmatpush2.msra.mxu0 0.0
  %6407 = vmatprep.subr.mxu0 0.0
  %6408 = vmatpush2.msra.mxu0 0.0
  %6409 = vmatprep.subr.mxu0 0.0
  %6410 = vmatpush2.msra.mxu0 0.0
  %6411 = vmatprep.subr.mxu0 0.0
  %6412 = vmatpush2.msra.mxu0 0.0
  %6413 = vmatprep.mubr.f32.mxu0 0.0
  %6414 = vmatmul.mubr.f32.gmra.mxu0 %v6341
  %v6415 = vpop.f32.mrf.mxu0
  %v6416 = vadd.f32 %v6328, %v6415
  %v6417 = vpop.f32.mrf.mxu0
  %v6418 = vadd.f32 %v6332, %v6417
  %6419 = vmatprep.mubr.f32.mxu0 0.0
  %6420 = vmatmul.mubr.f32.gmra.mxu0 %v6344
  %v6421 = vpop.f32.mrf.mxu0
  %v6422 = vadd.f32 %v6328, %v6421
  %v6423 = vpop.f32.mrf.mxu0
  %v6424 = vadd.f32 %v6332, %v6423
  %6425 = vmatprep.mubr.f32.mxu0 0.0
  %6426 = vmatmul.mubr.f32.gmra.mxu0 %v6347
  %v6427 = vpop.f32.mrf.mxu0
  %v6428 = vadd.f32 %v6328, %v6427
  %v6429 = vpop.f32.mrf.mxu0
  %v6430 = vadd.f32 %v6332, %v6429
  %6431 = vdwg.mxu0
  %6432 = vmatprep.subr.mxu0 0.0
  %6433 = vmatpush1.msra.mxu0 0.0
  %6434 = vmatprep.subr.mxu0 0.0
  %6435 = vmatpush1.msra.mxu0 0.0
  %6436 = vmatprep.subr.mxu0 0.0
  %6437 = vmatpush1.msra.mxu0 0.0
  %6438 = vmatprep.subr.mxu0 0.0
  %6439 = vmatpush1.msra.mxu0 0.0
  %6440 = vmatprep.subr.mxu0 0.0
  %6441 = vmatpush1.msra.mxu0 0.0
  %6442 = vmatprep.subr.mxu0 0.0
  %6443 = vmatpush1.msra.mxu0 0.0
  %6444 = vmatprep.subr.mxu0 0.0
  %6445 = vmatpush1.msra.mxu0 0.0
  %6446 = vmatprep.subr.mxu0 0.0
  %6447 = vmatpush1.msra.mxu0 0.0
  %6448 = vmatprep.subr.mxu0 0.0
  %6449 = vmatpush1.msra.mxu0 0.0
  %6450 = vmatprep.subr.mxu0 0.0
  %6451 = vmatpush1.msra.mxu0 0.0
  %6452 = vmatprep.subr.mxu0 0.0
  %6453 = vmatpush1.msra.mxu0 0.0
  %6454 = vmatprep.subr.mxu0 0.0
  %6455 = vmatpush1.msra.mxu0 0.0
  %6456 = vmatprep.subr.mxu0 0.0
  %6457 = vmatpush1.msra.mxu0 %v6300
  %6458 = vmatprep.subr.mxu0 0.0
  %6459 = vmatpush1.msra.mxu0 %v6297
  %6460 = vmatprep.subr.mxu0 0.0
  %6461 = vmatpush1.msra.mxu0 %v6294
  %6462 = vmatprep.subr.mxu0 0.0
  %6463 = vmatpush1.msra.mxu0 %v6291
  %6464 = vmatprep.subr.mxu0 0.0
  %6465 = vmatpush2.msra.mxu0 0.0
  %6466 = vmatprep.subr.mxu0 0.0
  %6467 = vmatpush2.msra.mxu0 0.0
  %6468 = vmatprep.subr.mxu0 0.0
  %6469 = vmatpush2.msra.mxu0 0.0
  %6470 = vmatprep.subr.mxu0 0.0
  %6471 = vmatpush2.msra.mxu0 0.0
  %6472 = vmatprep.subr.mxu0 0.0
  %6473 = vmatpush2.msra.mxu0 0.0
  %6474 = vmatprep.subr.mxu0 0.0
  %6475 = vmatpush2.msra.mxu0 0.0
  %6476 = vmatprep.subr.mxu0 0.0
  %6477 = vmatpush2.msra.mxu0 0.0
  %6478 = vmatprep.subr.mxu0 0.0
  %6479 = vmatpush2.msra.mxu0 0.0
  %6480 = vmatprep.subr.mxu0 0.0
  %6481 = vmatpush2.msra.mxu0 0.0
  %6482 = vmatprep.subr.mxu0 0.0
  %6483 = vmatpush2.msra.mxu0 0.0
  %6484 = vmatprep.subr.mxu0 0.0
  %6485 = vmatpush2.msra.mxu0 0.0
  %6486 = vmatprep.subr.mxu0 0.0
  %6487 = vmatpush2.msra.mxu0 0.0
  %6488 = vmatprep.subr.mxu0 0.0
  %6489 = vmatpush2.msra.mxu0 0.0
  %6490 = vmatprep.subr.mxu0 0.0
  %6491 = vmatpush2.msra.mxu0 0.0
  %6492 = vmatprep.subr.mxu0 0.0
  %6493 = vmatpush2.msra.mxu0 0.0
  %6494 = vmatprep.subr.mxu0 0.0
  %6495 = vmatpush2.msra.mxu0 0.0
  %6496 = vmatprep.mubr.f32.mxu0 0.0
  %6497 = vmatmul.mubr.f32.gmra.mxu0 %v6341
  %v6498 = vpop.f32.mrf.mxu0
  %v6499 = vadd.f32 %v6336, %v6498
  %v6500 = vpop.f32.mrf.mxu0
  %6501 = vmatprep.mubr.f32.mxu0 0.0
  %6502 = vmatmul.mubr.f32.gmra.mxu0 %v6344
  %v6503 = vpop.f32.mrf.mxu0
  %v6504 = vadd.f32 %v6336, %v6503
  %v6505 = vpop.f32.mrf.mxu0
  %6506 = vmatprep.mubr.f32.mxu0 0.0
  %6507 = vmatmul.mubr.f32.gmra.mxu0 %v6347
  %v6508 = vpop.f32.mrf.mxu0
  %v6509 = vadd.f32 %v6336, %v6508
  %v6510 = vpop.f32.mrf.mxu0
  %6511 = vdwg.mxu0
  %6512 = vmatprep.subr.mxu0 0.0
  %6513 = vmatpush1.msra.mxu0 0.0
  %6514 = vmatprep.subr.mxu0 0.0
  %6515 = vmatpush1.msra.mxu0 0.0
  %6516 = vmatprep.subr.mxu0 0.0
  %6517 = vmatpush1.msra.mxu0 0.0
  %6518 = vmatprep.subr.mxu0 0.0
  %6519 = vmatpush1.msra.mxu0 0.0
  %6520 = vmatprep.subr.mxu0 0.0
  %6521 = vmatpush1.msra.mxu0 0.0
  %6522 = vmatprep.subr.mxu0 0.0
  %6523 = vmatpush1.msra.mxu0 0.0
  %6524 = vmatprep.subr.mxu0 0.0
  %6525 = vmatpush1.msra.mxu0 0.0
  %6526 = vmatprep.subr.mxu0 0.0
  %6527 = vmatpush1.msra.mxu0 0.0
  %6528 = vmatprep.subr.mxu0 0.0
  %6529 = vmatpush1.msra.mxu0 0.0
  %6530 = vmatprep.subr.mxu0 0.0
  %6531 = vmatpush1.msra.mxu0 0.0
  %6532 = vmatprep.subr.mxu0 %v6318
  %6533 = vmatpush1.msra.mxu0 %v6317
  %6534 = vmatprep.subr.mxu0 %v6315
  %6535 = vmatpush1.msra.mxu0 %v6314
  %6536 = vmatprep.subr.mxu0 %v6312
  %6537 = vmatpush1.msra.mxu0 %v6311
  %6538 = vmatprep.subr.mxu0 %v6309
  %6539 = vmatpush1.msra.mxu0 %v6308
  %6540 = vmatprep.subr.mxu0 %v6306
  %6541 = vmatpush1.msra.mxu0 %v6305
  %6542 = vmatprep.subr.mxu0 %v6303
  %6543 = vmatpush1.msra.mxu0 %v6302
  %6544 = vmatprep.subr.mxu0 0.0
  %6545 = vmatpush2.msra.mxu0 0.0
  %6546 = vmatprep.subr.mxu0 0.0
  %6547 = vmatpush2.msra.mxu0 0.0
  %6548 = vmatprep.subr.mxu0 0.0
  %6549 = vmatpush2.msra.mxu0 0.0
  %6550 = vmatprep.subr.mxu0 0.0
  %6551 = vmatpush2.msra.mxu0 0.0
  %6552 = vmatprep.subr.mxu0 0.0
  %6553 = vmatpush2.msra.mxu0 0.0
  %6554 = vmatprep.subr.mxu0 0.0
  %6555 = vmatpush2.msra.mxu0 0.0
  %6556 = vmatprep.subr.mxu0 0.0
  %6557 = vmatpush2.msra.mxu0 0.0
  %6558 = vmatprep.subr.mxu0 0.0
  %6559 = vmatpush2.msra.mxu0 0.0
  %6560 = vmatprep.subr.mxu0 0.0
  %6561 = vmatpush2.msra.mxu0 0.0
  %6562 = vmatprep.subr.mxu0 0.0
  %6563 = vmatpush2.msra.mxu0 0.0
  %6564 = vmatprep.subr.mxu0 0.0
  %6565 = vmatpush2.msra.mxu0 0.0
  %6566 = vmatprep.subr.mxu0 0.0
  %6567 = vmatpush2.msra.mxu0 0.0
  %6568 = vmatprep.subr.mxu0 0.0
  %6569 = vmatpush2.msra.mxu0 0.0
  %6570 = vmatprep.subr.mxu0 0.0
  %6571 = vmatpush2.msra.mxu0 0.0
  %6572 = vmatprep.subr.mxu0 0.0
  %6573 = vmatpush2.msra.mxu0 0.0
  %6574 = vmatprep.subr.mxu0 0.0
  %6575 = vmatpush2.msra.mxu0 0.0
  %6576 = vmatprep.mubr.f32.mxu0 0.0
  %6577 = vmatmul.mubr.f32.gmra.mxu0 %v3044
  %v6578 = vpop.f32.mrf.mxu0
  %v6579 = vadd.f32 0.0, %v6578
  %v6580 = vpop.f32.mrf.mxu0
  %v6581 = vadd.f32 0.0, %v6580
  %6582 = vdwg.mxu0
  %6583 = vmatprep.subr.mxu0 0.0
  %6584 = vmatpush1.msra.mxu0 0.0
  %6585 = vmatprep.subr.mxu0 0.0
  %6586 = vmatpush1.msra.mxu0 0.0
  %6587 = vmatprep.subr.mxu0 0.0
  %6588 = vmatpush1.msra.mxu0 0.0
  %6589 = vmatprep.subr.mxu0 0.0
  %6590 = vmatpush1.msra.mxu0 0.0
  %6591 = vmatprep.subr.mxu0 0.0
  %6592 = vmatpush1.msra.mxu0 0.0
  %6593 = vmatprep.subr.mxu0 0.0
  %6594 = vmatpush1.msra.mxu0 0.0
  %6595 = vmatprep.subr.mxu0 0.0
  %6596 = vmatpush1.msra.mxu0 0.0
  %6597 = vmatprep.subr.mxu0 0.0
  %6598 = vmatpush1.msra.mxu0 0.0
  %6599 = vmatprep.subr.mxu0 0.0
  %6600 = vmatpush1.msra.mxu0 0.0
  %6601 = vmatprep.subr.mxu0 0.0
  %6602 = vmatpush1.msra.mxu0 0.0
  %6603 = vmatprep.subr.mxu0 0.0
  %6604 = vmatpush1.msra.mxu0 %v6319
  %6605 = vmatprep.subr.mxu0 0.0
  %6606 = vmatpush1.msra.mxu0 %v6316
  %6607 = vmatprep.subr.mxu0 0.0
  %6608 = vmatpush1.msra.mxu0 %v6313
  %6609 = vmatprep.subr.mxu0 0.0
  %6610 = vmatpush1.msra.mxu0 %v6310
  %6611 = vmatprep.subr.mxu0 0.0
  %6612 = vmatpush1.msra.mxu0 %v6307
  %6613 = vmatprep.subr.mxu0 0.0
  %6614 = vmatpush1.msra.mxu0 %v6304
  %6615 = vmatprep.subr.mxu0 0.0
  %6616 = vmatpush2.msra.mxu0 0.0
  %6617 = vmatprep.subr.mxu0 0.0
  %6618 = vmatpush2.msra.mxu0 0.0
  %6619 = vmatprep.subr.mxu0 0.0
  %6620 = vmatpush2.msra.mxu0 0.0
  %6621 = vmatprep.subr.mxu0 0.0
  %6622 = vmatpush2.msra.mxu0 0.0
  %6623 = vmatprep.subr.mxu0 0.0
  %6624 = vmatpush2.msra.mxu0 0.0
  %6625 = vmatprep.subr.mxu0 0.0
  %6626 = vmatpush2.msra.mxu0 0.0
  %6627 = vmatprep.subr.mxu0 0.0
  %6628 = vmatpush2.msra.mxu0 0.0
  %6629 = vmatprep.subr.mxu0 0.0
  %6630 = vmatpush2.msra.mxu0 0.0
  %6631 = vmatprep.subr.mxu0 0.0
  %6632 = vmatpush2.msra.mxu0 0.0
  %6633 = vmatprep.subr.mxu0 0.0
  %6634 = vmatpush2.msra.mxu0 0.0
  %6635 = vmatprep.subr.mxu0 0.0
  %6636 = vmatpush2.msra.mxu0 0.0
  %6637 = vmatprep.subr.mxu0 0.0
  %6638 = vmatpush2.msra.mxu0 0.0
  %6639 = vmatprep.subr.mxu0 0.0
  %6640 = vmatpush2.msra.mxu0 0.0
  %6641 = vmatprep.subr.mxu0 0.0
  %6642 = vmatpush2.msra.mxu0 0.0
  %6643 = vmatprep.subr.mxu0 0.0
  %6644 = vmatpush2.msra.mxu0 0.0
  %6645 = vmatprep.subr.mxu0 0.0
  %6646 = vmatpush2.msra.mxu0 0.0
  %6647 = vmatprep.mubr.f32.mxu0 0.0
  %6648 = vmatmul.mubr.f32.gmra.mxu0 %v3044
  %v6649 = vpop.f32.mrf.mxu0
  %v6650 = vadd.f32 0.0, %v6649
  %v6651 = vpop.f32.mrf.mxu0
  %6652 = vdwg.mxu0
  %v6653 = vadd.f32 %v6416, %v6579
  %v6654 = vxor.u32 %v6653, 2147483648
  %v6655 = vmul.f32 %v6654, 1.442695
  %v6656 = vpow.pop %v6655
  %v6657 = vadd.f32 %v6656, 1.0
  %v6658 = vrcp.pop %v6657
  %v6659 = vmul.f32 1.0, %v6658
  %v6660 = vadd.f32 %v6418, %v6581
  %v6661 = vxor.u32 %v6660, 2147483648
  %v6662 = vmul.f32 %v6661, 1.442695
  %v6663 = vpow.pop %v6662
  %v6664 = vadd.f32 %v6663, 1.0
  %v6665 = vrcp.pop %v6664
  %v6666 = vmul.f32 1.0, %v6665
  %v6668 = vlaneseq
  %v6669 = vshrl.u32 %v6668, 7
  %v6670 = vsub.s32 0, %v6669
  %v6671 = vrot.slane %v6323, %v6670
  %v6673 = vadd.f32 %v6650, %v6671
  %v6674 = vmul.f32 %v6659, %v6673
  %v6675 = vadd.f32 %v6499, %v6674
  %v6676 = vtanh.pop %v6675
  %v6677 = vsub.f32 1.0, %v6666
  %v6678 = vmul.f32 %v6677, %v6676
  %v6679 = vmul.f32 %v6666, 0.0
  %v6680 = vadd.f32 %v6678, %v6679
  %v6682 = vsel %vm3042, %v6680, 0
  %6684 = vmatprep.subr.mxu0 0.0
  %6685 = vmatpush1.msra.mxu0 0.0
  %6686 = vmatprep.subr.mxu0 0.0
  %6687 = vmatpush1.msra.mxu0 0.0
  %6688 = vmatprep.subr.mxu0 0.0
  %6689 = vmatpush1.msra.mxu0 0.0
  %6690 = vmatprep.subr.mxu0 0.0
  %6691 = vmatpush1.msra.mxu0 0.0
  %6692 = vmatprep.subr.mxu0 0.0
  %6693 = vmatpush1.msra.mxu0 0.0
  %6694 = vmatprep.subr.mxu0 0.0
  %6695 = vmatpush1.msra.mxu0 0.0
  %6696 = vmatprep.subr.mxu0 0.0
  %6697 = vmatpush1.msra.mxu0 0.0
  %6698 = vmatprep.subr.mxu0 0.0
  %6699 = vmatpush1.msra.mxu0 0.0
  %6700 = vmatprep.subr.mxu0 0.0
  %6701 = vmatpush1.msra.mxu0 0.0
  %6702 = vmatprep.subr.mxu0 0.0
  %6703 = vmatpush1.msra.mxu0 0.0
  %6704 = vmatprep.subr.mxu0 %v6318
  %6705 = vmatpush1.msra.mxu0 %v6317
  %6706 = vmatprep.subr.mxu0 %v6315
  %6707 = vmatpush1.msra.mxu0 %v6314
  %6708 = vmatprep.subr.mxu0 %v6312
  %6709 = vmatpush1.msra.mxu0 %v6311
  %6710 = vmatprep.subr.mxu0 %v6309
  %6711 = vmatpush1.msra.mxu0 %v6308
  %6712 = vmatprep.subr.mxu0 %v6306
  %6713 = vmatpush1.msra.mxu0 %v6305
  %6714 = vmatprep.subr.mxu0 %v6303
  %6715 = vmatpush1.msra.mxu0 %v6302
  %6716 = vmatprep.subr.mxu0 0.0
  %6717 = vmatpush2.msra.mxu0 0.0
  %6718 = vmatprep.subr.mxu0 0.0
  %6719 = vmatpush2.msra.mxu0 0.0
  %6720 = vmatprep.subr.mxu0 0.0
  %6721 = vmatpush2.msra.mxu0 0.0
  %6722 = vmatprep.subr.mxu0 0.0
  %6723 = vmatpush2.msra.mxu0 0.0
  %6724 = vmatprep.subr.mxu0 0.0
  %6725 = vmatpush2.msra.mxu0 0.0
  %6726 = vmatprep.subr.mxu0 0.0
  %6727 = vmatpush2.msra.mxu0 0.0
  %6728 = vmatprep.subr.mxu0 0.0
  %6729 = vmatpush2.msra.mxu0 0.0
  %6730 = vmatprep.subr.mxu0 0.0
  %6731 = vmatpush2.msra.mxu0 0.0
  %6732 = vmatprep.subr.mxu0 0.0
  %6733 = vmatpush2.msra.mxu0 0.0
  %6734 = vmatprep.subr.mxu0 0.0
  %6735 = vmatpush2.msra.mxu0 0.0
  %6736 = vmatprep.subr.mxu0 0.0
  %6737 = vmatpush2.msra.mxu0 0.0
  %6738 = vmatprep.subr.mxu0 0.0
  %6739 = vmatpush2.msra.mxu0 0.0
  %6740 = vmatprep.subr.mxu0 0.0
  %6741 = vmatpush2.msra.mxu0 0.0
  %6742 = vmatprep.subr.mxu0 0.0
  %6743 = vmatpush2.msra.mxu0 0.0
  %6744 = vmatprep.subr.mxu0 0.0
  %6745 = vmatpush2.msra.mxu0 0.0
  %6746 = vmatprep.subr.mxu0 0.0
  %6747 = vmatpush2.msra.mxu0 0.0
  %6748 = vmatprep.mubr.f32.mxu0 0.0
  %6749 = vmatmul.mubr.f32.gmra.mxu0 %v6682
  %v6750 = vpop.f32.mrf.mxu0
  %v6751 = vadd.f32 0.0, %v6750
  %v6752 = vpop.f32.mrf.mxu0
  %v6753 = vadd.f32 0.0, %v6752
  %6754 = vdwg.mxu0
  %6755 = vmatprep.subr.mxu0 0.0
  %6756 = vmatpush1.msra.mxu0 0.0
  %6757 = vmatprep.subr.mxu0 0.0
  %6758 = vmatpush1.msra.mxu0 0.0
  %6759 = vmatprep.subr.mxu0 0.0
  %6760 = vmatpush1.msra.mxu0 0.0
  %6761 = vmatprep.subr.mxu0 0.0
  %6762 = vmatpush1.msra.mxu0 0.0
  %6763 = vmatprep.subr.mxu0 0.0
  %6764 = vmatpush1.msra.mxu0 0.0
  %6765 = vmatprep.subr.mxu0 0.0
  %6766 = vmatpush1.msra.mxu0 0.0
  %6767 = vmatprep.subr.mxu0 0.0
  %6768 = vmatpush1.msra.mxu0 0.0
  %6769 = vmatprep.subr.mxu0 0.0
  %6770 = vmatpush1.msra.mxu0 0.0
  %6771 = vmatprep.subr.mxu0 0.0
  %6772 = vmatpush1.msra.mxu0 0.0
  %6773 = vmatprep.subr.mxu0 0.0
  %6774 = vmatpush1.msra.mxu0 0.0
  %6775 = vmatprep.subr.mxu0 0.0
  %6776 = vmatpush1.msra.mxu0 %v6319
  %6777 = vmatprep.subr.mxu0 0.0
  %6778 = vmatpush1.msra.mxu0 %v6316
  %6779 = vmatprep.subr.mxu0 0.0
  %6780 = vmatpush1.msra.mxu0 %v6313
  %6781 = vmatprep.subr.mxu0 0.0
  %6782 = vmatpush1.msra.mxu0 %v6310
  %6783 = vmatprep.subr.mxu0 0.0
  %6784 = vmatpush1.msra.mxu0 %v6307
  %6785 = vmatprep.subr.mxu0 0.0
  %6786 = vmatpush1.msra.mxu0 %v6304
  %6787 = vmatprep.subr.mxu0 0.0
  %6788 = vmatpush2.msra.mxu0 0.0
  %6789 = vmatprep.subr.mxu0 0.0
  %6790 = vmatpush2.msra.mxu0 0.0
  %6791 = vmatprep.subr.mxu0 0.0
  %6792 = vmatpush2.msra.mxu0 0.0
  %6793 = vmatprep.subr.mxu0 0.0
  %6794 = vmatpush2.msra.mxu0 0.0
  %6795 = vmatprep.subr.mxu0 0.0
  %6796 = vmatpush2.msra.mxu0 0.0
  %6797 = vmatprep.subr.mxu0 0.0
  %6798 = vmatpush2.msra.mxu0 0.0
  %6799 = vmatprep.subr.mxu0 0.0
  %6800 = vmatpush2.msra.mxu0 0.0
  %6801 = vmatprep.subr.mxu0 0.0
  %6802 = vmatpush2.msra.mxu0 0.0
  %6803 = vmatprep.subr.mxu0 0.0
  %6804 = vmatpush2.msra.mxu0 0.0
  %6805 = vmatprep.subr.mxu0 0.0
  %6806 = vmatpush2.msra.mxu0 0.0
  %6807 = vmatprep.subr.mxu0 0.0
  %6808 = vmatpush2.msra.mxu0 0.0
  %6809 = vmatprep.subr.mxu0 0.0
  %6810 = vmatpush2.msra.mxu0 0.0
  %6811 = vmatprep.subr.mxu0 0.0
  %6812 = vmatpush2.msra.mxu0 0.0
  %6813 = vmatprep.subr.mxu0 0.0
  %6814 = vmatpush2.msra.mxu0 0.0
  %6815 = vmatprep.subr.mxu0 0.0
  %6816 = vmatpush2.msra.mxu0 0.0
  %6817 = vmatprep.subr.mxu0 0.0
  %6818 = vmatpush2.msra.mxu0 0.0
  %6819 = vmatprep.mubr.f32.mxu0 0.0
  %6820 = vmatmul.mubr.f32.gmra.mxu0 %v6682
  %v6821 = vpop.f32.mrf.mxu0
  %v6822 = vadd.f32 0.0, %v6821
  %v6823 = vpop.f32.mrf.mxu0
  %6824 = vdwg.mxu0
  %v6825 = vadd.f32 %v6422, %v6751
  %v6826 = vxor.u32 %v6825, 2147483648
  %v6827 = vmul.f32 %v6826, 1.442695
  %v6828 = vpow.pop %v6827
  %v6829 = vadd.f32 %v6828, 1.0
  %v6830 = vrcp.pop %v6829
  %v6831 = vmul.f32 1.0, %v6830
  %v6832 = vadd.f32 %v6424, %v6753
  %v6833 = vxor.u32 %v6832, 2147483648
  %v6834 = vmul.f32 %v6833, 1.442695
  %v6835 = vpow.pop %v6834
  %v6836 = vadd.f32 %v6835, 1.0
  %v6837 = vrcp.pop %v6836
  %v6838 = vmul.f32 1.0, %v6837
  %v6839 = vadd.f32 %v6822, %v6671
  %v6840 = vmul.f32 %v6831, %v6839
  %v6841 = vadd.f32 %v6504, %v6840
  %v6842 = vtanh.pop %v6841
  %v6843 = vsub.f32 1.0, %v6838
  %v6844 = vmul.f32 %v6843, %v6842
  %v6845 = vmul.f32 %v6838, %v6680
  %v6846 = vadd.f32 %v6844, %v6845
  %v6848 = vsel %vm3042, %v6846, 0
  %6850 = vmatprep.subr.mxu0 0.0
  %6851 = vmatpush1.msra.mxu0 0.0
  %6852 = vmatprep.subr.mxu0 0.0
  %6853 = vmatpush1.msra.mxu0 0.0
  %6854 = vmatprep.subr.mxu0 0.0
  %6855 = vmatpush1.msra.mxu0 0.0
  %6856 = vmatprep.subr.mxu0 0.0
  %6857 = vmatpush1.msra.mxu0 0.0
  %6858 = vmatprep.subr.mxu0 0.0
  %6859 = vmatpush1.msra.mxu0 0.0
  %6860 = vmatprep.subr.mxu0 0.0
  %6861 = vmatpush1.msra.mxu0 0.0
  %6862 = vmatprep.subr.mxu0 0.0
  %6863 = vmatpush1.msra.mxu0 0.0
  %6864 = vmatprep.subr.mxu0 0.0
  %6865 = vmatpush1.msra.mxu0 0.0
  %6866 = vmatprep.subr.mxu0 0.0
  %6867 = vmatpush1.msra.mxu0 0.0
  %6868 = vmatprep.subr.mxu0 0.0
  %6869 = vmatpush1.msra.mxu0 0.0
  %6870 = vmatprep.subr.mxu0 %v6318
  %6871 = vmatpush1.msra.mxu0 %v6317
  %6872 = vmatprep.subr.mxu0 %v6315
  %6873 = vmatpush1.msra.mxu0 %v6314
  %6874 = vmatprep.subr.mxu0 %v6312
  %6875 = vmatpush1.msra.mxu0 %v6311
  %6876 = vmatprep.subr.mxu0 %v6309
  %6877 = vmatpush1.msra.mxu0 %v6308
  %6878 = vmatprep.subr.mxu0 %v6306
  %6879 = vmatpush1.msra.mxu0 %v6305
  %6880 = vmatprep.subr.mxu0 %v6303
  %6881 = vmatpush1.msra.mxu0 %v6302
  %6882 = vmatprep.subr.mxu0 0.0
  %6883 = vmatpush2.msra.mxu0 0.0
  %6884 = vmatprep.subr.mxu0 0.0
  %6885 = vmatpush2.msra.mxu0 0.0
  %6886 = vmatprep.subr.mxu0 0.0
  %6887 = vmatpush2.msra.mxu0 0.0
  %6888 = vmatprep.subr.mxu0 0.0
  %6889 = vmatpush2.msra.mxu0 0.0
  %6890 = vmatprep.subr.mxu0 0.0
  %6891 = vmatpush2.msra.mxu0 0.0
  %6892 = vmatprep.subr.mxu0 0.0
  %6893 = vmatpush2.msra.mxu0 0.0
  %6894 = vmatprep.subr.mxu0 0.0
  %6895 = vmatpush2.msra.mxu0 0.0
  %6896 = vmatprep.subr.mxu0 0.0
  %6897 = vmatpush2.msra.mxu0 0.0
  %6898 = vmatprep.subr.mxu0 0.0
  %6899 = vmatpush2.msra.mxu0 0.0
  %6900 = vmatprep.subr.mxu0 0.0
  %6901 = vmatpush2.msra.mxu0 0.0
  %6902 = vmatprep.subr.mxu0 0.0
  %6903 = vmatpush2.msra.mxu0 0.0
  %6904 = vmatprep.subr.mxu0 0.0
  %6905 = vmatpush2.msra.mxu0 0.0
  %6906 = vmatprep.subr.mxu0 0.0
  %6907 = vmatpush2.msra.mxu0 0.0
  %6908 = vmatprep.subr.mxu0 0.0
  %6909 = vmatpush2.msra.mxu0 0.0
  %6910 = vmatprep.subr.mxu0 0.0
  %6911 = vmatpush2.msra.mxu0 0.0
  %6912 = vmatprep.subr.mxu0 0.0
  %6913 = vmatpush2.msra.mxu0 0.0
  %6914 = vmatprep.mubr.f32.mxu0 0.0
  %6915 = vmatmul.mubr.f32.gmra.mxu0 %v6848
  %v6916 = vpop.f32.mrf.mxu0
  %v6917 = vadd.f32 0.0, %v6916
  %v6918 = vpop.f32.mrf.mxu0
  %v6919 = vadd.f32 0.0, %v6918
  %6920 = vdwg.mxu0
  %6921 = vmatprep.subr.mxu0 0.0
  %6922 = vmatpush1.msra.mxu0 0.0
  %6923 = vmatprep.subr.mxu0 0.0
  %6924 = vmatpush1.msra.mxu0 0.0
  %6925 = vmatprep.subr.mxu0 0.0
  %6926 = vmatpush1.msra.mxu0 0.0
  %6927 = vmatprep.subr.mxu0 0.0
  %6928 = vmatpush1.msra.mxu0 0.0
  %6929 = vmatprep.subr.mxu0 0.0
  %6930 = vmatpush1.msra.mxu0 0.0
  %6931 = vmatprep.subr.mxu0 0.0
  %6932 = vmatpush1.msra.mxu0 0.0
  %6933 = vmatprep.subr.mxu0 0.0
  %6934 = vmatpush1.msra.mxu0 0.0
  %6935 = vmatprep.subr.mxu0 0.0
  %6936 = vmatpush1.msra.mxu0 0.0
  %6937 = vmatprep.subr.mxu0 0.0
  %6938 = vmatpush1.msra.mxu0 0.0
  %6939 = vmatprep.subr.mxu0 0.0
  %6940 = vmatpush1.msra.mxu0 0.0
  %6941 = vmatprep.subr.mxu0 0.0
  %6942 = vmatpush1.msra.mxu0 %v6319
  %6943 = vmatprep.subr.mxu0 0.0
  %6944 = vmatpush1.msra.mxu0 %v6316
  %6945 = vmatprep.subr.mxu0 0.0
  %6946 = vmatpush1.msra.mxu0 %v6313
  %6947 = vmatprep.subr.mxu0 0.0
  %6948 = vmatpush1.msra.mxu0 %v6310
  %6949 = vmatprep.subr.mxu0 0.0
  %6950 = vmatpush1.msra.mxu0 %v6307
  %6951 = vmatprep.subr.mxu0 0.0
  %6952 = vmatpush1.msra.mxu0 %v6304
  %6953 = vmatprep.subr.mxu0 0.0
  %6954 = vmatpush2.msra.mxu0 0.0
  %6955 = vmatprep.subr.mxu0 0.0
  %6956 = vmatpush2.msra.mxu0 0.0
  %6957 = vmatprep.subr.mxu0 0.0
  %6958 = vmatpush2.msra.mxu0 0.0
  %6959 = vmatprep.subr.mxu0 0.0
  %6960 = vmatpush2.msra.mxu0 0.0
  %6961 = vmatprep.subr.mxu0 0.0
  %6962 = vmatpush2.msra.mxu0 0.0
  %6963 = vmatprep.subr.mxu0 0.0
  %6964 = vmatpush2.msra.mxu0 0.0
  %6965 = vmatprep.subr.mxu0 0.0
  %6966 = vmatpush2.msra.mxu0 0.0
  %6967 = vmatprep.subr.mxu0 0.0
  %6968 = vmatpush2.msra.mxu0 0.0
  %6969 = vmatprep.subr.mxu0 0.0
  %6970 = vmatpush2.msra.mxu0 0.0
  %6971 = vmatprep.subr.mxu0 0.0
  %6972 = vmatpush2.msra.mxu0 0.0
  %6973 = vmatprep.subr.mxu0 0.0
  %6974 = vmatpush2.msra.mxu0 0.0
  %6975 = vmatprep.subr.mxu0 0.0
  %6976 = vmatpush2.msra.mxu0 0.0
  %6977 = vmatprep.subr.mxu0 0.0
  %6978 = vmatpush2.msra.mxu0 0.0
  %6979 = vmatprep.subr.mxu0 0.0
  %6980 = vmatpush2.msra.mxu0 0.0
  %6981 = vmatprep.subr.mxu0 0.0
  %6982 = vmatpush2.msra.mxu0 0.0
  %6983 = vmatprep.subr.mxu0 0.0
  %6984 = vmatpush2.msra.mxu0 0.0
  %6985 = vmatprep.mubr.f32.mxu0 0.0
  %6986 = vmatmul.mubr.f32.gmra.mxu0 %v6848
  %v6987 = vpop.f32.mrf.mxu0
  %v6988 = vadd.f32 0.0, %v6987
  %v6989 = vpop.f32.mrf.mxu0
  %6990 = vdwg.mxu0
  %v6991 = vadd.f32 %v6428, %v6917
  %v6992 = vxor.u32 %v6991, 2147483648
  %v6993 = vmul.f32 %v6992, 1.442695
  %v6994 = vpow.pop %v6993
  %v6995 = vadd.f32 %v6994, 1.0
  %v6996 = vrcp.pop %v6995
  %v6997 = vmul.f32 1.0, %v6996
  %v6998 = vadd.f32 %v6430, %v6919
  %v6999 = vxor.u32 %v6998, 2147483648
  %v7000 = vmul.f32 %v6999, 1.442695
  %v7001 = vpow.pop %v7000
  %v7002 = vadd.f32 %v7001, 1.0
  %v7003 = vrcp.pop %v7002
  %v7004 = vmul.f32 1.0, %v7003
  %v7005 = vadd.f32 %v6988, %v6671
  %v7006 = vmul.f32 %v6997, %v7005
  %v7007 = vadd.f32 %v6509, %v7006
  %v7008 = vtanh.pop %v7007
  %v7009 = vsub.f32 1.0, %v7004
  %v7010 = vmul.f32 %v7009, %v7008
  %v7011 = vmul.f32 %v7004, %v6846
  %v7012 = vadd.f32 %v7010, %v7011
  %v7013 = vld [vmem:[%s2] sm:$0xff]
  %v7014 = vsub.f32 %v7013, 50.0
  %v7015 = vrcp.pop 100.0
  %v7016 = vmul.f32 %v7014, %v7015
  %v7017 = vld [vmem:[%s11] sm:$0x1f]
  %v7018 = vld [vmem:[%s12] sm:$0x1]
  %v7020 = vlaneseq
  %v7021 = vshrl.u32 %v7020, 7
  %v7022 = vsub.s32 0, %v7021
  %v7023 = vrot.slane %v7018, %v7022
  %vm7025 = vcmask 39936
  %v7027 = vsel %vm7025, %v7016, 0
  %vm7029 = vcmask 1044480
  %v7031 = vsel %vm7029, %v7017, 0
  %7033 = vmatprep.subr.mxu0 0.0
  %7034 = vmatpush1.msra.mxu0 0.0
  %7035 = vmatprep.subr.mxu0 0.0
  %7036 = vmatpush1.msra.mxu0 0.0
  %7037 = vmatprep.subr.mxu0 0.0
  %7038 = vmatpush1.msra.mxu0 0.0
  %7039 = vmatprep.subr.mxu0 0.0
  %7040 = vmatpush1.msra.mxu0 0.0
  %7041 = vmatprep.subr.mxu0 0.0
  %7042 = vmatpush1.msra.mxu0 0.0
  %7043 = vmatprep.subr.mxu0 0.0
  %7044 = vmatpush1.msra.mxu0 0.0
  %7045 = vmatprep.subr.mxu0 0.0
  %7046 = vmatpush1.msra.mxu0 0.0
  %7047 = vmatprep.subr.mxu0 0.0
  %7048 = vmatpush1.msra.mxu0 0.0
  %7049 = vmatprep.subr.mxu0 0.0
  %7050 = vmatpush1.msra.mxu0 0.0
  %7051 = vmatprep.subr.mxu0 0.0
  %7052 = vmatpush1.msra.mxu0 0.0
  %7053 = vmatprep.subr.mxu0 0.0
  %7054 = vmatpush1.msra.mxu0 0.0
  %7055 = vmatprep.subr.mxu0 0.0
  %7056 = vmatpush1.msra.mxu0 0.0
  %7057 = vmatprep.subr.mxu0 0.0
  %7058 = vmatpush1.msra.mxu0 0.0
  %7059 = vmatprep.subr.mxu0 0.0
  %7060 = vmatpush1.msra.mxu0 0.0
  %7061 = vmatprep.subr.mxu0 0.0
  %7062 = vmatpush1.msra.mxu0 0.0
  %7063 = vmatprep.subr.mxu0 0.0
  %7064 = vmatpush1.msra.mxu0 %v7031
  %7065 = vmatprep.subr.mxu0 0.0
  %7066 = vmatpush2.msra.mxu0 0.0
  %7067 = vmatprep.subr.mxu0 0.0
  %7068 = vmatpush2.msra.mxu0 0.0
  %7069 = vmatprep.subr.mxu0 0.0
  %7070 = vmatpush2.msra.mxu0 0.0
  %7071 = vmatprep.subr.mxu0 0.0
  %7072 = vmatpush2.msra.mxu0 0.0
  %7073 = vmatprep.subr.mxu0 0.0
  %7074 = vmatpush2.msra.mxu0 0.0
  %7075 = vmatprep.subr.mxu0 0.0
  %7076 = vmatpush2.msra.mxu0 0.0
  %7077 = vmatprep.subr.mxu0 0.0
  %7078 = vmatpush2.msra.mxu0 0.0
  %7079 = vmatprep.subr.mxu0 0.0
  %7080 = vmatpush2.msra.mxu0 0.0
  %7081 = vmatprep.subr.mxu0 0.0
  %7082 = vmatpush2.msra.mxu0 0.0
  %7083 = vmatprep.subr.mxu0 0.0
  %7084 = vmatpush2.msra.mxu0 0.0
  %7085 = vmatprep.subr.mxu0 0.0
  %7086 = vmatpush2.msra.mxu0 0.0
  %7087 = vmatprep.subr.mxu0 0.0
  %7088 = vmatpush2.msra.mxu0 0.0
  %7089 = vmatprep.subr.mxu0 0.0
  %7090 = vmatpush2.msra.mxu0 0.0
  %7091 = vmatprep.subr.mxu0 0.0
  %7092 = vmatpush2.msra.mxu0 0.0
  %7093 = vmatprep.subr.mxu0 0.0
  %7094 = vmatpush2.msra.mxu0 0.0
  %7095 = vmatprep.subr.mxu0 0.0
  %7096 = vmatpush2.msra.mxu0 0.0
  %7097 = vmatprep.mubr.f32.mxu0 0.0
  %7098 = vmatmul.mubr.f32.gmra.mxu0 %v7027
  %v7099 = vpop.f32.mrf.mxu0
  %v7100 = vadd.f32 %v7023, %v7099
  %v7101 = vpop.f32.mrf.mxu0
  %7102 = vdwg.mxu0
  %v7103 = vmax.f32 %v7100, 0.0
  %v7104 = vld [vmem:[%s13] sm:$0xff]
  %v7105 = vld [vmem:[%s13 + $0x8] sm:$0xff]
  %v7106 = vld [vmem:[%s13 + $0x10] sm:$0xff]
  %v7107 = vld [vmem:[%s13 + $0x18] sm:$0xff]
  %v7108 = vld [vmem:[%s14] sm:$0x1]
  %v7110 = vlaneseq
  %v7111 = vshrl.u32 %v7110, 7
  %v7112 = vsub.s32 0, %v7111
  %v7113 = vrot.slane %v7108, %v7112
  %v7116 = vsel %vm727, %v7103, 0
  %7118 = vmatprep.subr.mxu0 0.0
  %7119 = vmatpush1.msra.mxu0 0.0
  %7120 = vmatprep.subr.mxu0 0.0
  %7121 = vmatpush1.msra.mxu0 0.0
  %7122 = vmatprep.subr.mxu0 0.0
  %7123 = vmatpush1.msra.mxu0 0.0
  %7124 = vmatprep.subr.mxu0 0.0
  %7125 = vmatpush1.msra.mxu0 0.0
  %7126 = vmatprep.subr.mxu0 0.0
  %7127 = vmatpush1.msra.mxu0 0.0
  %7128 = vmatprep.subr.mxu0 0.0
  %7129 = vmatpush1.msra.mxu0 0.0
  %7130 = vmatprep.subr.mxu0 0.0
  %7131 = vmatpush1.msra.mxu0 0.0
  %7132 = vmatprep.subr.mxu0 0.0
  %7133 = vmatpush1.msra.mxu0 0.0
  %7134 = vmatprep.subr.mxu0 0.0
  %7135 = vmatpush1.msra.mxu0 0.0
  %7136 = vmatprep.subr.mxu0 0.0
  %7137 = vmatpush1.msra.mxu0 0.0
  %7138 = vmatprep.subr.mxu0 0.0
  %7139 = vmatpush1.msra.mxu0 0.0
  %7140 = vmatprep.subr.mxu0 0.0
  %7141 = vmatpush1.msra.mxu0 0.0
  %7142 = vmatprep.subr.mxu0 0.0
  %7143 = vmatpush1.msra.mxu0 %v7107
  %7144 = vmatprep.subr.mxu0 0.0
  %7145 = vmatpush1.msra.mxu0 %v7106
  %7146 = vmatprep.subr.mxu0 0.0
  %7147 = vmatpush1.msra.mxu0 %v7105
  %7148 = vmatprep.subr.mxu0 0.0
  %7149 = vmatpush1.msra.mxu0 %v7104
  %7150 = vmatprep.subr.mxu0 0.0
  %7151 = vmatpush2.msra.mxu0 0.0
  %7152 = vmatprep.subr.mxu0 0.0
  %7153 = vmatpush2.msra.mxu0 0.0
  %7154 = vmatprep.subr.mxu0 0.0
  %7155 = vmatpush2.msra.mxu0 0.0
  %7156 = vmatprep.subr.mxu0 0.0
  %7157 = vmatpush2.msra.mxu0 0.0
  %7158 = vmatprep.subr.mxu0 0.0
  %7159 = vmatpush2.msra.mxu0 0.0
  %7160 = vmatprep.subr.mxu0 0.0
  %7161 = vmatpush2.msra.mxu0 0.0
  %7162 = vmatprep.subr.mxu0 0.0
  %7163 = vmatpush2.msra.mxu0 0.0
  %7164 = vmatprep.subr.mxu0 0.0
  %7165 = vmatpush2.msra.mxu0 0.0
  %7166 = vmatprep.subr.mxu0 0.0
  %7167 = vmatpush2.msra.mxu0 0.0
  %7168 = vmatprep.subr.mxu0 0.0
  %7169 = vmatpush2.msra.mxu0 0.0
  %7170 = vmatprep.subr.mxu0 0.0
  %7171 = vmatpush2.msra.mxu0 0.0
  %7172 = vmatprep.subr.mxu0 0.0
  %7173 = vmatpush2.msra.mxu0 0.0
  %7174 = vmatprep.subr.mxu0 0.0
  %7175 = vmatpush2.msra.mxu0 0.0
  %7176 = vmatprep.subr.mxu0 0.0
  %7177 = vmatpush2.msra.mxu0 0.0
  %7178 = vmatprep.subr.mxu0 0.0
  %7179 = vmatpush2.msra.mxu0 0.0
  %7180 = vmatprep.subr.mxu0 0.0
  %7181 = vmatpush2.msra.mxu0 0.0
  %7182 = vmatprep.mubr.f32.mxu0 0.0
  %7183 = vmatmul.mubr.f32.gmra.mxu0 %v7116
  %v7184 = vpop.f32.mrf.mxu0
  %v7185 = vadd.f32 %v7113, %v7184
  %v7186 = vpop.f32.mrf.mxu0
  %7187 = vdwg.mxu0
  %v7188 = vmax.f32 %v7185, 0.0
  %7190 = vrot.lane.b32.xlu0 %v7012, 48
  %v7191 = vpop.permute.xlu0 %7190
  %7194 = vrot.lane.b32.xlu0 %v7188, 96
  %v7195 = vpop.permute.xlu0 %7194
  %v7197 = vsel %vm3042, %v3546, %v7191
  %vm7198 = vcmask 785408
  %v7199 = vsel %vm7198, %v7197, %v7195
  %v7200 = vld [vmem:[%s1] sm:$0xff]
  %7202 = vset.pattern.permute.xlu0 0
  %7203 = vperm.xlu0 %7202, %v7200
  %v7204 = vpop.permute.xlu0 %7203
  %v7206 = vmul.f32 %v7204, %v7199
  %vm7207 = vcmask 801792
  %v7208 = vsel %vm7207, %v7206, 0.0
  %v7209 = vrot.slane %v7208, 4
  %v7210 = vadd.f32 %v7208, %v7209
  %v7211 = vrot.slane %v7210, 2
  %v7212 = vadd.f32 %v7210, %v7211
  %v7213 = vrot.slane %v7212, 1
  %v7214 = vadd.f32 %v7212, %v7213
  %v7215 = vmul.f32 %v7206, %v7199
  %v7216 = vsel %vm7207, %v7215, 0.0
  %v7217 = vrot.slane %v7216, 4
  %v7218 = vadd.f32 %v7216, %v7217
  %v7219 = vrot.slane %v7218, 2
  %v7220 = vadd.f32 %v7218, %v7219
  %v7221 = vrot.slane %v7220, 1
  %v7222 = vadd.f32 %v7220, %v7221
  %v7223 = vmul.f32 %v7214, %v7214
  %v7224 = vsub.f32 %v7222, %v7223
  %7226 = vrot.lane.b32.xlu0 %v7224, 98
  %v7227 = vpop.permute.xlu0 %7226
  %v7229 = vsel %vm7207, %v7214, %v7227
  %v7230 = vld [vmem:[%s16] sm:$0xff]
  %v7231 = vld [vmem:[%s16 + $0x8] sm:$0xff]
  %v7232 = vld [vmem:[%s16 + $0x10] sm:$0xff]
  %v7233 = vld [vmem:[%s16 + $0x18] sm:$0xff]
  %v7234 = vld [vmem:[%s16 + $0x20] sm:$0xff]
  %v7235 = vld [vmem:[%s16 + $0x28] sm:$0xff]
  %v7236 = vld [vmem:[%s16 + $0x30] sm:$0xff]
  %v7237 = vld [vmem:[%s16 + $0x38] sm:$0xff]
  %v7238 = vld [vmem:[%s16 + $0x40] sm:$0xff]
  %v7239 = vld [vmem:[%s16 + $0x48] sm:$0xff]
  %v7240 = vld [vmem:[%s16 + $0x50] sm:$0xff]
  %v7241 = vld [vmem:[%s16 + $0x58] sm:$0xff]
  %v7242 = vld [vmem:[%s16 + $0x60] sm:$0x3]
  %v7243 = vld [vmem:[%s15] sm:$0xff]
  %v7244 = vld [vmem:[%s15 + $0x8] sm:$0xff]
  %v7245 = vld [vmem:[%s15 + $0x10] sm:$0xff]
  %v7246 = vld [vmem:[%s15 + $0x18] sm:$0xff]
  %v7247 = vld [vmem:[%s15 + $0x20] sm:$0xff]
  %v7248 = vld [vmem:[%s15 + $0x28] sm:$0xff]
  %v7249 = vld [vmem:[%s15 + $0x30] sm:$0xff]
  %v7250 = vld [vmem:[%s15 + $0x38] sm:$0xff]
  %v7251 = vld [vmem:[%s15 + $0x40] sm:$0xff]
  %v7252 = vld [vmem:[%s15 + $0x48] sm:$0xff]
  %v7253 = vld [vmem:[%s15 + $0x50] sm:$0xff]
  %v7254 = vld [vmem:[%s15 + $0x58] sm:$0xff]
  %v7255 = vld [vmem:[%s15 + $0x60] sm:$0xff]
  %v7256 = vld [vmem:[%s15 + $0x68] sm:$0xff]
  %v7257 = vld [vmem:[%s15 + $0x70] sm:$0xff]
  %v7258 = vld [vmem:[%s15 + $0x78] sm:$0xff]
  %v7259 = vld [vmem:[%s15 + $0x80] sm:$0xff]
  %v7260 = vld [vmem:[%s15 + $0x88] sm:$0xff]
  %v7261 = vld [vmem:[%s15 + $0x90] sm:$0xff]
  %v7262 = vld [vmem:[%s15 + $0x98] sm:$0xff]
  %v7263 = vld [vmem:[%s15 + $0xa0] sm:$0xff]
  %v7264 = vld [vmem:[%s15 + $0xa8] sm:$0xff]
  %v7265 = vld [vmem:[%s15 + $0xb0] sm:$0xff]
  %v7266 = vld [vmem:[%s15 + $0xb8] sm:$0xff]
  %v7267 = vld [vmem:[%s15 + $0xc0] sm:$0xf]
  %vm7268 = vcmask 556032
  %v7269 = vsel %vm7268, %v7227, 0
  %vm7271 = vcmask 1043456
  %v7273 = vsel %vm7271, %v7267, 0
  %7275 = vmatprep.subr.mxu0 0.0
  %7276 = vmatpush1.msra.mxu0 %v7258
  %7277 = vmatprep.subr.mxu0 0.0
  %7278 = vmatpush1.msra.mxu0 %v7257
  %7279 = vmatprep.subr.mxu0 0.0
  %7280 = vmatpush1.msra.mxu0 %v7256
  %7281 = vmatprep.subr.mxu0 0.0
  %7282 = vmatpush1.msra.mxu0 %v7255
  %7283 = vmatprep.subr.mxu0 0.0
  %7284 = vmatpush1.msra.mxu0 %v7254
  %7285 = vmatprep.subr.mxu0 0.0
  %7286 = vmatpush1.msra.mxu0 %v7253
  %7287 = vmatprep.subr.mxu0 0.0
  %7288 = vmatpush1.msra.mxu0 %v7252
  %7289 = vmatprep.subr.mxu0 0.0
  %7290 = vmatpush1.msra.mxu0 %v7251
  %7291 = vmatprep.subr.mxu0 0.0
  %7292 = vmatpush1.msra.mxu0 %v7250
  %7293 = vmatprep.subr.mxu0 0.0
  %7294 = vmatpush1.msra.mxu0 %v7249
  %7295 = vmatprep.subr.mxu0 0.0
  %7296 = vmatpush1.msra.mxu0 %v7248
  %7297 = vmatprep.subr.mxu0 0.0
  %7298 = vmatpush1.msra.mxu0 %v7247
  %7299 = vmatprep.subr.mxu0 0.0
  %7300 = vmatpush1.msra.mxu0 %v7246
  %7301 = vmatprep.subr.mxu0 0.0
  %7302 = vmatpush1.msra.mxu0 %v7245
  %7303 = vmatprep.subr.mxu0 0.0
  %7304 = vmatpush1.msra.mxu0 %v7244
  %7305 = vmatprep.subr.mxu0 0.0
  %7306 = vmatpush1.msra.mxu0 %v7243
  %7307 = vmatprep.subr.mxu0 0.0
  %7308 = vmatpush2.msra.mxu0 0.0
  %7309 = vmatprep.subr.mxu0 0.0
  %7310 = vmatpush2.msra.mxu0 0.0
  %7311 = vmatprep.subr.mxu0 0.0
  %7312 = vmatpush2.msra.mxu0 0.0
  %7313 = vmatprep.subr.mxu0 0.0
  %7314 = vmatpush2.msra.mxu0 0.0
  %7315 = vmatprep.subr.mxu0 0.0
  %7316 = vmatpush2.msra.mxu0 0.0
  %7317 = vmatprep.subr.mxu0 0.0
  %7318 = vmatpush2.msra.mxu0 0.0
  %7319 = vmatprep.subr.mxu0 0.0
  %7320 = vmatpush2.msra.mxu0 0.0
  %7321 = vmatprep.subr.mxu0 0.0
  %7322 = vmatpush2.msra.mxu0 %v7273
  %7323 = vmatprep.subr.mxu0 0.0
  %7324 = vmatpush2.msra.mxu0 %v7266
  %7325 = vmatprep.subr.mxu0 0.0
  %7326 = vmatpush2.msra.mxu0 %v7265
  %7327 = vmatprep.subr.mxu0 0.0
  %7328 = vmatpush2.msra.mxu0 %v7264
  %7329 = vmatprep.subr.mxu0 0.0
  %7330 = vmatpush2.msra.mxu0 %v7263
  %7331 = vmatprep.subr.mxu0 0.0
  %7332 = vmatpush2.msra.mxu0 %v7262
  %7333 = vmatprep.subr.mxu0 0.0
  %7334 = vmatpush2.msra.mxu0 %v7261
  %7335 = vmatprep.subr.mxu0 0.0
  %7336 = vmatpush2.msra.mxu0 %v7260
  %7337 = vmatprep.subr.mxu0 0.0
  %7338 = vmatpush2.msra.mxu0 %v7259
  %7339 = vmatprep.mubr.f32.mxu0 %v7269
  %7340 = vmatmul.mubr.f32.gmra.mxu0 %v7229
  %v7341 = vpop.f32.mrf.mxu0
  %v7342 = vadd.f32 0.0, %v7341
  %v7343 = vpop.f32.mrf.mxu0
  %7344 = vdwg.mxu0
  %v7345 = vlaneseq
  %v7346 = vshrl.u32 %v7345, 7
  %v7347 = vsub.s32 0, %v7346
  %v7348 = vrot.slane %v7342, %v7347
  %v7350 = vsel %vm7207, %v7199, 0
  %vm7352 = vcmask 1041408
  %v7354 = vsel %vm7352, %v7242, 0
  %7356 = vmatprep.subr.mxu0 0.0
  %7357 = vmatpush1.msra.mxu0 0.0
  %7358 = vmatprep.subr.mxu0 0.0
  %7359 = vmatpush1.msra.mxu0 0.0
  %7360 = vmatprep.subr.mxu0 0.0
  %7361 = vmatpush1.msra.mxu0 0.0
  %7362 = vmatprep.subr.mxu0 0.0
  %7363 = vmatpush1.msra.mxu0 %v7354
  %7364 = vmatprep.subr.mxu0 0.0
  %7365 = vmatpush1.msra.mxu0 %v7241
  %7366 = vmatprep.subr.mxu0 0.0
  %7367 = vmatpush1.msra.mxu0 %v7240
  %7368 = vmatprep.subr.mxu0 0.0
  %7369 = vmatpush1.msra.mxu0 %v7239
  %7370 = vmatprep.subr.mxu0 0.0
  %7371 = vmatpush1.msra.mxu0 %v7238
  %7372 = vmatprep.subr.mxu0 0.0
  %7373 = vmatpush1.msra.mxu0 %v7237
  %7374 = vmatprep.subr.mxu0 0.0
  %7375 = vmatpush1.msra.mxu0 %v7236
  %7376 = vmatprep.subr.mxu0 0.0
  %7377 = vmatpush1.msra.mxu0 %v7235
  %7378 = vmatprep.subr.mxu0 0.0
  %7379 = vmatpush1.msra.mxu0 %v7234
  %7380 = vmatprep.subr.mxu0 0.0
  %7381 = vmatpush1.msra.mxu0 %v7233
  %7382 = vmatprep.subr.mxu0 0.0
  %7383 = vmatpush1.msra.mxu0 %v7232
  %7384 = vmatprep.subr.mxu0 0.0
  %7385 = vmatpush1.msra.mxu0 %v7231
  %7386 = vmatprep.subr.mxu0 0.0
  %7387 = vmatpush1.msra.mxu0 %v7230
  %7388 = vmatprep.subr.mxu0 0.0
  %7389 = vmatpush2.msra.mxu0 0.0
  %7390 = vmatprep.subr.mxu0 0.0
  %7391 = vmatpush2.msra.mxu0 0.0
  %7392 = vmatprep.subr.mxu0 0.0
  %7393 = vmatpush2.msra.mxu0 0.0
  %7394 = vmatprep.subr.mxu0 0.0
  %7395 = vmatpush2.msra.mxu0 0.0
  %7396 = vmatprep.subr.mxu0 0.0
  %7397 = vmatpush2.msra.mxu0 0.0
  %7398 = vmatprep.subr.mxu0 0.0
  %7399 = vmatpush2.msra.mxu0 0.0
  %7400 = vmatprep.subr.mxu0 0.0
  %7401 = vmatpush2.msra.mxu0 0.0
  %7402 = vmatprep.subr.mxu0 0.0
  %7403 = vmatpush2.msra.mxu0 0.0
  %7404 = vmatprep.subr.mxu0 0.0
  %7405 = vmatpush2.msra.mxu0 0.0
  %7406 = vmatprep.subr.mxu0 0.0
  %7407 = vmatpush2.msra.mxu0 0.0
  %7408 = vmatprep.subr.mxu0 0.0
  %7409 = vmatpush2.msra.mxu0 0.0
  %7410 = vmatprep.subr.mxu0 0.0
  %7411 = vmatpush2.msra.mxu0 0.0
  %7412 = vmatprep.subr.mxu0 0.0
  %7413 = vmatpush2.msra.mxu0 0.0
  %7414 = vmatprep.subr.mxu0 0.0
  %7415 = vmatpush2.msra.mxu0 0.0
  %7416 = vmatprep.subr.mxu0 0.0
  %7417 = vmatpush2.msra.mxu0 0.0
  %7418 = vmatprep.subr.mxu0 0.0
  %7419 = vmatpush2.msra.mxu0 0.0
  %7420 = vmatprep.mubr.f32.mxu0 0.0
  %7421 = vmatmul.mubr.f32.gmra.mxu0 %v7350
  %v7422 = vpop.f32.mrf.mxu0
  %v7423 = vadd.f32 %v7348, %v7422
  %v7424 = vpop.f32.mrf.mxu0
  %7425 = vdwg.mxu0
  %v7426 = vld [vmem:[%s17] sm:$0x1]
  %v7428 = vlaneseq
  %v7429 = vshrl.u32 %v7428, 7
  %v7430 = vsub.s32 0, %v7429
  %v7431 = vrot.slane %v7426, %v7430
  %v7433 = vadd.f32 %v7423, %v7431
  %v7434 = vmax.f32 %v7433, 0.0
  %v7435 = vld [vmem:[%s18] sm:$0xff]
  %v7436 = vld [vmem:[%s18 + $0x8] sm:$0xff]
  %v7437 = vld [vmem:[%s18 + $0x10] sm:$0xff]
  %v7438 = vld [vmem:[%s18 + $0x18] sm:$0xff]
  %v7439 = vld [vmem:[#allocation3] sm:$0x1]
  %v7441 = vlaneseq
  %v7442 = vshrl.u32 %v7441, 7
  %v7443 = vsub.s32 0, %v7442
  %v7444 = vrot.slane %v7439, %v7443
  %v7447 = vsel %vm727, %v7434, 0
  %7449 = vmatprep.subr.mxu0 0.0
  %7450 = vmatpush1.msra.mxu0 0.0
  %7451 = vmatprep.subr.mxu0 0.0
  %7452 = vmatpush1.msra.mxu0 0.0
  %7453 = vmatprep.subr.mxu0 0.0
  %7454 = vmatpush1.msra.mxu0 0.0
  %7455 = vmatprep.subr.mxu0 0.0
  %7456 = vmatpush1.msra.mxu0 0.0
  %7457 = vmatprep.subr.mxu0 0.0
  %7458 = vmatpush1.msra.mxu0 0.0
  %7459 = vmatprep.subr.mxu0 0.0
  %7460 = vmatpush1.msra.mxu0 0.0
  %7461 = vmatprep.subr.mxu0 0.0
  %7462 = vmatpush1.msra.mxu0 0.0
  %7463 = vmatprep.subr.mxu0 0.0
  %7464 = vmatpush1.msra.mxu0 0.0
  %7465 = vmatprep.subr.mxu0 0.0
  %7466 = vmatpush1.msra.mxu0 0.0
  %7467 = vmatprep.subr.mxu0 0.0
  %7468 = vmatpush1.msra.mxu0 0.0
  %7469 = vmatprep.subr.mxu0 0.0
  %7470 = vmatpush1.msra.mxu0 0.0
  %7471 = vmatprep.subr.mxu0 0.0
  %7472 = vmatpush1.msra.mxu0 0.0
  %7473 = vmatprep.subr.mxu0 0.0
  %7474 = vmatpush1.msra.mxu0 %v7438
  %7475 = vmatprep.subr.mxu0 0.0
  %7476 = vmatpush1.msra.mxu0 %v7437
  %7477 = vmatprep.subr.mxu0 0.0
  %7478 = vmatpush1.msra.mxu0 %v7436
  %7479 = vmatprep.subr.mxu0 0.0
  %7480 = vmatpush1.msra.mxu0 %v7435
  %7481 = vmatprep.subr.mxu0 0.0
  %7482 = vmatpush2.msra.mxu0 0.0
  %7483 = vmatprep.subr.mxu0 0.0
  %7484 = vmatpush2.msra.mxu0 0.0
  %7485 = vmatprep.subr.mxu0 0.0
  %7486 = vmatpush2.msra.mxu0 0.0
  %7487 = vmatprep.subr.mxu0 0.0
  %7488 = vmatpush2.msra.mxu0 0.0
  %7489 = vmatprep.subr.mxu0 0.0
  %7490 = vmatpush2.msra.mxu0 0.0
  %7491 = vmatprep.subr.mxu0 0.0
  %7492 = vmatpush2.msra.mxu0 0.0
  %7493 = vmatprep.subr.mxu0 0.0
  %7494 = vmatpush2.msra.mxu0 0.0
  %7495 = vmatprep.subr.mxu0 0.0
  %7496 = vmatpush2.msra.mxu0 0.0
  %7497 = vmatprep.subr.mxu0 0.0
  %7498 = vmatpush2.msra.mxu0 0.0
  %7499 = vmatprep.subr.mxu0 0.0
  %7500 = vmatpush2.msra.mxu0 0.0
  %7501 = vmatprep.subr.mxu0 0.0
  %7502 = vmatpush2.msra.mxu0 0.0
  %7503 = vmatprep.subr.mxu0 0.0
  %7504 = vmatpush2.msra.mxu0 0.0
  %7505 = vmatprep.subr.mxu0 0.0
  %7506 = vmatpush2.msra.mxu0 0.0
  %7507 = vmatprep.subr.mxu0 0.0
  %7508 = vmatpush2.msra.mxu0 0.0
  %7509 = vmatprep.subr.mxu0 0.0
  %7510 = vmatpush2.msra.mxu0 0.0
  %7511 = vmatprep.subr.mxu0 0.0
  %7512 = vmatpush2.msra.mxu0 0.0
  %7513 = vmatprep.mubr.f32.mxu0 0.0
  %7514 = vmatmul.mubr.f32.gmra.mxu0 %v7447
  %v7515 = vpop.f32.mrf.mxu0
  %v7516 = vadd.f32 %v7444, %v7515
  %v7517 = vpop.f32.mrf.mxu0
  %7518 = vdwg.mxu0
  %vm7519 = vcmask 7168
  %7520 = vst.msk [vmem:[%s20] sm:$0xff] %vm7519, %v7516
  // Predicated region
  $region82: #{forward.1} parent=0 // pred_check
    _
  $region83: #{forward.1} parent=0 // pred_check_branch
    %7522 = sbr.rel (0) target = $region85
  $region84: #{forward.1} parent=0 // pred_region
    _
  $region85: #{forward.1} parent=0 // pred_fallthru
    _
  // Predicated region
  $region86: #{forward.1} parent=0 // pred_check
    _
  $region87: #{forward.1} parent=0 // pred_check_branch
    %7524 = sbr.rel (0) target = $region89
  $region88: #{forward.1} parent=0 // pred_region
    _
  $region89: #{forward.1} parent=0 // pred_fallthru
    _

</llo_original>
